<compile_context>
chip_gen: v6e
topology: v6e:2x2x1
jax: 0.10.0
libtpu: 0.0.40
codegen_flags: <defaults>
</compile_context>

<pallas_src>
import functools
import math
from typing import NamedTuple

import jax
import jax.numpy as jnp
from jax.experimental import pallas as pl
from jax.experimental.pallas import tpu as pltpu

LANE = 128
_EPS = 1e-5

# output-phase p (0/1) x in-window tap d (0/1) -> ConvTranspose kernel index
_KIDX = ((3, 1), (2, 0))


# ----------------------------------------------------------------------------
# small helpers
# ----------------------------------------------------------------------------
def _round_up(x, m):
    return ((x + m - 1) // m) * m


def _axis_taps(s):
    """For padded-window coordinate s in {0,1,2}: list of (phase, kernel_idx)."""
    taps = []
    for p in (0, 1):
        d = s - p
        if d in (0, 1):
            taps.append((p, _KIDX[p][d]))
    return taps


def _window_plan():
    """9 shifted windows; each carries the (py, px, ky, kx) taps that read it."""
    plan = []
    for sy in range(3):
        for sx in range(3):
            taps = []
            for (py, ky) in _axis_taps(sy):
                for (px, kx) in _axis_taps(sx):
                    taps.append((py, px, ky, kx))
            plan.append((sy, sx, taps))
    return plan


def _vmem_capacity_bytes():
    try:
        return int(pltpu.get_tpu_info().vmem_capacity_bytes)
    except Exception:
        return 64 * 1024 * 1024          # conservative (v7x per-TensorCore)


def _pick_divisor(total, per_unit_bytes, budget_bytes, need_mult8=False):
    """Largest divisor of `total` fitting the budget (smallest legal one otherwise)."""
    best = total
    for d in range(total, 0, -1):
        if total % d:
            continue
        if need_mult8 and d != total and d % 8 != 0:
            continue
        best = d
        if d * per_unit_bytes <= budget_bytes:
            return d
    return best


def _const_spec(shape, itemsize):
    """Grid-invariant block; single-buffered when large (halves VMEM residency)."""
    index_map = lambda *_: (0,) * len(shape)
    if itemsize * math.prod(shape) >= 4 * 1024 * 1024:
        try:
            return pl.BlockSpec(shape, index_map, pipeline_mode=pl.Buffered(1))
        except Exception:
            pass
    return pl.BlockSpec(shape, index_map)


# ----------------------------------------------------------------------------
# Pallas kernels
# ----------------------------------------------------------------------------
def _first_layer_kernel(z_ref, w_ref, out_ref, stats_ref):
    # ConvTranspose2d(latent -> C, k=4, s=1, p=0) on a 1x1 input == one GEMM.
    tb = z_ref.shape[0]
    c = stats_ref.shape[-1]
    acc = jnp.dot(z_ref[...], w_ref[...], preferred_element_type=jnp.float32)
    out_ref[...] = acc.astype(out_ref.dtype)             # (tb, 16*C) bf16 pre-act
    a2 = acc.reshape(tb * 16, c)                          # rows = (b, oy, ox)
    stats_ref[:, 0:1, :] = jnp.sum(a2, axis=0, keepdims=True)[None]
    stats_ref[:, 1:2, :] = jnp.sum(a2 * a2, axis=0, keepdims=True)[None]


def _convt_fused_kernel(x_ref, scale_ref, shift_ref, w_ref, *rest,
                        h, w, n, relu_in, use_stats, use_bias, store_c):
    """Fused [producer BN(+ReLU)] + ConvTranspose2d(k=4, s=2, p=1), one batch tile.

    x_ref   : (TB, H, W, Cin)      bf16  producer pre-activation (unpadded)
    scale/shift : (1, Cin)         f32   producer's folded BatchNorm
    w_ref   : (Cin, 16*Cout)       bf16  window-grouped packed taps
    bias_ref: (1, Cout)            f32   (final layer only)
    out_ref : (TB, H, 2, W, 2*store_c)   phase-packed pre-activation
    stats_ref: (1, 2, Cout)        f32   per-tile (sum, sumsq)  (BN layers only)
    xpad_ref: (TB, H+2, W+2, Cin)  bf16  VMEM halo scratch
    """
    rest = list(rest)
    bias_ref = rest.pop(0) if use_bias else None
    out_ref = rest.pop(0)
    stats_ref = rest.pop(0) if use_stats else None
    xpad_ref = rest.pop(0)

    tb = x_ref.shape[0]
    c_in = x_ref.shape[-1]
    m = tb * h * w

    # ---- halo: zero the 1-pixel border every step (cheap, megacore-safe),
    #      then write the BN(+ReLU)'d activation into the scratch interior ----
    zero_row = jnp.zeros((tb, 1, w + 2, c_in), xpad_ref.dtype)
    zero_col = jnp.zeros((tb, h + 2, 1, c_in), xpad_ref.dtype)
    xpad_ref[:, 0:1, :, :] = zero_row
    xpad_ref[:, h + 1:h + 2, :, :] = zero_row
    xpad_ref[:, :, 0:1, :] = zero_col
    xpad_ref[:, :, w + 1:w + 2, :] = zero_col

    xin = x_ref[...].astype(jnp.float32)
    xin = (xin * scale_ref[...].reshape(1, 1, 1, c_in)
           + shift_ref[...].reshape(1, 1, 1, c_in))
    if relu_in:
        xin = jnp.maximum(xin, 0.0)
    xpad_ref[:, 1:h + 1, 1:w + 1, :] = xin.astype(xpad_ref.dtype)

    # ---- sub-pixel transposed conv: 9 shifted windows, one wide GEMM each ----
    accs = [[None, None], [None, None]]
    off = 0
    for (sy, sx, taps) in _window_plan():
        xs = xpad_ref[:, sy:sy + h, sx:sx + w, :].reshape(m, c_in)
        width = len(taps) * n
        res = jnp.dot(xs, w_ref[:, off:off + width],
                      preferred_element_type=jnp.float32)
        for j, (py, px, _, _) in enumerate(taps):
            chunk = res[:, j * n:(j + 1) * n]
            accs[py][px] = chunk if accs[py][px] is None else accs[py][px] + chunk
        off += width

    # ---- epilogue: BN partial stats / bias, phase-packed store ----
    if use_stats:
        s_acc = jnp.zeros((1, n), jnp.float32)
        ss_acc = jnp.zeros((1, n), jnp.float32)
    for py in range(2):
        for px in range(2):
            acc = accs[py][px]
            if use_stats:
                s_acc = s_acc + jnp.sum(acc, axis=0, keepdims=True)
                ss_acc = ss_acc + jnp.sum(acc * acc, axis=0, keepdims=True)
            sl = acc[:, :store_c]
            if use_bias:
                sl = sl + bias_ref[...][:, :store_c]
            out_ref[:, :, py:py + 1, :, px * store_c:(px + 1) * store_c] = (
                sl.reshape(tb, h, 1, w, store_c).astype(out_ref.dtype))
    if use_stats:
        stats_ref[:, 0:1, :] = s_acc[None]
        stats_ref[:, 1:2, :] = ss_acc[None]


# ----------------------------------------------------------------------------
# pallas_call wrappers
# ----------------------------------------------------------------------------
def first_layer_pallas(z, w1, c_out_p):
    b, latent = z.shape
    ncol = w1.shape[1]
    vmem = _vmem_capacity_bytes()
    per_b = 2 * latent * 2 + 2 * ncol * 2 + 2 * ncol * 4   # z + bf16 out (x2) + f32 acc
    budget = max(2 * 1024 * 1024, int(0.22 * vmem) - 2 * w1.size * 2)
    tb = _pick_divisor(b, per_b, budget, need_mult8=True)
    grid = (b // tb,)
    return pl.pallas_call(
        _first_layer_kernel,
        out_shape=(jax.ShapeDtypeStruct((b, ncol), jnp.bfloat16),
                   jax.ShapeDtypeStruct((grid[0], 2, c_out_p), jnp.float32)),
        grid=grid,
        in_specs=[pl.BlockSpec((tb, latent), lambda i: (i, 0)),
                  _const_spec((latent, ncol), 2)],
        out_specs=(pl.BlockSpec((tb, ncol), lambda i: (i, 0)),
                   pl.BlockSpec((1, 2, c_out_p), lambda i: (i, 0, 0))),
        compiler_params=pltpu.CompilerParams(
            dimension_semantics=("parallel",),
            vmem_limit_bytes=min(int(0.8 * vmem), 100 * 1024 * 1024)),
    )(z, w1)


def convt_fused_pallas(x, scale, shift, wpack, bias, *,
                       relu_in, use_stats, store_c, out_dtype):
    b, h, w, c_in = x.shape
    n = wpack.shape[1] // 16
    use_bias = bias is not None
    out_last = 2 * store_c
    out_isize = jnp.dtype(out_dtype).itemsize

    vmem = _vmem_capacity_bytes()
    per_b = (2 * h * w * c_in * 2                      # x block (double buffered)
             + (h + 2) * (w + 2) * c_in * 2            # halo'd VMEM scratch
             + 2 * (h * 2 * w * out_last) * out_isize  # out block (double buffered)
             + 4 * h * w * n * 4                       # 4 f32 phase accumulators
             + h * w * c_in * 2                        # window slab temporary
             + h * w * 4 * n * 4)                      # widest GEMM result temporary
    fixed = 2 * wpack.size * 2 + 16 * 1024             # packed weights + small vectors
    budget = max(2 * 1024 * 1024, int(0.22 * vmem) - fixed)
    tb = _pick_divisor(b, per_b, budget)
    grid = (b // tb,)

    kernel = functools.partial(_convt_fused_kernel, h=h, w=w, n=n,
                               relu_in=relu_in, use_stats=use_stats,
                               use_bias=use_bias, store_c=store_c)

    in_specs = [pl.BlockSpec((tb, h, w, c_in), lambda i: (i, 0, 0, 0)),
                pl.BlockSpec((1, c_in), lambda i: (0, 0)),
                pl.BlockSpec((1, c_in), lambda i: (0, 0)),
                _const_spec((c_in, 16 * n), 2)]
    args = [x, scale, shift, wpack]
    if use_bias:
        in_specs.append(pl.BlockSpec((1, n), lambda i: (0, 0)))
        args.append(bias)

    out_shape = [jax.ShapeDtypeStruct((b, h, 2, w, out_last), out_dtype)]
    out_specs = [pl.BlockSpec((tb, h, 2, w, out_last),
                              lambda i: (i, 0, 0, 0, 0))]
    if use_stats:
        out_shape.append(jax.ShapeDtypeStruct((grid[0], 2, n), jnp.float32))
        out_specs.append(pl.BlockSpec((1, 2, n), lambda i: (i, 0, 0)))

    res = pl.pallas_call(
        kernel,
        out_shape=tuple(out_shape),
        grid=grid,
        in_specs=in_specs,
        out_specs=tuple(out_specs),
        scratch_shapes=[pltpu.VMEM((tb, h + 2, w + 2, c_in), jnp.bfloat16)],
        compiler_params=pltpu.CompilerParams(
            dimension_semantics=("parallel",),
            vmem_limit_bytes=min(int(0.8 * vmem), 100 * 1024 * 1024)),
    )(*args)
    return res if use_stats else res[0]


def _finalize_bn(stats, count, gamma, beta):
    # PyTorch training-mode BN: biased variance, eps=1e-5, folded to scale/shift.
    s = jnp.sum(stats[:, 0, :], axis=0)
    ss = jnp.sum(stats[:, 1, :], axis=0)
    mean = s / count
    var = jnp.maximum(ss / count - mean * mean, 0.0)
    scale = gamma * jax.lax.rsqrt(var + _EPS)
    shift = beta - mean * scale
    return scale, shift


# ----------------------------------------------------------------------------
# Generator: parameter init (kernel-ready layout) + forward
# ----------------------------------------------------------------------------
class LayerCfg(NamedTuple):
    first: bool
    c_out_p: int
    use_bn: bool
    use_relu: bool


def init_generator_params(key, n_channels, latent_dim, image_size, base_filters):
    n_blocks = int(math.log2(image_size / 4)) - 1
    max_filters = base_filters * 2 ** n_blocks
    block_filters = list(reversed([base_filters * 2 ** b for b in range(n_blocks)]))

    raw_cfg = [dict(c_in=latent_dim, c_out=max_filters, first=True,
                    use_bias=False, use_bn=True, use_relu=False)]
    for f in block_filters:
        raw_cfg.append(dict(c_in=f * 2, c_out=f, first=False,
                            use_bias=False, use_bn=True, use_relu=True))
    raw_cfg.append(dict(c_in=base_filters, c_out=n_channels, first=False,
                        use_bias=True, use_bn=False, use_relu=False))

    cfgs, params, raw = [], [], []
    for rc in raw_cfg:
        key, kw, kg, kb = jax.random.split(key, 4)
        c_in, c_out = rc["c_in"], rc["c_out"]
        c_in_p = c_in if rc["first"] else _round_up(c_in, LANE)
        c_out_p = _round_up(c_out, LANE)

        w = 0.02 * jax.random.normal(kw, (c_in, c_out, 4, 4), jnp.float32)
        w_p = jnp.pad(w, ((0, c_in_p - c_in), (0, c_out_p - c_out),
                          (0, 0), (0, 0)))

        layer, rlayer = {}, {"w": w}
        if rc["first"]:
            # out[b, oy, ox, co] = sum_ci z[b, ci] * w[ci, co, oy, ox]
            layer["w1"] = jnp.transpose(w_p, (0, 2, 3, 1)).reshape(
                c_in_p, 16 * c_out_p).astype(jnp.bfloat16)
        else:
            w_t = jnp.transpose(w_p, (2, 3, 0, 1))        # (ky, kx, Cin_p, Cout_p)
            cols = []
            for (_, _, taps) in _window_plan():           # window-grouped packing
                for (_, _, ky, kx) in taps:
                    cols.append(w_t[ky, kx])
            layer["wpack"] = jnp.concatenate(cols, axis=1).astype(jnp.bfloat16)
        if rc["use_bias"]:
            bias = 0.02 * jax.random.normal(kb, (c_out,), jnp.float32)
            layer["bias"] = jnp.pad(bias, (0, c_out_p - c_out)).reshape(1, c_out_p)
            rlayer["bias"] = bias
        if rc["use_bn"]:
            gamma = 1.0 + 0.02 * jax.random.normal(kg, (c_out,), jnp.float32)
            beta = jnp.zeros((c_out,), jnp.float32)
            # gamma padded with 0 -> padded channels stay exactly 0 after BN.
            layer["gamma"] = jnp.pad(gamma, (0, c_out_p - c_out))
            layer["beta"] = jnp.pad(beta, (0, c_out_p - c_out))
            rlayer["gamma"], rlayer["beta"] = gamma, beta

        cfgs.append(LayerCfg(first=rc["first"], c_out_p=c_out_p,
                             use_bn=rc["use_bn"], use_relu=rc["use_relu"]))
        params.append(layer)
        raw.append(rlayer)
    return tuple(cfgs), params, raw


@functools.partial(jax.jit, static_argnums=(0, 3))
def generator_forward(cfgs, params, z, n_channels):
    # z: (B, latent), treated as (B, latent, 1, 1) like x.view(*x.size(), 1, 1)
    b = z.shape[0]
    cfg0, p0 = cfgs[0], params[0]
    pre, stats = first_layer_pallas(z.astype(jnp.bfloat16), p0["w1"], cfg0.c_out_p)
    scale, shift = _finalize_bn(stats, b * 16, p0["gamma"], p0["beta"])
    x = pre.reshape(b, 4, 4, cfg0.c_out_p)                # NHWC bf16 pre-activation
    relu_in = cfg0.use_relu                               # first block: BN, no ReLU

    for cfg, p in zip(cfgs[1:], params[1:]):
        _, h, w, _ = x.shape
        if cfg.use_bn:
            pre, stats = convt_fused_pallas(
                x, scale[None, :], shift[None, :], p["wpack"], None,
                relu_in=relu_in, use_stats=True, store_c=cfg.c_out_p,
                out_dtype=jnp.bfloat16)
            scale, shift = _finalize_bn(stats, b * 4 * h * w, p["gamma"], p["beta"])
            x = pre.reshape(b, 2 * h, 2 * w, cfg.c_out_p)  # contiguous reshape
            relu_in = cfg.use_relu
        else:
            out6 = convt_fused_pallas(
                x, scale[None, :], shift[None, :], p["wpack"], p["bias"],
                relu_in=relu_in, use_stats=False, store_c=n_channels,
                out_dtype=jnp.float32)
            img = out6.reshape(b, 2 * h, 2 * w, n_channels)
            # tanh on the 3 real channels only, fused by XLA with NHWC->NCHW
            return jnp.tanh(jnp.transpose(img, (0, 3, 1, 2)))
    raise AssertionError("generator must end with a non-BN (tanh) layer")


# ----------------------------------------------------------------------------
# pure-JAX f32 reference (for a loose self-check in __main__)
# ----------------------------------------------------------------------------
def _ref_conv_transpose(x, w, bias, stride, padding):
    b, cin, h, w_ = x.shape
    cout = w.shape[1]
    hout = (h - 1) * stride - 2 * padding + 4
    wout = (w_ - 1) * stride - 2 * padding + 4
    full = jnp.zeros((b, cout, hout + 2 * padding, wout + 2 * padding), jnp.float32)
    for ky in range(4):
        for kx in range(4):
            contrib = jnp.einsum("bihw,io->bohw", x, w[:, :, ky, kx])
            full = full.at[:, :, ky:ky + h * stride:stride,
                           kx:kx + w_ * stride:stride].add(contrib)
    out = full[:, :, padding:padding + hout, padding:padding + wout]
    if bias is not None:
        out = out + bias.reshape(1, -1, 1, 1)
    return out


def _reference_forward(raw, z):
    x = z.reshape(z.shape[0], z.shape[1], 1, 1).astype(jnp.float32)
    for i, layer in enumerate(raw):
        first = i == 0
        last = i == len(raw) - 1
        x = _ref_conv_transpose(x, layer["w"], layer.get("bias"),
                                1 if first else 2, 0 if first else 1)
        if not last:
            mean = jnp.mean(x, axis=(0, 2, 3), keepdims=True)
            var = jnp.mean((x - mean) ** 2, axis=(0, 2, 3), keepdims=True)
            x = (x - mean) * jax.lax.rsqrt(var + _EPS)
            x = (x * layer["gamma"].reshape(1, -1, 1, 1)
                 + layer["beta"].reshape(1, -1, 1, 1))
            if not first:
                x = jnp.maximum(x, 0.0)
    return jnp.tanh(x)


if __name__ == "__main__":
    # Small but structurally faithful config: image_size=16 -> layers
    #   ConvT(16->16, s=1, p=0) + BN           -> 4x4
    #   ConvT(16-> 8, s=2, p=1) + BN + ReLU    -> 8x8
    #   ConvT( 8-> 3, s=2, p=1, bias) + Tanh   -> 16x16
    n_channels, latent_dim, image_size, base_filters = 3, 16, 16, 8
    batch = 2

    key = jax.random.PRNGKey(0)
    kp, kz = jax.random.split(key)
    cfgs, params, raw = init_generator_params(kp, n_channels, latent_dim,
                                              image_size, base_filters)
    z = jax.random.normal(kz, (batch, latent_dim), jnp.float32)

    out = generator_forward(cfgs, params, z, n_channels)
    out = jax.block_until_ready(out)

    assert out.shape == (batch, n_channels, image_size, image_size), out.shape
    assert bool(jnp.all(jnp.isfinite(out)))
    assert bool(jnp.all(jnp.abs(out) <= 1.0 + 1e-6))      # tanh output range

    # loose check vs a pure-JAX f32 reference (kernel path runs bf16 on the MXU)
    ref = _reference_forward(raw, z)
    max_err = float(jnp.max(jnp.abs(out - ref)))
    assert max_err < 5e-2, f"max abs err vs reference: {max_err}"

    print("KERNEL_OK")
</pallas_src>

<mosaic_0001>
module attributes {stable_mosaic.version = 11 : i64} {
  func.func @_first_layer_kernel(%arg0: i32, %arg1: memref<2x16xbf16, #tpu.memory_space<vmem>>, %arg2: memref<16x2048xbf16, #tpu.memory_space<vmem>>, %arg3: memref<2x2048xbf16, #tpu.memory_space<vmem>>, %arg4: memref<1x2x128xf32, #tpu.memory_space<vmem>>) attributes {dimension_semantics = [#tpu.dimension_semantics<parallel>], iteration_bounds = array<i64: 1>, scalar_prefetch = 0 : i64, scratch_operands = 0 : i64, tpu.core_type = #tpu.core_type<tc>, window_params = [{transform_indices = @transform_0, window_bounds = array<i64: 2, 16>}, {pipeline_mode = #tpu.pipeline_mode<synchronous>, transform_indices = @transform_1, window_bounds = array<i64: 16, 2048>}, {transform_indices = @transform_2, window_bounds = array<i64: 2, 2048>}, {transform_indices = @transform_3, window_bounds = array<i64: 1, 2, 128>}]} {
    %c0 = arith.constant 0 : index
    %c0_0 = arith.constant 0 : index
    %0 = vector.load %arg1[%c0, %c0_0] : memref<2x16xbf16, #tpu.memory_space<vmem>>, vector<2x16xbf16>
    %c0_1 = arith.constant 0 : index
    %c0_2 = arith.constant 0 : index
    %1 = vector.load %arg2[%c0_1, %c0_2] : memref<16x2048xbf16, #tpu.memory_space<vmem>>, vector<16x2048xbf16>
    %cst = arith.constant dense<0.000000e+00> : vector<2x2048xf32>
    %2 = tpu.matmul %0, %1, %cst {dimension_numbers = #tpu.dot_dimension_numbers<[1], [0], [0], [1], [0, 0, 1, 1], [], []>} : vector<2x16xbf16>, vector<16x2048xbf16>, vector<2x2048xf32> -> vector<2x2048xf32>
    %3 = arith.truncf %2 : vector<2x2048xf32> to vector<2x2048xbf16>
    %c0_3 = arith.constant 0 : index
    %c0_4 = arith.constant 0 : index
    %4 = vector.load %arg3[%c0_3, %c0_4] : memref<2x2048xbf16, #tpu.memory_space<vmem>>, vector<2x2048xbf16>
    tpu.vector_store %arg3[%c0_3, %c0_4], %3 {strides = array<i32>} : memref<2x2048xbf16, #tpu.memory_space<vmem>>, vector<2x2048xbf16>,
    %5 = vector.shape_cast %2 : vector<2x2048xf32> to vector<32x128xf32>
    %cst_5 = arith.constant dense<0.000000e+00> : vector<128xf32>
    %6 = vector.multi_reduction <add>, %5, %cst_5 [0] : vector<32x128xf32> to vector<128xf32>
    %7 = vector.shape_cast %6 : vector<128xf32> to vector<1x128xf32>
    %8 = vector.shape_cast %7 : vector<1x128xf32> to vector<1x1x128xf32>
    %c0_6 = arith.constant 0 : index
    %c0_7 = arith.constant 0 : index
    %c0_8 = arith.constant 0 : index
    %9 = vector.load %arg4[%c0_6, %c0_7, %c0_8] : memref<1x2x128xf32, #tpu.memory_space<vmem>>, vector<1x1x128xf32>
    tpu.vector_store %arg4[%c0_6, %c0_7, %c0_8], %8 {strides = array<i32>} : memref<1x2x128xf32, #tpu.memory_space<vmem>>, vector<1x1x128xf32>,
    %10 = arith.mulf %5, %5 : vector<32x128xf32>
    %cst_9 = arith.constant dense<0.000000e+00> : vector<128xf32>
    %11 = vector.multi_reduction <add>, %10, %cst_9 [0] : vector<32x128xf32> to vector<128xf32>
    %12 = vector.shape_cast %11 : vector<128xf32> to vector<1x128xf32>
    %13 = vector.shape_cast %12 : vector<1x128xf32> to vector<1x1x128xf32>
    %c0_10 = arith.constant 0 : index
    %c1 = arith.constant 1 : index
    %c0_11 = arith.constant 0 : index
    %14 = vector.load %arg4[%c0_10, %c1, %c0_11] : memref<1x2x128xf32, #tpu.memory_space<vmem>>, vector<1x1x128xf32>
    tpu.vector_store %arg4[%c0_10, %c1, %c0_11], %13 {strides = array<i32>} : memref<1x2x128xf32, #tpu.memory_space<vmem>>, vector<1x1x128xf32>,
    return
  }
  func.func @transform_0(%arg0: i32) -> (i32, i32) {
    %c0_i32 = arith.constant 0 : i32
    %c0_i32_0 = arith.constant 0 : i32
    return %arg0, %c0_i32 : i32, i32
  }
  func.func @transform_1(%arg0: i32) -> (i32, i32) {
    %c0_i32 = arith.constant 0 : i32
    %c0_i32_0 = arith.constant 0 : i32
    %c0_i32_1 = arith.constant 0 : i32
    return %c0_i32, %c0_i32_0 : i32, i32
  }
  func.func @transform_2(%arg0: i32) -> (i32, i32) {
    %c0_i32 = arith.constant 0 : i32
    %c0_i32_0 = arith.constant 0 : i32
    return %arg0, %c0_i32 : i32, i32
  }
  func.func @transform_3(%arg0: i32) -> (i32, i32, i32) {
    %c0_i32 = arith.constant 0 : i32
    %c0_i32_0 = arith.constant 0 : i32
    %c0_i32_1 = arith.constant 0 : i32
    return %arg0, %c0_i32, %c0_i32_0 : i32, i32, i32
  }
}

module attributes {stable_mosaic.version = 11 : i64} {
  func.func @_convt_fused_kernel(%arg0: i32, %arg1: memref<2x8x8x128xbf16, #tpu.memory_space<vmem>>, %arg2: memref<1x128xf32, #tpu.memory_space<vmem>>, %arg3: memref<1x128xf32, #tpu.memory_space<vmem>>, %arg4: memref<128x2048xbf16, #tpu.memory_space<vmem>>, %arg5: memref<1x128xf32, #tpu.memory_space<vmem>>, %arg6: memref<2x8x2x8x6xf32, #tpu.memory_space<vmem>>, %arg7: memref<2x10x10x128xbf16, #tpu.memory_space<vmem>>) attributes {dimension_semantics = [#tpu.dimension_semantics<parallel>], iteration_bounds = array<i64: 1>, scalar_prefetch = 0 : i64, scratch_operands = 1 : i64, tpu.core_type = #tpu.core_type<tc>, window_params = [{transform_indices = @transform_0, window_bounds = array<i64: 2, 8, 8, 128>}, {pipeline_mode = #tpu.pipeline_mode<synchronous>, transform_indices = @transform_1, window_bounds = array<i64: 1, 128>}, {pipeline_mode = #tpu.pipeline_mode<synchronous>, transform_indices = @transform_2, window_bounds = array<i64: 1, 128>}, {pipeline_mode = #tpu.pipeline_mode<synchronous>, transform_indices = @transform_3, window_bounds = array<i64: 128, 2048>}, {pipeline_mode = #tpu.pipeline_mode<synchronous>, transform_indices = @transform_4, window_bounds = array<i64: 1, 128>}, {transform_indices = @transform_5, window_bounds = array<i64: 2, 8, 2, 8, 6>}]} {
    %cst = arith.constant 0.000000e+00 : bf16
    %0 = vector.broadcast %cst : bf16 to vector<2x1x10x128xbf16>
    %cst_0 = arith.constant 0.000000e+00 : bf16
    %1 = vector.broadcast %cst_0 : bf16 to vector<2x10x1x128xbf16>
    %c0 = arith.constant 0 : index
    %c0_1 = arith.constant 0 : index
    %c0_2 = arith.constant 0 : index
    %c0_3 = arith.constant 0 : index
    %2 = vector.load %arg7[%c0, %c0_1, %c0_2, %c0_3] : memref<2x10x10x128xbf16, #tpu.memory_space<vmem>>, vector<2x1x10x128xbf16>
    tpu.vector_store %arg7[%c0, %c0_1, %c0_2, %c0_3], %0 {strides = array<i32>} : memref<2x10x10x128xbf16, #tpu.memory_space<vmem>>, vector<2x1x10x128xbf16>,
    %c0_4 = arith.constant 0 : index
    %c9 = arith.constant 9 : index
    %c0_5 = arith.constant 0 : index
    %c0_6 = arith.constant 0 : index
    %3 = vector.load %arg7[%c0_4, %c9, %c0_5, %c0_6] : memref<2x10x10x128xbf16, #tpu.memory_space<vmem>>, vector<2x1x10x128xbf16>
    tpu.vector_store %arg7[%c0_4, %c9, %c0_5, %c0_6], %0 {strides = array<i32>} : memref<2x10x10x128xbf16, #tpu.memory_space<vmem>>, vector<2x1x10x128xbf16>,
    %c0_7 = arith.constant 0 : index
    %c0_8 = arith.constant 0 : index
    %c0_9 = arith.constant 0 : index
    %c0_10 = arith.constant 0 : index
    %4 = vector.load %arg7[%c0_7, %c0_8, %c0_9, %c0_10] : memref<2x10x10x128xbf16, #tpu.memory_space<vmem>>, vector<2x10x1x128xbf16>
    tpu.vector_store %arg7[%c0_7, %c0_8, %c0_9, %c0_10], %1 {strides = array<i32>} : memref<2x10x10x128xbf16, #tpu.memory_space<vmem>>, vector<2x10x1x128xbf16>,
    %c0_11 = arith.constant 0 : index
    %c0_12 = arith.constant 0 : index
    %c9_13 = arith.constant 9 : index
    %c0_14 = arith.constant 0 : index
    %5 = vector.load %arg7[%c0_11, %c0_12, %c9_13, %c0_14] : memref<2x10x10x128xbf16, #tpu.memory_space<vmem>>, vector<2x10x1x128xbf16>
    tpu.vector_store %arg7[%c0_11, %c0_12, %c9_13, %c0_14], %1 {strides = array<i32>} : memref<2x10x10x128xbf16, #tpu.memory_space<vmem>>, vector<2x10x1x128xbf16>,
    %c0_15 = arith.constant 0 : index
    %c0_16 = arith.constant 0 : index
    %c0_17 = arith.constant 0 : index
    %c0_18 = arith.constant 0 : index
    %6 = vector.load %arg1[%c0_15, %c0_16, %c0_17, %c0_18] : memref<2x8x8x128xbf16, #tpu.memory_space<vmem>>, vector<2x8x8x128xbf16>
    %7 = arith.extf %6 : vector<2x8x8x128xbf16> to vector<2x8x8x128xf32>
    %c0_19 = arith.constant 0 : index
    %c0_20 = arith.constant 0 : index
    %8 = vector.load %arg2[%c0_19, %c0_20] : memref<1x128xf32, #tpu.memory_space<vmem>>, vector<1x128xf32>
    %9 = vector.shape_cast %8 : vector<1x128xf32> to vector<1x1x1x128xf32>
    %10 = vector.broadcast %9 : vector<1x1x1x128xf32> to vector<2x8x8x128xf32>
    %11 = arith.mulf %7, %10 : vector<2x8x8x128xf32>
    %c0_21 = arith.constant 0 : index
    %c0_22 = arith.constant 0 : index
    %12 = vector.load %arg3[%c0_21, %c0_22] : memref<1x128xf32, #tpu.memory_space<vmem>>, vector<1x128xf32>
    %13 = vector.shape_cast %12 : vector<1x128xf32> to vector<1x1x1x128xf32>
    %14 = vector.broadcast %13 : vector<1x1x1x128xf32> to vector<2x8x8x128xf32>
    %15 = arith.addf %11, %14 : vector<2x8x8x128xf32>
    %cst_23 = arith.constant 0.000000e+00 : f32
    %16 = vector.broadcast %cst_23 : f32 to vector<2x8x8x128xf32>
    %17 = arith.maximumf %15, %16 : vector<2x8x8x128xf32>
    %18 = arith.truncf %17 : vector<2x8x8x128xf32> to vector<2x8x8x128xbf16>
    %c0_24 = arith.constant 0 : index
    %c1 = arith.constant 1 : index
    %c1_25 = arith.constant 1 : index
    %c0_26 = arith.constant 0 : index
    %19 = vector.load %arg7[%c0_24, %c1, %c1_25, %c0_26] : memref<2x10x10x128xbf16, #tpu.memory_space<vmem>>, vector<2x8x8x128xbf16>
    tpu.vector_store %arg7[%c0_24, %c1, %c1_25, %c0_26], %18 {strides = array<i32>} : memref<2x10x10x128xbf16, #tpu.memory_space<vmem>>, vector<2x8x8x128xbf16>,
    %c0_27 = arith.constant 0 : index
    %c0_28 = arith.constant 0 : index
    %c0_29 = arith.constant 0 : index
    %c0_30 = arith.constant 0 : index
    %20 = vector.load %arg7[%c0_27, %c0_28, %c0_29, %c0_30] : memref<2x10x10x128xbf16, #tpu.memory_space<vmem>>, vector<2x8x8x128xbf16>
    %21 = vector.shape_cast %20 : vector<2x8x8x128xbf16> to vector<128x128xbf16>
    %c0_31 = arith.constant 0 : index
    %c0_32 = arith.constant 0 : index
    %22 = vector.load %arg4[%c0_31, %c0_32] : memref<128x2048xbf16, #tpu.memory_space<vmem>>, vector<128x128xbf16>
    %cst_33 = arith.constant dense<0.000000e+00> : vector<128x128xf32>
    %23 = tpu.matmul %21, %22, %cst_33 {dimension_numbers = #tpu.dot_dimension_numbers<[1], [0], [0], [1], [0, 0, 1, 1], [], []>} : vector<128x128xbf16>, vector<128x128xbf16>, vector<128x128xf32> -> vector<128x128xf32>
    %c0_34 = arith.constant 0 : index
    %c0_35 = arith.constant 0 : index
    %c1_36 = arith.constant 1 : index
    %c0_37 = arith.constant 0 : index
    %24 = vector.load %arg7[%c0_34, %c0_35, %c1_36, %c0_37] : memref<2x10x10x128xbf16, #tpu.memory_space<vmem>>, vector<2x8x8x128xbf16>
    %25 = vector.shape_cast %24 : vector<2x8x8x128xbf16> to vector<128x128xbf16>
    %c0_38 = arith.constant 0 : index
    %c128 = arith.constant 128 : index
    %26 = vector.load %arg4[%c0_38, %c128] : memref<128x2048xbf16, #tpu.memory_space<vmem>>, vector<128x256xbf16>
    %cst_39 = arith.constant dense<0.000000e+00> : vector<128x256xf32>
    %27 = tpu.matmul %25, %26, %cst_39 {dimension_numbers = #tpu.dot_dimension_numbers<[1], [0], [0], [1], [0, 0, 1, 1], [], []>} : vector<128x128xbf16>, vector<128x256xbf16>, vector<128x256xf32> -> vector<128x256xf32>
    %28 = vector.extract_strided_slice %27 {offsets = [0, 0], sizes = [128, 128], strides = [1, 1]} : vector<128x256xf32> to vector<128x128xf32>
    %29 = arith.addf %23, %28 : vector<128x128xf32>
    %30 = vector.extract_strided_slice %27 {offsets = [0, 128], sizes = [128, 128], strides = [1, 1]} : vector<128x256xf32> to vector<128x128xf32>
    %c0_40 = arith.constant 0 : index
    %c0_41 = arith.constant 0 : index
    %c2 = arith.constant 2 : index
    %c0_42 = arith.constant 0 : index
    %31 = vector.load %arg7[%c0_40, %c0_41, %c2, %c0_42] : memref<2x10x10x128xbf16, #tpu.memory_space<vmem>>, vector<2x8x8x128xbf16>
    %32 = vector.shape_cast %31 : vector<2x8x8x128xbf16> to vector<128x128xbf16>
    %c0_43 = arith.constant 0 : index
    %c384 = arith.constant 384 : index
    %33 = vector.load %arg4[%c0_43, %c384] : memref<128x2048xbf16, #tpu.memory_space<vmem>>, vector<128x128xbf16>
    %cst_44 = arith.constant dense<0.000000e+00> : vector<128x128xf32>
    %34 = tpu.matmul %32, %33, %cst_44 {dimension_numbers = #tpu.dot_dimension_numbers<[1], [0], [0], [1], [0, 0, 1, 1], [], []>} : vector<128x128xbf16>, vector<128x128xbf16>, vector<128x128xf32> -> vector<128x128xf32>
    %35 = arith.addf %30, %34 : vector<128x128xf32>
    %c0_45 = arith.constant 0 : index
    %c1_46 = arith.constant 1 : index
    %c0_47 = arith.constant 0 : index
    %c0_48 = arith.constant 0 : index
    %36 = vector.load %arg7[%c0_45, %c1_46, %c0_47, %c0_48] : memref<2x10x10x128xbf16, #tpu.memory_space<vmem>>, vector<2x8x8x128xbf16>
    %37 = vector.shape_cast %36 : vector<2x8x8x128xbf16> to vector<128x128xbf16>
    %c0_49 = arith.constant 0 : index
    %c512 = arith.constant 512 : index
    %38 = vector.load %arg4[%c0_49, %c512] : memref<128x2048xbf16, #tpu.memory_space<vmem>>, vector<128x256xbf16>
    %cst_50 = arith.constant dense<0.000000e+00> : vector<128x256xf32>
    %39 = tpu.matmul %37, %38, %cst_50 {dimension_numbers = #tpu.dot_dimension_numbers<[1], [0], [0], [1], [0, 0, 1, 1], [], []>} : vector<128x128xbf16>, vector<128x256xbf16>, vector<128x256xf32> -> vector<128x256xf32>
    %40 = vector.extract_strided_slice %39 {offsets = [0, 0], sizes = [128, 128], strides = [1, 1]} : vector<128x256xf32> to vector<128x128xf32>
    %41 = arith.addf %29, %40 : vector<128x128xf32>
    %42 = vector.extract_strided_slice %39 {offsets = [0, 128], sizes = [128, 128], strides = [1, 1]} : vector<128x256xf32> to vector<128x128xf32>
    %c0_51 = arith.constant 0 : index
    %c1_52 = arith.constant 1 : index
    %c1_53 = arith.constant 1 : index
    %c0_54 = arith.constant 0 : index
    %43 = vector.load %arg7[%c0_51, %c1_52, %c1_53, %c0_54] : memref<2x10x10x128xbf16, #tpu.memory_space<vmem>>, vector<2x8x8x128xbf16>
    %44 = vector.shape_cast %43 : vector<2x8x8x128xbf16> to vector<128x128xbf16>
    %c0_55 = arith.constant 0 : index
    %c768 = arith.constant 768 : index
    %45 = vector.load %arg4[%c0_55, %c768] : memref<128x2048xbf16, #tpu.memory_space<vmem>>, vector<128x512xbf16>
    %cst_56 = arith.constant dense<0.000000e+00> : vector<128x512xf32>
    %46 = tpu.matmul %44, %45, %cst_56 {dimension_numbers = #tpu.dot_dimension_numbers<[1], [0], [0], [1], [0, 0, 1, 1], [], []>} : vector<128x128xbf16>, vector<128x512xbf16>, vector<128x512xf32> -> vector<128x512xf32>
    %47 = vector.extract_strided_slice %46 {offsets = [0, 0], sizes = [128, 128], strides = [1, 1]} : vector<128x512xf32> to vector<128x128xf32>
    %48 = arith.addf %41, %47 : vector<128x128xf32>
    %49 = vector.extract_strided_slice %46 {offsets = [0, 128], sizes = [128, 128], strides = [1, 1]} : vector<128x512xf32> to vector<128x128xf32>
    %50 = arith.addf %35, %49 : vector<128x128xf32>
    %51 = vector.extract_strided_slice %46 {offsets = [0, 256], sizes = [128, 128], strides = [1, 1]} : vector<128x512xf32> to vector<128x128xf32>
    %52 = arith.addf %42, %51 : vector<128x128xf32>
    %53 = vector.extract_strided_slice %46 {offsets = [0, 384], sizes = [128, 128], strides = [1, 1]} : vector<128x512xf32> to vector<128x128xf32>
    %c0_57 = arith.constant 0 : index
    %c1_58 = arith.constant 1 : index
    %c2_59 = arith.constant 2 : index
    %c0_60 = arith.constant 0 : index
    %54 = vector.load %arg7[%c0_57, %c1_58, %c2_59, %c0_60] : memref<2x10x10x128xbf16, #tpu.memory_space<vmem>>, vector<2x8x8x128xbf16>
    %55 = vector.shape_cast %54 : vector<2x8x8x128xbf16> to vector<128x128xbf16>
    %c0_61 = arith.constant 0 : index
    %c1280 = arith.constant 1280 : index
    %56 = vector.load %arg4[%c0_61, %c1280] : memref<128x2048xbf16, #tpu.memory_space<vmem>>, vector<128x256xbf16>
    %cst_62 = arith.constant dense<0.000000e+00> : vector<128x256xf32>
    %57 = tpu.matmul %55, %56, %cst_62 {dimension_numbers = #tpu.dot_dimension_numbers<[1], [0], [0], [1], [0, 0, 1, 1], [], []>} : vector<128x128xbf16>, vector<128x256xbf16>, vector<128x256xf32> -> vector<128x256xf32>
    %58 = vector.extract_strided_slice %57 {offsets = [0, 0], sizes = [128, 128], strides = [1, 1]} : vector<128x256xf32> to vector<128x128xf32>
    %59 = arith.addf %50, %58 : vector<128x128xf32>
    %60 = vector.extract_strided_slice %57 {offsets = [0, 128], sizes = [128, 128], strides = [1, 1]} : vector<128x256xf32> to vector<128x128xf32>
    %61 = arith.addf %53, %60 : vector<128x128xf32>
    %c0_63 = arith.constant 0 : index
    %c2_64 = arith.constant 2 : index
    %c0_65 = arith.constant 0 : index
    %c0_66 = arith.constant 0 : index
    %62 = vector.load %arg7[%c0_63, %c2_64, %c0_65, %c0_66] : memref<2x10x10x128xbf16, #tpu.memory_space<vmem>>, vector<2x8x8x128xbf16>
    %63 = vector.shape_cast %62 : vector<2x8x8x128xbf16> to vector<128x128xbf16>
    %c0_67 = arith.constant 0 : index
    %c1536 = arith.constant 1536 : index
    %64 = vector.load %arg4[%c0_67, %c1536] : memref<128x2048xbf16, #tpu.memory_space<vmem>>, vector<128x128xbf16>
    %cst_68 = arith.constant dense<0.000000e+00> : vector<128x128xf32>
    %65 = tpu.matmul %63, %64, %cst_68 {dimension_numbers = #tpu.dot_dimension_numbers<[1], [0], [0], [1], [0, 0, 1, 1], [], []>} : vector<128x128xbf16>, vector<128x128xbf16>, vector<128x128xf32> -> vector<128x128xf32>
    %66 = arith.addf %52, %65 : vector<128x128xf32>
    %c0_69 = arith.constant 0 : index
    %c2_70 = arith.constant 2 : index
    %c1_71 = arith.constant 1 : index
    %c0_72 = arith.constant 0 : index
    %67 = vector.load %arg7[%c0_69, %c2_70, %c1_71, %c0_72] : memref<2x10x10x128xbf16, #tpu.memory_space<vmem>>, vector<2x8x8x128xbf16>
    %68 = vector.shape_cast %67 : vector<2x8x8x128xbf16> to vector<128x128xbf16>
    %c0_73 = arith.constant 0 : index
    %c1664 = arith.constant 1664 : index
    %69 = vector.load %arg4[%c0_73, %c1664] : memref<128x2048xbf16, #tpu.memory_space<vmem>>, vector<128x256xbf16>
    %cst_74 = arith.constant dense<0.000000e+00> : vector<128x256xf32>
    %70 = tpu.matmul %68, %69, %cst_74 {dimension_numbers = #tpu.dot_dimension_numbers<[1], [0], [0], [1], [0, 0, 1, 1], [], []>} : vector<128x128xbf16>, vector<128x256xbf16>, vector<128x256xf32> -> vector<128x256xf32>
    %71 = vector.extract_strided_slice %70 {offsets = [0, 0], sizes = [128, 128], strides = [1, 1]} : vector<128x256xf32> to vector<128x128xf32>
    %72 = arith.addf %66, %71 : vector<128x128xf32>
    %73 = vector.extract_strided_slice %70 {offsets = [0, 128], sizes = [128, 128], strides = [1, 1]} : vector<128x256xf32> to vector<128x128xf32>
    %74 = arith.addf %61, %73 : vector<128x128xf32>
    %c0_75 = arith.constant 0 : index
    %c2_76 = arith.constant 2 : index
    %c2_77 = arith.constant 2 : index
    %c0_78 = arith.constant 0 : index
    %75 = vector.load %arg7[%c0_75, %c2_76, %c2_77, %c0_78] : memref<2x10x10x128xbf16, #tpu.memory_space<vmem>>, vector<2x8x8x128xbf16>
    %76 = vector.shape_cast %75 : vector<2x8x8x128xbf16> to vector<128x128xbf16>
    %c0_79 = arith.constant 0 : index
    %c1920 = arith.constant 1920 : index
    %77 = vector.load %arg4[%c0_79, %c1920] : memref<128x2048xbf16, #tpu.memory_space<vmem>>, vector<128x128xbf16>
    %cst_80 = arith.constant dense<0.000000e+00> : vector<128x128xf32>
    %78 = tpu.matmul %76, %77, %cst_80 {dimension_numbers = #tpu.dot_dimension_numbers<[1], [0], [0], [1], [0, 0, 1, 1], [], []>} : vector<128x128xbf16>, vector<128x128xbf16>, vector<128x128xf32> -> vector<128x128xf32>
    %79 = arith.addf %74, %78 : vector<128x128xf32>
    %80 = vector.extract_strided_slice %48 {offsets = [0, 0], sizes = [128, 3], strides = [1, 1]} : vector<128x128xf32> to vector<128x3xf32>
    %c0_81 = arith.constant 0 : index
    %c0_82 = arith.constant 0 : index
    %81 = vector.load %arg5[%c0_81, %c0_82] : memref<1x128xf32, #tpu.memory_space<vmem>>, vector<1x128xf32>
    %82 = vector.extract_strided_slice %81 {offsets = [0, 0], sizes = [1, 3], strides = [1, 1]} : vector<1x128xf32> to vector<1x3xf32>
    %83 = vector.broadcast %82 : vector<1x3xf32> to vector<128x3xf32>
    %84 = arith.addf %80, %83 : vector<128x3xf32>
    %85 = vector.shape_cast %84 : vector<128x3xf32> to vector<2x8x1x8x3xf32>
    %c0_83 = arith.constant 0 : index
    %c0_84 = arith.constant 0 : index
    %c0_85 = arith.constant 0 : index
    %c0_86 = arith.constant 0 : index
    %c0_87 = arith.constant 0 : index
    %86 = vector.load %arg6[%c0_83, %c0_84, %c0_85, %c0_86, %c0_87] : memref<2x8x2x8x6xf32, #tpu.memory_space<vmem>>, vector<2x8x1x8x3xf32>
    tpu.vector_store %arg6[%c0_83, %c0_84, %c0_85, %c0_86, %c0_87], %85 {strides = array<i32>} : memref<2x8x2x8x6xf32, #tpu.memory_space<vmem>>, vector<2x8x1x8x3xf32>,
    %87 = vector.extract_strided_slice %59 {offsets = [0, 0], sizes = [128, 3], strides = [1, 1]} : vector<128x128xf32> to vector<128x3xf32>
    %c0_88 = arith.constant 0 : index
    %c0_89 = arith.constant 0 : index
    %88 = vector.load %arg5[%c0_88, %c0_89] : memref<1x128xf32, #tpu.memory_space<vmem>>, vector<1x128xf32>
    %89 = vector.extract_strided_slice %88 {offsets = [0, 0], sizes = [1, 3], strides = [1, 1]} : vector<1x128xf32> to vector<1x3xf32>
    %90 = vector.broadcast %89 : vector<1x3xf32> to vector<128x3xf32>
    %91 = arith.addf %87, %90 : vector<128x3xf32>
    %92 = vector.shape_cast %91 : vector<128x3xf32> to vector<2x8x1x8x3xf32>
    %c0_90 = arith.constant 0 : index
    %c0_91 = arith.constant 0 : index
    %c0_92 = arith.constant 0 : index
    %c0_93 = arith.constant 0 : index
    %c3 = arith.constant 3 : index
    %93 = vector.load %arg6[%c0_90, %c0_91, %c0_92, %c0_93, %c3] : memref<2x8x2x8x6xf32, #tpu.memory_space<vmem>>, vector<2x8x1x8x3xf32>
    tpu.vector_store %arg6[%c0_90, %c0_91, %c0_92, %c0_93, %c3], %92 {strides = array<i32>} : memref<2x8x2x8x6xf32, #tpu.memory_space<vmem>>, vector<2x8x1x8x3xf32>,
    %94 = vector.extract_strided_slice %72 {offsets = [0, 0], sizes = [128, 3], strides = [1, 1]} : vector<128x128xf32> to vector<128x3xf32>
    %c0_94 = arith.constant 0 : index
    %c0_95 = arith.constant 0 : index
    %95 = vector.load %arg5[%c0_94, %c0_95] : memref<1x128xf32, #tpu.memory_space<vmem>>, vector<1x128xf32>
    %96 = vector.extract_strided_slice %95 {offsets = [0, 0], sizes = [1, 3], strides = [1, 1]} : vector<1x128xf32> to vector<1x3xf32>
    %97 = vector.broadcast %96 : vector<1x3xf32> to vector<128x3xf32>
    %98 = arith.addf %94, %97 : vector<128x3xf32>
    %99 = vector.shape_cast %98 : vector<128x3xf32> to vector<2x8x1x8x3xf32>
    %c0_96 = arith.constant 0 : index
    %c0_97 = arith.constant 0 : index
    %c1_98 = arith.constant 1 : index
    %c0_99 = arith.constant 0 : index
    %c0_100 = arith.constant 0 : index
    %100 = vector.load %arg6[%c0_96, %c0_97, %c1_98, %c0_99, %c0_100] : memref<2x8x2x8x6xf32, #tpu.memory_space<vmem>>, vector<2x8x1x8x3xf32>
    tpu.vector_store %arg6[%c0_96, %c0_97, %c1_98, %c0_99, %c0_100], %99 {strides = array<i32>} : memref<2x8x2x8x6xf32, #tpu.memory_space<vmem>>, vector<2x8x1x8x3xf32>,
    %101 = vector.extract_strided_slice %79 {offsets = [0, 0], sizes = [128, 3], strides = [1, 1]} : vector<128x128xf32> to vector<128x3xf32>
    %c0_101 = arith.constant 0 : index
    %c0_102 = arith.constant 0 : index
    %102 = vector.load %arg5[%c0_101, %c0_102] : memref<1x128xf32, #tpu.memory_space<vmem>>, vector<1x128xf32>
    %103 = vector.extract_strided_slice %102 {offsets = [0, 0], sizes = [1, 3], strides = [1, 1]} : vector<1x128xf32> to vector<1x3xf32>
    %104 = vector.broadcast %103 : vector<1x3xf32> to vector<128x3xf32>
    %105 = arith.addf %101, %104 : vector<128x3xf32>
    %106 = vector.shape_cast %105 : vector<128x3xf32> to vector<2x8x1x8x3xf32>
    %c0_103 = arith.constant 0 : index
    %c0_104 = arith.constant 0 : index
    %c1_105 = arith.constant 1 : index
    %c0_106 = arith.constant 0 : index
    %c3_107 = arith.constant 3 : index
    %107 = vector.load %arg6[%c0_103, %c0_104, %c1_105, %c0_106, %c3_107] : memref<2x8x2x8x6xf32, #tpu.memory_space<vmem>>, vector<2x8x1x8x3xf32>
    tpu.vector_store %arg6[%c0_103, %c0_104, %c1_105, %c0_106, %c3_107], %106 {strides = array<i32>} : memref<2x8x2x8x6xf32, #tpu.memory_space<vmem>>, vector<2x8x1x8x3xf32>,
    return
  }
  func.func @transform_0(%arg0: i32) -> (i32, i32, i32, i32) {
    %c0_i32 = arith.constant 0 : i32
    %c0_i32_0 = arith.constant 0 : i32
    %c0_i32_1 = arith.constant 0 : i32
    %c0_i32_2 = arith.constant 0 : i32
    return %arg0, %c0_i32, %c0_i32_0, %c0_i32_1 : i32, i32, i32, i32
  }
  func.func @transform_1(%arg0: i32) -> (i32, i32) {
    %c0_i32 = arith.constant 0 : i32
    %c0_i32_0 = arith.constant 0 : i32
    %c0_i32_1 = arith.constant 0 : i32
    return %c0_i32, %c0_i32_0 : i32, i32
  }
  func.func @transform_2(%arg0: i32) -> (i32, i32) {
    %c0_i32 = arith.constant 0 : i32
    %c0_i32_0 = arith.constant 0 : i32
    %c0_i32_1 = arith.constant 0 : i32
    return %c0_i32, %c0_i32_0 : i32, i32
  }
  func.func @transform_3(%arg0: i32) -> (i32, i32) {
    %c0_i32 = arith.constant 0 : i32
    %c0_i32_0 = arith.constant 0 : i32
    %c0_i32_1 = arith.constant 0 : i32
    return %c0_i32, %c0_i32_0 : i32, i32
  }
  func.func @transform_4(%arg0: i32) -> (i32, i32) {
    %c0_i32 = arith.constant 0 : i32
    %c0_i32_0 = arith.constant 0 : i32
    %c0_i32_1 = arith.constant 0 : i32
    return %c0_i32, %c0_i32_0 : i32, i32
  }
  func.func @transform_5(%arg0: i32) -> (i32, i32, i32, i32, i32) {
    %c0_i32 = arith.constant 0 : i32
    %c0_i32_0 = arith.constant 0 : i32
    %c0_i32_1 = arith.constant 0 : i32
    %c0_i32_2 = arith.constant 0 : i32
    %c0_i32_3 = arith.constant 0 : i32
    return %arg0, %c0_i32, %c0_i32_0, %c0_i32_1, %c0_i32_2 : i32, i32, i32, i32, i32
  }
}

module attributes {stable_mosaic.version = 11 : i64} {
  func.func @_convt_fused_kernel(%arg0: i32, %arg1: memref<2x4x4x128xbf16, #tpu.memory_space<vmem>>, %arg2: memref<1x128xf32, #tpu.memory_space<vmem>>, %arg3: memref<1x128xf32, #tpu.memory_space<vmem>>, %arg4: memref<128x2048xbf16, #tpu.memory_space<vmem>>, %arg5: memref<2x4x2x4x256xbf16, #tpu.memory_space<vmem>>, %arg6: memref<1x2x128xf32, #tpu.memory_space<vmem>>, %arg7: memref<2x6x6x128xbf16, #tpu.memory_space<vmem>>) attributes {dimension_semantics = [#tpu.dimension_semantics<parallel>], iteration_bounds = array<i64: 1>, scalar_prefetch = 0 : i64, scratch_operands = 1 : i64, tpu.core_type = #tpu.core_type<tc>, window_params = [{transform_indices = @transform_0, window_bounds = array<i64: 2, 4, 4, 128>}, {pipeline_mode = #tpu.pipeline_mode<synchronous>, transform_indices = @transform_1, window_bounds = array<i64: 1, 128>}, {pipeline_mode = #tpu.pipeline_mode<synchronous>, transform_indices = @transform_2, window_bounds = array<i64: 1, 128>}, {pipeline_mode = #tpu.pipeline_mode<synchronous>, transform_indices = @transform_3, window_bounds = array<i64: 128, 2048>}, {transform_indices = @transform_4, window_bounds = array<i64: 2, 4, 2, 4, 256>}, {transform_indices = @transform_5, window_bounds = array<i64: 1, 2, 128>}]} {
    %cst = arith.constant 0.000000e+00 : bf16
    %0 = vector.broadcast %cst : bf16 to vector<2x1x6x128xbf16>
    %cst_0 = arith.constant 0.000000e+00 : bf16
    %1 = vector.broadcast %cst_0 : bf16 to vector<2x6x1x128xbf16>
    %c0 = arith.constant 0 : index
    %c0_1 = arith.constant 0 : index
    %c0_2 = arith.constant 0 : index
    %c0_3 = arith.constant 0 : index
    %2 = vector.load %arg7[%c0, %c0_1, %c0_2, %c0_3] : memref<2x6x6x128xbf16, #tpu.memory_space<vmem>>, vector<2x1x6x128xbf16>
    tpu.vector_store %arg7[%c0, %c0_1, %c0_2, %c0_3], %0 {strides = array<i32>} : memref<2x6x6x128xbf16, #tpu.memory_space<vmem>>, vector<2x1x6x128xbf16>,
    %c0_4 = arith.constant 0 : index
    %c5 = arith.constant 5 : index
    %c0_5 = arith.constant 0 : index
    %c0_6 = arith.constant 0 : index
    %3 = vector.load %arg7[%c0_4, %c5, %c0_5, %c0_6] : memref<2x6x6x128xbf16, #tpu.memory_space<vmem>>, vector<2x1x6x128xbf16>
    tpu.vector_store %arg7[%c0_4, %c5, %c0_5, %c0_6], %0 {strides = array<i32>} : memref<2x6x6x128xbf16, #tpu.memory_space<vmem>>, vector<2x1x6x128xbf16>,
    %c0_7 = arith.constant 0 : index
    %c0_8 = arith.constant 0 : index
    %c0_9 = arith.constant 0 : index
    %c0_10 = arith.constant 0 : index
    %4 = vector.load %arg7[%c0_7, %c0_8, %c0_9, %c0_10] : memref<2x6x6x128xbf16, #tpu.memory_space<vmem>>, vector<2x6x1x128xbf16>
    tpu.vector_store %arg7[%c0_7, %c0_8, %c0_9, %c0_10], %1 {strides = array<i32>} : memref<2x6x6x128xbf16, #tpu.memory_space<vmem>>, vector<2x6x1x128xbf16>,
    %c0_11 = arith.constant 0 : index
    %c0_12 = arith.constant 0 : index
    %c5_13 = arith.constant 5 : index
    %c0_14 = arith.constant 0 : index
    %5 = vector.load %arg7[%c0_11, %c0_12, %c5_13, %c0_14] : memref<2x6x6x128xbf16, #tpu.memory_space<vmem>>, vector<2x6x1x128xbf16>
    tpu.vector_store %arg7[%c0_11, %c0_12, %c5_13, %c0_14], %1 {strides = array<i32>} : memref<2x6x6x128xbf16, #tpu.memory_space<vmem>>, vector<2x6x1x128xbf16>,
    %c0_15 = arith.constant 0 : index
    %c0_16 = arith.constant 0 : index
    %c0_17 = arith.constant 0 : index
    %c0_18 = arith.constant 0 : index
    %6 = vector.load %arg1[%c0_15, %c0_16, %c0_17, %c0_18] : memref<2x4x4x128xbf16, #tpu.memory_space<vmem>>, vector<2x4x4x128xbf16>
    %7 = arith.extf %6 : vector<2x4x4x128xbf16> to vector<2x4x4x128xf32>
    %c0_19 = arith.constant 0 : index
    %c0_20 = arith.constant 0 : index
    %8 = vector.load %arg2[%c0_19, %c0_20] : memref<1x128xf32, #tpu.memory_space<vmem>>, vector<1x128xf32>
    %9 = vector.shape_cast %8 : vector<1x128xf32> to vector<1x1x1x128xf32>
    %10 = vector.broadcast %9 : vector<1x1x1x128xf32> to vector<2x4x4x128xf32>
    %11 = arith.mulf %7, %10 : vector<2x4x4x128xf32>
    %c0_21 = arith.constant 0 : index
    %c0_22 = arith.constant 0 : index
    %12 = vector.load %arg3[%c0_21, %c0_22] : memref<1x128xf32, #tpu.memory_space<vmem>>, vector<1x128xf32>
    %13 = vector.shape_cast %12 : vector<1x128xf32> to vector<1x1x1x128xf32>
    %14 = vector.broadcast %13 : vector<1x1x1x128xf32> to vector<2x4x4x128xf32>
    %15 = arith.addf %11, %14 : vector<2x4x4x128xf32>
    %16 = arith.truncf %15 : vector<2x4x4x128xf32> to vector<2x4x4x128xbf16>
    %c0_23 = arith.constant 0 : index
    %c1 = arith.constant 1 : index
    %c1_24 = arith.constant 1 : index
    %c0_25 = arith.constant 0 : index
    %17 = vector.load %arg7[%c0_23, %c1, %c1_24, %c0_25] : memref<2x6x6x128xbf16, #tpu.memory_space<vmem>>, vector<2x4x4x128xbf16>
    tpu.vector_store %arg7[%c0_23, %c1, %c1_24, %c0_25], %16 {strides = array<i32>} : memref<2x6x6x128xbf16, #tpu.memory_space<vmem>>, vector<2x4x4x128xbf16>,
    %c0_26 = arith.constant 0 : index
    %c0_27 = arith.constant 0 : index
    %c0_28 = arith.constant 0 : index
    %c0_29 = arith.constant 0 : index
    %18 = vector.load %arg7[%c0_26, %c0_27, %c0_28, %c0_29] : memref<2x6x6x128xbf16, #tpu.memory_space<vmem>>, vector<2x4x4x128xbf16>
    %19 = vector.shape_cast %18 : vector<2x4x4x128xbf16> to vector<32x128xbf16>
    %c0_30 = arith.constant 0 : index
    %c0_31 = arith.constant 0 : index
    %20 = vector.load %arg4[%c0_30, %c0_31] : memref<128x2048xbf16, #tpu.memory_space<vmem>>, vector<128x128xbf16>
    %cst_32 = arith.constant dense<0.000000e+00> : vector<32x128xf32>
    %21 = tpu.matmul %19, %20, %cst_32 {dimension_numbers = #tpu.dot_dimension_numbers<[1], [0], [0], [1], [0, 0, 1, 1], [], []>} : vector<32x128xbf16>, vector<128x128xbf16>, vector<32x128xf32> -> vector<32x128xf32>
    %c0_33 = arith.constant 0 : index
    %c0_34 = arith.constant 0 : index
    %c1_35 = arith.constant 1 : index
    %c0_36 = arith.constant 0 : index
    %22 = vector.load %arg7[%c0_33, %c0_34, %c1_35, %c0_36] : memref<2x6x6x128xbf16, #tpu.memory_space<vmem>>, vector<2x4x4x128xbf16>
    %23 = vector.shape_cast %22 : vector<2x4x4x128xbf16> to vector<32x128xbf16>
    %c0_37 = arith.constant 0 : index
    %c128 = arith.constant 128 : index
    %24 = vector.load %arg4[%c0_37, %c128] : memref<128x2048xbf16, #tpu.memory_space<vmem>>, vector<128x256xbf16>
    %cst_38 = arith.constant dense<0.000000e+00> : vector<32x256xf32>
    %25 = tpu.matmul %23, %24, %cst_38 {dimension_numbers = #tpu.dot_dimension_numbers<[1], [0], [0], [1], [0, 0, 1, 1], [], []>} : vector<32x128xbf16>, vector<128x256xbf16>, vector<32x256xf32> -> vector<32x256xf32>
    %26 = vector.extract_strided_slice %25 {offsets = [0, 0], sizes = [32, 128], strides = [1, 1]} : vector<32x256xf32> to vector<32x128xf32>
    %27 = arith.addf %21, %26 : vector<32x128xf32>
    %28 = vector.extract_strided_slice %25 {offsets = [0, 128], sizes = [32, 128], strides = [1, 1]} : vector<32x256xf32> to vector<32x128xf32>
    %c0_39 = arith.constant 0 : index
    %c0_40 = arith.constant 0 : index
    %c2 = arith.constant 2 : index
    %c0_41 = arith.constant 0 : index
    %29 = vector.load %arg7[%c0_39, %c0_40, %c2, %c0_41] : memref<2x6x6x128xbf16, #tpu.memory_space<vmem>>, vector<2x4x4x128xbf16>
    %30 = vector.shape_cast %29 : vector<2x4x4x128xbf16> to vector<32x128xbf16>
    %c0_42 = arith.constant 0 : index
    %c384 = arith.constant 384 : index
    %31 = vector.load %arg4[%c0_42, %c384] : memref<128x2048xbf16, #tpu.memory_space<vmem>>, vector<128x128xbf16>
    %cst_43 = arith.constant dense<0.000000e+00> : vector<32x128xf32>
    %32 = tpu.matmul %30, %31, %cst_43 {dimension_numbers = #tpu.dot_dimension_numbers<[1], [0], [0], [1], [0, 0, 1, 1], [], []>} : vector<32x128xbf16>, vector<128x128xbf16>, vector<32x128xf32> -> vector<32x128xf32>
    %33 = arith.addf %28, %32 : vector<32x128xf32>
    %c0_44 = arith.constant 0 : index
    %c1_45 = arith.constant 1 : index
    %c0_46 = arith.constant 0 : index
    %c0_47 = arith.constant 0 : index
    %34 = vector.load %arg7[%c0_44, %c1_45, %c0_46, %c0_47] : memref<2x6x6x128xbf16, #tpu.memory_space<vmem>>, vector<2x4x4x128xbf16>
    %35 = vector.shape_cast %34 : vector<2x4x4x128xbf16> to vector<32x128xbf16>
    %c0_48 = arith.constant 0 : index
    %c512 = arith.constant 512 : index
    %36 = vector.load %arg4[%c0_48, %c512] : memref<128x2048xbf16, #tpu.memory_space<vmem>>, vector<128x256xbf16>
    %cst_49 = arith.constant dense<0.000000e+00> : vector<32x256xf32>
    %37 = tpu.matmul %35, %36, %cst_49 {dimension_numbers = #tpu.dot_dimension_numbers<[1], [0], [0], [1], [0, 0, 1, 1], [], []>} : vector<32x128xbf16>, vector<128x256xbf16>, vector<32x256xf32> -> vector<32x256xf32>
    %38 = vector.extract_strided_slice %37 {offsets = [0, 0], sizes = [32, 128], strides = [1, 1]} : vector<32x256xf32> to vector<32x128xf32>
    %39 = arith.addf %27, %38 : vector<32x128xf32>
    %40 = vector.extract_strided_slice %37 {offsets = [0, 128], sizes = [32, 128], strides = [1, 1]} : vector<32x256xf32> to vector<32x128xf32>
    %c0_50 = arith.constant 0 : index
    %c1_51 = arith.constant 1 : index
    %c1_52 = arith.constant 1 : index
    %c0_53 = arith.constant 0 : index
    %41 = vector.load %arg7[%c0_50, %c1_51, %c1_52, %c0_53] : memref<2x6x6x128xbf16, #tpu.memory_space<vmem>>, vector<2x4x4x128xbf16>
    %42 = vector.shape_cast %41 : vector<2x4x4x128xbf16> to vector<32x128xbf16>
    %c0_54 = arith.constant 0 : index
    %c768 = arith.constant 768 : index
    %43 = vector.load %arg4[%c0_54, %c768] : memref<128x2048xbf16, #tpu.memory_space<vmem>>, vector<128x512xbf16>
    %cst_55 = arith.constant dense<0.000000e+00> : vector<32x512xf32>
    %44 = tpu.matmul %42, %43, %cst_55 {dimension_numbers = #tpu.dot_dimension_numbers<[1], [0], [0], [1], [0, 0, 1, 1], [], []>} : vector<32x128xbf16>, vector<128x512xbf16>, vector<32x512xf32> -> vector<32x512xf32>
    %45 = vector.extract_strided_slice %44 {offsets = [0, 0], sizes = [32, 128], strides = [1, 1]} : vector<32x512xf32> to vector<32x128xf32>
    %46 = arith.addf %39, %45 : vector<32x128xf32>
    %47 = vector.extract_strided_slice %44 {offsets = [0, 128], sizes = [32, 128], strides = [1, 1]} : vector<32x512xf32> to vector<32x128xf32>
    %48 = arith.addf %33, %47 : vector<32x128xf32>
    %49 = vector.extract_strided_slice %44 {offsets = [0, 256], sizes = [32, 128], strides = [1, 1]} : vector<32x512xf32> to vector<32x128xf32>
    %50 = arith.addf %40, %49 : vector<32x128xf32>
    %51 = vector.extract_strided_slice %44 {offsets = [0, 384], sizes = [32, 128], strides = [1, 1]} : vector<32x512xf32> to vector<32x128xf32>
    %c0_56 = arith.constant 0 : index
    %c1_57 = arith.constant 1 : index
    %c2_58 = arith.constant 2 : index
    %c0_59 = arith.constant 0 : index
    %52 = vector.load %arg7[%c0_56, %c1_57, %c2_58, %c0_59] : memref<2x6x6x128xbf16, #tpu.memory_space<vmem>>, vector<2x4x4x128xbf16>
    %53 = vector.shape_cast %52 : vector<2x4x4x128xbf16> to vector<32x128xbf16>
    %c0_60 = arith.constant 0 : index
    %c1280 = arith.constant 1280 : index
    %54 = vector.load %arg4[%c0_60, %c1280] : memref<128x2048xbf16, #tpu.memory_space<vmem>>, vector<128x256xbf16>
    %cst_61 = arith.constant dense<0.000000e+00> : vector<32x256xf32>
    %55 = tpu.matmul %53, %54, %cst_61 {dimension_numbers = #tpu.dot_dimension_numbers<[1], [0], [0], [1], [0, 0, 1, 1], [], []>} : vector<32x128xbf16>, vector<128x256xbf16>, vector<32x256xf32> -> vector<32x256xf32>
    %56 = vector.extract_strided_slice %55 {offsets = [0, 0], sizes = [32, 128], strides = [1, 1]} : vector<32x256xf32> to vector<32x128xf32>
    %57 = arith.addf %48, %56 : vector<32x128xf32>
    %58 = vector.extract_strided_slice %55 {offsets = [0, 128], sizes = [32, 128], strides = [1, 1]} : vector<32x256xf32> to vector<32x128xf32>
    %59 = arith.addf %51, %58 : vector<32x128xf32>
    %c0_62 = arith.constant 0 : index
    %c2_63 = arith.constant 2 : index
    %c0_64 = arith.constant 0 : index
    %c0_65 = arith.constant 0 : index
    %60 = vector.load %arg7[%c0_62, %c2_63, %c0_64, %c0_65] : memref<2x6x6x128xbf16, #tpu.memory_space<vmem>>, vector<2x4x4x128xbf16>
    %61 = vector.shape_cast %60 : vector<2x4x4x128xbf16> to vector<32x128xbf16>
    %c0_66 = arith.constant 0 : index
    %c1536 = arith.constant 1536 : index
    %62 = vector.load %arg4[%c0_66, %c1536] : memref<128x2048xbf16, #tpu.memory_space<vmem>>, vector<128x128xbf16>
    %cst_67 = arith.constant dense<0.000000e+00> : vector<32x128xf32>
    %63 = tpu.matmul %61, %62, %cst_67 {dimension_numbers = #tpu.dot_dimension_numbers<[1], [0], [0], [1], [0, 0, 1, 1], [], []>} : vector<32x128xbf16>, vector<128x128xbf16>, vector<32x128xf32> -> vector<32x128xf32>
    %64 = arith.addf %50, %63 : vector<32x128xf32>
    %c0_68 = arith.constant 0 : index
    %c2_69 = arith.constant 2 : index
    %c1_70 = arith.constant 1 : index
    %c0_71 = arith.constant 0 : index
    %65 = vector.load %arg7[%c0_68, %c2_69, %c1_70, %c0_71] : memref<2x6x6x128xbf16, #tpu.memory_space<vmem>>, vector<2x4x4x128xbf16>
    %66 = vector.shape_cast %65 : vector<2x4x4x128xbf16> to vector<32x128xbf16>
    %c0_72 = arith.constant 0 : index
    %c1664 = arith.constant 1664 : index
    %67 = vector.load %arg4[%c0_72, %c1664] : memref<128x2048xbf16, #tpu.memory_space<vmem>>, vector<128x256xbf16>
    %cst_73 = arith.constant dense<0.000000e+00> : vector<32x256xf32>
    %68 = tpu.matmul %66, %67, %cst_73 {dimension_numbers = #tpu.dot_dimension_numbers<[1], [0], [0], [1], [0, 0, 1, 1], [], []>} : vector<32x128xbf16>, vector<128x256xbf16>, vector<32x256xf32> -> vector<32x256xf32>
    %69 = vector.extract_strided_slice %68 {offsets = [0, 0], sizes = [32, 128], strides = [1, 1]} : vector<32x256xf32> to vector<32x128xf32>
    %70 = arith.addf %64, %69 : vector<32x128xf32>
    %71 = vector.extract_strided_slice %68 {offsets = [0, 128], sizes = [32, 128], strides = [1, 1]} : vector<32x256xf32> to vector<32x128xf32>
    %72 = arith.addf %59, %71 : vector<32x128xf32>
    %c0_74 = arith.constant 0 : index
    %c2_75 = arith.constant 2 : index
    %c2_76 = arith.constant 2 : index
    %c0_77 = arith.constant 0 : index
    %73 = vector.load %arg7[%c0_74, %c2_75, %c2_76, %c0_77] : memref<2x6x6x128xbf16, #tpu.memory_space<vmem>>, vector<2x4x4x128xbf16>
    %74 = vector.shape_cast %73 : vector<2x4x4x128xbf16> to vector<32x128xbf16>
    %c0_78 = arith.constant 0 : index
    %c1920 = arith.constant 1920 : index
    %75 = vector.load %arg4[%c0_78, %c1920] : memref<128x2048xbf16, #tpu.memory_space<vmem>>, vector<128x128xbf16>
    %cst_79 = arith.constant dense<0.000000e+00> : vector<32x128xf32>
    %76 = tpu.matmul %74, %75, %cst_79 {dimension_numbers = #tpu.dot_dimension_numbers<[1], [0], [0], [1], [0, 0, 1, 1], [], []>} : vector<32x128xbf16>, vector<128x128xbf16>, vector<32x128xf32> -> vector<32x128xf32>
    %77 = arith.addf %72, %76 : vector<32x128xf32>
    %cst_80 = arith.constant 0.000000e+00 : f32
    %78 = vector.broadcast %cst_80 : f32 to vector<1x128xf32>
    %cst_81 = arith.constant 0.000000e+00 : f32
    %79 = vector.broadcast %cst_81 : f32 to vector<1x128xf32>
    %cst_82 = arith.constant dense<0.000000e+00> : vector<128xf32>
    %80 = vector.multi_reduction <add>, %46, %cst_82 [0] : vector<32x128xf32> to vector<128xf32>
    %81 = vector.shape_cast %80 : vector<128xf32> to vector<1x128xf32>
    %82 = arith.addf %78, %81 : vector<1x128xf32>
    %83 = arith.mulf %46, %46 : vector<32x128xf32>
    %cst_83 = arith.constant dense<0.000000e+00> : vector<128xf32>
    %84 = vector.multi_reduction <add>, %83, %cst_83 [0] : vector<32x128xf32> to vector<128xf32>
    %85 = vector.shape_cast %84 : vector<128xf32> to vector<1x128xf32>
    %86 = arith.addf %79, %85 : vector<1x128xf32>
    %87 = vector.shape_cast %46 : vector<32x128xf32> to vector<2x4x1x4x128xf32>
    %88 = arith.truncf %87 : vector<2x4x1x4x128xf32> to vector<2x4x1x4x128xbf16>
    %c0_84 = arith.constant 0 : index
    %c0_85 = arith.constant 0 : index
    %c0_86 = arith.constant 0 : index
    %c0_87 = arith.constant 0 : index
    %c0_88 = arith.constant 0 : index
    %89 = vector.load %arg5[%c0_84, %c0_85, %c0_86, %c0_87, %c0_88] : memref<2x4x2x4x256xbf16, #tpu.memory_space<vmem>>, vector<2x4x1x4x128xbf16>
    tpu.vector_store %arg5[%c0_84, %c0_85, %c0_86, %c0_87, %c0_88], %88 {strides = array<i32>} : memref<2x4x2x4x256xbf16, #tpu.memory_space<vmem>>, vector<2x4x1x4x128xbf16>,
    %cst_89 = arith.constant dense<0.000000e+00> : vector<128xf32>
    %90 = vector.multi_reduction <add>, %57, %cst_89 [0] : vector<32x128xf32> to vector<128xf32>
    %91 = vector.shape_cast %90 : vector<128xf32> to vector<1x128xf32>
    %92 = arith.addf %82, %91 : vector<1x128xf32>
    %93 = arith.mulf %57, %57 : vector<32x128xf32>
    %cst_90 = arith.constant dense<0.000000e+00> : vector<128xf32>
    %94 = vector.multi_reduction <add>, %93, %cst_90 [0] : vector<32x128xf32> to vector<128xf32>
    %95 = vector.shape_cast %94 : vector<128xf32> to vector<1x128xf32>
    %96 = arith.addf %86, %95 : vector<1x128xf32>
    %97 = vector.shape_cast %57 : vector<32x128xf32> to vector<2x4x1x4x128xf32>
    %98 = arith.truncf %97 : vector<2x4x1x4x128xf32> to vector<2x4x1x4x128xbf16>
    %c0_91 = arith.constant 0 : index
    %c0_92 = arith.constant 0 : index
    %c0_93 = arith.constant 0 : index
    %c0_94 = arith.constant 0 : index
    %c128_95 = arith.constant 128 : index
    %99 = vector.load %arg5[%c0_91, %c0_92, %c0_93, %c0_94, %c128_95] : memref<2x4x2x4x256xbf16, #tpu.memory_space<vmem>>, vector<2x4x1x4x128xbf16>
    tpu.vector_store %arg5[%c0_91, %c0_92, %c0_93, %c0_94, %c128_95], %98 {strides = array<i32>} : memref<2x4x2x4x256xbf16, #tpu.memory_space<vmem>>, vector<2x4x1x4x128xbf16>,
    %cst_96 = arith.constant dense<0.000000e+00> : vector<128xf32>
    %100 = vector.multi_reduction <add>, %70, %cst_96 [0] : vector<32x128xf32> to vector<128xf32>
    %101 = vector.shape_cast %100 : vector<128xf32> to vector<1x128xf32>
    %102 = arith.addf %92, %101 : vector<1x128xf32>
    %103 = arith.mulf %70, %70 : vector<32x128xf32>
    %cst_97 = arith.constant dense<0.000000e+00> : vector<128xf32>
    %104 = vector.multi_reduction <add>, %103, %cst_97 [0] : vector<32x128xf32> to vector<128xf32>
    %105 = vector.shape_cast %104 : vector<128xf32> to vector<1x128xf32>
    %106 = arith.addf %96, %105 : vector<1x128xf32>
    %107 = vector.shape_cast %70 : vector<32x128xf32> to vector<2x4x1x4x128xf32>
    %108 = arith.truncf %107 : vector<2x4x1x4x128xf32> to vector<2x4x1x4x128xbf16>
    %c0_98 = arith.constant 0 : index
    %c0_99 = arith.constant 0 : index
    %c1_100 = arith.constant 1 : index
    %c0_101 = arith.constant 0 : index
    %c0_102 = arith.constant 0 : index
    %109 = vector.load %arg5[%c0_98, %c0_99, %c1_100, %c0_101, %c0_102] : memref<2x4x2x4x256xbf16, #tpu.memory_space<vmem>>, vector<2x4x1x4x128xbf16>
    tpu.vector_store %arg5[%c0_98, %c0_99, %c1_100, %c0_101, %c0_102], %108 {strides = array<i32>} : memref<2x4x2x4x256xbf16, #tpu.memory_space<vmem>>, vector<2x4x1x4x128xbf16>,
    %cst_103 = arith.constant dense<0.000000e+00> : vector<128xf32>
    %110 = vector.multi_reduction <add>, %77, %cst_103 [0] : vector<32x128xf32> to vector<128xf32>
    %111 = vector.shape_cast %110 : vector<128xf32> to vector<1x128xf32>
    %112 = arith.addf %102, %111 : vector<1x128xf32>
    %113 = arith.mulf %77, %77 : vector<32x128xf32>
    %cst_104 = arith.constant dense<0.000000e+00> : vector<128xf32>
    %114 = vector.multi_reduction <add>, %113, %cst_104 [0] : vector<32x128xf32> to vector<128xf32>
    %115 = vector.shape_cast %114 : vector<128xf32> to vector<1x128xf32>
    %116 = arith.addf %106, %115 : vector<1x128xf32>
    %117 = vector.shape_cast %77 : vector<32x128xf32> to vector<2x4x1x4x128xf32>
    %118 = arith.truncf %117 : vector<2x4x1x4x128xf32> to vector<2x4x1x4x128xbf16>
    %c0_105 = arith.constant 0 : index
    %c0_106 = arith.constant 0 : index
    %c1_107 = arith.constant 1 : index
    %c0_108 = arith.constant 0 : index
    %c128_109 = arith.constant 128 : index
    %119 = vector.load %arg5[%c0_105, %c0_106, %c1_107, %c0_108, %c128_109] : memref<2x4x2x4x256xbf16, #tpu.memory_space<vmem>>, vector<2x4x1x4x128xbf16>
    tpu.vector_store %arg5[%c0_105, %c0_106, %c1_107, %c0_108, %c128_109], %118 {strides = array<i32>} : memref<2x4x2x4x256xbf16, #tpu.memory_space<vmem>>, vector<2x4x1x4x128xbf16>,
    %120 = vector.shape_cast %112 : vector<1x128xf32> to vector<1x1x128xf32>
    %c0_110 = arith.constant 0 : index
    %c0_111 = arith.constant 0 : index
    %c0_112 = arith.constant 0 : index
    %121 = vector.load %arg6[%c0_110, %c0_111, %c0_112] : memref<1x2x128xf32, #tpu.memory_space<vmem>>, vector<1x1x128xf32>
    tpu.vector_store %arg6[%c0_110, %c0_111, %c0_112], %120 {strides = array<i32>} : memref<1x2x128xf32, #tpu.memory_space<vmem>>, vector<1x1x128xf32>,
    %122 = vector.shape_cast %116 : vector<1x128xf32> to vector<1x1x128xf32>
    %c0_113 = arith.constant 0 : index
    %c1_114 = arith.constant 1 : index
    %c0_115 = arith.constant 0 : index
    %123 = vector.load %arg6[%c0_113, %c1_114, %c0_115] : memref<1x2x128xf32, #tpu.memory_space<vmem>>, vector<1x1x128xf32>
    tpu.vector_store %arg6[%c0_113, %c1_114, %c0_115], %122 {strides = array<i32>} : memref<1x2x128xf32, #tpu.memory_space<vmem>>, vector<1x1x128xf32>,
    return
  }
  func.func @transform_0(%arg0: i32) -> (i32, i32, i32, i32) {
    %c0_i32 = arith.constant 0 : i32
    %c0_i32_0 = arith.constant 0 : i32
    %c0_i32_1 = arith.constant 0 : i32
    %c0_i32_2 = arith.constant 0 : i32
    return %arg0, %c0_i32, %c0_i32_0, %c0_i32_1 : i32, i32, i32, i32
  }
  func.func @transform_1(%arg0: i32) -> (i32, i32) {
    %c0_i32 = arith.constant 0 : i32
    %c0_i32_0 = arith.constant 0 : i32
    %c0_i32_1 = arith.constant 0 : i32
    return %c0_i32, %c0_i32_0 : i32, i32
  }
  func.func @transform_2(%arg0: i32) -> (i32, i32) {
    %c0_i32 = arith.constant 0 : i32
    %c0_i32_0 = arith.constant 0 : i32
    %c0_i32_1 = arith.constant 0 : i32
    return %c0_i32, %c0_i32_0 : i32, i32
  }
  func.func @transform_3(%arg0: i32) -> (i32, i32) {
    %c0_i32 = arith.constant 0 : i32
    %c0_i32_0 = arith.constant 0 : i32
    %c0_i32_1 = arith.constant 0 : i32
    return %c0_i32, %c0_i32_0 : i32, i32
  }
  func.func @transform_4(%arg0: i32) -> (i32, i32, i32, i32, i32) {
    %c0_i32 = arith.constant 0 : i32
    %c0_i32_0 = arith.constant 0 : i32
    %c0_i32_1 = arith.constant 0 : i32
    %c0_i32_2 = arith.constant 0 : i32
    %c0_i32_3 = arith.constant 0 : i32
    return %arg0, %c0_i32, %c0_i32_0, %c0_i32_1, %c0_i32_2 : i32, i32, i32, i32, i32
  }
  func.func @transform_5(%arg0: i32) -> (i32, i32, i32) {
    %c0_i32 = arith.constant 0 : i32
    %c0_i32_0 = arith.constant 0 : i32
    %c0_i32_1 = arith.constant 0 : i32
    return %arg0, %c0_i32, %c0_i32_0 : i32, i32, i32
  }
}

</mosaic_0001>

<llo_original>
// kernel: generator_forward.3
$region0: #{generator_forward.3}
  #allocation0 [shape = 'u32[]', space=smem, size = 0x4, offset = 0x4, fixed_abs, tag = 'smem constant byte address 0x4 - core index']
  #allocation1 [shape = 'u32[144,128]{1,0:T(1,128)}', space=vmem, size = 0x12000, scoped, tag = 'internal scratch']
  %s0 = inlined_call_operand.vmem [shape: bf16[2,16], index: 0, kind: input, shape index: {}]
  %s1 = inlined_call_operand.hbm [shape: bf16[16,2048], index: 1, kind: input, shape index: {}]
  %s2 = inlined_call_operand.vmem [shape: bf16[2,2048], index: 2, kind: output, shape index: {0}]
  %s3 = inlined_call_operand.vmem [shape: f32[1,2,128], index: 3, kind: output, shape index: {1}]
  %4 = xla_tuple %s2, %s3
  %s5 = sld [smem:[#allocation0]]
  $region30: #{generator_forward.3} parent=0
    _
  %s7 = ssub.s32 1, %s5
  %s8 = scalar_select 0, %s7, %s5
  $region1: #{generator_forward.3} parent=0
    #allocation2 [shape = 'u8[65536]{0}', space=vmem, size = 0x10000, scoped, tag = 'input window, operand 1, single buffered']
    #allocation3 [shape = 's32[1]{0}', space=sflag, size = 0x4, scoped, tag = 'scoped memory for generator_forward.3']
    %9 = vsyncpa [#allocation3], 0
    // Predicated region
    $region2: #{generator_forward.3} parent=1 // pred_check
      _
    $region3: #{generator_forward.3} parent=1 // pred_check_branch
      %11 = sbr.rel (0) target = $region5
    $region4: #{generator_forward.3} parent=1 // pred_region
      _
    $region5: #{generator_forward.3} parent=1 // pred_fallthru
      _
    // Predicated region
    $region6: #{generator_forward.3} parent=1 // pred_check
      _
    $region7: #{generator_forward.3} parent=1 // pred_check_branch
      %13 = sbr.rel (0) target = $region9
    $region8: #{generator_forward.3} parent=1 // pred_region
      %s15 = ssub.s32 2048, 2048
      %16 = vsyncadd [#allocation3], %s15
      %s17 = sshll.u32 [#allocation2], 4
      %s18 = int_to_ptr.vmem [resolvable:$true] %s17
      %23 = dma.hbm_to_vmem [thread:$0]  %s1, 2048, %s18, [#allocation3], 1024, 1024, 64
    $region9: #{generator_forward.3} parent=1 // pred_fallthru
      _
    // Predicated region
    $region10: #{generator_forward.3} parent=1 // pred_check
      _
    $region11: #{generator_forward.3} parent=1 // pred_check_branch
      %25 = sbr.rel (0) target = $region13
    $region12: #{generator_forward.3} parent=1 // pred_region
      %26 = dma.done [#allocation3], 2048
    $region13: #{generator_forward.3} parent=1 // pred_fallthru
      _
    %v28 = vld [vmem:[%s0] sm:$0x1]
    %v29 = vld [vmem:[#allocation2] sm:$0xff]
    %v30 = vld [vmem:[#allocation2 + $0x8] sm:$0xff]
    %v31 = vld [vmem:[#allocation2 + $0x10] sm:$0xff]
    %v32 = vld [vmem:[#allocation2 + $0x18] sm:$0xff]
    %v33 = vld [vmem:[#allocation2 + $0x20] sm:$0xff]
    %v34 = vld [vmem:[#allocation2 + $0x28] sm:$0xff]
    %v35 = vld [vmem:[#allocation2 + $0x30] sm:$0xff]
    %v36 = vld [vmem:[#allocation2 + $0x38] sm:$0xff]
    %v37 = vld [vmem:[#allocation2 + $0x40] sm:$0xff]
    %v38 = vld [vmem:[#allocation2 + $0x48] sm:$0xff]
    %v39 = vld [vmem:[#allocation2 + $0x50] sm:$0xff]
    %v40 = vld [vmem:[#allocation2 + $0x58] sm:$0xff]
    %v41 = vld [vmem:[#allocation2 + $0x60] sm:$0xff]
    %v42 = vld [vmem:[#allocation2 + $0x68] sm:$0xff]
    %v43 = vld [vmem:[#allocation2 + $0x70] sm:$0xff]
    %v44 = vld [vmem:[#allocation2 + $0x78] sm:$0xff]
    %v61 = vunpack.c.l.b16 %v29
    %v62 = vunpack.c.h.b16 %v29
    %v63 = vunpack.c.l.b16 %v30
    %v64 = vunpack.c.h.b16 %v30
    %v65 = vunpack.c.l.b16 %v31
    %v66 = vunpack.c.h.b16 %v31
    %v67 = vunpack.c.l.b16 %v32
    %v68 = vunpack.c.h.b16 %v32
    %v69 = vunpack.c.l.b16 %v33
    %v70 = vunpack.c.h.b16 %v33
    %v71 = vunpack.c.l.b16 %v34
    %v72 = vunpack.c.h.b16 %v34
    %v73 = vunpack.c.l.b16 %v35
    %v74 = vunpack.c.h.b16 %v35
    %v75 = vunpack.c.l.b16 %v36
    %v76 = vunpack.c.h.b16 %v36
    %v77 = vunpack.c.l.b16 %v37
    %v78 = vunpack.c.h.b16 %v37
    %v79 = vunpack.c.l.b16 %v38
    %v80 = vunpack.c.h.b16 %v38
    %v81 = vunpack.c.l.b16 %v39
    %v82 = vunpack.c.h.b16 %v39
    %v83 = vunpack.c.l.b16 %v40
    %v84 = vunpack.c.h.b16 %v40
    %v85 = vunpack.c.l.b16 %v41
    %v86 = vunpack.c.h.b16 %v41
    %v87 = vunpack.c.l.b16 %v42
    %v88 = vunpack.c.h.b16 %v42
    %v89 = vunpack.c.l.b16 %v43
    %v90 = vunpack.c.h.b16 %v43
    %v91 = vunpack.c.l.b16 %v44
    %v92 = vunpack.c.h.b16 %v44
    %v93 = vpack.c.b16 %v77, %v61
    %v94 = vpack.c.b16 %v78, %v62
    %v95 = vpack.c.b16 %v79, %v63
    %v96 = vpack.c.b16 %v80, %v64
    %v97 = vpack.c.b16 %v81, %v65
    %v98 = vpack.c.b16 %v82, %v66
    %v99 = vpack.c.b16 %v83, %v67
    %v100 = vpack.c.b16 %v84, %v68
    %v101 = vpack.c.b16 %v85, %v69
    %v102 = vpack.c.b16 %v86, %v70
    %v103 = vpack.c.b16 %v87, %v71
    %v104 = vpack.c.b16 %v88, %v72
    %v105 = vpack.c.b16 %v89, %v73
    %v106 = vpack.c.b16 %v90, %v74
    %v107 = vpack.c.b16 %v91, %v75
    %v108 = vpack.c.b16 %v92, %v76
    %vm125 = vcmask 130048
    %v127 = vsel %vm125, %v28, 0
    %129 = vmatprep.subr.bf16.mxu0 0
    %130 = vmatpush1.bf16.msra.mxu0 0
    %131 = vmatprep.subr.bf16.mxu0 0
    %132 = vmatpush1.bf16.msra.mxu0 0
    %133 = vmatprep.subr.bf16.mxu0 0
    %134 = vmatpush1.bf16.msra.mxu0 0
    %135 = vmatprep.subr.bf16.mxu0 0
    %136 = vmatpush1.bf16.msra.mxu0 0
    %137 = vmatprep.subr.bf16.mxu0 0
    %138 = vmatpush1.bf16.msra.mxu0 0
    %139 = vmatprep.subr.bf16.mxu0 0
    %140 = vmatpush1.bf16.msra.mxu0 0
    %141 = vmatprep.subr.bf16.mxu0 0
    %142 = vmatpush1.bf16.msra.mxu0 0
    %143 = vmatprep.subr.bf16.mxu0 %v94
    %144 = vmatpush1.bf16.msra.mxu0 %v93
    %145 = vmatprep.subr.bf16.mxu0 0
    %146 = vmatpush2.bf16.msra.mxu0 0
    %147 = vmatprep.subr.bf16.mxu0 0
    %148 = vmatpush2.bf16.msra.mxu0 0
    %149 = vmatprep.subr.bf16.mxu0 0
    %150 = vmatpush2.bf16.msra.mxu0 0
    %151 = vmatprep.subr.bf16.mxu0 0
    %152 = vmatpush2.bf16.msra.mxu0 0
    %153 = vmatprep.subr.bf16.mxu0 0
    %154 = vmatpush2.bf16.msra.mxu0 0
    %155 = vmatprep.subr.bf16.mxu0 0
    %156 = vmatpush2.bf16.msra.mxu0 0
    %157 = vmatprep.subr.bf16.mxu0 0
    %158 = vmatpush2.bf16.msra.mxu0 0
    %159 = vmatprep.subr.bf16.mxu0 0
    %160 = vmatpush2.bf16.msra.mxu0 0
    %161 = vmatprep.mubr.bf16.mxu0 0
    %162 = vmatmul.mubr.bf16.gmra.mxu0 %v127
    %v163 = vpop.f32.mrf.mxu0
    %v164 = vadd.f32 0.0, %v163
    %v165 = vpop.f32.mrf.mxu0
    %v166 = vadd.f32 0.0, %v165
    %v167 = vpop.f32.mrf.mxu0
    %v168 = vpop.f32.mrf.mxu0
    %169 = vdwg.mxu0
    %170 = vmatprep.subr.bf16.mxu0 0
    %171 = vmatpush1.bf16.msra.mxu0 0
    %172 = vmatprep.subr.bf16.mxu0 0
    %173 = vmatpush1.bf16.msra.mxu0 0
    %174 = vmatprep.subr.bf16.mxu0 0
    %175 = vmatpush1.bf16.msra.mxu0 0
    %176 = vmatprep.subr.bf16.mxu0 0
    %177 = vmatpush1.bf16.msra.mxu0 0
    %178 = vmatprep.subr.bf16.mxu0 0
    %179 = vmatpush1.bf16.msra.mxu0 0
    %180 = vmatprep.subr.bf16.mxu0 0
    %181 = vmatpush1.bf16.msra.mxu0 0
    %182 = vmatprep.subr.bf16.mxu0 0
    %183 = vmatpush1.bf16.msra.mxu0 0
    %184 = vmatprep.subr.bf16.mxu0 %v96
    %185 = vmatpush1.bf16.msra.mxu0 %v95
    %186 = vmatprep.subr.bf16.mxu0 0
    %187 = vmatpush2.bf16.msra.mxu0 0
    %188 = vmatprep.subr.bf16.mxu0 0
    %189 = vmatpush2.bf16.msra.mxu0 0
    %190 = vmatprep.subr.bf16.mxu0 0
    %191 = vmatpush2.bf16.msra.mxu0 0
    %192 = vmatprep.subr.bf16.mxu0 0
    %193 = vmatpush2.bf16.msra.mxu0 0
    %194 = vmatprep.subr.bf16.mxu0 0
    %195 = vmatpush2.bf16.msra.mxu0 0
    %196 = vmatprep.subr.bf16.mxu0 0
    %197 = vmatpush2.bf16.msra.mxu0 0
    %198 = vmatprep.subr.bf16.mxu0 0
    %199 = vmatpush2.bf16.msra.mxu0 0
    %200 = vmatprep.subr.bf16.mxu0 0
    %201 = vmatpush2.bf16.msra.mxu0 0
    %202 = vmatprep.mubr.bf16.mxu0 0
    %203 = vmatmul.mubr.bf16.gmra.mxu0 %v127
    %v204 = vpop.f32.mrf.mxu0
    %v205 = vadd.f32 0.0, %v204
    %v206 = vpop.f32.mrf.mxu0
    %v207 = vadd.f32 0.0, %v206
    %v208 = vpop.f32.mrf.mxu0
    %v209 = vpop.f32.mrf.mxu0
    %210 = vdwg.mxu0
    %211 = vmatprep.subr.bf16.mxu0 0
    %212 = vmatpush1.bf16.msra.mxu0 0
    %213 = vmatprep.subr.bf16.mxu0 0
    %214 = vmatpush1.bf16.msra.mxu0 0
    %215 = vmatprep.subr.bf16.mxu0 0
    %216 = vmatpush1.bf16.msra.mxu0 0
    %217 = vmatprep.subr.bf16.mxu0 0
    %218 = vmatpush1.bf16.msra.mxu0 0
    %219 = vmatprep.subr.bf16.mxu0 0
    %220 = vmatpush1.bf16.msra.mxu0 0
    %221 = vmatprep.subr.bf16.mxu0 0
    %222 = vmatpush1.bf16.msra.mxu0 0
    %223 = vmatprep.subr.bf16.mxu0 0
    %224 = vmatpush1.bf16.msra.mxu0 0
    %225 = vmatprep.subr.bf16.mxu0 %v98
    %226 = vmatpush1.bf16.msra.mxu0 %v97
    %227 = vmatprep.subr.bf16.mxu0 0
    %228 = vmatpush2.bf16.msra.mxu0 0
    %229 = vmatprep.subr.bf16.mxu0 0
    %230 = vmatpush2.bf16.msra.mxu0 0
    %231 = vmatprep.subr.bf16.mxu0 0
    %232 = vmatpush2.bf16.msra.mxu0 0
    %233 = vmatprep.subr.bf16.mxu0 0
    %234 = vmatpush2.bf16.msra.mxu0 0
    %235 = vmatprep.subr.bf16.mxu0 0
    %236 = vmatpush2.bf16.msra.mxu0 0
    %237 = vmatprep.subr.bf16.mxu0 0
    %238 = vmatpush2.bf16.msra.mxu0 0
    %239 = vmatprep.subr.bf16.mxu0 0
    %240 = vmatpush2.bf16.msra.mxu0 0
    %241 = vmatprep.subr.bf16.mxu0 0
    %242 = vmatpush2.bf16.msra.mxu0 0
    %243 = vmatprep.mubr.bf16.mxu0 0
    %244 = vmatmul.mubr.bf16.gmra.mxu0 %v127
    %v245 = vpop.f32.mrf.mxu0
    %v246 = vadd.f32 0.0, %v245
    %v247 = vpop.f32.mrf.mxu0
    %v248 = vadd.f32 0.0, %v247
    %v249 = vpop.f32.mrf.mxu0
    %v250 = vpop.f32.mrf.mxu0
    %251 = vdwg.mxu0
    %252 = vmatprep.subr.bf16.mxu0 0
    %253 = vmatpush1.bf16.msra.mxu0 0
    %254 = vmatprep.subr.bf16.mxu0 0
    %255 = vmatpush1.bf16.msra.mxu0 0
    %256 = vmatprep.subr.bf16.mxu0 0
    %257 = vmatpush1.bf16.msra.mxu0 0
    %258 = vmatprep.subr.bf16.mxu0 0
    %259 = vmatpush1.bf16.msra.mxu0 0
    %260 = vmatprep.subr.bf16.mxu0 0
    %261 = vmatpush1.bf16.msra.mxu0 0
    %262 = vmatprep.subr.bf16.mxu0 0
    %263 = vmatpush1.bf16.msra.mxu0 0
    %264 = vmatprep.subr.bf16.mxu0 0
    %265 = vmatpush1.bf16.msra.mxu0 0
    %266 = vmatprep.subr.bf16.mxu0 %v100
    %267 = vmatpush1.bf16.msra.mxu0 %v99
    %268 = vmatprep.subr.bf16.mxu0 0
    %269 = vmatpush2.bf16.msra.mxu0 0
    %270 = vmatprep.subr.bf16.mxu0 0
    %271 = vmatpush2.bf16.msra.mxu0 0
    %272 = vmatprep.subr.bf16.mxu0 0
    %273 = vmatpush2.bf16.msra.mxu0 0
    %274 = vmatprep.subr.bf16.mxu0 0
    %275 = vmatpush2.bf16.msra.mxu0 0
    %276 = vmatprep.subr.bf16.mxu0 0
    %277 = vmatpush2.bf16.msra.mxu0 0
    %278 = vmatprep.subr.bf16.mxu0 0
    %279 = vmatpush2.bf16.msra.mxu0 0
    %280 = vmatprep.subr.bf16.mxu0 0
    %281 = vmatpush2.bf16.msra.mxu0 0
    %282 = vmatprep.subr.bf16.mxu0 0
    %283 = vmatpush2.bf16.msra.mxu0 0
    %284 = vmatprep.mubr.bf16.mxu0 0
    %285 = vmatmul.mubr.bf16.gmra.mxu0 %v127
    %v286 = vpop.f32.mrf.mxu0
    %v287 = vadd.f32 0.0, %v286
    %v288 = vpop.f32.mrf.mxu0
    %v289 = vadd.f32 0.0, %v288
    %v290 = vpop.f32.mrf.mxu0
    %v291 = vpop.f32.mrf.mxu0
    %292 = vdwg.mxu0
    %293 = vmatprep.subr.bf16.mxu0 0
    %294 = vmatpush1.bf16.msra.mxu0 0
    %295 = vmatprep.subr.bf16.mxu0 0
    %296 = vmatpush1.bf16.msra.mxu0 0
    %297 = vmatprep.subr.bf16.mxu0 0
    %298 = vmatpush1.bf16.msra.mxu0 0
    %299 = vmatprep.subr.bf16.mxu0 0
    %300 = vmatpush1.bf16.msra.mxu0 0
    %301 = vmatprep.subr.bf16.mxu0 0
    %302 = vmatpush1.bf16.msra.mxu0 0
    %303 = vmatprep.subr.bf16.mxu0 0
    %304 = vmatpush1.bf16.msra.mxu0 0
    %305 = vmatprep.subr.bf16.mxu0 0
    %306 = vmatpush1.bf16.msra.mxu0 0
    %307 = vmatprep.subr.bf16.mxu0 %v102
    %308 = vmatpush1.bf16.msra.mxu0 %v101
    %309 = vmatprep.subr.bf16.mxu0 0
    %310 = vmatpush2.bf16.msra.mxu0 0
    %311 = vmatprep.subr.bf16.mxu0 0
    %312 = vmatpush2.bf16.msra.mxu0 0
    %313 = vmatprep.subr.bf16.mxu0 0
    %314 = vmatpush2.bf16.msra.mxu0 0
    %315 = vmatprep.subr.bf16.mxu0 0
    %316 = vmatpush2.bf16.msra.mxu0 0
    %317 = vmatprep.subr.bf16.mxu0 0
    %318 = vmatpush2.bf16.msra.mxu0 0
    %319 = vmatprep.subr.bf16.mxu0 0
    %320 = vmatpush2.bf16.msra.mxu0 0
    %321 = vmatprep.subr.bf16.mxu0 0
    %322 = vmatpush2.bf16.msra.mxu0 0
    %323 = vmatprep.subr.bf16.mxu0 0
    %324 = vmatpush2.bf16.msra.mxu0 0
    %325 = vmatprep.mubr.bf16.mxu0 0
    %326 = vmatmul.mubr.bf16.gmra.mxu0 %v127
    %v327 = vpop.f32.mrf.mxu0
    %v328 = vadd.f32 0.0, %v327
    %v329 = vpop.f32.mrf.mxu0
    %v330 = vadd.f32 0.0, %v329
    %v331 = vpop.f32.mrf.mxu0
    %v332 = vpop.f32.mrf.mxu0
    %333 = vdwg.mxu0
    %334 = vmatprep.subr.bf16.mxu0 0
    %335 = vmatpush1.bf16.msra.mxu0 0
    %336 = vmatprep.subr.bf16.mxu0 0
    %337 = vmatpush1.bf16.msra.mxu0 0
    %338 = vmatprep.subr.bf16.mxu0 0
    %339 = vmatpush1.bf16.msra.mxu0 0
    %340 = vmatprep.subr.bf16.mxu0 0
    %341 = vmatpush1.bf16.msra.mxu0 0
    %342 = vmatprep.subr.bf16.mxu0 0
    %343 = vmatpush1.bf16.msra.mxu0 0
    %344 = vmatprep.subr.bf16.mxu0 0
    %345 = vmatpush1.bf16.msra.mxu0 0
    %346 = vmatprep.subr.bf16.mxu0 0
    %347 = vmatpush1.bf16.msra.mxu0 0
    %348 = vmatprep.subr.bf16.mxu0 %v104
    %349 = vmatpush1.bf16.msra.mxu0 %v103
    %350 = vmatprep.subr.bf16.mxu0 0
    %351 = vmatpush2.bf16.msra.mxu0 0
    %352 = vmatprep.subr.bf16.mxu0 0
    %353 = vmatpush2.bf16.msra.mxu0 0
    %354 = vmatprep.subr.bf16.mxu0 0
    %355 = vmatpush2.bf16.msra.mxu0 0
    %356 = vmatprep.subr.bf16.mxu0 0
    %357 = vmatpush2.bf16.msra.mxu0 0
    %358 = vmatprep.subr.bf16.mxu0 0
    %359 = vmatpush2.bf16.msra.mxu0 0
    %360 = vmatprep.subr.bf16.mxu0 0
    %361 = vmatpush2.bf16.msra.mxu0 0
    %362 = vmatprep.subr.bf16.mxu0 0
    %363 = vmatpush2.bf16.msra.mxu0 0
    %364 = vmatprep.subr.bf16.mxu0 0
    %365 = vmatpush2.bf16.msra.mxu0 0
    %366 = vmatprep.mubr.bf16.mxu0 0
    %367 = vmatmul.mubr.bf16.gmra.mxu0 %v127
    %v368 = vpop.f32.mrf.mxu0
    %v369 = vadd.f32 0.0, %v368
    %v370 = vpop.f32.mrf.mxu0
    %v371 = vadd.f32 0.0, %v370
    %v372 = vpop.f32.mrf.mxu0
    %v373 = vpop.f32.mrf.mxu0
    %374 = vdwg.mxu0
    %375 = vmatprep.subr.bf16.mxu0 0
    %376 = vmatpush1.bf16.msra.mxu0 0
    %377 = vmatprep.subr.bf16.mxu0 0
    %378 = vmatpush1.bf16.msra.mxu0 0
    %379 = vmatprep.subr.bf16.mxu0 0
    %380 = vmatpush1.bf16.msra.mxu0 0
    %381 = vmatprep.subr.bf16.mxu0 0
    %382 = vmatpush1.bf16.msra.mxu0 0
    %383 = vmatprep.subr.bf16.mxu0 0
    %384 = vmatpush1.bf16.msra.mxu0 0
    %385 = vmatprep.subr.bf16.mxu0 0
    %386 = vmatpush1.bf16.msra.mxu0 0
    %387 = vmatprep.subr.bf16.mxu0 0
    %388 = vmatpush1.bf16.msra.mxu0 0
    %389 = vmatprep.subr.bf16.mxu0 %v106
    %390 = vmatpush1.bf16.msra.mxu0 %v105
    %391 = vmatprep.subr.bf16.mxu0 0
    %392 = vmatpush2.bf16.msra.mxu0 0
    %393 = vmatprep.subr.bf16.mxu0 0
    %394 = vmatpush2.bf16.msra.mxu0 0
    %395 = vmatprep.subr.bf16.mxu0 0
    %396 = vmatpush2.bf16.msra.mxu0 0
    %397 = vmatprep.subr.bf16.mxu0 0
    %398 = vmatpush2.bf16.msra.mxu0 0
    %399 = vmatprep.subr.bf16.mxu0 0
    %400 = vmatpush2.bf16.msra.mxu0 0
    %401 = vmatprep.subr.bf16.mxu0 0
    %402 = vmatpush2.bf16.msra.mxu0 0
    %403 = vmatprep.subr.bf16.mxu0 0
    %404 = vmatpush2.bf16.msra.mxu0 0
    %405 = vmatprep.subr.bf16.mxu0 0
    %406 = vmatpush2.bf16.msra.mxu0 0
    %407 = vmatprep.mubr.bf16.mxu0 0
    %408 = vmatmul.mubr.bf16.gmra.mxu0 %v127
    %v409 = vpop.f32.mrf.mxu0
    %v410 = vadd.f32 0.0, %v409
    %v411 = vpop.f32.mrf.mxu0
    %v412 = vadd.f32 0.0, %v411
    %v413 = vpop.f32.mrf.mxu0
    %v414 = vpop.f32.mrf.mxu0
    %415 = vdwg.mxu0
    %416 = vmatprep.subr.bf16.mxu0 0
    %417 = vmatpush1.bf16.msra.mxu0 0
    %418 = vmatprep.subr.bf16.mxu0 0
    %419 = vmatpush1.bf16.msra.mxu0 0
    %420 = vmatprep.subr.bf16.mxu0 0
    %421 = vmatpush1.bf16.msra.mxu0 0
    %422 = vmatprep.subr.bf16.mxu0 0
    %423 = vmatpush1.bf16.msra.mxu0 0
    %424 = vmatprep.subr.bf16.mxu0 0
    %425 = vmatpush1.bf16.msra.mxu0 0
    %426 = vmatprep.subr.bf16.mxu0 0
    %427 = vmatpush1.bf16.msra.mxu0 0
    %428 = vmatprep.subr.bf16.mxu0 0
    %429 = vmatpush1.bf16.msra.mxu0 0
    %430 = vmatprep.subr.bf16.mxu0 %v108
    %431 = vmatpush1.bf16.msra.mxu0 %v107
    %432 = vmatprep.subr.bf16.mxu0 0
    %433 = vmatpush2.bf16.msra.mxu0 0
    %434 = vmatprep.subr.bf16.mxu0 0
    %435 = vmatpush2.bf16.msra.mxu0 0
    %436 = vmatprep.subr.bf16.mxu0 0
    %437 = vmatpush2.bf16.msra.mxu0 0
    %438 = vmatprep.subr.bf16.mxu0 0
    %439 = vmatpush2.bf16.msra.mxu0 0
    %440 = vmatprep.subr.bf16.mxu0 0
    %441 = vmatpush2.bf16.msra.mxu0 0
    %442 = vmatprep.subr.bf16.mxu0 0
    %443 = vmatpush2.bf16.msra.mxu0 0
    %444 = vmatprep.subr.bf16.mxu0 0
    %445 = vmatpush2.bf16.msra.mxu0 0
    %446 = vmatprep.subr.bf16.mxu0 0
    %447 = vmatpush2.bf16.msra.mxu0 0
    %448 = vmatprep.mubr.bf16.mxu0 0
    %449 = vmatmul.mubr.bf16.gmra.mxu0 %v127
    %v450 = vpop.f32.mrf.mxu0
    %v451 = vadd.f32 0.0, %v450
    %v452 = vpop.f32.mrf.mxu0
    %v453 = vadd.f32 0.0, %v452
    %v454 = vpop.f32.mrf.mxu0
    %v455 = vpop.f32.mrf.mxu0
    %456 = vdwg.mxu0
    %v457 = vpack.c.bf16 %v164, %v164
    %v458 = vpack.c.bf16 %v166, %v166
    %v459 = vpack.c.bf16 %v205, %v205
    %v460 = vpack.c.bf16 %v207, %v207
    %v461 = vpack.c.bf16 %v246, %v246
    %v462 = vpack.c.bf16 %v248, %v248
    %v463 = vpack.c.bf16 %v287, %v287
    %v464 = vpack.c.bf16 %v289, %v289
    %v465 = vpack.c.bf16 %v328, %v328
    %v466 = vpack.c.bf16 %v330, %v330
    %v467 = vpack.c.bf16 %v369, %v369
    %v468 = vpack.c.bf16 %v371, %v371
    %v469 = vpack.c.bf16 %v410, %v410
    %v470 = vpack.c.bf16 %v412, %v412
    %v471 = vpack.c.bf16 %v451, %v451
    %v472 = vpack.c.bf16 %v453, %v453
    %v489 = vcombine.low %v457, %v458
    %v490 = vcombine.low %v459, %v460
    %v491 = vcombine.low %v461, %v462
    %v492 = vcombine.low %v463, %v464
    %v494 = vunpack.c.l.s4 1966171168
    %v495 = vunpack.c.0.s8 %v494
    %v496 = vlaneseq
    %v497 = vshrl.u32 %v496, 7
    %v498 = vsub.s32 %v495, %v497
    %v499 = vrot.slane %v489, %v498
    %v501 = vunpack.c.l.s4 1966171168
    %v502 = vunpack.c.0.s8 %v501
    %v503 = vlaneseq
    %v504 = vshrl.u32 %v503, 7
    %v505 = vsub.s32 %v502, %v504
    %v506 = vrot.slane %v490, %v505
    %v508 = vunpack.c.l.s4 1966171168
    %v509 = vunpack.c.0.s8 %v508
    %v510 = vlaneseq
    %v511 = vshrl.u32 %v510, 7
    %v512 = vsub.s32 %v509, %v511
    %v513 = vrot.slane %v491, %v512
    %v515 = vunpack.c.l.s4 1966171168
    %v516 = vunpack.c.0.s8 %v515
    %v517 = vlaneseq
    %v518 = vshrl.u32 %v517, 7
    %v519 = vsub.s32 %v516, %v518
    %v520 = vrot.slane %v492, %v519
    %v521 = vcombine.low %v499, %v506
    %v522 = vcombine.low %v513, %v520
    %v524 = vunpack.c.l.s4 1966171168
    %v525 = vunpack.c.0.s8 %v524
    %v526 = vlaneseq
    %v527 = vshrl.u32 %v526, 7
    %v528 = vsub.s32 %v525, %v527
    %v529 = vrot.slane %v521, %v528
    %v531 = vunpack.c.l.s4 1966171168
    %v532 = vunpack.c.0.s8 %v531
    %v533 = vlaneseq
    %v534 = vshrl.u32 %v533, 7
    %v535 = vsub.s32 %v532, %v534
    %v536 = vrot.slane %v522, %v535
    %v537 = vcombine.low %v529, %v536
    %v538 = vcombine.low %v465, %v466
    %v539 = vcombine.low %v467, %v468
    %v540 = vcombine.low %v469, %v470
    %v541 = vcombine.low %v471, %v472
    %v543 = vunpack.c.l.s4 1966171168
    %v544 = vunpack.c.0.s8 %v543
    %v545 = vlaneseq
    %v546 = vshrl.u32 %v545, 7
    %v547 = vsub.s32 %v544, %v546
    %v548 = vrot.slane %v538, %v547
    %v550 = vunpack.c.l.s4 1966171168
    %v551 = vunpack.c.0.s8 %v550
    %v552 = vlaneseq
    %v553 = vshrl.u32 %v552, 7
    %v554 = vsub.s32 %v551, %v553
    %v555 = vrot.slane %v539, %v554
    %v557 = vunpack.c.l.s4 1966171168
    %v558 = vunpack.c.0.s8 %v557
    %v559 = vlaneseq
    %v560 = vshrl.u32 %v559, 7
    %v561 = vsub.s32 %v558, %v560
    %v562 = vrot.slane %v540, %v561
    %v564 = vunpack.c.l.s4 1966171168
    %v565 = vunpack.c.0.s8 %v564
    %v566 = vlaneseq
    %v567 = vshrl.u32 %v566, 7
    %v568 = vsub.s32 %v565, %v567
    %v569 = vrot.slane %v541, %v568
    %v570 = vcombine.low %v548, %v555
    %v571 = vcombine.low %v562, %v569
    %v573 = vunpack.c.l.s4 1966171168
    %v574 = vunpack.c.0.s8 %v573
    %v575 = vlaneseq
    %v576 = vshrl.u32 %v575, 7
    %v577 = vsub.s32 %v574, %v576
    %v578 = vrot.slane %v570, %v577
    %v580 = vunpack.c.l.s4 1966171168
    %v581 = vunpack.c.0.s8 %v580
    %v582 = vlaneseq
    %v583 = vshrl.u32 %v582, 7
    %v584 = vsub.s32 %v581, %v583
    %v585 = vrot.slane %v571, %v584
    %v586 = vcombine.low %v578, %v585
    %589 = vst [vmem:[%s2] sm:$0xff] %v537
    %590 = vst [vmem:[%s2 + $0x8] sm:$0xff] %v586
    %v607 = vcombine.low %v164, %v166
    %v608 = vcombine.low %v205, %v207
    %v609 = vcombine.low %v246, %v248
    %v610 = vcombine.low %v287, %v289
    %v612 = vunpack.c.l.s4 1966171168
    %v613 = vunpack.c.0.s8 %v612
    %v614 = vlaneseq
    %v615 = vshrl.u32 %v614, 7
    %v616 = vsub.s32 %v613, %v615
    %v617 = vrot.slane %v607, %v616
    %v619 = vunpack.c.l.s4 1966171168
    %v620 = vunpack.c.0.s8 %v619
    %v621 = vlaneseq
    %v622 = vshrl.u32 %v621, 7
    %v623 = vsub.s32 %v620, %v622
    %v624 = vrot.slane %v608, %v623
    %v626 = vunpack.c.l.s4 1966171168
    %v627 = vunpack.c.0.s8 %v626
    %v628 = vlaneseq
    %v629 = vshrl.u32 %v628, 7
    %v630 = vsub.s32 %v627, %v629
    %v631 = vrot.slane %v609, %v630
    %v633 = vunpack.c.l.s4 1966171168
    %v634 = vunpack.c.0.s8 %v633
    %v635 = vlaneseq
    %v636 = vshrl.u32 %v635, 7
    %v637 = vsub.s32 %v634, %v636
    %v638 = vrot.slane %v610, %v637
    %v639 = vcombine.low %v617, %v624
    %v640 = vcombine.high %v617, %v624
    %v641 = vcombine.low %v631, %v638
    %v642 = vcombine.high %v631, %v638
    %v644 = vunpack.c.l.s4 1966171168
    %v645 = vunpack.c.0.s8 %v644
    %v646 = vlaneseq
    %v647 = vshrl.u32 %v646, 7
    %v648 = vsub.s32 %v645, %v647
    %v649 = vrot.slane %v639, %v648
    %v651 = vunpack.c.l.s4 1966171168
    %v652 = vunpack.c.0.s8 %v651
    %v653 = vlaneseq
    %v654 = vshrl.u32 %v653, 7
    %v655 = vsub.s32 %v652, %v654
    %v656 = vrot.slane %v640, %v655
    %v658 = vunpack.c.l.s4 1966171168
    %v659 = vunpack.c.0.s8 %v658
    %v660 = vlaneseq
    %v661 = vshrl.u32 %v660, 7
    %v662 = vsub.s32 %v659, %v661
    %v663 = vrot.slane %v641, %v662
    %v665 = vunpack.c.l.s4 1966171168
    %v666 = vunpack.c.0.s8 %v665
    %v667 = vlaneseq
    %v668 = vshrl.u32 %v667, 7
    %v669 = vsub.s32 %v666, %v668
    %v670 = vrot.slane %v642, %v669
    %v671 = vcombine.low %v649, %v663
    %v672 = vcombine.low %v656, %v670
    %v673 = vcombine.low %v328, %v330
    %v674 = vcombine.low %v369, %v371
    %v675 = vcombine.low %v410, %v412
    %v676 = vcombine.low %v451, %v453
    %v678 = vunpack.c.l.s4 1966171168
    %v679 = vunpack.c.0.s8 %v678
    %v680 = vlaneseq
    %v681 = vshrl.u32 %v680, 7
    %v682 = vsub.s32 %v679, %v681
    %v683 = vrot.slane %v673, %v682
    %v685 = vunpack.c.l.s4 1966171168
    %v686 = vunpack.c.0.s8 %v685
    %v687 = vlaneseq
    %v688 = vshrl.u32 %v687, 7
    %v689 = vsub.s32 %v686, %v688
    %v690 = vrot.slane %v674, %v689
    %v692 = vunpack.c.l.s4 1966171168
    %v693 = vunpack.c.0.s8 %v692
    %v694 = vlaneseq
    %v695 = vshrl.u32 %v694, 7
    %v696 = vsub.s32 %v693, %v695
    %v697 = vrot.slane %v675, %v696
    %v699 = vunpack.c.l.s4 1966171168
    %v700 = vunpack.c.0.s8 %v699
    %v701 = vlaneseq
    %v702 = vshrl.u32 %v701, 7
    %v703 = vsub.s32 %v700, %v702
    %v704 = vrot.slane %v676, %v703
    %v705 = vcombine.low %v683, %v690
    %v706 = vcombine.high %v683, %v690
    %v707 = vcombine.low %v697, %v704
    %v708 = vcombine.high %v697, %v704
    %v710 = vunpack.c.l.s4 1966171168
    %v711 = vunpack.c.0.s8 %v710
    %v712 = vlaneseq
    %v713 = vshrl.u32 %v712, 7
    %v714 = vsub.s32 %v711, %v713
    %v715 = vrot.slane %v705, %v714
    %v717 = vunpack.c.l.s4 1966171168
    %v718 = vunpack.c.0.s8 %v717
    %v719 = vlaneseq
    %v720 = vshrl.u32 %v719, 7
    %v721 = vsub.s32 %v718, %v720
    %v722 = vrot.slane %v706, %v721
    %v724 = vunpack.c.l.s4 1966171168
    %v725 = vunpack.c.0.s8 %v724
    %v726 = vlaneseq
    %v727 = vshrl.u32 %v726, 7
    %v728 = vsub.s32 %v725, %v727
    %v729 = vrot.slane %v707, %v728
    %v731 = vunpack.c.l.s4 1966171168
    %v732 = vunpack.c.0.s8 %v731
    %v733 = vlaneseq
    %v734 = vshrl.u32 %v733, 7
    %v735 = vsub.s32 %v732, %v734
    %v736 = vrot.slane %v708, %v735
    %v737 = vcombine.low %v715, %v729
    %v738 = vcombine.low %v722, %v736
    %v743 = vadd.f32 %v671, %v737
    %v744 = vadd.f32 %v743, %v672
    %v745 = vadd.f32 %v744, %v738
    %v746 = vrot.slane %v745, 4
    %v747 = vadd.f32 %v745, %v746
    %v748 = vrot.slane %v747, 2
    %v749 = vadd.f32 %v747, %v748
    %v750 = vrot.slane %v749, 1
    %v751 = vadd.f32 %v749, %v750
    %752 = vst [vmem:[%s3] sm:$0x1] %v751
    %v753 = vmul.f32 %v671, %v671
    %v754 = vmul.f32 %v737, %v737
    %v755 = vmul.f32 %v672, %v672
    %v756 = vmul.f32 %v738, %v738
    %v757 = vadd.f32 %v753, %v754
    %v758 = vadd.f32 %v757, %v755
    %v759 = vadd.f32 %v758, %v756
    %v760 = vrot.slane %v759, 4
    %v761 = vadd.f32 %v759, %v760
    %v762 = vrot.slane %v761, 2
    %v763 = vadd.f32 %v761, %v762
    %v764 = vrot.slane %v763, 1
    %v765 = vadd.f32 %v763, %v764
    %766 = vst [vmem:[%s3 + $0x1] sm:$0x1] %v765
    // Predicated region
    $region14: #{generator_forward.3} parent=1 // pred_check
      _
    $region15: #{generator_forward.3} parent=1 // pred_check_branch
      %768 = sbr.rel (0) target = $region17
    $region16: #{generator_forward.3} parent=1 // pred_region
      _
    $region17: #{generator_forward.3} parent=1 // pred_fallthru
      _
    // Predicated region
    $region18: #{generator_forward.3} parent=1 // pred_check
      _
    $region19: #{generator_forward.3} parent=1 // pred_check_branch
      %770 = sbr.rel (0) target = $region21
    $region20: #{generator_forward.3} parent=1 // pred_region
      _
    $region21: #{generator_forward.3} parent=1 // pred_fallthru
      _
    // Predicated region
    $region22: #{generator_forward.3} parent=1 // pred_check
      _
    $region23: #{generator_forward.3} parent=1 // pred_check_branch
      %772 = sbr.rel (0) target = $region25
    $region24: #{generator_forward.3} parent=1 // pred_region
      _
    $region25: #{generator_forward.3} parent=1 // pred_fallthru
      _
    // Predicated region
    $region26: #{generator_forward.3} parent=1 // pred_check
      _
    $region27: #{generator_forward.3} parent=1 // pred_check_branch
      %774 = sbr.rel (0) target = $region29
    $region28: #{generator_forward.3} parent=1 // pred_region
      _
    $region29: #{generator_forward.3} parent=1 // pred_fallthru
      _
    %775 = vsyncpa [#allocation3], 1

// kernel: generator_forward.4
$region0: #{generator_forward.4}
  #allocation0 [shape = 'u32[]', space=smem, size = 0x4, offset = 0x4, fixed_abs, tag = 'smem constant byte address 0x4 - core index']
  #allocation1 [shape = 'u32[144,128]{1,0:T(1,128)}', space=vmem, size = 0x12000, scoped, tag = 'internal scratch']
  #allocation2 [shape = 'bf16[2,6,6,128]{3,2,1,0:T(8,128)(2,1)}', space=vmem, size = 0x6000, scoped, tag = 'scratch operand']
  %s0 = inlined_call_operand.vmem [shape: bf16[2,4,4,128], index: 0, kind: input, shape index: {}]
  %s1 = inlined_call_operand.vmem [shape: f32[1,128], index: 1, kind: input, shape index: {}]
  %s2 = inlined_call_operand.vmem [shape: f32[1,128], index: 2, kind: input, shape index: {}]
  %s3 = inlined_call_operand.hbm [shape: bf16[128,2048], index: 3, kind: input, shape index: {}]
  %s4 = inlined_call_operand.vmem [shape: bf16[2,4,2,4,256], index: 4, kind: output, shape index: {0}]
  %s5 = inlined_call_operand.vmem [shape: f32[1,2,128], index: 5, kind: output, shape index: {1}]
  %6 = xla_tuple %s4, %s5
  %s7 = sld [smem:[#allocation0]]
  $region38: #{generator_forward.4} parent=0
    _
  %s9 = ssub.s32 1, %s7
  %s10 = scalar_select 0, %s9, %s7
  $region1: #{generator_forward.4} parent=0
    #allocation3 [shape = 'u8[524288]{0}', space=vmem, size = 0x80000, scoped, tag = 'input window, operand 3, single buffered']
    #allocation4 [shape = 's32[1]{0}', space=sflag, size = 0x4, scoped, tag = 'scoped memory for generator_forward.4']
    %11 = vsyncpa [#allocation4], 0
    // Predicated region
    $region2: #{generator_forward.4} parent=1 // pred_check
      _
    $region3: #{generator_forward.4} parent=1 // pred_check_branch
      %13 = sbr.rel (0) target = $region5
    $region4: #{generator_forward.4} parent=1 // pred_region
      _
    $region5: #{generator_forward.4} parent=1 // pred_fallthru
      _
    // Predicated region
    $region6: #{generator_forward.4} parent=1 // pred_check
      _
    $region7: #{generator_forward.4} parent=1 // pred_check_branch
      %15 = sbr.rel (0) target = $region9
    $region8: #{generator_forward.4} parent=1 // pred_region
      _
    $region9: #{generator_forward.4} parent=1 // pred_fallthru
      _
    // Predicated region
    $region10: #{generator_forward.4} parent=1 // pred_check
      _
    $region11: #{generator_forward.4} parent=1 // pred_check_branch
      %17 = sbr.rel (0) target = $region13
    $region12: #{generator_forward.4} parent=1 // pred_region
      _
    $region13: #{generator_forward.4} parent=1 // pred_fallthru
      _
    // Predicated region
    $region14: #{generator_forward.4} parent=1 // pred_check
      _
    $region15: #{generator_forward.4} parent=1 // pred_check_branch
      %19 = sbr.rel (0) target = $region17
    $region16: #{generator_forward.4} parent=1 // pred_region
      %s21 = ssub.s32 16384, 16384
      %22 = vsyncadd [#allocation4], %s21
      %s23 = sshll.u32 [#allocation3], 4
      %s24 = int_to_ptr.vmem [resolvable:$true] %s23
      %29 = dma.hbm_to_vmem [thread:$0]  %s3, 16384, %s24, [#allocation4], 1024, 1024, 64
    $region17: #{generator_forward.4} parent=1 // pred_fallthru
      _
    // Predicated region
    $region18: #{generator_forward.4} parent=1 // pred_check
      _
    $region19: #{generator_forward.4} parent=1 // pred_check_branch
      %31 = sbr.rel (0) target = $region21
    $region20: #{generator_forward.4} parent=1 // pred_region
      %32 = dma.done [#allocation4], 16384
    $region21: #{generator_forward.4} parent=1 // pred_fallthru
      _
    %34 = vst [vmem:[#allocation2] sm:$0x7] 0
    %35 = vst [vmem:[#allocation2 + $0x18] sm:$0x7] 0
    %s36 = scalar_lea.vmem [#allocation2], 20
    %37 = vst [vmem:[%s36] sm:$0x7] 0
    %38 = vst [vmem:[%s36 + $0x18] sm:$0x7] 0
    %vm39 = vcmask 1040384
    %vm40 = vsmask.f32 256
    %vm41 = vmand %vm39, %vm40
    %v42 = vld [vmem:[#allocation2] sm:$0x1]
    %v43 = vsel %vm41, 0, %v42
    %44 = vst [vmem:[#allocation2] sm:$0x1] %v43
    %v45 = vld [vmem:[#allocation2 + $0x4] sm:$0x1]
    %v46 = vsel %vm41, 0, %v45
    %47 = vst [vmem:[#allocation2 + $0x4] sm:$0x1] %v46
    %v48 = vld [vmem:[#allocation2 + $0x8] sm:$0x1]
    %v49 = vsel %vm41, 0, %v48
    %50 = vst [vmem:[#allocation2 + $0x8] sm:$0x1] %v49
    %v51 = vld [vmem:[#allocation2 + $0xc] sm:$0x1]
    %v52 = vsel %vm41, 0, %v51
    %53 = vst [vmem:[#allocation2 + $0xc] sm:$0x1] %v52
    %v54 = vld [vmem:[#allocation2 + $0x10] sm:$0x1]
    %v55 = vsel %vm41, 0, %v54
    %56 = vst [vmem:[#allocation2 + $0x10] sm:$0x1] %v55
    %v57 = vld [vmem:[#allocation2 + $0x14] sm:$0x1]
    %v58 = vsel %vm41, 0, %v57
    %59 = vst [vmem:[#allocation2 + $0x14] sm:$0x1] %v58
    %v60 = vld [vmem:[#allocation2 + $0x18] sm:$0x1]
    %v61 = vsel %vm41, 0, %v60
    %62 = vst [vmem:[#allocation2 + $0x18] sm:$0x1] %v61
    %v63 = vld [vmem:[#allocation2 + $0x1c] sm:$0x1]
    %v64 = vsel %vm41, 0, %v63
    %65 = vst [vmem:[#allocation2 + $0x1c] sm:$0x1] %v64
    %v66 = vld [vmem:[#allocation2 + $0x20] sm:$0x1]
    %v67 = vsel %vm41, 0, %v66
    %68 = vst [vmem:[#allocation2 + $0x20] sm:$0x1] %v67
    %v69 = vld [vmem:[#allocation2 + $0x24] sm:$0x1]
    %v70 = vsel %vm41, 0, %v69
    %71 = vst [vmem:[#allocation2 + $0x24] sm:$0x1] %v70
    %v72 = vld [vmem:[#allocation2 + $0x28] sm:$0x1]
    %v73 = vsel %vm41, 0, %v72
    %74 = vst [vmem:[#allocation2 + $0x28] sm:$0x1] %v73
    %v75 = vld [vmem:[#allocation2 + $0x2c] sm:$0x1]
    %v76 = vsel %vm41, 0, %v75
    %77 = vst [vmem:[#allocation2 + $0x2c] sm:$0x1] %v76
    %vm78 = vcmask 1042434
    %vm79 = vsmask.f32 7946
    %vm80 = vmand %vm78, %vm79
    %v81 = vld [vmem:[#allocation2] sm:$0x4]
    %v82 = vsel %vm80, 0, %v81
    %83 = vst [vmem:[#allocation2] sm:$0x4] %v82
    %v84 = vld [vmem:[#allocation2 + $0x4] sm:$0x4]
    %v85 = vsel %vm80, 0, %v84
    %86 = vst [vmem:[#allocation2 + $0x4] sm:$0x4] %v85
    %v87 = vld [vmem:[#allocation2 + $0x8] sm:$0x4]
    %v88 = vsel %vm80, 0, %v87
    %89 = vst [vmem:[#allocation2 + $0x8] sm:$0x4] %v88
    %v90 = vld [vmem:[#allocation2 + $0xc] sm:$0x4]
    %v91 = vsel %vm80, 0, %v90
    %92 = vst [vmem:[#allocation2 + $0xc] sm:$0x4] %v91
    %v93 = vld [vmem:[#allocation2 + $0x10] sm:$0x4]
    %v94 = vsel %vm80, 0, %v93
    %95 = vst [vmem:[#allocation2 + $0x10] sm:$0x4] %v94
    %v96 = vld [vmem:[#allocation2 + $0x14] sm:$0x4]
    %v97 = vsel %vm80, 0, %v96
    %98 = vst [vmem:[#allocation2 + $0x14] sm:$0x4] %v97
    %v99 = vld [vmem:[#allocation2 + $0x18] sm:$0x4]
    %v100 = vsel %vm80, 0, %v99
    %101 = vst [vmem:[#allocation2 + $0x18] sm:$0x4] %v100
    %v102 = vld [vmem:[#allocation2 + $0x1c] sm:$0x4]
    %v103 = vsel %vm80, 0, %v102
    %104 = vst [vmem:[#allocation2 + $0x1c] sm:$0x4] %v103
    %v105 = vld [vmem:[#allocation2 + $0x20] sm:$0x4]
    %v106 = vsel %vm80, 0, %v105
    %107 = vst [vmem:[#allocation2 + $0x20] sm:$0x4] %v106
    %v108 = vld [vmem:[#allocation2 + $0x24] sm:$0x4]
    %v109 = vsel %vm80, 0, %v108
    %110 = vst [vmem:[#allocation2 + $0x24] sm:$0x4] %v109
    %v111 = vld [vmem:[#allocation2 + $0x28] sm:$0x4]
    %v112 = vsel %vm80, 0, %v111
    %113 = vst [vmem:[#allocation2 + $0x28] sm:$0x4] %v112
    %v114 = vld [vmem:[#allocation2 + $0x2c] sm:$0x4]
    %v115 = vsel %vm80, 0, %v114
    %116 = vst [vmem:[#allocation2 + $0x2c] sm:$0x4] %v115
    %v117 = vld [vmem:[%s0] sm:$0x3]
    %v118 = vld [vmem:[%s0 + $0x2] sm:$0x3]
    %v119 = vld [vmem:[%s0 + $0x4] sm:$0x3]
    %v120 = vld [vmem:[%s0 + $0x6] sm:$0x3]
    %v121 = vld [vmem:[%s0 + $0x8] sm:$0x3]
    %v122 = vld [vmem:[%s0 + $0xa] sm:$0x3]
    %v123 = vld [vmem:[%s0 + $0xc] sm:$0x3]
    %v124 = vld [vmem:[%s0 + $0xe] sm:$0x3]
    %v125 = vunpack.c.l.bf16 %v117
    %v126 = vunpack.c.l.bf16 %v118
    %v127 = vunpack.c.l.bf16 %v119
    %v128 = vunpack.c.l.bf16 %v120
    %v129 = vunpack.c.l.bf16 %v121
    %v130 = vunpack.c.l.bf16 %v122
    %v131 = vunpack.c.l.bf16 %v123
    %v132 = vunpack.c.l.bf16 %v124
    %v133 = vld [vmem:[%s1] sm:$0x1]
    %v135 = vlaneseq
    %v136 = vshrl.u32 %v135, 7
    %v137 = vsub.s32 0, %v136
    %v138 = vrot.slane %v133, %v137
    %v140 = vmul.f32 %v125, %v138
    %v141 = vmul.f32 %v126, %v138
    %v142 = vmul.f32 %v127, %v138
    %v143 = vmul.f32 %v128, %v138
    %v144 = vmul.f32 %v129, %v138
    %v145 = vmul.f32 %v130, %v138
    %v146 = vmul.f32 %v131, %v138
    %v147 = vmul.f32 %v132, %v138
    %v148 = vld [vmem:[%s2] sm:$0x1]
    %v150 = vlaneseq
    %v151 = vshrl.u32 %v150, 7
    %v152 = vsub.s32 0, %v151
    %v153 = vrot.slane %v148, %v152
    %v155 = vadd.f32 %v140, %v153
    %v156 = vadd.f32 %v141, %v153
    %v157 = vadd.f32 %v142, %v153
    %v158 = vadd.f32 %v143, %v153
    %v159 = vadd.f32 %v144, %v153
    %v160 = vadd.f32 %v145, %v153
    %v161 = vadd.f32 %v146, %v153
    %v162 = vadd.f32 %v147, %v153
    %v163 = vpack.c.bf16 %v155, %v155
    %v164 = vpack.c.bf16 %v156, %v156
    %v165 = vpack.c.bf16 %v157, %v157
    %v166 = vpack.c.bf16 %v158, %v158
    %v167 = vpack.c.bf16 %v159, %v159
    %v168 = vpack.c.bf16 %v160, %v160
    %v169 = vpack.c.bf16 %v161, %v161
    %v170 = vpack.c.bf16 %v162, %v162
    %v179 = vunpack.c.l.b16 %v163
    %v180 = vunpack.c.l.b16 %v164
    %v181 = vunpack.c.l.b16 %v165
    %v182 = vunpack.c.l.b16 %v166
    %v183 = vunpack.c.l.b16 %v167
    %v184 = vunpack.c.l.b16 %v168
    %v185 = vunpack.c.l.b16 %v169
    %v186 = vunpack.c.l.b16 %v170
    %v187 = vpack.c.b16 %v179, %v179
    %v188 = vpack.c.b16 %v180, %v180
    %v189 = vpack.c.b16 %v181, %v181
    %v190 = vpack.c.b16 %v182, %v182
    %v191 = vpack.c.b16 %v183, %v183
    %v192 = vpack.c.b16 %v184, %v184
    %v193 = vpack.c.b16 %v185, %v185
    %v194 = vpack.c.b16 %v186, %v186
    %v196 = vshrl.u32 %v187, 16
    %v198 = vrot.slane %v196, 7
    %v199 = vshll.u32 %v187, 16
    %v201 = vor.u32 %v198, %v199
    %v203 = vshrl.u32 %v188, 16
    %v205 = vrot.slane %v203, 7
    %v206 = vshll.u32 %v188, 16
    %v208 = vor.u32 %v205, %v206
    %v210 = vshrl.u32 %v189, 16
    %v212 = vrot.slane %v210, 7
    %v213 = vshll.u32 %v189, 16
    %v215 = vor.u32 %v212, %v213
    %v217 = vshrl.u32 %v190, 16
    %v219 = vrot.slane %v217, 7
    %v220 = vshll.u32 %v190, 16
    %v222 = vor.u32 %v219, %v220
    %v224 = vshrl.u32 %v191, 16
    %v226 = vrot.slane %v224, 7
    %v227 = vshll.u32 %v191, 16
    %v229 = vor.u32 %v226, %v227
    %v231 = vshrl.u32 %v192, 16
    %v233 = vrot.slane %v231, 7
    %v234 = vshll.u32 %v192, 16
    %v236 = vor.u32 %v233, %v234
    %v238 = vshrl.u32 %v193, 16
    %v240 = vrot.slane %v238, 7
    %v241 = vshll.u32 %v193, 16
    %v243 = vor.u32 %v240, %v241
    %v245 = vshrl.u32 %v194, 16
    %v247 = vrot.slane %v245, 7
    %v248 = vshll.u32 %v194, 16
    %v250 = vor.u32 %v247, %v248
    %s259 = scalar_lea.vmem [#allocation2], 4
    %vm260 = vcmask 1042432
    %vm261 = vsmask.f32 2306
    %vm262 = vmand %vm260, %vm261
    %v263 = vld [vmem:[%s259] sm:$0x7]
    %v264 = vsel %vm262, %v201, %v263
    %265 = vst [vmem:[%s259] sm:$0x7] %v264
    %v266 = vld [vmem:[%s259 + $0x4] sm:$0x7]
    %v267 = vsel %vm262, %v208, %v266
    %268 = vst [vmem:[%s259 + $0x4] sm:$0x7] %v267
    %v269 = vld [vmem:[%s259 + $0x8] sm:$0x7]
    %v270 = vsel %vm262, %v215, %v269
    %271 = vst [vmem:[%s259 + $0x8] sm:$0x7] %v270
    %v272 = vld [vmem:[%s259 + $0xc] sm:$0x7]
    %v273 = vsel %vm262, %v222, %v272
    %274 = vst [vmem:[%s259 + $0xc] sm:$0x7] %v273
    %v275 = vld [vmem:[%s259 + $0x18] sm:$0x7]
    %v276 = vsel %vm262, %v229, %v275
    %277 = vst [vmem:[%s259 + $0x18] sm:$0x7] %v276
    %v278 = vld [vmem:[%s259 + $0x1c] sm:$0x7]
    %v279 = vsel %vm262, %v236, %v278
    %280 = vst [vmem:[%s259 + $0x1c] sm:$0x7] %v279
    %v281 = vld [vmem:[%s259 + $0x20] sm:$0x7]
    %v282 = vsel %vm262, %v243, %v281
    %283 = vst [vmem:[%s259 + $0x20] sm:$0x7] %v282
    %v284 = vld [vmem:[%s259 + $0x24] sm:$0x7]
    %v285 = vsel %vm262, %v250, %v284
    %286 = vst [vmem:[%s259 + $0x24] sm:$0x7] %v285
    %v287 = vld [vmem:[#allocation2] sm:$0x3]
    %v288 = vld [vmem:[#allocation2 + $0x4] sm:$0x3]
    %v289 = vld [vmem:[#allocation2 + $0x8] sm:$0x3]
    %v290 = vld [vmem:[#allocation2 + $0xc] sm:$0x3]
    %v291 = vld [vmem:[#allocation2 + $0x18] sm:$0x3]
    %v292 = vld [vmem:[#allocation2 + $0x1c] sm:$0x3]
    %v293 = vld [vmem:[#allocation2 + $0x20] sm:$0x3]
    %v294 = vld [vmem:[#allocation2 + $0x24] sm:$0x3]
    %v295 = vld [vmem:[#allocation3] sm:$0xf]
    %v296 = vld [vmem:[#allocation3 + $0x40] sm:$0xf]
    %v297 = vld [vmem:[#allocation3 + $0x80] sm:$0xf]
    %v298 = vld [vmem:[#allocation3 + $0xc0] sm:$0xf]
    %v299 = vld [vmem:[#allocation3 + $0x100] sm:$0xf]
    %v300 = vld [vmem:[#allocation3 + $0x140] sm:$0xf]
    %v301 = vld [vmem:[#allocation3 + $0x180] sm:$0xf]
    %v302 = vld [vmem:[#allocation3 + $0x1c0] sm:$0xf]
    %v303 = vld [vmem:[#allocation3 + $0x200] sm:$0xf]
    %v304 = vld [vmem:[#allocation3 + $0x240] sm:$0xf]
    %v305 = vld [vmem:[#allocation3 + $0x280] sm:$0xf]
    %v306 = vld [vmem:[#allocation3 + $0x2c0] sm:$0xf]
    %v307 = vld [vmem:[#allocation3 + $0x300] sm:$0xf]
    %v308 = vld [vmem:[#allocation3 + $0x340] sm:$0xf]
    %v309 = vld [vmem:[#allocation3 + $0x380] sm:$0xf]
    %v310 = vld [vmem:[#allocation3 + $0x3c0] sm:$0xf]
    %v311 = vld [vmem:[#allocation2] sm:$0x7]
    %v312 = vld [vmem:[#allocation2 + $0x4] sm:$0x7]
    %v313 = vld [vmem:[#allocation2 + $0x8] sm:$0x7]
    %v314 = vld [vmem:[#allocation2 + $0xc] sm:$0x7]
    %v315 = vld [vmem:[#allocation2 + $0x18] sm:$0x7]
    %v316 = vld [vmem:[#allocation2 + $0x1c] sm:$0x7]
    %v317 = vld [vmem:[#allocation2 + $0x20] sm:$0x7]
    %v318 = vld [vmem:[#allocation2 + $0x24] sm:$0x7]
    %v328 = vunpack.c.l.s4 1983009808
    %v329 = vunpack.c.0.s8 %v328
    %v330 = vlaneseq
    %v331 = vshrl.u32 %v330, 7
    %v332 = vsub.s32 %v329, %v331
    %v333 = vrot.slane %v311, %v332
    %v334 = vcombine.high %v333, %v333
    %v336 = vunpack.c.l.s4 1983009808
    %v337 = vunpack.c.0.s8 %v336
    %v338 = vlaneseq
    %v339 = vshrl.u32 %v338, 7
    %v340 = vsub.s32 %v337, %v339
    %v341 = vrot.slane %v312, %v340
    %v342 = vcombine.high %v341, %v341
    %v344 = vunpack.c.l.s4 1983009808
    %v345 = vunpack.c.0.s8 %v344
    %v346 = vlaneseq
    %v347 = vshrl.u32 %v346, 7
    %v348 = vsub.s32 %v345, %v347
    %v349 = vrot.slane %v313, %v348
    %v350 = vcombine.high %v349, %v349
    %v352 = vunpack.c.l.s4 1983009808
    %v353 = vunpack.c.0.s8 %v352
    %v354 = vlaneseq
    %v355 = vshrl.u32 %v354, 7
    %v356 = vsub.s32 %v353, %v355
    %v357 = vrot.slane %v314, %v356
    %v358 = vcombine.high %v357, %v357
    %v360 = vunpack.c.l.s4 1983009808
    %v361 = vunpack.c.0.s8 %v360
    %v362 = vlaneseq
    %v363 = vshrl.u32 %v362, 7
    %v364 = vsub.s32 %v361, %v363
    %v365 = vrot.slane %v315, %v364
    %v366 = vcombine.high %v365, %v365
    %v368 = vunpack.c.l.s4 1983009808
    %v369 = vunpack.c.0.s8 %v368
    %v370 = vlaneseq
    %v371 = vshrl.u32 %v370, 7
    %v372 = vsub.s32 %v369, %v371
    %v373 = vrot.slane %v316, %v372
    %v374 = vcombine.high %v373, %v373
    %v376 = vunpack.c.l.s4 1983009808
    %v377 = vunpack.c.0.s8 %v376
    %v378 = vlaneseq
    %v379 = vshrl.u32 %v378, 7
    %v380 = vsub.s32 %v377, %v379
    %v381 = vrot.slane %v317, %v380
    %v382 = vcombine.high %v381, %v381
    %v384 = vunpack.c.l.s4 1983009808
    %v385 = vunpack.c.0.s8 %v384
    %v386 = vlaneseq
    %v387 = vshrl.u32 %v386, 7
    %v388 = vsub.s32 %v385, %v387
    %v389 = vrot.slane %v318, %v388
    %v390 = vcombine.high %v389, %v389
    %vm391 = vsmask.f32 1280
    %vm392 = vsmask.f32 3336
    %vm393 = vmor %vm391, %vm392
    %vm394 = vsmask.f32 5392
    %vm395 = vmor %vm393, %vm394
    %vm396 = vsmask.f32 7448
    %vm397 = vmor %vm395, %vm396
    %v399 = vshrl.u32 %v333, 16
    %v401 = vrot.slane %v399, 6
    %v402 = vshll.u32 %v333, 16
    %v404 = vrot.slane %v402, 7
    %v405 = vor.u32 %v401, %v404
    %v406 = vrot.slane %v405, 2
    %v408 = vshll.u32 %v334, 16
    %v410 = vrot.slane %v408, 7
    %v411 = vsel %vm397, %v406, %v410
    %v413 = vshrl.u32 %v341, 16
    %v415 = vrot.slane %v413, 6
    %v416 = vshll.u32 %v341, 16
    %v418 = vrot.slane %v416, 7
    %v419 = vor.u32 %v415, %v418
    %v420 = vrot.slane %v419, 2
    %v422 = vshll.u32 %v342, 16
    %v424 = vrot.slane %v422, 7
    %v425 = vsel %vm397, %v420, %v424
    %v427 = vshrl.u32 %v349, 16
    %v429 = vrot.slane %v427, 6
    %v430 = vshll.u32 %v349, 16
    %v432 = vrot.slane %v430, 7
    %v433 = vor.u32 %v429, %v432
    %v434 = vrot.slane %v433, 2
    %v436 = vshll.u32 %v350, 16
    %v438 = vrot.slane %v436, 7
    %v439 = vsel %vm397, %v434, %v438
    %v441 = vshrl.u32 %v357, 16
    %v443 = vrot.slane %v441, 6
    %v444 = vshll.u32 %v357, 16
    %v446 = vrot.slane %v444, 7
    %v447 = vor.u32 %v443, %v446
    %v448 = vrot.slane %v447, 2
    %v450 = vshll.u32 %v358, 16
    %v452 = vrot.slane %v450, 7
    %v453 = vsel %vm397, %v448, %v452
    %v455 = vshrl.u32 %v365, 16
    %v457 = vrot.slane %v455, 6
    %v458 = vshll.u32 %v365, 16
    %v460 = vrot.slane %v458, 7
    %v461 = vor.u32 %v457, %v460
    %v462 = vrot.slane %v461, 2
    %v464 = vshll.u32 %v366, 16
    %v466 = vrot.slane %v464, 7
    %v467 = vsel %vm397, %v462, %v466
    %v469 = vshrl.u32 %v373, 16
    %v471 = vrot.slane %v469, 6
    %v472 = vshll.u32 %v373, 16
    %v474 = vrot.slane %v472, 7
    %v475 = vor.u32 %v471, %v474
    %v476 = vrot.slane %v475, 2
    %v478 = vshll.u32 %v374, 16
    %v480 = vrot.slane %v478, 7
    %v481 = vsel %vm397, %v476, %v480
    %v483 = vshrl.u32 %v381, 16
    %v485 = vrot.slane %v483, 6
    %v486 = vshll.u32 %v381, 16
    %v488 = vrot.slane %v486, 7
    %v489 = vor.u32 %v485, %v488
    %v490 = vrot.slane %v489, 2
    %v492 = vshll.u32 %v382, 16
    %v494 = vrot.slane %v492, 7
    %v495 = vsel %vm397, %v490, %v494
    %v497 = vshrl.u32 %v389, 16
    %v499 = vrot.slane %v497, 6
    %v500 = vshll.u32 %v389, 16
    %v502 = vrot.slane %v500, 7
    %v503 = vor.u32 %v499, %v502
    %v504 = vrot.slane %v503, 2
    %v506 = vshll.u32 %v390, 16
    %v508 = vrot.slane %v506, 7
    %v509 = vsel %vm397, %v504, %v508
    %v510 = vld [vmem:[#allocation3 + $0x4] sm:$0xff]
    %v511 = vld [vmem:[#allocation3 + $0x44] sm:$0xff]
    %v512 = vld [vmem:[#allocation3 + $0x84] sm:$0xff]
    %v513 = vld [vmem:[#allocation3 + $0xc4] sm:$0xff]
    %v514 = vld [vmem:[#allocation3 + $0x104] sm:$0xff]
    %v515 = vld [vmem:[#allocation3 + $0x144] sm:$0xff]
    %v516 = vld [vmem:[#allocation3 + $0x184] sm:$0xff]
    %v517 = vld [vmem:[#allocation3 + $0x1c4] sm:$0xff]
    %v518 = vld [vmem:[#allocation3 + $0x204] sm:$0xff]
    %v519 = vld [vmem:[#allocation3 + $0x244] sm:$0xff]
    %v520 = vld [vmem:[#allocation3 + $0x284] sm:$0xff]
    %v521 = vld [vmem:[#allocation3 + $0x2c4] sm:$0xff]
    %v522 = vld [vmem:[#allocation3 + $0x304] sm:$0xff]
    %v523 = vld [vmem:[#allocation3 + $0x344] sm:$0xff]
    %v524 = vld [vmem:[#allocation3 + $0x384] sm:$0xff]
    %v525 = vld [vmem:[#allocation3 + $0x3c4] sm:$0xff]
    %v526 = vcombine.low %v411, %v425
    %v527 = vcombine.low %v439, %v453
    %v529 = vunpack.c.l.s4 1983009808
    %v530 = vunpack.c.0.s8 %v529
    %v531 = vlaneseq
    %v532 = vshrl.u32 %v531, 7
    %v533 = vsub.s32 %v530, %v532
    %v534 = vrot.slane %v526, %v533
    %v536 = vunpack.c.l.s4 1983009808
    %v537 = vunpack.c.0.s8 %v536
    %v538 = vlaneseq
    %v539 = vshrl.u32 %v538, 7
    %v540 = vsub.s32 %v537, %v539
    %v541 = vrot.slane %v527, %v540
    %v542 = vcombine.low %v534, %v541
    %v543 = vcombine.low %v467, %v481
    %v544 = vcombine.low %v495, %v509
    %v546 = vunpack.c.l.s4 1983009808
    %v547 = vunpack.c.0.s8 %v546
    %v548 = vlaneseq
    %v549 = vshrl.u32 %v548, 7
    %v550 = vsub.s32 %v547, %v549
    %v551 = vrot.slane %v543, %v550
    %v553 = vunpack.c.l.s4 1983009808
    %v554 = vunpack.c.0.s8 %v553
    %v555 = vlaneseq
    %v556 = vshrl.u32 %v555, 7
    %v557 = vsub.s32 %v554, %v556
    %v558 = vrot.slane %v544, %v557
    %v559 = vcombine.low %v551, %v558
    %v578 = vunpack.c.l.b16 %v510
    %v579 = vunpack.c.h.b16 %v510
    %v580 = vunpack.c.l.b16 %v511
    %v581 = vunpack.c.h.b16 %v511
    %v582 = vunpack.c.l.b16 %v512
    %v583 = vunpack.c.h.b16 %v512
    %v584 = vunpack.c.l.b16 %v513
    %v585 = vunpack.c.h.b16 %v513
    %v586 = vunpack.c.l.b16 %v514
    %v587 = vunpack.c.h.b16 %v514
    %v588 = vunpack.c.l.b16 %v515
    %v589 = vunpack.c.h.b16 %v515
    %v590 = vunpack.c.l.b16 %v516
    %v591 = vunpack.c.h.b16 %v516
    %v592 = vunpack.c.l.b16 %v517
    %v593 = vunpack.c.h.b16 %v517
    %v594 = vunpack.c.l.b16 %v518
    %v595 = vunpack.c.h.b16 %v518
    %v596 = vunpack.c.l.b16 %v519
    %v597 = vunpack.c.h.b16 %v519
    %v598 = vunpack.c.l.b16 %v520
    %v599 = vunpack.c.h.b16 %v520
    %v600 = vunpack.c.l.b16 %v521
    %v601 = vunpack.c.h.b16 %v521
    %v602 = vunpack.c.l.b16 %v522
    %v603 = vunpack.c.h.b16 %v522
    %v604 = vunpack.c.l.b16 %v523
    %v605 = vunpack.c.h.b16 %v523
    %v606 = vunpack.c.l.b16 %v524
    %v607 = vunpack.c.h.b16 %v524
    %v608 = vunpack.c.l.b16 %v525
    %v609 = vunpack.c.h.b16 %v525
    %v610 = vpack.c.b16 %v580, %v578
    %v611 = vpack.c.b16 %v581, %v579
    %v612 = vpack.c.b16 %v584, %v582
    %v613 = vpack.c.b16 %v585, %v583
    %v614 = vpack.c.b16 %v588, %v586
    %v615 = vpack.c.b16 %v589, %v587
    %v616 = vpack.c.b16 %v592, %v590
    %v617 = vpack.c.b16 %v593, %v591
    %v618 = vpack.c.b16 %v596, %v594
    %v619 = vpack.c.b16 %v597, %v595
    %v620 = vpack.c.b16 %v600, %v598
    %v621 = vpack.c.b16 %v601, %v599
    %v622 = vpack.c.b16 %v604, %v602
    %v623 = vpack.c.b16 %v605, %v603
    %v624 = vpack.c.b16 %v608, %v606
    %v625 = vpack.c.b16 %v609, %v607
    %642 = vmatprep.subr.bf16.mxu0 %v625
    %643 = vmatpush1.bf16.msra.mxu0 %v624
    %644 = vmatprep.subr.bf16.mxu0 %v623
    %645 = vmatpush1.bf16.msra.mxu0 %v622
    %646 = vmatprep.subr.bf16.mxu0 %v621
    %647 = vmatpush1.bf16.msra.mxu0 %v620
    %648 = vmatprep.subr.bf16.mxu0 %v619
    %649 = vmatpush1.bf16.msra.mxu0 %v618
    %650 = vmatprep.subr.bf16.mxu0 %v617
    %651 = vmatpush1.bf16.msra.mxu0 %v616
    %652 = vmatprep.subr.bf16.mxu0 %v615
    %653 = vmatpush1.bf16.msra.mxu0 %v614
    %654 = vmatprep.subr.bf16.mxu0 %v613
    %655 = vmatpush1.bf16.msra.mxu0 %v612
    %656 = vmatprep.subr.bf16.mxu0 %v611
    %657 = vmatpush1.bf16.msra.mxu0 %v610
    %658 = vmatprep.subr.bf16.mxu0 0
    %659 = vmatpush2.bf16.msra.mxu0 0
    %660 = vmatprep.subr.bf16.mxu0 0
    %661 = vmatpush2.bf16.msra.mxu0 0
    %662 = vmatprep.subr.bf16.mxu0 0
    %663 = vmatpush2.bf16.msra.mxu0 0
    %664 = vmatprep.subr.bf16.mxu0 0
    %665 = vmatpush2.bf16.msra.mxu0 0
    %666 = vmatprep.subr.bf16.mxu0 0
    %667 = vmatpush2.bf16.msra.mxu0 0
    %668 = vmatprep.subr.bf16.mxu0 0
    %669 = vmatpush2.bf16.msra.mxu0 0
    %670 = vmatprep.subr.bf16.mxu0 0
    %671 = vmatpush2.bf16.msra.mxu0 0
    %672 = vmatprep.subr.bf16.mxu0 0
    %673 = vmatpush2.bf16.msra.mxu0 0
    %674 = vmatprep.mubr.bf16.mxu0 0
    %675 = vmatmul.mubr.bf16.gmra.mxu0 %v542
    %v676 = vpop.f32.mrf.mxu0
    %v677 = vadd.f32 0.0, %v676
    %v678 = vpop.f32.mrf.mxu0
    %v679 = vadd.f32 0.0, %v678
    %v680 = vpop.f32.mrf.mxu0
    %v681 = vadd.f32 0.0, %v680
    %v682 = vpop.f32.mrf.mxu0
    %v683 = vadd.f32 0.0, %v682
    %684 = vmatprep.mubr.bf16.mxu0 0
    %685 = vmatmul.mubr.bf16.gmra.mxu0 %v559
    %v686 = vpop.f32.mrf.mxu0
    %v687 = vadd.f32 0.0, %v686
    %v688 = vpop.f32.mrf.mxu0
    %v689 = vadd.f32 0.0, %v688
    %v690 = vpop.f32.mrf.mxu0
    %v691 = vadd.f32 0.0, %v690
    %v692 = vpop.f32.mrf.mxu0
    %v693 = vadd.f32 0.0, %v692
    %694 = vdwg.mxu0
    %v703 = vcombine.low %v287, %v288
    %v704 = vcombine.low %v289, %v290
    %v706 = vunpack.c.l.s4 1983009808
    %v707 = vunpack.c.0.s8 %v706
    %v708 = vlaneseq
    %v709 = vshrl.u32 %v708, 7
    %v710 = vsub.s32 %v707, %v709
    %v711 = vrot.slane %v703, %v710
    %v713 = vunpack.c.l.s4 1983009808
    %v714 = vunpack.c.0.s8 %v713
    %v715 = vlaneseq
    %v716 = vshrl.u32 %v715, 7
    %v717 = vsub.s32 %v714, %v716
    %v718 = vrot.slane %v704, %v717
    %v719 = vcombine.low %v711, %v718
    %v720 = vcombine.low %v291, %v292
    %v721 = vcombine.low %v293, %v294
    %v723 = vunpack.c.l.s4 1983009808
    %v724 = vunpack.c.0.s8 %v723
    %v725 = vlaneseq
    %v726 = vshrl.u32 %v725, 7
    %v727 = vsub.s32 %v724, %v726
    %v728 = vrot.slane %v720, %v727
    %v730 = vunpack.c.l.s4 1983009808
    %v731 = vunpack.c.0.s8 %v730
    %v732 = vlaneseq
    %v733 = vshrl.u32 %v732, 7
    %v734 = vsub.s32 %v731, %v733
    %v735 = vrot.slane %v721, %v734
    %v736 = vcombine.low %v728, %v735
    %v755 = vunpack.c.l.b16 %v295
    %v756 = vunpack.c.l.b16 %v296
    %v757 = vunpack.c.l.b16 %v297
    %v758 = vunpack.c.l.b16 %v298
    %v759 = vunpack.c.l.b16 %v299
    %v760 = vunpack.c.l.b16 %v300
    %v761 = vunpack.c.l.b16 %v301
    %v762 = vunpack.c.l.b16 %v302
    %v763 = vunpack.c.l.b16 %v303
    %v764 = vunpack.c.l.b16 %v304
    %v765 = vunpack.c.l.b16 %v305
    %v766 = vunpack.c.l.b16 %v306
    %v767 = vunpack.c.l.b16 %v307
    %v768 = vunpack.c.l.b16 %v308
    %v769 = vunpack.c.l.b16 %v309
    %v770 = vunpack.c.l.b16 %v310
    %v771 = vpack.c.b16 %v756, %v755
    %v772 = vpack.c.b16 %v758, %v757
    %v773 = vpack.c.b16 %v760, %v759
    %v774 = vpack.c.b16 %v762, %v761
    %v775 = vpack.c.b16 %v764, %v763
    %v776 = vpack.c.b16 %v766, %v765
    %v777 = vpack.c.b16 %v768, %v767
    %v778 = vpack.c.b16 %v770, %v769
    %787 = vmatprep.subr.bf16.mxu0 0
    %788 = vmatpush1.bf16.msra.mxu0 %v778
    %789 = vmatprep.subr.bf16.mxu0 0
    %790 = vmatpush1.bf16.msra.mxu0 %v777
    %791 = vmatprep.subr.bf16.mxu0 0
    %792 = vmatpush1.bf16.msra.mxu0 %v776
    %793 = vmatprep.subr.bf16.mxu0 0
    %794 = vmatpush1.bf16.msra.mxu0 %v775
    %795 = vmatprep.subr.bf16.mxu0 0
    %796 = vmatpush1.bf16.msra.mxu0 %v774
    %797 = vmatprep.subr.bf16.mxu0 0
    %798 = vmatpush1.bf16.msra.mxu0 %v773
    %799 = vmatprep.subr.bf16.mxu0 0
    %800 = vmatpush1.bf16.msra.mxu0 %v772
    %801 = vmatprep.subr.bf16.mxu0 0
    %802 = vmatpush1.bf16.msra.mxu0 %v771
    %803 = vmatprep.subr.bf16.mxu0 0
    %804 = vmatpush2.bf16.msra.mxu0 0
    %805 = vmatprep.subr.bf16.mxu0 0
    %806 = vmatpush2.bf16.msra.mxu0 0
    %807 = vmatprep.subr.bf16.mxu0 0
    %808 = vmatpush2.bf16.msra.mxu0 0
    %809 = vmatprep.subr.bf16.mxu0 0
    %810 = vmatpush2.bf16.msra.mxu0 0
    %811 = vmatprep.subr.bf16.mxu0 0
    %812 = vmatpush2.bf16.msra.mxu0 0
    %813 = vmatprep.subr.bf16.mxu0 0
    %814 = vmatpush2.bf16.msra.mxu0 0
    %815 = vmatprep.subr.bf16.mxu0 0
    %816 = vmatpush2.bf16.msra.mxu0 0
    %817 = vmatprep.subr.bf16.mxu0 0
    %818 = vmatpush2.bf16.msra.mxu0 0
    %819 = vmatprep.mubr.bf16.mxu0 0
    %820 = vmatmul.mubr.bf16.gmra.mxu0 %v719
    %v821 = vpop.f32.mrf.mxu0
    %v822 = vadd.f32 %v677, %v821
    %v823 = vpop.f32.mrf.mxu0
    %v824 = vpop.f32.mrf.mxu0
    %v825 = vadd.f32 %v681, %v824
    %v826 = vpop.f32.mrf.mxu0
    %827 = vmatprep.mubr.bf16.mxu0 0
    %828 = vmatmul.mubr.bf16.gmra.mxu0 %v736
    %v829 = vpop.f32.mrf.mxu0
    %v830 = vadd.f32 %v687, %v829
    %v831 = vpop.f32.mrf.mxu0
    %v832 = vpop.f32.mrf.mxu0
    %v833 = vadd.f32 %v691, %v832
    %v834 = vpop.f32.mrf.mxu0
    %835 = vdwg.mxu0
    %v836 = vld [vmem:[#allocation2] sm:$0x6]
    %v837 = vld [vmem:[#allocation2 + $0x4] sm:$0x6]
    %v838 = vld [vmem:[#allocation2 + $0x8] sm:$0x6]
    %v839 = vld [vmem:[#allocation2 + $0xc] sm:$0x6]
    %v840 = vld [vmem:[#allocation2 + $0x18] sm:$0x6]
    %v841 = vld [vmem:[#allocation2 + $0x1c] sm:$0x6]
    %v842 = vld [vmem:[#allocation2 + $0x20] sm:$0x6]
    %v843 = vld [vmem:[#allocation2 + $0x24] sm:$0x6]
    %v853 = vunpack.c.l.s4 1983009808
    %v854 = vunpack.c.0.s8 %v853
    %v855 = vlaneseq
    %v856 = vshrl.u32 %v855, 7
    %v857 = vsub.s32 %v854, %v856
    %v858 = vrot.slane %v836, %v857
    %v859 = vcombine.high %v858, %v858
    %v861 = vunpack.c.l.s4 1983009808
    %v862 = vunpack.c.0.s8 %v861
    %v863 = vlaneseq
    %v864 = vshrl.u32 %v863, 7
    %v865 = vsub.s32 %v862, %v864
    %v866 = vrot.slane %v837, %v865
    %v867 = vcombine.high %v866, %v866
    %v869 = vunpack.c.l.s4 1983009808
    %v870 = vunpack.c.0.s8 %v869
    %v871 = vlaneseq
    %v872 = vshrl.u32 %v871, 7
    %v873 = vsub.s32 %v870, %v872
    %v874 = vrot.slane %v838, %v873
    %v875 = vcombine.high %v874, %v874
    %v877 = vunpack.c.l.s4 1983009808
    %v878 = vunpack.c.0.s8 %v877
    %v879 = vlaneseq
    %v880 = vshrl.u32 %v879, 7
    %v881 = vsub.s32 %v878, %v880
    %v882 = vrot.slane %v839, %v881
    %v883 = vcombine.high %v882, %v882
    %v885 = vunpack.c.l.s4 1983009808
    %v886 = vunpack.c.0.s8 %v885
    %v887 = vlaneseq
    %v888 = vshrl.u32 %v887, 7
    %v889 = vsub.s32 %v886, %v888
    %v890 = vrot.slane %v840, %v889
    %v891 = vcombine.high %v890, %v890
    %v893 = vunpack.c.l.s4 1983009808
    %v894 = vunpack.c.0.s8 %v893
    %v895 = vlaneseq
    %v896 = vshrl.u32 %v895, 7
    %v897 = vsub.s32 %v894, %v896
    %v898 = vrot.slane %v841, %v897
    %v899 = vcombine.high %v898, %v898
    %v901 = vunpack.c.l.s4 1983009808
    %v902 = vunpack.c.0.s8 %v901
    %v903 = vlaneseq
    %v904 = vshrl.u32 %v903, 7
    %v905 = vsub.s32 %v902, %v904
    %v906 = vrot.slane %v842, %v905
    %v907 = vcombine.high %v906, %v906
    %v909 = vunpack.c.l.s4 1983009808
    %v910 = vunpack.c.0.s8 %v909
    %v911 = vlaneseq
    %v912 = vshrl.u32 %v911, 7
    %v913 = vsub.s32 %v910, %v912
    %v914 = vrot.slane %v843, %v913
    %v915 = vcombine.high %v914, %v914
    %vm916 = vmor %vm39, %vm78
    %vm917 = vcmask 1044484
    %vm918 = vmor %vm916, %vm917
    %vm919 = vcmask 1046534
    %vm920 = vmor %vm918, %vm919
    %v921 = vrot.slane %v858, 7
    %v922 = vrot.slane %v921, 2
    %v923 = vrot.slane %v859, 7
    %v924 = vsel %vm920, %v922, %v923
    %v925 = vrot.slane %v866, 7
    %v926 = vrot.slane %v925, 2
    %v927 = vrot.slane %v867, 7
    %v928 = vsel %vm920, %v926, %v927
    %v929 = vrot.slane %v874, 7
    %v930 = vrot.slane %v929, 2
    %v931 = vrot.slane %v875, 7
    %v932 = vsel %vm920, %v930, %v931
    %v933 = vrot.slane %v882, 7
    %v934 = vrot.slane %v933, 2
    %v935 = vrot.slane %v883, 7
    %v936 = vsel %vm920, %v934, %v935
    %v937 = vrot.slane %v890, 7
    %v938 = vrot.slane %v937, 2
    %v939 = vrot.slane %v891, 7
    %v940 = vsel %vm920, %v938, %v939
    %v941 = vrot.slane %v898, 7
    %v942 = vrot.slane %v941, 2
    %v943 = vrot.slane %v899, 7
    %v944 = vsel %vm920, %v942, %v943
    %v945 = vrot.slane %v906, 7
    %v946 = vrot.slane %v945, 2
    %v947 = vrot.slane %v907, 7
    %v948 = vsel %vm920, %v946, %v947
    %v949 = vrot.slane %v914, 7
    %v950 = vrot.slane %v949, 2
    %v951 = vrot.slane %v915, 7
    %v952 = vsel %vm920, %v950, %v951
    %v953 = vld [vmem:[#allocation3 + $0xc] sm:$0xf]
    %v954 = vld [vmem:[#allocation3 + $0x4c] sm:$0xf]
    %v955 = vld [vmem:[#allocation3 + $0x8c] sm:$0xf]
    %v956 = vld [vmem:[#allocation3 + $0xcc] sm:$0xf]
    %v957 = vld [vmem:[#allocation3 + $0x10c] sm:$0xf]
    %v958 = vld [vmem:[#allocation3 + $0x14c] sm:$0xf]
    %v959 = vld [vmem:[#allocation3 + $0x18c] sm:$0xf]
    %v960 = vld [vmem:[#allocation3 + $0x1cc] sm:$0xf]
    %v961 = vld [vmem:[#allocation3 + $0x20c] sm:$0xf]
    %v962 = vld [vmem:[#allocation3 + $0x24c] sm:$0xf]
    %v963 = vld [vmem:[#allocation3 + $0x28c] sm:$0xf]
    %v964 = vld [vmem:[#allocation3 + $0x2cc] sm:$0xf]
    %v965 = vld [vmem:[#allocation3 + $0x30c] sm:$0xf]
    %v966 = vld [vmem:[#allocation3 + $0x34c] sm:$0xf]
    %v967 = vld [vmem:[#allocation3 + $0x38c] sm:$0xf]
    %v968 = vld [vmem:[#allocation3 + $0x3cc] sm:$0xf]
    %v969 = vcombine.low %v924, %v928
    %v970 = vcombine.low %v932, %v936
    %v972 = vunpack.c.l.s4 1983009808
    %v973 = vunpack.c.0.s8 %v972
    %v974 = vlaneseq
    %v975 = vshrl.u32 %v974, 7
    %v976 = vsub.s32 %v973, %v975
    %v977 = vrot.slane %v969, %v976
    %v979 = vunpack.c.l.s4 1983009808
    %v980 = vunpack.c.0.s8 %v979
    %v981 = vlaneseq
    %v982 = vshrl.u32 %v981, 7
    %v983 = vsub.s32 %v980, %v982
    %v984 = vrot.slane %v970, %v983
    %v985 = vcombine.low %v977, %v984
    %v986 = vcombine.low %v940, %v944
    %v987 = vcombine.low %v948, %v952
    %v989 = vunpack.c.l.s4 1983009808
    %v990 = vunpack.c.0.s8 %v989
    %v991 = vlaneseq
    %v992 = vshrl.u32 %v991, 7
    %v993 = vsub.s32 %v990, %v992
    %v994 = vrot.slane %v986, %v993
    %v996 = vunpack.c.l.s4 1983009808
    %v997 = vunpack.c.0.s8 %v996
    %v998 = vlaneseq
    %v999 = vshrl.u32 %v998, 7
    %v1000 = vsub.s32 %v997, %v999
    %v1001 = vrot.slane %v987, %v1000
    %v1002 = vcombine.low %v994, %v1001
    %v1021 = vunpack.c.l.b16 %v953
    %v1022 = vunpack.c.l.b16 %v954
    %v1023 = vunpack.c.l.b16 %v955
    %v1024 = vunpack.c.l.b16 %v956
    %v1025 = vunpack.c.l.b16 %v957
    %v1026 = vunpack.c.l.b16 %v958
    %v1027 = vunpack.c.l.b16 %v959
    %v1028 = vunpack.c.l.b16 %v960
    %v1029 = vunpack.c.l.b16 %v961
    %v1030 = vunpack.c.l.b16 %v962
    %v1031 = vunpack.c.l.b16 %v963
    %v1032 = vunpack.c.l.b16 %v964
    %v1033 = vunpack.c.l.b16 %v965
    %v1034 = vunpack.c.l.b16 %v966
    %v1035 = vunpack.c.l.b16 %v967
    %v1036 = vunpack.c.l.b16 %v968
    %v1037 = vpack.c.b16 %v1022, %v1021
    %v1038 = vpack.c.b16 %v1024, %v1023
    %v1039 = vpack.c.b16 %v1026, %v1025
    %v1040 = vpack.c.b16 %v1028, %v1027
    %v1041 = vpack.c.b16 %v1030, %v1029
    %v1042 = vpack.c.b16 %v1032, %v1031
    %v1043 = vpack.c.b16 %v1034, %v1033
    %v1044 = vpack.c.b16 %v1036, %v1035
    %1053 = vmatprep.subr.bf16.mxu0 0
    %1054 = vmatpush1.bf16.msra.mxu0 %v1044
    %1055 = vmatprep.subr.bf16.mxu0 0
    %1056 = vmatpush1.bf16.msra.mxu0 %v1043
    %1057 = vmatprep.subr.bf16.mxu0 0
    %1058 = vmatpush1.bf16.msra.mxu0 %v1042
    %1059 = vmatprep.subr.bf16.mxu0 0
    %1060 = vmatpush1.bf16.msra.mxu0 %v1041
    %1061 = vmatprep.subr.bf16.mxu0 0
    %1062 = vmatpush1.bf16.msra.mxu0 %v1040
    %1063 = vmatprep.subr.bf16.mxu0 0
    %1064 = vmatpush1.bf16.msra.mxu0 %v1039
    %1065 = vmatprep.subr.bf16.mxu0 0
    %1066 = vmatpush1.bf16.msra.mxu0 %v1038
    %1067 = vmatprep.subr.bf16.mxu0 0
    %1068 = vmatpush1.bf16.msra.mxu0 %v1037
    %1069 = vmatprep.subr.bf16.mxu0 0
    %1070 = vmatpush2.bf16.msra.mxu0 0
    %1071 = vmatprep.subr.bf16.mxu0 0
    %1072 = vmatpush2.bf16.msra.mxu0 0
    %1073 = vmatprep.subr.bf16.mxu0 0
    %1074 = vmatpush2.bf16.msra.mxu0 0
    %1075 = vmatprep.subr.bf16.mxu0 0
    %1076 = vmatpush2.bf16.msra.mxu0 0
    %1077 = vmatprep.subr.bf16.mxu0 0
    %1078 = vmatpush2.bf16.msra.mxu0 0
    %1079 = vmatprep.subr.bf16.mxu0 0
    %1080 = vmatpush2.bf16.msra.mxu0 0
    %1081 = vmatprep.subr.bf16.mxu0 0
    %1082 = vmatpush2.bf16.msra.mxu0 0
    %1083 = vmatprep.subr.bf16.mxu0 0
    %1084 = vmatpush2.bf16.msra.mxu0 0
    %1085 = vmatprep.mubr.bf16.mxu0 0
    %1086 = vmatmul.mubr.bf16.gmra.mxu0 %v985
    %v1087 = vpop.f32.mrf.mxu0
    %v1088 = vadd.f32 0.0, %v1087
    %v1089 = vpop.f32.mrf.mxu0
    %v1090 = vpop.f32.mrf.mxu0
    %v1091 = vadd.f32 0.0, %v1090
    %v1092 = vpop.f32.mrf.mxu0
    %1093 = vmatprep.mubr.bf16.mxu0 0
    %1094 = vmatmul.mubr.bf16.gmra.mxu0 %v1002
    %v1095 = vpop.f32.mrf.mxu0
    %v1096 = vadd.f32 0.0, %v1095
    %v1097 = vpop.f32.mrf.mxu0
    %v1098 = vpop.f32.mrf.mxu0
    %v1099 = vadd.f32 0.0, %v1098
    %v1100 = vpop.f32.mrf.mxu0
    %1101 = vdwg.mxu0
    %v1102 = vadd.f32 %v679, %v1088
    %v1103 = vadd.f32 %v683, %v1091
    %v1104 = vadd.f32 %v689, %v1096
    %v1105 = vadd.f32 %v693, %v1099
    %v1106 = vld [vmem:[%s259] sm:$0x3]
    %v1107 = vld [vmem:[%s259 + $0x4] sm:$0x3]
    %v1108 = vld [vmem:[%s259 + $0x8] sm:$0x3]
    %v1109 = vld [vmem:[%s259 + $0xc] sm:$0x3]
    %v1110 = vld [vmem:[%s259 + $0x18] sm:$0x3]
    %v1111 = vld [vmem:[%s259 + $0x1c] sm:$0x3]
    %v1112 = vld [vmem:[%s259 + $0x20] sm:$0x3]
    %v1113 = vld [vmem:[%s259 + $0x24] sm:$0x3]
    %v1114 = vld [vmem:[#allocation3 + $0x10] sm:$0xff]
    %v1115 = vld [vmem:[#allocation3 + $0x50] sm:$0xff]
    %v1116 = vld [vmem:[#allocation3 + $0x90] sm:$0xff]
    %v1117 = vld [vmem:[#allocation3 + $0xd0] sm:$0xff]
    %v1118 = vld [vmem:[#allocation3 + $0x110] sm:$0xff]
    %v1119 = vld [vmem:[#allocation3 + $0x150] sm:$0xff]
    %v1120 = vld [vmem:[#allocation3 + $0x190] sm:$0xff]
    %v1121 = vld [vmem:[#allocation3 + $0x1d0] sm:$0xff]
    %v1122 = vld [vmem:[#allocation3 + $0x210] sm:$0xff]
    %v1123 = vld [vmem:[#allocation3 + $0x250] sm:$0xff]
    %v1124 = vld [vmem:[#allocation3 + $0x290] sm:$0xff]
    %v1125 = vld [vmem:[#allocation3 + $0x2d0] sm:$0xff]
    %v1126 = vld [vmem:[#allocation3 + $0x310] sm:$0xff]
    %v1127 = vld [vmem:[#allocation3 + $0x350] sm:$0xff]
    %v1128 = vld [vmem:[#allocation3 + $0x390] sm:$0xff]
    %v1129 = vld [vmem:[#allocation3 + $0x3d0] sm:$0xff]
    %v1138 = vcombine.low %v1106, %v1107
    %v1139 = vcombine.low %v1108, %v1109
    %v1141 = vunpack.c.l.s4 1983009808
    %v1142 = vunpack.c.0.s8 %v1141
    %v1143 = vlaneseq
    %v1144 = vshrl.u32 %v1143, 7
    %v1145 = vsub.s32 %v1142, %v1144
    %v1146 = vrot.slane %v1138, %v1145
    %v1148 = vunpack.c.l.s4 1983009808
    %v1149 = vunpack.c.0.s8 %v1148
    %v1150 = vlaneseq
    %v1151 = vshrl.u32 %v1150, 7
    %v1152 = vsub.s32 %v1149, %v1151
    %v1153 = vrot.slane %v1139, %v1152
    %v1154 = vcombine.low %v1146, %v1153
    %v1155 = vcombine.low %v1110, %v1111
    %v1156 = vcombine.low %v1112, %v1113
    %v1158 = vunpack.c.l.s4 1983009808
    %v1159 = vunpack.c.0.s8 %v1158
    %v1160 = vlaneseq
    %v1161 = vshrl.u32 %v1160, 7
    %v1162 = vsub.s32 %v1159, %v1161
    %v1163 = vrot.slane %v1155, %v1162
    %v1165 = vunpack.c.l.s4 1983009808
    %v1166 = vunpack.c.0.s8 %v1165
    %v1167 = vlaneseq
    %v1168 = vshrl.u32 %v1167, 7
    %v1169 = vsub.s32 %v1166, %v1168
    %v1170 = vrot.slane %v1156, %v1169
    %v1171 = vcombine.low %v1163, %v1170
    %v1190 = vunpack.c.l.b16 %v1114
    %v1191 = vunpack.c.h.b16 %v1114
    %v1192 = vunpack.c.l.b16 %v1115
    %v1193 = vunpack.c.h.b16 %v1115
    %v1194 = vunpack.c.l.b16 %v1116
    %v1195 = vunpack.c.h.b16 %v1116
    %v1196 = vunpack.c.l.b16 %v1117
    %v1197 = vunpack.c.h.b16 %v1117
    %v1198 = vunpack.c.l.b16 %v1118
    %v1199 = vunpack.c.h.b16 %v1118
    %v1200 = vunpack.c.l.b16 %v1119
    %v1201 = vunpack.c.h.b16 %v1119
    %v1202 = vunpack.c.l.b16 %v1120
    %v1203 = vunpack.c.h.b16 %v1120
    %v1204 = vunpack.c.l.b16 %v1121
    %v1205 = vunpack.c.h.b16 %v1121
    %v1206 = vunpack.c.l.b16 %v1122
    %v1207 = vunpack.c.h.b16 %v1122
    %v1208 = vunpack.c.l.b16 %v1123
    %v1209 = vunpack.c.h.b16 %v1123
    %v1210 = vunpack.c.l.b16 %v1124
    %v1211 = vunpack.c.h.b16 %v1124
    %v1212 = vunpack.c.l.b16 %v1125
    %v1213 = vunpack.c.h.b16 %v1125
    %v1214 = vunpack.c.l.b16 %v1126
    %v1215 = vunpack.c.h.b16 %v1126
    %v1216 = vunpack.c.l.b16 %v1127
    %v1217 = vunpack.c.h.b16 %v1127
    %v1218 = vunpack.c.l.b16 %v1128
    %v1219 = vunpack.c.h.b16 %v1128
    %v1220 = vunpack.c.l.b16 %v1129
    %v1221 = vunpack.c.h.b16 %v1129
    %v1222 = vpack.c.b16 %v1192, %v1190
    %v1223 = vpack.c.b16 %v1193, %v1191
    %v1224 = vpack.c.b16 %v1196, %v1194
    %v1225 = vpack.c.b16 %v1197, %v1195
    %v1226 = vpack.c.b16 %v1200, %v1198
    %v1227 = vpack.c.b16 %v1201, %v1199
    %v1228 = vpack.c.b16 %v1204, %v1202
    %v1229 = vpack.c.b16 %v1205, %v1203
    %v1230 = vpack.c.b16 %v1208, %v1206
    %v1231 = vpack.c.b16 %v1209, %v1207
    %v1232 = vpack.c.b16 %v1212, %v1210
    %v1233 = vpack.c.b16 %v1213, %v1211
    %v1234 = vpack.c.b16 %v1216, %v1214
    %v1235 = vpack.c.b16 %v1217, %v1215
    %v1236 = vpack.c.b16 %v1220, %v1218
    %v1237 = vpack.c.b16 %v1221, %v1219
    %1254 = vmatprep.subr.bf16.mxu0 %v1237
    %1255 = vmatpush1.bf16.msra.mxu0 %v1236
    %1256 = vmatprep.subr.bf16.mxu0 %v1235
    %1257 = vmatpush1.bf16.msra.mxu0 %v1234
    %1258 = vmatprep.subr.bf16.mxu0 %v1233
    %1259 = vmatpush1.bf16.msra.mxu0 %v1232
    %1260 = vmatprep.subr.bf16.mxu0 %v1231
    %1261 = vmatpush1.bf16.msra.mxu0 %v1230
    %1262 = vmatprep.subr.bf16.mxu0 %v1229
    %1263 = vmatpush1.bf16.msra.mxu0 %v1228
    %1264 = vmatprep.subr.bf16.mxu0 %v1227
    %1265 = vmatpush1.bf16.msra.mxu0 %v1226
    %1266 = vmatprep.subr.bf16.mxu0 %v1225
    %1267 = vmatpush1.bf16.msra.mxu0 %v1224
    %1268 = vmatprep.subr.bf16.mxu0 %v1223
    %1269 = vmatpush1.bf16.msra.mxu0 %v1222
    %1270 = vmatprep.subr.bf16.mxu0 0
    %1271 = vmatpush2.bf16.msra.mxu0 0
    %1272 = vmatprep.subr.bf16.mxu0 0
    %1273 = vmatpush2.bf16.msra.mxu0 0
    %1274 = vmatprep.subr.bf16.mxu0 0
    %1275 = vmatpush2.bf16.msra.mxu0 0
    %1276 = vmatprep.subr.bf16.mxu0 0
    %1277 = vmatpush2.bf16.msra.mxu0 0
    %1278 = vmatprep.subr.bf16.mxu0 0
    %1279 = vmatpush2.bf16.msra.mxu0 0
    %1280 = vmatprep.subr.bf16.mxu0 0
    %1281 = vmatpush2.bf16.msra.mxu0 0
    %1282 = vmatprep.subr.bf16.mxu0 0
    %1283 = vmatpush2.bf16.msra.mxu0 0
    %1284 = vmatprep.subr.bf16.mxu0 0
    %1285 = vmatpush2.bf16.msra.mxu0 0
    %1286 = vmatprep.mubr.bf16.mxu0 0
    %1287 = vmatmul.mubr.bf16.gmra.mxu0 %v1154
    %v1288 = vpop.f32.mrf.mxu0
    %v1289 = vadd.f32 0.0, %v1288
    %v1290 = vpop.f32.mrf.mxu0
    %v1291 = vadd.f32 0.0, %v1290
    %v1292 = vpop.f32.mrf.mxu0
    %v1293 = vadd.f32 0.0, %v1292
    %v1294 = vpop.f32.mrf.mxu0
    %v1295 = vadd.f32 0.0, %v1294
    %1296 = vmatprep.mubr.bf16.mxu0 0
    %1297 = vmatmul.mubr.bf16.gmra.mxu0 %v1171
    %v1298 = vpop.f32.mrf.mxu0
    %v1299 = vadd.f32 0.0, %v1298
    %v1300 = vpop.f32.mrf.mxu0
    %v1301 = vadd.f32 0.0, %v1300
    %v1302 = vpop.f32.mrf.mxu0
    %v1303 = vadd.f32 0.0, %v1302
    %v1304 = vpop.f32.mrf.mxu0
    %v1305 = vadd.f32 0.0, %v1304
    %1306 = vdwg.mxu0
    %v1307 = vadd.f32 %v822, %v1289
    %v1308 = vadd.f32 %v825, %v1293
    %v1309 = vadd.f32 %v830, %v1299
    %v1310 = vadd.f32 %v833, %v1303
    %v1311 = vld [vmem:[%s259] sm:$0x7]
    %v1312 = vld [vmem:[%s259 + $0x4] sm:$0x7]
    %v1313 = vld [vmem:[%s259 + $0x8] sm:$0x7]
    %v1314 = vld [vmem:[%s259 + $0xc] sm:$0x7]
    %v1315 = vld [vmem:[%s259 + $0x18] sm:$0x7]
    %v1316 = vld [vmem:[%s259 + $0x1c] sm:$0x7]
    %v1317 = vld [vmem:[%s259 + $0x20] sm:$0x7]
    %v1318 = vld [vmem:[%s259 + $0x24] sm:$0x7]
    %v1328 = vunpack.c.l.s4 1983009808
    %v1329 = vunpack.c.0.s8 %v1328
    %v1330 = vlaneseq
    %v1331 = vshrl.u32 %v1330, 7
    %v1332 = vsub.s32 %v1329, %v1331
    %v1333 = vrot.slane %v1311, %v1332
    %v1334 = vcombine.high %v1333, %v1333
    %v1336 = vunpack.c.l.s4 1983009808
    %v1337 = vunpack.c.0.s8 %v1336
    %v1338 = vlaneseq
    %v1339 = vshrl.u32 %v1338, 7
    %v1340 = vsub.s32 %v1337, %v1339
    %v1341 = vrot.slane %v1312, %v1340
    %v1342 = vcombine.high %v1341, %v1341
    %v1344 = vunpack.c.l.s4 1983009808
    %v1345 = vunpack.c.0.s8 %v1344
    %v1346 = vlaneseq
    %v1347 = vshrl.u32 %v1346, 7
    %v1348 = vsub.s32 %v1345, %v1347
    %v1349 = vrot.slane %v1313, %v1348
    %v1350 = vcombine.high %v1349, %v1349
    %v1352 = vunpack.c.l.s4 1983009808
    %v1353 = vunpack.c.0.s8 %v1352
    %v1354 = vlaneseq
    %v1355 = vshrl.u32 %v1354, 7
    %v1356 = vsub.s32 %v1353, %v1355
    %v1357 = vrot.slane %v1314, %v1356
    %v1358 = vcombine.high %v1357, %v1357
    %v1360 = vunpack.c.l.s4 1983009808
    %v1361 = vunpack.c.0.s8 %v1360
    %v1362 = vlaneseq
    %v1363 = vshrl.u32 %v1362, 7
    %v1364 = vsub.s32 %v1361, %v1363
    %v1365 = vrot.slane %v1315, %v1364
    %v1366 = vcombine.high %v1365, %v1365
    %v1368 = vunpack.c.l.s4 1983009808
    %v1369 = vunpack.c.0.s8 %v1368
    %v1370 = vlaneseq
    %v1371 = vshrl.u32 %v1370, 7
    %v1372 = vsub.s32 %v1369, %v1371
    %v1373 = vrot.slane %v1316, %v1372
    %v1374 = vcombine.high %v1373, %v1373
    %v1376 = vunpack.c.l.s4 1983009808
    %v1377 = vunpack.c.0.s8 %v1376
    %v1378 = vlaneseq
    %v1379 = vshrl.u32 %v1378, 7
    %v1380 = vsub.s32 %v1377, %v1379
    %v1381 = vrot.slane %v1317, %v1380
    %v1382 = vcombine.high %v1381, %v1381
    %v1384 = vunpack.c.l.s4 1983009808
    %v1385 = vunpack.c.0.s8 %v1384
    %v1386 = vlaneseq
    %v1387 = vshrl.u32 %v1386, 7
    %v1388 = vsub.s32 %v1385, %v1387
    %v1389 = vrot.slane %v1318, %v1388
    %v1390 = vcombine.high %v1389, %v1389
    %v1392 = vshrl.u32 %v1333, 16
    %v1394 = vrot.slane %v1392, 6
    %v1395 = vshll.u32 %v1333, 16
    %v1397 = vrot.slane %v1395, 7
    %v1398 = vor.u32 %v1394, %v1397
    %v1399 = vrot.slane %v1398, 2
    %v1401 = vshll.u32 %v1334, 16
    %v1403 = vrot.slane %v1401, 7
    %v1404 = vsel %vm397, %v1399, %v1403
    %v1406 = vshrl.u32 %v1341, 16
    %v1408 = vrot.slane %v1406, 6
    %v1409 = vshll.u32 %v1341, 16
    %v1411 = vrot.slane %v1409, 7
    %v1412 = vor.u32 %v1408, %v1411
    %v1413 = vrot.slane %v1412, 2
    %v1415 = vshll.u32 %v1342, 16
    %v1417 = vrot.slane %v1415, 7
    %v1418 = vsel %vm397, %v1413, %v1417
    %v1420 = vshrl.u32 %v1349, 16
    %v1422 = vrot.slane %v1420, 6
    %v1423 = vshll.u32 %v1349, 16
    %v1425 = vrot.slane %v1423, 7
    %v1426 = vor.u32 %v1422, %v1425
    %v1427 = vrot.slane %v1426, 2
    %v1429 = vshll.u32 %v1350, 16
    %v1431 = vrot.slane %v1429, 7
    %v1432 = vsel %vm397, %v1427, %v1431
    %v1434 = vshrl.u32 %v1357, 16
    %v1436 = vrot.slane %v1434, 6
    %v1437 = vshll.u32 %v1357, 16
    %v1439 = vrot.slane %v1437, 7
    %v1440 = vor.u32 %v1436, %v1439
    %v1441 = vrot.slane %v1440, 2
    %v1443 = vshll.u32 %v1358, 16
    %v1445 = vrot.slane %v1443, 7
    %v1446 = vsel %vm397, %v1441, %v1445
    %v1448 = vshrl.u32 %v1365, 16
    %v1450 = vrot.slane %v1448, 6
    %v1451 = vshll.u32 %v1365, 16
    %v1453 = vrot.slane %v1451, 7
    %v1454 = vor.u32 %v1450, %v1453
    %v1455 = vrot.slane %v1454, 2
    %v1457 = vshll.u32 %v1366, 16
    %v1459 = vrot.slane %v1457, 7
    %v1460 = vsel %vm397, %v1455, %v1459
    %v1462 = vshrl.u32 %v1373, 16
    %v1464 = vrot.slane %v1462, 6
    %v1465 = vshll.u32 %v1373, 16
    %v1467 = vrot.slane %v1465, 7
    %v1468 = vor.u32 %v1464, %v1467
    %v1469 = vrot.slane %v1468, 2
    %v1471 = vshll.u32 %v1374, 16
    %v1473 = vrot.slane %v1471, 7
    %v1474 = vsel %vm397, %v1469, %v1473
    %v1476 = vshrl.u32 %v1381, 16
    %v1478 = vrot.slane %v1476, 6
    %v1479 = vshll.u32 %v1381, 16
    %v1481 = vrot.slane %v1479, 7
    %v1482 = vor.u32 %v1478, %v1481
    %v1483 = vrot.slane %v1482, 2
    %v1485 = vshll.u32 %v1382, 16
    %v1487 = vrot.slane %v1485, 7
    %v1488 = vsel %vm397, %v1483, %v1487
    %v1490 = vshrl.u32 %v1389, 16
    %v1492 = vrot.slane %v1490, 6
    %v1493 = vshll.u32 %v1389, 16
    %v1495 = vrot.slane %v1493, 7
    %v1496 = vor.u32 %v1492, %v1495
    %v1497 = vrot.slane %v1496, 2
    %v1499 = vshll.u32 %v1390, 16
    %v1501 = vrot.slane %v1499, 7
    %v1502 = vsel %vm397, %v1497, %v1501
    %v1503 = vld [vmem:[#allocation3 + $0x18] sm:$0xff]
    %v1504 = vld [vmem:[#allocation3 + $0x20] sm:$0xff]
    %v1505 = vld [vmem:[#allocation3 + $0x58] sm:$0xff]
    %v1506 = vld [vmem:[#allocation3 + $0x60] sm:$0xff]
    %v1507 = vld [vmem:[#allocation3 + $0x98] sm:$0xff]
    %v1508 = vld [vmem:[#allocation3 + $0xa0] sm:$0xff]
    %v1509 = vld [vmem:[#allocation3 + $0xd8] sm:$0xff]
    %v1510 = vld [vmem:[#allocation3 + $0xe0] sm:$0xff]
    %v1511 = vld [vmem:[#allocation3 + $0x118] sm:$0xff]
    %v1512 = vld [vmem:[#allocation3 + $0x120] sm:$0xff]
    %v1513 = vld [vmem:[#allocation3 + $0x158] sm:$0xff]
    %v1514 = vld [vmem:[#allocation3 + $0x160] sm:$0xff]
    %v1515 = vld [vmem:[#allocation3 + $0x198] sm:$0xff]
    %v1516 = vld [vmem:[#allocation3 + $0x1a0] sm:$0xff]
    %v1517 = vld [vmem:[#allocation3 + $0x1d8] sm:$0xff]
    %v1518 = vld [vmem:[#allocation3 + $0x1e0] sm:$0xff]
    %v1519 = vld [vmem:[#allocation3 + $0x218] sm:$0xff]
    %v1520 = vld [vmem:[#allocation3 + $0x220] sm:$0xff]
    %v1521 = vld [vmem:[#allocation3 + $0x258] sm:$0xff]
    %v1522 = vld [vmem:[#allocation3 + $0x260] sm:$0xff]
    %v1523 = vld [vmem:[#allocation3 + $0x298] sm:$0xff]
    %v1524 = vld [vmem:[#allocation3 + $0x2a0] sm:$0xff]
    %v1525 = vld [vmem:[#allocation3 + $0x2d8] sm:$0xff]
    %v1526 = vld [vmem:[#allocation3 + $0x2e0] sm:$0xff]
    %v1527 = vld [vmem:[#allocation3 + $0x318] sm:$0xff]
    %v1528 = vld [vmem:[#allocation3 + $0x320] sm:$0xff]
    %v1529 = vld [vmem:[#allocation3 + $0x358] sm:$0xff]
    %v1530 = vld [vmem:[#allocation3 + $0x360] sm:$0xff]
    %v1531 = vld [vmem:[#allocation3 + $0x398] sm:$0xff]
    %v1532 = vld [vmem:[#allocation3 + $0x3a0] sm:$0xff]
    %v1533 = vld [vmem:[#allocation3 + $0x3d8] sm:$0xff]
    %v1534 = vld [vmem:[#allocation3 + $0x3e0] sm:$0xff]
    %v1535 = vcombine.low %v1404, %v1418
    %v1536 = vcombine.low %v1432, %v1446
    %v1538 = vunpack.c.l.s4 1983009808
    %v1539 = vunpack.c.0.s8 %v1538
    %v1540 = vlaneseq
    %v1541 = vshrl.u32 %v1540, 7
    %v1542 = vsub.s32 %v1539, %v1541
    %v1543 = vrot.slane %v1535, %v1542
    %v1545 = vunpack.c.l.s4 1983009808
    %v1546 = vunpack.c.0.s8 %v1545
    %v1547 = vlaneseq
    %v1548 = vshrl.u32 %v1547, 7
    %v1549 = vsub.s32 %v1546, %v1548
    %v1550 = vrot.slane %v1536, %v1549
    %v1551 = vcombine.low %v1543, %v1550
    %v1552 = vcombine.low %v1460, %v1474
    %v1553 = vcombine.low %v1488, %v1502
    %v1555 = vunpack.c.l.s4 1983009808
    %v1556 = vunpack.c.0.s8 %v1555
    %v1557 = vlaneseq
    %v1558 = vshrl.u32 %v1557, 7
    %v1559 = vsub.s32 %v1556, %v1558
    %v1560 = vrot.slane %v1552, %v1559
    %v1562 = vunpack.c.l.s4 1983009808
    %v1563 = vunpack.c.0.s8 %v1562
    %v1564 = vlaneseq
    %v1565 = vshrl.u32 %v1564, 7
    %v1566 = vsub.s32 %v1563, %v1565
    %v1567 = vrot.slane %v1553, %v1566
    %v1568 = vcombine.low %v1560, %v1567
    %v1603 = vunpack.c.l.b16 %v1503
    %v1604 = vunpack.c.h.b16 %v1503
    %v1605 = vunpack.c.l.b16 %v1504
    %v1606 = vunpack.c.h.b16 %v1504
    %v1607 = vunpack.c.l.b16 %v1505
    %v1608 = vunpack.c.h.b16 %v1505
    %v1609 = vunpack.c.l.b16 %v1506
    %v1610 = vunpack.c.h.b16 %v1506
    %v1611 = vunpack.c.l.b16 %v1507
    %v1612 = vunpack.c.h.b16 %v1507
    %v1613 = vunpack.c.l.b16 %v1508
    %v1614 = vunpack.c.h.b16 %v1508
    %v1615 = vunpack.c.l.b16 %v1509
    %v1616 = vunpack.c.h.b16 %v1509
    %v1617 = vunpack.c.l.b16 %v1510
    %v1618 = vunpack.c.h.b16 %v1510
    %v1619 = vunpack.c.l.b16 %v1511
    %v1620 = vunpack.c.h.b16 %v1511
    %v1621 = vunpack.c.l.b16 %v1512
    %v1622 = vunpack.c.h.b16 %v1512
    %v1623 = vunpack.c.l.b16 %v1513
    %v1624 = vunpack.c.h.b16 %v1513
    %v1625 = vunpack.c.l.b16 %v1514
    %v1626 = vunpack.c.h.b16 %v1514
    %v1627 = vunpack.c.l.b16 %v1515
    %v1628 = vunpack.c.h.b16 %v1515
    %v1629 = vunpack.c.l.b16 %v1516
    %v1630 = vunpack.c.h.b16 %v1516
    %v1631 = vunpack.c.l.b16 %v1517
    %v1632 = vunpack.c.h.b16 %v1517
    %v1633 = vunpack.c.l.b16 %v1518
    %v1634 = vunpack.c.h.b16 %v1518
    %v1635 = vunpack.c.l.b16 %v1519
    %v1636 = vunpack.c.h.b16 %v1519
    %v1637 = vunpack.c.l.b16 %v1520
    %v1638 = vunpack.c.h.b16 %v1520
    %v1639 = vunpack.c.l.b16 %v1521
    %v1640 = vunpack.c.h.b16 %v1521
    %v1641 = vunpack.c.l.b16 %v1522
    %v1642 = vunpack.c.h.b16 %v1522
    %v1643 = vunpack.c.l.b16 %v1523
    %v1644 = vunpack.c.h.b16 %v1523
    %v1645 = vunpack.c.l.b16 %v1524
    %v1646 = vunpack.c.h.b16 %v1524
    %v1647 = vunpack.c.l.b16 %v1525
    %v1648 = vunpack.c.h.b16 %v1525
    %v1649 = vunpack.c.l.b16 %v1526
    %v1650 = vunpack.c.h.b16 %v1526
    %v1651 = vunpack.c.l.b16 %v1527
    %v1652 = vunpack.c.h.b16 %v1527
    %v1653 = vunpack.c.l.b16 %v1528
    %v1654 = vunpack.c.h.b16 %v1528
    %v1655 = vunpack.c.l.b16 %v1529
    %v1656 = vunpack.c.h.b16 %v1529
    %v1657 = vunpack.c.l.b16 %v1530
    %v1658 = vunpack.c.h.b16 %v1530
    %v1659 = vunpack.c.l.b16 %v1531
    %v1660 = vunpack.c.h.b16 %v1531
    %v1661 = vunpack.c.l.b16 %v1532
    %v1662 = vunpack.c.h.b16 %v1532
    %v1663 = vunpack.c.l.b16 %v1533
    %v1664 = vunpack.c.h.b16 %v1533
    %v1665 = vunpack.c.l.b16 %v1534
    %v1666 = vunpack.c.h.b16 %v1534
    %v1667 = vpack.c.b16 %v1607, %v1603
    %v1668 = vpack.c.b16 %v1608, %v1604
    %v1669 = vpack.c.b16 %v1609, %v1605
    %v1670 = vpack.c.b16 %v1610, %v1606
    %v1671 = vpack.c.b16 %v1615, %v1611
    %v1672 = vpack.c.b16 %v1616, %v1612
    %v1673 = vpack.c.b16 %v1617, %v1613
    %v1674 = vpack.c.b16 %v1618, %v1614
    %v1675 = vpack.c.b16 %v1623, %v1619
    %v1676 = vpack.c.b16 %v1624, %v1620
    %v1677 = vpack.c.b16 %v1625, %v1621
    %v1678 = vpack.c.b16 %v1626, %v1622
    %v1679 = vpack.c.b16 %v1631, %v1627
    %v1680 = vpack.c.b16 %v1632, %v1628
    %v1681 = vpack.c.b16 %v1633, %v1629
    %v1682 = vpack.c.b16 %v1634, %v1630
    %v1683 = vpack.c.b16 %v1639, %v1635
    %v1684 = vpack.c.b16 %v1640, %v1636
    %v1685 = vpack.c.b16 %v1641, %v1637
    %v1686 = vpack.c.b16 %v1642, %v1638
    %v1687 = vpack.c.b16 %v1647, %v1643
    %v1688 = vpack.c.b16 %v1648, %v1644
    %v1689 = vpack.c.b16 %v1649, %v1645
    %v1690 = vpack.c.b16 %v1650, %v1646
    %v1691 = vpack.c.b16 %v1655, %v1651
    %v1692 = vpack.c.b16 %v1656, %v1652
    %v1693 = vpack.c.b16 %v1657, %v1653
    %v1694 = vpack.c.b16 %v1658, %v1654
    %v1695 = vpack.c.b16 %v1663, %v1659
    %v1696 = vpack.c.b16 %v1664, %v1660
    %v1697 = vpack.c.b16 %v1665, %v1661
    %v1698 = vpack.c.b16 %v1666, %v1662
    %1731 = vmatprep.subr.bf16.mxu0 %v1696
    %1732 = vmatpush1.bf16.msra.mxu0 %v1695
    %1733 = vmatprep.subr.bf16.mxu0 %v1692
    %1734 = vmatpush1.bf16.msra.mxu0 %v1691
    %1735 = vmatprep.subr.bf16.mxu0 %v1688
    %1736 = vmatpush1.bf16.msra.mxu0 %v1687
    %1737 = vmatprep.subr.bf16.mxu0 %v1684
    %1738 = vmatpush1.bf16.msra.mxu0 %v1683
    %1739 = vmatprep.subr.bf16.mxu0 %v1680
    %1740 = vmatpush1.bf16.msra.mxu0 %v1679
    %1741 = vmatprep.subr.bf16.mxu0 %v1676
    %1742 = vmatpush1.bf16.msra.mxu0 %v1675
    %1743 = vmatprep.subr.bf16.mxu0 %v1672
    %1744 = vmatpush1.bf16.msra.mxu0 %v1671
    %1745 = vmatprep.subr.bf16.mxu0 %v1668
    %1746 = vmatpush1.bf16.msra.mxu0 %v1667
    %1747 = vmatprep.subr.bf16.mxu0 0
    %1748 = vmatpush2.bf16.msra.mxu0 0
    %1749 = vmatprep.subr.bf16.mxu0 0
    %1750 = vmatpush2.bf16.msra.mxu0 0
    %1751 = vmatprep.subr.bf16.mxu0 0
    %1752 = vmatpush2.bf16.msra.mxu0 0
    %1753 = vmatprep.subr.bf16.mxu0 0
    %1754 = vmatpush2.bf16.msra.mxu0 0
    %1755 = vmatprep.subr.bf16.mxu0 0
    %1756 = vmatpush2.bf16.msra.mxu0 0
    %1757 = vmatprep.subr.bf16.mxu0 0
    %1758 = vmatpush2.bf16.msra.mxu0 0
    %1759 = vmatprep.subr.bf16.mxu0 0
    %1760 = vmatpush2.bf16.msra.mxu0 0
    %1761 = vmatprep.subr.bf16.mxu0 0
    %1762 = vmatpush2.bf16.msra.mxu0 0
    %1763 = vmatprep.mubr.bf16.mxu0 0
    %1764 = vmatmul.mubr.bf16.gmra.mxu0 %v1551
    %v1765 = vpop.f32.mrf.mxu0
    %v1766 = vadd.f32 0.0, %v1765
    %v1767 = vpop.f32.mrf.mxu0
    %v1768 = vadd.f32 0.0, %v1767
    %v1769 = vpop.f32.mrf.mxu0
    %v1770 = vadd.f32 0.0, %v1769
    %v1771 = vpop.f32.mrf.mxu0
    %v1772 = vadd.f32 0.0, %v1771
    %1773 = vmatprep.mubr.bf16.mxu0 0
    %1774 = vmatmul.mubr.bf16.gmra.mxu0 %v1568
    %v1775 = vpop.f32.mrf.mxu0
    %v1776 = vadd.f32 0.0, %v1775
    %v1777 = vpop.f32.mrf.mxu0
    %v1778 = vadd.f32 0.0, %v1777
    %v1779 = vpop.f32.mrf.mxu0
    %v1780 = vadd.f32 0.0, %v1779
    %v1781 = vpop.f32.mrf.mxu0
    %v1782 = vadd.f32 0.0, %v1781
    %1783 = vdwg.mxu0
    %1784 = vmatprep.subr.bf16.mxu0 %v1698
    %1785 = vmatpush1.bf16.msra.mxu0 %v1697
    %1786 = vmatprep.subr.bf16.mxu0 %v1694
    %1787 = vmatpush1.bf16.msra.mxu0 %v1693
    %1788 = vmatprep.subr.bf16.mxu0 %v1690
    %1789 = vmatpush1.bf16.msra.mxu0 %v1689
    %1790 = vmatprep.subr.bf16.mxu0 %v1686
    %1791 = vmatpush1.bf16.msra.mxu0 %v1685
    %1792 = vmatprep.subr.bf16.mxu0 %v1682
    %1793 = vmatpush1.bf16.msra.mxu0 %v1681
    %1794 = vmatprep.subr.bf16.mxu0 %v1678
    %1795 = vmatpush1.bf16.msra.mxu0 %v1677
    %1796 = vmatprep.subr.bf16.mxu0 %v1674
    %1797 = vmatpush1.bf16.msra.mxu0 %v1673
    %1798 = vmatprep.subr.bf16.mxu0 %v1670
    %1799 = vmatpush1.bf16.msra.mxu0 %v1669
    %1800 = vmatprep.subr.bf16.mxu0 0
    %1801 = vmatpush2.bf16.msra.mxu0 0
    %1802 = vmatprep.subr.bf16.mxu0 0
    %1803 = vmatpush2.bf16.msra.mxu0 0
    %1804 = vmatprep.subr.bf16.mxu0 0
    %1805 = vmatpush2.bf16.msra.mxu0 0
    %1806 = vmatprep.subr.bf16.mxu0 0
    %1807 = vmatpush2.bf16.msra.mxu0 0
    %1808 = vmatprep.subr.bf16.mxu0 0
    %1809 = vmatpush2.bf16.msra.mxu0 0
    %1810 = vmatprep.subr.bf16.mxu0 0
    %1811 = vmatpush2.bf16.msra.mxu0 0
    %1812 = vmatprep.subr.bf16.mxu0 0
    %1813 = vmatpush2.bf16.msra.mxu0 0
    %1814 = vmatprep.subr.bf16.mxu0 0
    %1815 = vmatpush2.bf16.msra.mxu0 0
    %1816 = vmatprep.mubr.bf16.mxu0 0
    %1817 = vmatmul.mubr.bf16.gmra.mxu0 %v1551
    %v1818 = vpop.f32.mrf.mxu0
    %v1819 = vadd.f32 0.0, %v1818
    %v1820 = vpop.f32.mrf.mxu0
    %v1821 = vadd.f32 0.0, %v1820
    %v1822 = vpop.f32.mrf.mxu0
    %v1823 = vadd.f32 0.0, %v1822
    %v1824 = vpop.f32.mrf.mxu0
    %v1825 = vadd.f32 0.0, %v1824
    %1826 = vmatprep.mubr.bf16.mxu0 0
    %1827 = vmatmul.mubr.bf16.gmra.mxu0 %v1568
    %v1828 = vpop.f32.mrf.mxu0
    %v1829 = vadd.f32 0.0, %v1828
    %v1830 = vpop.f32.mrf.mxu0
    %v1831 = vadd.f32 0.0, %v1830
    %v1832 = vpop.f32.mrf.mxu0
    %v1833 = vadd.f32 0.0, %v1832
    %v1834 = vpop.f32.mrf.mxu0
    %v1835 = vadd.f32 0.0, %v1834
    %1836 = vdwg.mxu0
    %v1837 = vadd.f32 %v1307, %v1766
    %v1838 = vadd.f32 %v1308, %v1770
    %v1839 = vadd.f32 %v1309, %v1776
    %v1840 = vadd.f32 %v1310, %v1780
    %v1841 = vadd.f32 %v1102, %v1768
    %v1842 = vadd.f32 %v1103, %v1772
    %v1843 = vadd.f32 %v1104, %v1778
    %v1844 = vadd.f32 %v1105, %v1782
    %v1845 = vadd.f32 %v1291, %v1819
    %v1846 = vadd.f32 %v1295, %v1823
    %v1847 = vadd.f32 %v1301, %v1829
    %v1848 = vadd.f32 %v1305, %v1833
    %v1849 = vld [vmem:[%s259] sm:$0x6]
    %v1850 = vld [vmem:[%s259 + $0x4] sm:$0x6]
    %v1851 = vld [vmem:[%s259 + $0x8] sm:$0x6]
    %v1852 = vld [vmem:[%s259 + $0xc] sm:$0x6]
    %v1853 = vld [vmem:[%s259 + $0x18] sm:$0x6]
    %v1854 = vld [vmem:[%s259 + $0x1c] sm:$0x6]
    %v1855 = vld [vmem:[%s259 + $0x20] sm:$0x6]
    %v1856 = vld [vmem:[%s259 + $0x24] sm:$0x6]
    %v1866 = vunpack.c.l.s4 1983009808
    %v1867 = vunpack.c.0.s8 %v1866
    %v1868 = vlaneseq
    %v1869 = vshrl.u32 %v1868, 7
    %v1870 = vsub.s32 %v1867, %v1869
    %v1871 = vrot.slane %v1849, %v1870
    %v1872 = vcombine.high %v1871, %v1871
    %v1874 = vunpack.c.l.s4 1983009808
    %v1875 = vunpack.c.0.s8 %v1874
    %v1876 = vlaneseq
    %v1877 = vshrl.u32 %v1876, 7
    %v1878 = vsub.s32 %v1875, %v1877
    %v1879 = vrot.slane %v1850, %v1878
    %v1880 = vcombine.high %v1879, %v1879
    %v1882 = vunpack.c.l.s4 1983009808
    %v1883 = vunpack.c.0.s8 %v1882
    %v1884 = vlaneseq
    %v1885 = vshrl.u32 %v1884, 7
    %v1886 = vsub.s32 %v1883, %v1885
    %v1887 = vrot.slane %v1851, %v1886
    %v1888 = vcombine.high %v1887, %v1887
    %v1890 = vunpack.c.l.s4 1983009808
    %v1891 = vunpack.c.0.s8 %v1890
    %v1892 = vlaneseq
    %v1893 = vshrl.u32 %v1892, 7
    %v1894 = vsub.s32 %v1891, %v1893
    %v1895 = vrot.slane %v1852, %v1894
    %v1896 = vcombine.high %v1895, %v1895
    %v1898 = vunpack.c.l.s4 1983009808
    %v1899 = vunpack.c.0.s8 %v1898
    %v1900 = vlaneseq
    %v1901 = vshrl.u32 %v1900, 7
    %v1902 = vsub.s32 %v1899, %v1901
    %v1903 = vrot.slane %v1853, %v1902
    %v1904 = vcombine.high %v1903, %v1903
    %v1906 = vunpack.c.l.s4 1983009808
    %v1907 = vunpack.c.0.s8 %v1906
    %v1908 = vlaneseq
    %v1909 = vshrl.u32 %v1908, 7
    %v1910 = vsub.s32 %v1907, %v1909
    %v1911 = vrot.slane %v1854, %v1910
    %v1912 = vcombine.high %v1911, %v1911
    %v1914 = vunpack.c.l.s4 1983009808
    %v1915 = vunpack.c.0.s8 %v1914
    %v1916 = vlaneseq
    %v1917 = vshrl.u32 %v1916, 7
    %v1918 = vsub.s32 %v1915, %v1917
    %v1919 = vrot.slane %v1855, %v1918
    %v1920 = vcombine.high %v1919, %v1919
    %v1922 = vunpack.c.l.s4 1983009808
    %v1923 = vunpack.c.0.s8 %v1922
    %v1924 = vlaneseq
    %v1925 = vshrl.u32 %v1924, 7
    %v1926 = vsub.s32 %v1923, %v1925
    %v1927 = vrot.slane %v1856, %v1926
    %v1928 = vcombine.high %v1927, %v1927
    %v1929 = vrot.slane %v1871, 7
    %v1930 = vrot.slane %v1929, 2
    %v1931 = vrot.slane %v1872, 7
    %v1932 = vsel %vm920, %v1930, %v1931
    %v1933 = vrot.slane %v1879, 7
    %v1934 = vrot.slane %v1933, 2
    %v1935 = vrot.slane %v1880, 7
    %v1936 = vsel %vm920, %v1934, %v1935
    %v1937 = vrot.slane %v1887, 7
    %v1938 = vrot.slane %v1937, 2
    %v1939 = vrot.slane %v1888, 7
    %v1940 = vsel %vm920, %v1938, %v1939
    %v1941 = vrot.slane %v1895, 7
    %v1942 = vrot.slane %v1941, 2
    %v1943 = vrot.slane %v1896, 7
    %v1944 = vsel %vm920, %v1942, %v1943
    %v1945 = vrot.slane %v1903, 7
    %v1946 = vrot.slane %v1945, 2
    %v1947 = vrot.slane %v1904, 7
    %v1948 = vsel %vm920, %v1946, %v1947
    %v1949 = vrot.slane %v1911, 7
    %v1950 = vrot.slane %v1949, 2
    %v1951 = vrot.slane %v1912, 7
    %v1952 = vsel %vm920, %v1950, %v1951
    %v1953 = vrot.slane %v1919, 7
    %v1954 = vrot.slane %v1953, 2
    %v1955 = vrot.slane %v1920, 7
    %v1956 = vsel %vm920, %v1954, %v1955
    %v1957 = vrot.slane %v1927, 7
    %v1958 = vrot.slane %v1957, 2
    %v1959 = vrot.slane %v1928, 7
    %v1960 = vsel %vm920, %v1958, %v1959
    %v1961 = vld [vmem:[#allocation3 + $0x28] sm:$0xff]
    %v1962 = vld [vmem:[#allocation3 + $0x68] sm:$0xff]
    %v1963 = vld [vmem:[#allocation3 + $0xa8] sm:$0xff]
    %v1964 = vld [vmem:[#allocation3 + $0xe8] sm:$0xff]
    %v1965 = vld [vmem:[#allocation3 + $0x128] sm:$0xff]
    %v1966 = vld [vmem:[#allocation3 + $0x168] sm:$0xff]
    %v1967 = vld [vmem:[#allocation3 + $0x1a8] sm:$0xff]
    %v1968 = vld [vmem:[#allocation3 + $0x1e8] sm:$0xff]
    %v1969 = vld [vmem:[#allocation3 + $0x228] sm:$0xff]
    %v1970 = vld [vmem:[#allocation3 + $0x268] sm:$0xff]
    %v1971 = vld [vmem:[#allocation3 + $0x2a8] sm:$0xff]
    %v1972 = vld [vmem:[#allocation3 + $0x2e8] sm:$0xff]
    %v1973 = vld [vmem:[#allocation3 + $0x328] sm:$0xff]
    %v1974 = vld [vmem:[#allocation3 + $0x368] sm:$0xff]
    %v1975 = vld [vmem:[#allocation3 + $0x3a8] sm:$0xff]
    %v1976 = vld [vmem:[#allocation3 + $0x3e8] sm:$0xff]
    %v1977 = vcombine.low %v1932, %v1936
    %v1978 = vcombine.low %v1940, %v1944
    %v1980 = vunpack.c.l.s4 1983009808
    %v1981 = vunpack.c.0.s8 %v1980
    %v1982 = vlaneseq
    %v1983 = vshrl.u32 %v1982, 7
    %v1984 = vsub.s32 %v1981, %v1983
    %v1985 = vrot.slane %v1977, %v1984
    %v1987 = vunpack.c.l.s4 1983009808
    %v1988 = vunpack.c.0.s8 %v1987
    %v1989 = vlaneseq
    %v1990 = vshrl.u32 %v1989, 7
    %v1991 = vsub.s32 %v1988, %v1990
    %v1992 = vrot.slane %v1978, %v1991
    %v1993 = vcombine.low %v1985, %v1992
    %v1994 = vcombine.low %v1948, %v1952
    %v1995 = vcombine.low %v1956, %v1960
    %v1997 = vunpack.c.l.s4 1983009808
    %v1998 = vunpack.c.0.s8 %v1997
    %v1999 = vlaneseq
    %v2000 = vshrl.u32 %v1999, 7
    %v2001 = vsub.s32 %v1998, %v2000
    %v2002 = vrot.slane %v1994, %v2001
    %v2004 = vunpack.c.l.s4 1983009808
    %v2005 = vunpack.c.0.s8 %v2004
    %v2006 = vlaneseq
    %v2007 = vshrl.u32 %v2006, 7
    %v2008 = vsub.s32 %v2005, %v2007
    %v2009 = vrot.slane %v1995, %v2008
    %v2010 = vcombine.low %v2002, %v2009
    %v2029 = vunpack.c.l.b16 %v1961
    %v2030 = vunpack.c.h.b16 %v1961
    %v2031 = vunpack.c.l.b16 %v1962
    %v2032 = vunpack.c.h.b16 %v1962
    %v2033 = vunpack.c.l.b16 %v1963
    %v2034 = vunpack.c.h.b16 %v1963
    %v2035 = vunpack.c.l.b16 %v1964
    %v2036 = vunpack.c.h.b16 %v1964
    %v2037 = vunpack.c.l.b16 %v1965
    %v2038 = vunpack.c.h.b16 %v1965
    %v2039 = vunpack.c.l.b16 %v1966
    %v2040 = vunpack.c.h.b16 %v1966
    %v2041 = vunpack.c.l.b16 %v1967
    %v2042 = vunpack.c.h.b16 %v1967
    %v2043 = vunpack.c.l.b16 %v1968
    %v2044 = vunpack.c.h.b16 %v1968
    %v2045 = vunpack.c.l.b16 %v1969
    %v2046 = vunpack.c.h.b16 %v1969
    %v2047 = vunpack.c.l.b16 %v1970
    %v2048 = vunpack.c.h.b16 %v1970
    %v2049 = vunpack.c.l.b16 %v1971
    %v2050 = vunpack.c.h.b16 %v1971
    %v2051 = vunpack.c.l.b16 %v1972
    %v2052 = vunpack.c.h.b16 %v1972
    %v2053 = vunpack.c.l.b16 %v1973
    %v2054 = vunpack.c.h.b16 %v1973
    %v2055 = vunpack.c.l.b16 %v1974
    %v2056 = vunpack.c.h.b16 %v1974
    %v2057 = vunpack.c.l.b16 %v1975
    %v2058 = vunpack.c.h.b16 %v1975
    %v2059 = vunpack.c.l.b16 %v1976
    %v2060 = vunpack.c.h.b16 %v1976
    %v2061 = vpack.c.b16 %v2031, %v2029
    %v2062 = vpack.c.b16 %v2032, %v2030
    %v2063 = vpack.c.b16 %v2035, %v2033
    %v2064 = vpack.c.b16 %v2036, %v2034
    %v2065 = vpack.c.b16 %v2039, %v2037
    %v2066 = vpack.c.b16 %v2040, %v2038
    %v2067 = vpack.c.b16 %v2043, %v2041
    %v2068 = vpack.c.b16 %v2044, %v2042
    %v2069 = vpack.c.b16 %v2047, %v2045
    %v2070 = vpack.c.b16 %v2048, %v2046
    %v2071 = vpack.c.b16 %v2051, %v2049
    %v2072 = vpack.c.b16 %v2052, %v2050
    %v2073 = vpack.c.b16 %v2055, %v2053
    %v2074 = vpack.c.b16 %v2056, %v2054
    %v2075 = vpack.c.b16 %v2059, %v2057
    %v2076 = vpack.c.b16 %v2060, %v2058
    %2093 = vmatprep.subr.bf16.mxu0 %v2076
    %2094 = vmatpush1.bf16.msra.mxu0 %v2075
    %2095 = vmatprep.subr.bf16.mxu0 %v2074
    %2096 = vmatpush1.bf16.msra.mxu0 %v2073
    %2097 = vmatprep.subr.bf16.mxu0 %v2072
    %2098 = vmatpush1.bf16.msra.mxu0 %v2071
    %2099 = vmatprep.subr.bf16.mxu0 %v2070
    %2100 = vmatpush1.bf16.msra.mxu0 %v2069
    %2101 = vmatprep.subr.bf16.mxu0 %v2068
    %2102 = vmatpush1.bf16.msra.mxu0 %v2067
    %2103 = vmatprep.subr.bf16.mxu0 %v2066
    %2104 = vmatpush1.bf16.msra.mxu0 %v2065
    %2105 = vmatprep.subr.bf16.mxu0 %v2064
    %2106 = vmatpush1.bf16.msra.mxu0 %v2063
    %2107 = vmatprep.subr.bf16.mxu0 %v2062
    %2108 = vmatpush1.bf16.msra.mxu0 %v2061
    %2109 = vmatprep.subr.bf16.mxu0 0
    %2110 = vmatpush2.bf16.msra.mxu0 0
    %2111 = vmatprep.subr.bf16.mxu0 0
    %2112 = vmatpush2.bf16.msra.mxu0 0
    %2113 = vmatprep.subr.bf16.mxu0 0
    %2114 = vmatpush2.bf16.msra.mxu0 0
    %2115 = vmatprep.subr.bf16.mxu0 0
    %2116 = vmatpush2.bf16.msra.mxu0 0
    %2117 = vmatprep.subr.bf16.mxu0 0
    %2118 = vmatpush2.bf16.msra.mxu0 0
    %2119 = vmatprep.subr.bf16.mxu0 0
    %2120 = vmatpush2.bf16.msra.mxu0 0
    %2121 = vmatprep.subr.bf16.mxu0 0
    %2122 = vmatpush2.bf16.msra.mxu0 0
    %2123 = vmatprep.subr.bf16.mxu0 0
    %2124 = vmatpush2.bf16.msra.mxu0 0
    %2125 = vmatprep.mubr.bf16.mxu0 0
    %2126 = vmatmul.mubr.bf16.gmra.mxu0 %v1993
    %v2127 = vpop.f32.mrf.mxu0
    %v2128 = vadd.f32 0.0, %v2127
    %v2129 = vpop.f32.mrf.mxu0
    %v2130 = vadd.f32 0.0, %v2129
    %v2131 = vpop.f32.mrf.mxu0
    %v2132 = vadd.f32 0.0, %v2131
    %v2133 = vpop.f32.mrf.mxu0
    %v2134 = vadd.f32 0.0, %v2133
    %2135 = vmatprep.mubr.bf16.mxu0 0
    %2136 = vmatmul.mubr.bf16.gmra.mxu0 %v2010
    %v2137 = vpop.f32.mrf.mxu0
    %v2138 = vadd.f32 0.0, %v2137
    %v2139 = vpop.f32.mrf.mxu0
    %v2140 = vadd.f32 0.0, %v2139
    %v2141 = vpop.f32.mrf.mxu0
    %v2142 = vadd.f32 0.0, %v2141
    %v2143 = vpop.f32.mrf.mxu0
    %v2144 = vadd.f32 0.0, %v2143
    %2145 = vdwg.mxu0
    %v2146 = vadd.f32 %v1841, %v2128
    %v2147 = vadd.f32 %v1842, %v2132
    %v2148 = vadd.f32 %v1843, %v2138
    %v2149 = vadd.f32 %v1844, %v2142
    %v2150 = vadd.f32 %v1821, %v2130
    %v2151 = vadd.f32 %v1825, %v2134
    %v2152 = vadd.f32 %v1831, %v2140
    %v2153 = vadd.f32 %v1835, %v2144
    %s2154 = scalar_lea.vmem [#allocation2], 8
    %v2155 = vld [vmem:[%s2154] sm:$0x3]
    %v2156 = vld [vmem:[%s2154 + $0x4] sm:$0x3]
    %v2157 = vld [vmem:[%s2154 + $0x8] sm:$0x3]
    %v2158 = vld [vmem:[%s2154 + $0xc] sm:$0x3]
    %v2159 = vld [vmem:[%s2154 + $0x18] sm:$0x3]
    %v2160 = vld [vmem:[%s2154 + $0x1c] sm:$0x3]
    %v2161 = vld [vmem:[%s2154 + $0x20] sm:$0x3]
    %v2162 = vld [vmem:[%s2154 + $0x24] sm:$0x3]
    %v2163 = vld [vmem:[#allocation3 + $0x30] sm:$0xf]
    %v2164 = vld [vmem:[#allocation3 + $0x70] sm:$0xf]
    %v2165 = vld [vmem:[#allocation3 + $0xb0] sm:$0xf]
    %v2166 = vld [vmem:[#allocation3 + $0xf0] sm:$0xf]
    %v2167 = vld [vmem:[#allocation3 + $0x130] sm:$0xf]
    %v2168 = vld [vmem:[#allocation3 + $0x170] sm:$0xf]
    %v2169 = vld [vmem:[#allocation3 + $0x1b0] sm:$0xf]
    %v2170 = vld [vmem:[#allocation3 + $0x1f0] sm:$0xf]
    %v2171 = vld [vmem:[#allocation3 + $0x230] sm:$0xf]
    %v2172 = vld [vmem:[#allocation3 + $0x270] sm:$0xf]
    %v2173 = vld [vmem:[#allocation3 + $0x2b0] sm:$0xf]
    %v2174 = vld [vmem:[#allocation3 + $0x2f0] sm:$0xf]
    %v2175 = vld [vmem:[#allocation3 + $0x330] sm:$0xf]
    %v2176 = vld [vmem:[#allocation3 + $0x370] sm:$0xf]
    %v2177 = vld [vmem:[#allocation3 + $0x3b0] sm:$0xf]
    %v2178 = vld [vmem:[#allocation3 + $0x3f0] sm:$0xf]
    %v2187 = vcombine.low %v2155, %v2156
    %v2188 = vcombine.low %v2157, %v2158
    %v2190 = vunpack.c.l.s4 1983009808
    %v2191 = vunpack.c.0.s8 %v2190
    %v2192 = vlaneseq
    %v2193 = vshrl.u32 %v2192, 7
    %v2194 = vsub.s32 %v2191, %v2193
    %v2195 = vrot.slane %v2187, %v2194
    %v2197 = vunpack.c.l.s4 1983009808
    %v2198 = vunpack.c.0.s8 %v2197
    %v2199 = vlaneseq
    %v2200 = vshrl.u32 %v2199, 7
    %v2201 = vsub.s32 %v2198, %v2200
    %v2202 = vrot.slane %v2188, %v2201
    %v2203 = vcombine.low %v2195, %v2202
    %v2204 = vcombine.low %v2159, %v2160
    %v2205 = vcombine.low %v2161, %v2162
    %v2207 = vunpack.c.l.s4 1983009808
    %v2208 = vunpack.c.0.s8 %v2207
    %v2209 = vlaneseq
    %v2210 = vshrl.u32 %v2209, 7
    %v2211 = vsub.s32 %v2208, %v2210
    %v2212 = vrot.slane %v2204, %v2211
    %v2214 = vunpack.c.l.s4 1983009808
    %v2215 = vunpack.c.0.s8 %v2214
    %v2216 = vlaneseq
    %v2217 = vshrl.u32 %v2216, 7
    %v2218 = vsub.s32 %v2215, %v2217
    %v2219 = vrot.slane %v2205, %v2218
    %v2220 = vcombine.low %v2212, %v2219
    %v2239 = vunpack.c.l.b16 %v2163
    %v2240 = vunpack.c.l.b16 %v2164
    %v2241 = vunpack.c.l.b16 %v2165
    %v2242 = vunpack.c.l.b16 %v2166
    %v2243 = vunpack.c.l.b16 %v2167
    %v2244 = vunpack.c.l.b16 %v2168
    %v2245 = vunpack.c.l.b16 %v2169
    %v2246 = vunpack.c.l.b16 %v2170
    %v2247 = vunpack.c.l.b16 %v2171
    %v2248 = vunpack.c.l.b16 %v2172
    %v2249 = vunpack.c.l.b16 %v2173
    %v2250 = vunpack.c.l.b16 %v2174
    %v2251 = vunpack.c.l.b16 %v2175
    %v2252 = vunpack.c.l.b16 %v2176
    %v2253 = vunpack.c.l.b16 %v2177
    %v2254 = vunpack.c.l.b16 %v2178
    %v2255 = vpack.c.b16 %v2240, %v2239
    %v2256 = vpack.c.b16 %v2242, %v2241
    %v2257 = vpack.c.b16 %v2244, %v2243
    %v2258 = vpack.c.b16 %v2246, %v2245
    %v2259 = vpack.c.b16 %v2248, %v2247
    %v2260 = vpack.c.b16 %v2250, %v2249
    %v2261 = vpack.c.b16 %v2252, %v2251
    %v2262 = vpack.c.b16 %v2254, %v2253
    %2271 = vmatprep.subr.bf16.mxu0 0
    %2272 = vmatpush1.bf16.msra.mxu0 %v2262
    %2273 = vmatprep.subr.bf16.mxu0 0
    %2274 = vmatpush1.bf16.msra.mxu0 %v2261
    %2275 = vmatprep.subr.bf16.mxu0 0
    %2276 = vmatpush1.bf16.msra.mxu0 %v2260
    %2277 = vmatprep.subr.bf16.mxu0 0
    %2278 = vmatpush1.bf16.msra.mxu0 %v2259
    %2279 = vmatprep.subr.bf16.mxu0 0
    %2280 = vmatpush1.bf16.msra.mxu0 %v2258
    %2281 = vmatprep.subr.bf16.mxu0 0
    %2282 = vmatpush1.bf16.msra.mxu0 %v2257
    %2283 = vmatprep.subr.bf16.mxu0 0
    %2284 = vmatpush1.bf16.msra.mxu0 %v2256
    %2285 = vmatprep.subr.bf16.mxu0 0
    %2286 = vmatpush1.bf16.msra.mxu0 %v2255
    %2287 = vmatprep.subr.bf16.mxu0 0
    %2288 = vmatpush2.bf16.msra.mxu0 0
    %2289 = vmatprep.subr.bf16.mxu0 0
    %2290 = vmatpush2.bf16.msra.mxu0 0
    %2291 = vmatprep.subr.bf16.mxu0 0
    %2292 = vmatpush2.bf16.msra.mxu0 0
    %2293 = vmatprep.subr.bf16.mxu0 0
    %2294 = vmatpush2.bf16.msra.mxu0 0
    %2295 = vmatprep.subr.bf16.mxu0 0
    %2296 = vmatpush2.bf16.msra.mxu0 0
    %2297 = vmatprep.subr.bf16.mxu0 0
    %2298 = vmatpush2.bf16.msra.mxu0 0
    %2299 = vmatprep.subr.bf16.mxu0 0
    %2300 = vmatpush2.bf16.msra.mxu0 0
    %2301 = vmatprep.subr.bf16.mxu0 0
    %2302 = vmatpush2.bf16.msra.mxu0 0
    %2303 = vmatprep.mubr.bf16.mxu0 0
    %2304 = vmatmul.mubr.bf16.gmra.mxu0 %v2203
    %v2305 = vpop.f32.mrf.mxu0
    %v2306 = vadd.f32 0.0, %v2305
    %v2307 = vpop.f32.mrf.mxu0
    %v2308 = vpop.f32.mrf.mxu0
    %v2309 = vadd.f32 0.0, %v2308
    %v2310 = vpop.f32.mrf.mxu0
    %2311 = vmatprep.mubr.bf16.mxu0 0
    %2312 = vmatmul.mubr.bf16.gmra.mxu0 %v2220
    %v2313 = vpop.f32.mrf.mxu0
    %v2314 = vadd.f32 0.0, %v2313
    %v2315 = vpop.f32.mrf.mxu0
    %v2316 = vpop.f32.mrf.mxu0
    %v2317 = vadd.f32 0.0, %v2316
    %v2318 = vpop.f32.mrf.mxu0
    %2319 = vdwg.mxu0
    %v2320 = vadd.f32 %v1845, %v2306
    %v2321 = vadd.f32 %v1846, %v2309
    %v2322 = vadd.f32 %v1847, %v2314
    %v2323 = vadd.f32 %v1848, %v2317
    %v2324 = vld [vmem:[%s2154] sm:$0x7]
    %v2325 = vld [vmem:[%s2154 + $0x4] sm:$0x7]
    %v2326 = vld [vmem:[%s2154 + $0x8] sm:$0x7]
    %v2327 = vld [vmem:[%s2154 + $0xc] sm:$0x7]
    %v2328 = vld [vmem:[%s2154 + $0x18] sm:$0x7]
    %v2329 = vld [vmem:[%s2154 + $0x1c] sm:$0x7]
    %v2330 = vld [vmem:[%s2154 + $0x20] sm:$0x7]
    %v2331 = vld [vmem:[%s2154 + $0x24] sm:$0x7]
    %v2341 = vunpack.c.l.s4 1983009808
    %v2342 = vunpack.c.0.s8 %v2341
    %v2343 = vlaneseq
    %v2344 = vshrl.u32 %v2343, 7
    %v2345 = vsub.s32 %v2342, %v2344
    %v2346 = vrot.slane %v2324, %v2345
    %v2347 = vcombine.high %v2346, %v2346
    %v2349 = vunpack.c.l.s4 1983009808
    %v2350 = vunpack.c.0.s8 %v2349
    %v2351 = vlaneseq
    %v2352 = vshrl.u32 %v2351, 7
    %v2353 = vsub.s32 %v2350, %v2352
    %v2354 = vrot.slane %v2325, %v2353
    %v2355 = vcombine.high %v2354, %v2354
    %v2357 = vunpack.c.l.s4 1983009808
    %v2358 = vunpack.c.0.s8 %v2357
    %v2359 = vlaneseq
    %v2360 = vshrl.u32 %v2359, 7
    %v2361 = vsub.s32 %v2358, %v2360
    %v2362 = vrot.slane %v2326, %v2361
    %v2363 = vcombine.high %v2362, %v2362
    %v2365 = vunpack.c.l.s4 1983009808
    %v2366 = vunpack.c.0.s8 %v2365
    %v2367 = vlaneseq
    %v2368 = vshrl.u32 %v2367, 7
    %v2369 = vsub.s32 %v2366, %v2368
    %v2370 = vrot.slane %v2327, %v2369
    %v2371 = vcombine.high %v2370, %v2370
    %v2373 = vunpack.c.l.s4 1983009808
    %v2374 = vunpack.c.0.s8 %v2373
    %v2375 = vlaneseq
    %v2376 = vshrl.u32 %v2375, 7
    %v2377 = vsub.s32 %v2374, %v2376
    %v2378 = vrot.slane %v2328, %v2377
    %v2379 = vcombine.high %v2378, %v2378
    %v2381 = vunpack.c.l.s4 1983009808
    %v2382 = vunpack.c.0.s8 %v2381
    %v2383 = vlaneseq
    %v2384 = vshrl.u32 %v2383, 7
    %v2385 = vsub.s32 %v2382, %v2384
    %v2386 = vrot.slane %v2329, %v2385
    %v2387 = vcombine.high %v2386, %v2386
    %v2389 = vunpack.c.l.s4 1983009808
    %v2390 = vunpack.c.0.s8 %v2389
    %v2391 = vlaneseq
    %v2392 = vshrl.u32 %v2391, 7
    %v2393 = vsub.s32 %v2390, %v2392
    %v2394 = vrot.slane %v2330, %v2393
    %v2395 = vcombine.high %v2394, %v2394
    %v2397 = vunpack.c.l.s4 1983009808
    %v2398 = vunpack.c.0.s8 %v2397
    %v2399 = vlaneseq
    %v2400 = vshrl.u32 %v2399, 7
    %v2401 = vsub.s32 %v2398, %v2400
    %v2402 = vrot.slane %v2331, %v2401
    %v2403 = vcombine.high %v2402, %v2402
    %v2405 = vshrl.u32 %v2346, 16
    %v2407 = vrot.slane %v2405, 6
    %v2408 = vshll.u32 %v2346, 16
    %v2410 = vrot.slane %v2408, 7
    %v2411 = vor.u32 %v2407, %v2410
    %v2412 = vrot.slane %v2411, 2
    %v2414 = vshll.u32 %v2347, 16
    %v2416 = vrot.slane %v2414, 7
    %v2417 = vsel %vm397, %v2412, %v2416
    %v2419 = vshrl.u32 %v2354, 16
    %v2421 = vrot.slane %v2419, 6
    %v2422 = vshll.u32 %v2354, 16
    %v2424 = vrot.slane %v2422, 7
    %v2425 = vor.u32 %v2421, %v2424
    %v2426 = vrot.slane %v2425, 2
    %v2428 = vshll.u32 %v2355, 16
    %v2430 = vrot.slane %v2428, 7
    %v2431 = vsel %vm397, %v2426, %v2430
    %v2433 = vshrl.u32 %v2362, 16
    %v2435 = vrot.slane %v2433, 6
    %v2436 = vshll.u32 %v2362, 16
    %v2438 = vrot.slane %v2436, 7
    %v2439 = vor.u32 %v2435, %v2438
    %v2440 = vrot.slane %v2439, 2
    %v2442 = vshll.u32 %v2363, 16
    %v2444 = vrot.slane %v2442, 7
    %v2445 = vsel %vm397, %v2440, %v2444
    %v2447 = vshrl.u32 %v2370, 16
    %v2449 = vrot.slane %v2447, 6
    %v2450 = vshll.u32 %v2370, 16
    %v2452 = vrot.slane %v2450, 7
    %v2453 = vor.u32 %v2449, %v2452
    %v2454 = vrot.slane %v2453, 2
    %v2456 = vshll.u32 %v2371, 16
    %v2458 = vrot.slane %v2456, 7
    %v2459 = vsel %vm397, %v2454, %v2458
    %v2461 = vshrl.u32 %v2378, 16
    %v2463 = vrot.slane %v2461, 6
    %v2464 = vshll.u32 %v2378, 16
    %v2466 = vrot.slane %v2464, 7
    %v2467 = vor.u32 %v2463, %v2466
    %v2468 = vrot.slane %v2467, 2
    %v2470 = vshll.u32 %v2379, 16
    %v2472 = vrot.slane %v2470, 7
    %v2473 = vsel %vm397, %v2468, %v2472
    %v2475 = vshrl.u32 %v2386, 16
    %v2477 = vrot.slane %v2475, 6
    %v2478 = vshll.u32 %v2386, 16
    %v2480 = vrot.slane %v2478, 7
    %v2481 = vor.u32 %v2477, %v2480
    %v2482 = vrot.slane %v2481, 2
    %v2484 = vshll.u32 %v2387, 16
    %v2486 = vrot.slane %v2484, 7
    %v2487 = vsel %vm397, %v2482, %v2486
    %v2489 = vshrl.u32 %v2394, 16
    %v2491 = vrot.slane %v2489, 6
    %v2492 = vshll.u32 %v2394, 16
    %v2494 = vrot.slane %v2492, 7
    %v2495 = vor.u32 %v2491, %v2494
    %v2496 = vrot.slane %v2495, 2
    %v2498 = vshll.u32 %v2395, 16
    %v2500 = vrot.slane %v2498, 7
    %v2501 = vsel %vm397, %v2496, %v2500
    %v2503 = vshrl.u32 %v2402, 16
    %v2505 = vrot.slane %v2503, 6
    %v2506 = vshll.u32 %v2402, 16
    %v2508 = vrot.slane %v2506, 7
    %v2509 = vor.u32 %v2505, %v2508
    %v2510 = vrot.slane %v2509, 2
    %v2512 = vshll.u32 %v2403, 16
    %v2514 = vrot.slane %v2512, 7
    %v2515 = vsel %vm397, %v2510, %v2514
    %v2516 = vld [vmem:[#allocation3 + $0x34] sm:$0xff]
    %v2517 = vld [vmem:[#allocation3 + $0x74] sm:$0xff]
    %v2518 = vld [vmem:[#allocation3 + $0xb4] sm:$0xff]
    %v2519 = vld [vmem:[#allocation3 + $0xf4] sm:$0xff]
    %v2520 = vld [vmem:[#allocation3 + $0x134] sm:$0xff]
    %v2521 = vld [vmem:[#allocation3 + $0x174] sm:$0xff]
    %v2522 = vld [vmem:[#allocation3 + $0x1b4] sm:$0xff]
    %v2523 = vld [vmem:[#allocation3 + $0x1f4] sm:$0xff]
    %v2524 = vld [vmem:[#allocation3 + $0x234] sm:$0xff]
    %v2525 = vld [vmem:[#allocation3 + $0x274] sm:$0xff]
    %v2526 = vld [vmem:[#allocation3 + $0x2b4] sm:$0xff]
    %v2527 = vld [vmem:[#allocation3 + $0x2f4] sm:$0xff]
    %v2528 = vld [vmem:[#allocation3 + $0x334] sm:$0xff]
    %v2529 = vld [vmem:[#allocation3 + $0x374] sm:$0xff]
    %v2530 = vld [vmem:[#allocation3 + $0x3b4] sm:$0xff]
    %v2531 = vld [vmem:[#allocation3 + $0x3f4] sm:$0xff]
    %v2532 = vcombine.low %v2417, %v2431
    %v2533 = vcombine.low %v2445, %v2459
    %v2535 = vunpack.c.l.s4 1983009808
    %v2536 = vunpack.c.0.s8 %v2535
    %v2537 = vlaneseq
    %v2538 = vshrl.u32 %v2537, 7
    %v2539 = vsub.s32 %v2536, %v2538
    %v2540 = vrot.slane %v2532, %v2539
    %v2542 = vunpack.c.l.s4 1983009808
    %v2543 = vunpack.c.0.s8 %v2542
    %v2544 = vlaneseq
    %v2545 = vshrl.u32 %v2544, 7
    %v2546 = vsub.s32 %v2543, %v2545
    %v2547 = vrot.slane %v2533, %v2546
    %v2548 = vcombine.low %v2540, %v2547
    %v2549 = vcombine.low %v2473, %v2487
    %v2550 = vcombine.low %v2501, %v2515
    %v2552 = vunpack.c.l.s4 1983009808
    %v2553 = vunpack.c.0.s8 %v2552
    %v2554 = vlaneseq
    %v2555 = vshrl.u32 %v2554, 7
    %v2556 = vsub.s32 %v2553, %v2555
    %v2557 = vrot.slane %v2549, %v2556
    %v2559 = vunpack.c.l.s4 1983009808
    %v2560 = vunpack.c.0.s8 %v2559
    %v2561 = vlaneseq
    %v2562 = vshrl.u32 %v2561, 7
    %v2563 = vsub.s32 %v2560, %v2562
    %v2564 = vrot.slane %v2550, %v2563
    %v2565 = vcombine.low %v2557, %v2564
    %v2584 = vunpack.c.l.b16 %v2516
    %v2585 = vunpack.c.h.b16 %v2516
    %v2586 = vunpack.c.l.b16 %v2517
    %v2587 = vunpack.c.h.b16 %v2517
    %v2588 = vunpack.c.l.b16 %v2518
    %v2589 = vunpack.c.h.b16 %v2518
    %v2590 = vunpack.c.l.b16 %v2519
    %v2591 = vunpack.c.h.b16 %v2519
    %v2592 = vunpack.c.l.b16 %v2520
    %v2593 = vunpack.c.h.b16 %v2520
    %v2594 = vunpack.c.l.b16 %v2521
    %v2595 = vunpack.c.h.b16 %v2521
    %v2596 = vunpack.c.l.b16 %v2522
    %v2597 = vunpack.c.h.b16 %v2522
    %v2598 = vunpack.c.l.b16 %v2523
    %v2599 = vunpack.c.h.b16 %v2523
    %v2600 = vunpack.c.l.b16 %v2524
    %v2601 = vunpack.c.h.b16 %v2524
    %v2602 = vunpack.c.l.b16 %v2525
    %v2603 = vunpack.c.h.b16 %v2525
    %v2604 = vunpack.c.l.b16 %v2526
    %v2605 = vunpack.c.h.b16 %v2526
    %v2606 = vunpack.c.l.b16 %v2527
    %v2607 = vunpack.c.h.b16 %v2527
    %v2608 = vunpack.c.l.b16 %v2528
    %v2609 = vunpack.c.h.b16 %v2528
    %v2610 = vunpack.c.l.b16 %v2529
    %v2611 = vunpack.c.h.b16 %v2529
    %v2612 = vunpack.c.l.b16 %v2530
    %v2613 = vunpack.c.h.b16 %v2530
    %v2614 = vunpack.c.l.b16 %v2531
    %v2615 = vunpack.c.h.b16 %v2531
    %v2616 = vpack.c.b16 %v2586, %v2584
    %v2617 = vpack.c.b16 %v2587, %v2585
    %v2618 = vpack.c.b16 %v2590, %v2588
    %v2619 = vpack.c.b16 %v2591, %v2589
    %v2620 = vpack.c.b16 %v2594, %v2592
    %v2621 = vpack.c.b16 %v2595, %v2593
    %v2622 = vpack.c.b16 %v2598, %v2596
    %v2623 = vpack.c.b16 %v2599, %v2597
    %v2624 = vpack.c.b16 %v2602, %v2600
    %v2625 = vpack.c.b16 %v2603, %v2601
    %v2626 = vpack.c.b16 %v2606, %v2604
    %v2627 = vpack.c.b16 %v2607, %v2605
    %v2628 = vpack.c.b16 %v2610, %v2608
    %v2629 = vpack.c.b16 %v2611, %v2609
    %v2630 = vpack.c.b16 %v2614, %v2612
    %v2631 = vpack.c.b16 %v2615, %v2613
    %2648 = vmatprep.subr.bf16.mxu0 %v2631
    %2649 = vmatpush1.bf16.msra.mxu0 %v2630
    %2650 = vmatprep.subr.bf16.mxu0 %v2629
    %2651 = vmatpush1.bf16.msra.mxu0 %v2628
    %2652 = vmatprep.subr.bf16.mxu0 %v2627
    %2653 = vmatpush1.bf16.msra.mxu0 %v2626
    %2654 = vmatprep.subr.bf16.mxu0 %v2625
    %2655 = vmatpush1.bf16.msra.mxu0 %v2624
    %2656 = vmatprep.subr.bf16.mxu0 %v2623
    %2657 = vmatpush1.bf16.msra.mxu0 %v2622
    %2658 = vmatprep.subr.bf16.mxu0 %v2621
    %2659 = vmatpush1.bf16.msra.mxu0 %v2620
    %2660 = vmatprep.subr.bf16.mxu0 %v2619
    %2661 = vmatpush1.bf16.msra.mxu0 %v2618
    %2662 = vmatprep.subr.bf16.mxu0 %v2617
    %2663 = vmatpush1.bf16.msra.mxu0 %v2616
    %2664 = vmatprep.subr.bf16.mxu0 0
    %2665 = vmatpush2.bf16.msra.mxu0 0
    %2666 = vmatprep.subr.bf16.mxu0 0
    %2667 = vmatpush2.bf16.msra.mxu0 0
    %2668 = vmatprep.subr.bf16.mxu0 0
    %2669 = vmatpush2.bf16.msra.mxu0 0
    %2670 = vmatprep.subr.bf16.mxu0 0
    %2671 = vmatpush2.bf16.msra.mxu0 0
    %2672 = vmatprep.subr.bf16.mxu0 0
    %2673 = vmatpush2.bf16.msra.mxu0 0
    %2674 = vmatprep.subr.bf16.mxu0 0
    %2675 = vmatpush2.bf16.msra.mxu0 0
    %2676 = vmatprep.subr.bf16.mxu0 0
    %2677 = vmatpush2.bf16.msra.mxu0 0
    %2678 = vmatprep.subr.bf16.mxu0 0
    %2679 = vmatpush2.bf16.msra.mxu0 0
    %2680 = vmatprep.mubr.bf16.mxu0 0
    %2681 = vmatmul.mubr.bf16.gmra.mxu0 %v2548
    %v2682 = vpop.f32.mrf.mxu0
    %v2683 = vadd.f32 0.0, %v2682
    %v2684 = vpop.f32.mrf.mxu0
    %v2685 = vadd.f32 0.0, %v2684
    %v2686 = vpop.f32.mrf.mxu0
    %v2687 = vadd.f32 0.0, %v2686
    %v2688 = vpop.f32.mrf.mxu0
    %v2689 = vadd.f32 0.0, %v2688
    %2690 = vmatprep.mubr.bf16.mxu0 0
    %2691 = vmatmul.mubr.bf16.gmra.mxu0 %v2565
    %v2692 = vpop.f32.mrf.mxu0
    %v2693 = vadd.f32 0.0, %v2692
    %v2694 = vpop.f32.mrf.mxu0
    %v2695 = vadd.f32 0.0, %v2694
    %v2696 = vpop.f32.mrf.mxu0
    %v2697 = vadd.f32 0.0, %v2696
    %v2698 = vpop.f32.mrf.mxu0
    %v2699 = vadd.f32 0.0, %v2698
    %2700 = vdwg.mxu0
    %v2701 = vadd.f32 %v2320, %v2683
    %v2702 = vadd.f32 %v2321, %v2687
    %v2703 = vadd.f32 %v2322, %v2693
    %v2704 = vadd.f32 %v2323, %v2697
    %v2705 = vadd.f32 %v2150, %v2685
    %v2706 = vadd.f32 %v2151, %v2689
    %v2707 = vadd.f32 %v2152, %v2695
    %v2708 = vadd.f32 %v2153, %v2699
    %v2709 = vld [vmem:[%s2154] sm:$0x6]
    %v2710 = vld [vmem:[%s2154 + $0x4] sm:$0x6]
    %v2711 = vld [vmem:[%s2154 + $0x8] sm:$0x6]
    %v2712 = vld [vmem:[%s2154 + $0xc] sm:$0x6]
    %v2713 = vld [vmem:[%s2154 + $0x18] sm:$0x6]
    %v2714 = vld [vmem:[%s2154 + $0x1c] sm:$0x6]
    %v2715 = vld [vmem:[%s2154 + $0x20] sm:$0x6]
    %v2716 = vld [vmem:[%s2154 + $0x24] sm:$0x6]
    %v2726 = vunpack.c.l.s4 1983009808
    %v2727 = vunpack.c.0.s8 %v2726
    %v2728 = vlaneseq
    %v2729 = vshrl.u32 %v2728, 7
    %v2730 = vsub.s32 %v2727, %v2729
    %v2731 = vrot.slane %v2709, %v2730
    %v2732 = vcombine.high %v2731, %v2731
    %v2734 = vunpack.c.l.s4 1983009808
    %v2735 = vunpack.c.0.s8 %v2734
    %v2736 = vlaneseq
    %v2737 = vshrl.u32 %v2736, 7
    %v2738 = vsub.s32 %v2735, %v2737
    %v2739 = vrot.slane %v2710, %v2738
    %v2740 = vcombine.high %v2739, %v2739
    %v2742 = vunpack.c.l.s4 1983009808
    %v2743 = vunpack.c.0.s8 %v2742
    %v2744 = vlaneseq
    %v2745 = vshrl.u32 %v2744, 7
    %v2746 = vsub.s32 %v2743, %v2745
    %v2747 = vrot.slane %v2711, %v2746
    %v2748 = vcombine.high %v2747, %v2747
    %v2750 = vunpack.c.l.s4 1983009808
    %v2751 = vunpack.c.0.s8 %v2750
    %v2752 = vlaneseq
    %v2753 = vshrl.u32 %v2752, 7
    %v2754 = vsub.s32 %v2751, %v2753
    %v2755 = vrot.slane %v2712, %v2754
    %v2756 = vcombine.high %v2755, %v2755
    %v2758 = vunpack.c.l.s4 1983009808
    %v2759 = vunpack.c.0.s8 %v2758
    %v2760 = vlaneseq
    %v2761 = vshrl.u32 %v2760, 7
    %v2762 = vsub.s32 %v2759, %v2761
    %v2763 = vrot.slane %v2713, %v2762
    %v2764 = vcombine.high %v2763, %v2763
    %v2766 = vunpack.c.l.s4 1983009808
    %v2767 = vunpack.c.0.s8 %v2766
    %v2768 = vlaneseq
    %v2769 = vshrl.u32 %v2768, 7
    %v2770 = vsub.s32 %v2767, %v2769
    %v2771 = vrot.slane %v2714, %v2770
    %v2772 = vcombine.high %v2771, %v2771
    %v2774 = vunpack.c.l.s4 1983009808
    %v2775 = vunpack.c.0.s8 %v2774
    %v2776 = vlaneseq
    %v2777 = vshrl.u32 %v2776, 7
    %v2778 = vsub.s32 %v2775, %v2777
    %v2779 = vrot.slane %v2715, %v2778
    %v2780 = vcombine.high %v2779, %v2779
    %v2782 = vunpack.c.l.s4 1983009808
    %v2783 = vunpack.c.0.s8 %v2782
    %v2784 = vlaneseq
    %v2785 = vshrl.u32 %v2784, 7
    %v2786 = vsub.s32 %v2783, %v2785
    %v2787 = vrot.slane %v2716, %v2786
    %v2788 = vcombine.high %v2787, %v2787
    %v2789 = vrot.slane %v2731, 7
    %v2790 = vrot.slane %v2789, 2
    %v2791 = vrot.slane %v2732, 7
    %v2792 = vsel %vm920, %v2790, %v2791
    %v2793 = vrot.slane %v2739, 7
    %v2794 = vrot.slane %v2793, 2
    %v2795 = vrot.slane %v2740, 7
    %v2796 = vsel %vm920, %v2794, %v2795
    %v2797 = vrot.slane %v2747, 7
    %v2798 = vrot.slane %v2797, 2
    %v2799 = vrot.slane %v2748, 7
    %v2800 = vsel %vm920, %v2798, %v2799
    %v2801 = vrot.slane %v2755, 7
    %v2802 = vrot.slane %v2801, 2
    %v2803 = vrot.slane %v2756, 7
    %v2804 = vsel %vm920, %v2802, %v2803
    %v2805 = vrot.slane %v2763, 7
    %v2806 = vrot.slane %v2805, 2
    %v2807 = vrot.slane %v2764, 7
    %v2808 = vsel %vm920, %v2806, %v2807
    %v2809 = vrot.slane %v2771, 7
    %v2810 = vrot.slane %v2809, 2
    %v2811 = vrot.slane %v2772, 7
    %v2812 = vsel %vm920, %v2810, %v2811
    %v2813 = vrot.slane %v2779, 7
    %v2814 = vrot.slane %v2813, 2
    %v2815 = vrot.slane %v2780, 7
    %v2816 = vsel %vm920, %v2814, %v2815
    %v2817 = vrot.slane %v2787, 7
    %v2818 = vrot.slane %v2817, 2
    %v2819 = vrot.slane %v2788, 7
    %v2820 = vsel %vm920, %v2818, %v2819
    %v2821 = vld [vmem:[#allocation3 + $0x3c] sm:$0xf]
    %v2822 = vld [vmem:[#allocation3 + $0x7c] sm:$0xf]
    %v2823 = vld [vmem:[#allocation3 + $0xbc] sm:$0xf]
    %v2824 = vld [vmem:[#allocation3 + $0xfc] sm:$0xf]
    %v2825 = vld [vmem:[#allocation3 + $0x13c] sm:$0xf]
    %v2826 = vld [vmem:[#allocation3 + $0x17c] sm:$0xf]
    %v2827 = vld [vmem:[#allocation3 + $0x1bc] sm:$0xf]
    %v2828 = vld [vmem:[#allocation3 + $0x1fc] sm:$0xf]
    %v2829 = vld [vmem:[#allocation3 + $0x23c] sm:$0xf]
    %v2830 = vld [vmem:[#allocation3 + $0x27c] sm:$0xf]
    %v2831 = vld [vmem:[#allocation3 + $0x2bc] sm:$0xf]
    %v2832 = vld [vmem:[#allocation3 + $0x2fc] sm:$0xf]
    %v2833 = vld [vmem:[#allocation3 + $0x33c] sm:$0xf]
    %v2834 = vld [vmem:[#allocation3 + $0x37c] sm:$0xf]
    %v2835 = vld [vmem:[#allocation3 + $0x3bc] sm:$0xf]
    %v2836 = vld [vmem:[#allocation3 + $0x3fc] sm:$0xf]
    %v2837 = vcombine.low %v2792, %v2796
    %v2838 = vcombine.low %v2800, %v2804
    %v2840 = vunpack.c.l.s4 1983009808
    %v2841 = vunpack.c.0.s8 %v2840
    %v2842 = vlaneseq
    %v2843 = vshrl.u32 %v2842, 7
    %v2844 = vsub.s32 %v2841, %v2843
    %v2845 = vrot.slane %v2837, %v2844
    %v2847 = vunpack.c.l.s4 1983009808
    %v2848 = vunpack.c.0.s8 %v2847
    %v2849 = vlaneseq
    %v2850 = vshrl.u32 %v2849, 7
    %v2851 = vsub.s32 %v2848, %v2850
    %v2852 = vrot.slane %v2838, %v2851
    %v2853 = vcombine.low %v2845, %v2852
    %v2854 = vcombine.low %v2808, %v2812
    %v2855 = vcombine.low %v2816, %v2820
    %v2857 = vunpack.c.l.s4 1983009808
    %v2858 = vunpack.c.0.s8 %v2857
    %v2859 = vlaneseq
    %v2860 = vshrl.u32 %v2859, 7
    %v2861 = vsub.s32 %v2858, %v2860
    %v2862 = vrot.slane %v2854, %v2861
    %v2864 = vunpack.c.l.s4 1983009808
    %v2865 = vunpack.c.0.s8 %v2864
    %v2866 = vlaneseq
    %v2867 = vshrl.u32 %v2866, 7
    %v2868 = vsub.s32 %v2865, %v2867
    %v2869 = vrot.slane %v2855, %v2868
    %v2870 = vcombine.low %v2862, %v2869
    %v2889 = vunpack.c.l.b16 %v2821
    %v2890 = vunpack.c.l.b16 %v2822
    %v2891 = vunpack.c.l.b16 %v2823
    %v2892 = vunpack.c.l.b16 %v2824
    %v2893 = vunpack.c.l.b16 %v2825
    %v2894 = vunpack.c.l.b16 %v2826
    %v2895 = vunpack.c.l.b16 %v2827
    %v2896 = vunpack.c.l.b16 %v2828
    %v2897 = vunpack.c.l.b16 %v2829
    %v2898 = vunpack.c.l.b16 %v2830
    %v2899 = vunpack.c.l.b16 %v2831
    %v2900 = vunpack.c.l.b16 %v2832
    %v2901 = vunpack.c.l.b16 %v2833
    %v2902 = vunpack.c.l.b16 %v2834
    %v2903 = vunpack.c.l.b16 %v2835
    %v2904 = vunpack.c.l.b16 %v2836
    %v2905 = vpack.c.b16 %v2890, %v2889
    %v2906 = vpack.c.b16 %v2892, %v2891
    %v2907 = vpack.c.b16 %v2894, %v2893
    %v2908 = vpack.c.b16 %v2896, %v2895
    %v2909 = vpack.c.b16 %v2898, %v2897
    %v2910 = vpack.c.b16 %v2900, %v2899
    %v2911 = vpack.c.b16 %v2902, %v2901
    %v2912 = vpack.c.b16 %v2904, %v2903
    %2921 = vmatprep.subr.bf16.mxu0 0
    %2922 = vmatpush1.bf16.msra.mxu0 %v2912
    %2923 = vmatprep.subr.bf16.mxu0 0
    %2924 = vmatpush1.bf16.msra.mxu0 %v2911
    %2925 = vmatprep.subr.bf16.mxu0 0
    %2926 = vmatpush1.bf16.msra.mxu0 %v2910
    %2927 = vmatprep.subr.bf16.mxu0 0
    %2928 = vmatpush1.bf16.msra.mxu0 %v2909
    %2929 = vmatprep.subr.bf16.mxu0 0
    %2930 = vmatpush1.bf16.msra.mxu0 %v2908
    %2931 = vmatprep.subr.bf16.mxu0 0
    %2932 = vmatpush1.bf16.msra.mxu0 %v2907
    %2933 = vmatprep.subr.bf16.mxu0 0
    %2934 = vmatpush1.bf16.msra.mxu0 %v2906
    %2935 = vmatprep.subr.bf16.mxu0 0
    %2936 = vmatpush1.bf16.msra.mxu0 %v2905
    %2937 = vmatprep.subr.bf16.mxu0 0
    %2938 = vmatpush2.bf16.msra.mxu0 0
    %2939 = vmatprep.subr.bf16.mxu0 0
    %2940 = vmatpush2.bf16.msra.mxu0 0
    %2941 = vmatprep.subr.bf16.mxu0 0
    %2942 = vmatpush2.bf16.msra.mxu0 0
    %2943 = vmatprep.subr.bf16.mxu0 0
    %2944 = vmatpush2.bf16.msra.mxu0 0
    %2945 = vmatprep.subr.bf16.mxu0 0
    %2946 = vmatpush2.bf16.msra.mxu0 0
    %2947 = vmatprep.subr.bf16.mxu0 0
    %2948 = vmatpush2.bf16.msra.mxu0 0
    %2949 = vmatprep.subr.bf16.mxu0 0
    %2950 = vmatpush2.bf16.msra.mxu0 0
    %2951 = vmatprep.subr.bf16.mxu0 0
    %2952 = vmatpush2.bf16.msra.mxu0 0
    %2953 = vmatprep.mubr.bf16.mxu0 0
    %2954 = vmatmul.mubr.bf16.gmra.mxu0 %v2853
    %v2955 = vpop.f32.mrf.mxu0
    %v2956 = vadd.f32 0.0, %v2955
    %v2957 = vpop.f32.mrf.mxu0
    %v2958 = vpop.f32.mrf.mxu0
    %v2959 = vadd.f32 0.0, %v2958
    %v2960 = vpop.f32.mrf.mxu0
    %2961 = vmatprep.mubr.bf16.mxu0 0
    %2962 = vmatmul.mubr.bf16.gmra.mxu0 %v2870
    %v2963 = vpop.f32.mrf.mxu0
    %v2964 = vadd.f32 0.0, %v2963
    %v2965 = vpop.f32.mrf.mxu0
    %v2966 = vpop.f32.mrf.mxu0
    %v2967 = vadd.f32 0.0, %v2966
    %v2968 = vpop.f32.mrf.mxu0
    %2969 = vdwg.mxu0
    %v2970 = vadd.f32 %v2705, %v2956
    %v2971 = vadd.f32 %v2706, %v2959
    %v2972 = vadd.f32 %v2707, %v2964
    %v2973 = vadd.f32 %v2708, %v2967
    %v2974 = vadd.f32 %v1837, %v1838
    %v2975 = vadd.f32 %v2974, %v1839
    %v2976 = vadd.f32 %v2975, %v1840
    %v2977 = vrot.slane %v2976, 4
    %v2978 = vadd.f32 %v2976, %v2977
    %v2979 = vrot.slane %v2978, 2
    %v2980 = vadd.f32 %v2978, %v2979
    %v2981 = vrot.slane %v2980, 1
    %v2982 = vadd.f32 %v2980, %v2981
    %v2983 = vadd.f32 %v2982, 0.0
    %v2984 = vmul.f32 %v1837, %v1837
    %v2985 = vmul.f32 %v1838, %v1838
    %v2986 = vmul.f32 %v1839, %v1839
    %v2987 = vmul.f32 %v1840, %v1840
    %v2988 = vadd.f32 %v2984, %v2985
    %v2989 = vadd.f32 %v2988, %v2986
    %v2990 = vadd.f32 %v2989, %v2987
    %v2991 = vrot.slane %v2990, 4
    %v2992 = vadd.f32 %v2990, %v2991
    %v2993 = vrot.slane %v2992, 2
    %v2994 = vadd.f32 %v2992, %v2993
    %v2995 = vrot.slane %v2994, 1
    %v2996 = vadd.f32 %v2994, %v2995
    %v2997 = vadd.f32 %v2996, 0.0
    %v3002 = vcombine.high %v1837, %v1837
    %v3003 = vcombine.high %v1838, %v1838
    %v3004 = vcombine.high %v1839, %v1839
    %v3005 = vcombine.high %v1840, %v1840
    %v3010 = vpack.c.bf16 %v1837, %v1837
    %v3011 = vpack.c.bf16 %v3002, %v3002
    %v3012 = vpack.c.bf16 %v1838, %v1838
    %v3013 = vpack.c.bf16 %v3003, %v3003
    %v3014 = vpack.c.bf16 %v1839, %v1839
    %v3015 = vpack.c.bf16 %v3004, %v3004
    %v3016 = vpack.c.bf16 %v1840, %v1840
    %v3017 = vpack.c.bf16 %v3005, %v3005
    %3018 = vst [vmem:[%s4] sm:$0x3] %v3010
    %3019 = vst [vmem:[%s4 + $0x8] sm:$0x3] %v3011
    %3020 = vst [vmem:[%s4 + $0x10] sm:$0x3] %v3012
    %3021 = vst [vmem:[%s4 + $0x18] sm:$0x3] %v3013
    %3022 = vst [vmem:[%s4 + $0x20] sm:$0x3] %v3014
    %3023 = vst [vmem:[%s4 + $0x28] sm:$0x3] %v3015
    %3024 = vst [vmem:[%s4 + $0x30] sm:$0x3] %v3016
    %3025 = vst [vmem:[%s4 + $0x38] sm:$0x3] %v3017
    %v3026 = vadd.f32 %v2146, %v2147
    %v3027 = vadd.f32 %v3026, %v2148
    %v3028 = vadd.f32 %v3027, %v2149
    %v3029 = vrot.slane %v3028, 4
    %v3030 = vadd.f32 %v3028, %v3029
    %v3031 = vrot.slane %v3030, 2
    %v3032 = vadd.f32 %v3030, %v3031
    %v3033 = vrot.slane %v3032, 1
    %v3034 = vadd.f32 %v3032, %v3033
    %v3035 = vadd.f32 %v2983, %v3034
    %v3036 = vmul.f32 %v2146, %v2146
    %v3037 = vmul.f32 %v2147, %v2147
    %v3038 = vmul.f32 %v2148, %v2148
    %v3039 = vmul.f32 %v2149, %v2149
    %v3040 = vadd.f32 %v3036, %v3037
    %v3041 = vadd.f32 %v3040, %v3038
    %v3042 = vadd.f32 %v3041, %v3039
    %v3043 = vrot.slane %v3042, 4
    %v3044 = vadd.f32 %v3042, %v3043
    %v3045 = vrot.slane %v3044, 2
    %v3046 = vadd.f32 %v3044, %v3045
    %v3047 = vrot.slane %v3046, 1
    %v3048 = vadd.f32 %v3046, %v3047
    %v3049 = vadd.f32 %v2997, %v3048
    %v3054 = vcombine.high %v2146, %v2146
    %v3055 = vcombine.high %v2147, %v2147
    %v3056 = vcombine.high %v2148, %v2148
    %v3057 = vcombine.high %v2149, %v2149
    %v3062 = vpack.c.bf16 %v2146, %v2146
    %v3063 = vpack.c.bf16 %v3054, %v3054
    %v3064 = vpack.c.bf16 %v2147, %v2147
    %v3065 = vpack.c.bf16 %v3055, %v3055
    %v3066 = vpack.c.bf16 %v2148, %v2148
    %v3067 = vpack.c.bf16 %v3056, %v3056
    %v3068 = vpack.c.bf16 %v2149, %v2149
    %v3069 = vpack.c.bf16 %v3057, %v3057
    %3070 = vst [vmem:[%s4 + $0x2] sm:$0x3] %v3062
    %3071 = vst [vmem:[%s4 + $0xa] sm:$0x3] %v3063
    %3072 = vst [vmem:[%s4 + $0x12] sm:$0x3] %v3064
    %3073 = vst [vmem:[%s4 + $0x1a] sm:$0x3] %v3065
    %3074 = vst [vmem:[%s4 + $0x22] sm:$0x3] %v3066
    %3075 = vst [vmem:[%s4 + $0x2a] sm:$0x3] %v3067
    %3076 = vst [vmem:[%s4 + $0x32] sm:$0x3] %v3068
    %3077 = vst [vmem:[%s4 + $0x3a] sm:$0x3] %v3069
    %v3078 = vadd.f32 %v2701, %v2702
    %v3079 = vadd.f32 %v3078, %v2703
    %v3080 = vadd.f32 %v3079, %v2704
    %v3081 = vrot.slane %v3080, 4
    %v3082 = vadd.f32 %v3080, %v3081
    %v3083 = vrot.slane %v3082, 2
    %v3084 = vadd.f32 %v3082, %v3083
    %v3085 = vrot.slane %v3084, 1
    %v3086 = vadd.f32 %v3084, %v3085
    %v3087 = vadd.f32 %v3035, %v3086
    %v3088 = vmul.f32 %v2701, %v2701
    %v3089 = vmul.f32 %v2702, %v2702
    %v3090 = vmul.f32 %v2703, %v2703
    %v3091 = vmul.f32 %v2704, %v2704
    %v3092 = vadd.f32 %v3088, %v3089
    %v3093 = vadd.f32 %v3092, %v3090
    %v3094 = vadd.f32 %v3093, %v3091
    %v3095 = vrot.slane %v3094, 4
    %v3096 = vadd.f32 %v3094, %v3095
    %v3097 = vrot.slane %v3096, 2
    %v3098 = vadd.f32 %v3096, %v3097
    %v3099 = vrot.slane %v3098, 1
    %v3100 = vadd.f32 %v3098, %v3099
    %v3101 = vadd.f32 %v3049, %v3100
    %v3106 = vcombine.high %v2701, %v2701
    %v3107 = vcombine.high %v2702, %v2702
    %v3108 = vcombine.high %v2703, %v2703
    %v3109 = vcombine.high %v2704, %v2704
    %v3114 = vpack.c.bf16 %v2701, %v2701
    %v3115 = vpack.c.bf16 %v3106, %v3106
    %v3116 = vpack.c.bf16 %v2702, %v2702
    %v3117 = vpack.c.bf16 %v3107, %v3107
    %v3118 = vpack.c.bf16 %v2703, %v2703
    %v3119 = vpack.c.bf16 %v3108, %v3108
    %v3120 = vpack.c.bf16 %v2704, %v2704
    %v3121 = vpack.c.bf16 %v3109, %v3109
    %s3122 = scalar_lea.vmem %s4, 4
    %3123 = vst [vmem:[%s3122] sm:$0x3] %v3114
    %3124 = vst [vmem:[%s3122 + $0x8] sm:$0x3] %v3115
    %3125 = vst [vmem:[%s3122 + $0x10] sm:$0x3] %v3116
    %3126 = vst [vmem:[%s3122 + $0x18] sm:$0x3] %v3117
    %3127 = vst [vmem:[%s3122 + $0x20] sm:$0x3] %v3118
    %3128 = vst [vmem:[%s3122 + $0x28] sm:$0x3] %v3119
    %3129 = vst [vmem:[%s3122 + $0x30] sm:$0x3] %v3120
    %3130 = vst [vmem:[%s3122 + $0x38] sm:$0x3] %v3121
    %v3131 = vadd.f32 %v2970, %v2971
    %v3132 = vadd.f32 %v3131, %v2972
    %v3133 = vadd.f32 %v3132, %v2973
    %v3134 = vrot.slane %v3133, 4
    %v3135 = vadd.f32 %v3133, %v3134
    %v3136 = vrot.slane %v3135, 2
    %v3137 = vadd.f32 %v3135, %v3136
    %v3138 = vrot.slane %v3137, 1
    %v3139 = vadd.f32 %v3137, %v3138
    %v3140 = vadd.f32 %v3087, %v3139
    %v3141 = vmul.f32 %v2970, %v2970
    %v3142 = vmul.f32 %v2971, %v2971
    %v3143 = vmul.f32 %v2972, %v2972
    %v3144 = vmul.f32 %v2973, %v2973
    %v3145 = vadd.f32 %v3141, %v3142
    %v3146 = vadd.f32 %v3145, %v3143
    %v3147 = vadd.f32 %v3146, %v3144
    %v3148 = vrot.slane %v3147, 4
    %v3149 = vadd.f32 %v3147, %v3148
    %v3150 = vrot.slane %v3149, 2
    %v3151 = vadd.f32 %v3149, %v3150
    %v3152 = vrot.slane %v3151, 1
    %v3153 = vadd.f32 %v3151, %v3152
    %v3154 = vadd.f32 %v3101, %v3153
    %v3159 = vcombine.high %v2970, %v2970
    %v3160 = vcombine.high %v2971, %v2971
    %v3161 = vcombine.high %v2972, %v2972
    %v3162 = vcombine.high %v2973, %v2973
    %v3167 = vpack.c.bf16 %v2970, %v2970
    %v3168 = vpack.c.bf16 %v3159, %v3159
    %v3169 = vpack.c.bf16 %v2971, %v2971
    %v3170 = vpack.c.bf16 %v3160, %v3160
    %v3171 = vpack.c.bf16 %v2972, %v2972
    %v3172 = vpack.c.bf16 %v3161, %v3161
    %v3173 = vpack.c.bf16 %v2973, %v2973
    %v3174 = vpack.c.bf16 %v3162, %v3162
    %3175 = vst [vmem:[%s3122 + $0x2] sm:$0x3] %v3167
    %3176 = vst [vmem:[%s3122 + $0xa] sm:$0x3] %v3168
    %3177 = vst [vmem:[%s3122 + $0x12] sm:$0x3] %v3169
    %3178 = vst [vmem:[%s3122 + $0x1a] sm:$0x3] %v3170
    %3179 = vst [vmem:[%s3122 + $0x22] sm:$0x3] %v3171
    %3180 = vst [vmem:[%s3122 + $0x2a] sm:$0x3] %v3172
    %3181 = vst [vmem:[%s3122 + $0x32] sm:$0x3] %v3173
    %3182 = vst [vmem:[%s3122 + $0x3a] sm:$0x3] %v3174
    %3183 = vst [vmem:[%s5] sm:$0x1] %v3140
    %3184 = vst [vmem:[%s5 + $0x1] sm:$0x1] %v3154
    // Predicated region
    $region22: #{generator_forward.4} parent=1 // pred_check
      _
    $region23: #{generator_forward.4} parent=1 // pred_check_branch
      %3186 = sbr.rel (0) target = $region25
    $region24: #{generator_forward.4} parent=1 // pred_region
      _
    $region25: #{generator_forward.4} parent=1 // pred_fallthru
      _
    // Predicated region
    $region26: #{generator_forward.4} parent=1 // pred_check
      _
    $region27: #{generator_forward.4} parent=1 // pred_check_branch
      %3188 = sbr.rel (0) target = $region29
    $region28: #{generator_forward.4} parent=1 // pred_region
      _
    $region29: #{generator_forward.4} parent=1 // pred_fallthru
      _
    // Predicated region
    $region30: #{generator_forward.4} parent=1 // pred_check
      _
    $region31: #{generator_forward.4} parent=1 // pred_check_branch
      %3190 = sbr.rel (0) target = $region33
    $region32: #{generator_forward.4} parent=1 // pred_region
      _
    $region33: #{generator_forward.4} parent=1 // pred_fallthru
      _
    // Predicated region
    $region34: #{generator_forward.4} parent=1 // pred_check
      _
    $region35: #{generator_forward.4} parent=1 // pred_check_branch
      %3192 = sbr.rel (0) target = $region37
    $region36: #{generator_forward.4} parent=1 // pred_region
      _
    $region37: #{generator_forward.4} parent=1 // pred_fallthru
      _
    %3193 = vsyncpa [#allocation4], 1

// kernel: generator_forward.5
$region0: #{generator_forward.5}
  #allocation0 [shape = 'u32[]', space=smem, size = 0x4, offset = 0x4, fixed_abs, tag = 'smem constant byte address 0x4 - core index']
  #allocation1 [shape = 'u32[144,128]{1,0:T(1,128)}', space=vmem, size = 0x12000, scoped, tag = 'internal scratch']
  #allocation2 [shape = 'bf16[2,10,10,128]{3,2,1,0:T(8,128)(2,1)}', space=vmem, size = 0x14000, scoped, tag = 'scratch operand']
  %s0 = inlined_call_operand.vmem [shape: bf16[2,8,8,128], index: 0, kind: input, shape index: {}]
  %s1 = inlined_call_operand.vmem [shape: f32[1,128], index: 1, kind: input, shape index: {}]
  %s2 = inlined_call_operand.vmem [shape: f32[1,128], index: 2, kind: input, shape index: {}]
  %s3 = inlined_call_operand.vmem [shape: bf16[128,2048], index: 3, kind: input, shape index: {}]
  %s4 = inlined_call_operand.vmem [shape: f32[1,128], index: 4, kind: input, shape index: {}]
  %s5 = inlined_call_operand.vmem [shape: f32[2,8,2,8,6], index: 5, kind: output, shape index: {}]
  %s6 = sld [smem:[#allocation0]]
  $region30: #{generator_forward.5} parent=0
    _
  %s8 = ssub.s32 1, %s6
  %s9 = scalar_select 0, %s8, %s6
  // Predicated region
  $region2: #{generator_forward.5} parent=0 // pred_check
    _
  $region3: #{generator_forward.5} parent=0 // pred_check_branch
    %11 = sbr.rel (0) target = $region5
  $region4: #{generator_forward.5} parent=0 // pred_region
    _
  $region5: #{generator_forward.5} parent=0 // pred_fallthru
    _
  // Predicated region
  $region6: #{generator_forward.5} parent=0 // pred_check
    _
  $region7: #{generator_forward.5} parent=0 // pred_check_branch
    %13 = sbr.rel (0) target = $region9
  $region8: #{generator_forward.5} parent=0 // pred_region
    _
  $region9: #{generator_forward.5} parent=0 // pred_fallthru
    _
  // Predicated region
  $region10: #{generator_forward.5} parent=0 // pred_check
    _
  $region11: #{generator_forward.5} parent=0 // pred_check_branch
    %15 = sbr.rel (0) target = $region13
  $region12: #{generator_forward.5} parent=0 // pred_region
    _
  $region13: #{generator_forward.5} parent=0 // pred_fallthru
    _
  // Predicated region
  $region14: #{generator_forward.5} parent=0 // pred_check
    _
  $region15: #{generator_forward.5} parent=0 // pred_check_branch
    %17 = sbr.rel (0) target = $region17
  $region16: #{generator_forward.5} parent=0 // pred_region
    _
  $region17: #{generator_forward.5} parent=0 // pred_fallthru
    _
  // Predicated region
  $region18: #{generator_forward.5} parent=0 // pred_check
    _
  $region19: #{generator_forward.5} parent=0 // pred_check_branch
    %19 = sbr.rel (0) target = $region21
  $region20: #{generator_forward.5} parent=0 // pred_region
    _
  $region21: #{generator_forward.5} parent=0 // pred_fallthru
    _
  %21 = vst [vmem:[#allocation2] sm:$0xf] 0
  %22 = vst [vmem:[#allocation2 + $0x4] sm:$0x1] 0
  %23 = vst [vmem:[#allocation2 + $0x50] sm:$0xf] 0
  %24 = vst [vmem:[#allocation2 + $0x54] sm:$0x1] 0
  %s25 = scalar_lea.vmem [#allocation2], 72
  %26 = vst [vmem:[%s25] sm:$0xf] 0
  %27 = vst [vmem:[%s25 + $0x4] sm:$0x1] 0
  %28 = vst [vmem:[%s25 + $0x50] sm:$0xf] 0
  %29 = vst [vmem:[%s25 + $0x54] sm:$0x1] 0
  %vm30 = vcmask 1040384
  %vm31 = vsmask.f32 256
  %vm32 = vmand %vm30, %vm31
  %v33 = vld [vmem:[#allocation2] sm:$0x1]
  %v34 = vsel %vm32, 0, %v33
  %35 = vst [vmem:[#allocation2] sm:$0x1] %v34
  %v36 = vld [vmem:[#allocation2 + $0x8] sm:$0x1]
  %v37 = vsel %vm32, 0, %v36
  %38 = vst [vmem:[#allocation2 + $0x8] sm:$0x1] %v37
  %v39 = vld [vmem:[#allocation2 + $0x10] sm:$0x1]
  %v40 = vsel %vm32, 0, %v39
  %41 = vst [vmem:[#allocation2 + $0x10] sm:$0x1] %v40
  %v42 = vld [vmem:[#allocation2 + $0x18] sm:$0x1]
  %v43 = vsel %vm32, 0, %v42
  %44 = vst [vmem:[#allocation2 + $0x18] sm:$0x1] %v43
  %v45 = vld [vmem:[#allocation2 + $0x20] sm:$0x1]
  %v46 = vsel %vm32, 0, %v45
  %47 = vst [vmem:[#allocation2 + $0x20] sm:$0x1] %v46
  %v48 = vld [vmem:[#allocation2 + $0x28] sm:$0x1]
  %v49 = vsel %vm32, 0, %v48
  %50 = vst [vmem:[#allocation2 + $0x28] sm:$0x1] %v49
  %v51 = vld [vmem:[#allocation2 + $0x30] sm:$0x1]
  %v52 = vsel %vm32, 0, %v51
  %53 = vst [vmem:[#allocation2 + $0x30] sm:$0x1] %v52
  %v54 = vld [vmem:[#allocation2 + $0x38] sm:$0x1]
  %v55 = vsel %vm32, 0, %v54
  %56 = vst [vmem:[#allocation2 + $0x38] sm:$0x1] %v55
  %v57 = vld [vmem:[#allocation2 + $0x40] sm:$0x1]
  %v58 = vsel %vm32, 0, %v57
  %59 = vst [vmem:[#allocation2 + $0x40] sm:$0x1] %v58
  %v60 = vld [vmem:[#allocation2 + $0x48] sm:$0x1]
  %v61 = vsel %vm32, 0, %v60
  %62 = vst [vmem:[#allocation2 + $0x48] sm:$0x1] %v61
  %v63 = vld [vmem:[#allocation2 + $0x50] sm:$0x1]
  %v64 = vsel %vm32, 0, %v63
  %65 = vst [vmem:[#allocation2 + $0x50] sm:$0x1] %v64
  %v66 = vld [vmem:[#allocation2 + $0x58] sm:$0x1]
  %v67 = vsel %vm32, 0, %v66
  %68 = vst [vmem:[#allocation2 + $0x58] sm:$0x1] %v67
  %v69 = vld [vmem:[#allocation2 + $0x60] sm:$0x1]
  %v70 = vsel %vm32, 0, %v69
  %71 = vst [vmem:[#allocation2 + $0x60] sm:$0x1] %v70
  %v72 = vld [vmem:[#allocation2 + $0x68] sm:$0x1]
  %v73 = vsel %vm32, 0, %v72
  %74 = vst [vmem:[#allocation2 + $0x68] sm:$0x1] %v73
  %v75 = vld [vmem:[#allocation2 + $0x70] sm:$0x1]
  %v76 = vsel %vm32, 0, %v75
  %77 = vst [vmem:[#allocation2 + $0x70] sm:$0x1] %v76
  %v78 = vld [vmem:[#allocation2 + $0x78] sm:$0x1]
  %v79 = vsel %vm32, 0, %v78
  %80 = vst [vmem:[#allocation2 + $0x78] sm:$0x1] %v79
  %v81 = vld [vmem:[#allocation2 + $0x80] sm:$0x1]
  %v82 = vsel %vm32, 0, %v81
  %83 = vst [vmem:[#allocation2 + $0x80] sm:$0x1] %v82
  %v84 = vld [vmem:[#allocation2 + $0x88] sm:$0x1]
  %v85 = vsel %vm32, 0, %v84
  %86 = vst [vmem:[#allocation2 + $0x88] sm:$0x1] %v85
  %v87 = vld [vmem:[#allocation2 + $0x90] sm:$0x1]
  %v88 = vsel %vm32, 0, %v87
  %89 = vst [vmem:[#allocation2 + $0x90] sm:$0x1] %v88
  %v90 = vld [vmem:[#allocation2 + $0x98] sm:$0x1]
  %v91 = vsel %vm32, 0, %v90
  %92 = vst [vmem:[#allocation2 + $0x98] sm:$0x1] %v91
  %vm93 = vsmask.f32 7938
  %vm94 = vmand %vm30, %vm93
  %v95 = vld [vmem:[#allocation2 + $0x4] sm:$0x1]
  %v96 = vsel %vm94, 0, %v95
  %97 = vst [vmem:[#allocation2 + $0x4] sm:$0x1] %v96
  %v98 = vld [vmem:[#allocation2 + $0xc] sm:$0x1]
  %v99 = vsel %vm94, 0, %v98
  %100 = vst [vmem:[#allocation2 + $0xc] sm:$0x1] %v99
  %v101 = vld [vmem:[#allocation2 + $0x14] sm:$0x1]
  %v102 = vsel %vm94, 0, %v101
  %103 = vst [vmem:[#allocation2 + $0x14] sm:$0x1] %v102
  %v104 = vld [vmem:[#allocation2 + $0x1c] sm:$0x1]
  %v105 = vsel %vm94, 0, %v104
  %106 = vst [vmem:[#allocation2 + $0x1c] sm:$0x1] %v105
  %v107 = vld [vmem:[#allocation2 + $0x24] sm:$0x1]
  %v108 = vsel %vm94, 0, %v107
  %109 = vst [vmem:[#allocation2 + $0x24] sm:$0x1] %v108
  %v110 = vld [vmem:[#allocation2 + $0x2c] sm:$0x1]
  %v111 = vsel %vm94, 0, %v110
  %112 = vst [vmem:[#allocation2 + $0x2c] sm:$0x1] %v111
  %v113 = vld [vmem:[#allocation2 + $0x34] sm:$0x1]
  %v114 = vsel %vm94, 0, %v113
  %115 = vst [vmem:[#allocation2 + $0x34] sm:$0x1] %v114
  %v116 = vld [vmem:[#allocation2 + $0x3c] sm:$0x1]
  %v117 = vsel %vm94, 0, %v116
  %118 = vst [vmem:[#allocation2 + $0x3c] sm:$0x1] %v117
  %v119 = vld [vmem:[#allocation2 + $0x44] sm:$0x1]
  %v120 = vsel %vm94, 0, %v119
  %121 = vst [vmem:[#allocation2 + $0x44] sm:$0x1] %v120
  %v122 = vld [vmem:[#allocation2 + $0x4c] sm:$0x1]
  %v123 = vsel %vm94, 0, %v122
  %124 = vst [vmem:[#allocation2 + $0x4c] sm:$0x1] %v123
  %v125 = vld [vmem:[#allocation2 + $0x54] sm:$0x1]
  %v126 = vsel %vm94, 0, %v125
  %127 = vst [vmem:[#allocation2 + $0x54] sm:$0x1] %v126
  %v128 = vld [vmem:[#allocation2 + $0x5c] sm:$0x1]
  %v129 = vsel %vm94, 0, %v128
  %130 = vst [vmem:[#allocation2 + $0x5c] sm:$0x1] %v129
  %v131 = vld [vmem:[#allocation2 + $0x64] sm:$0x1]
  %v132 = vsel %vm94, 0, %v131
  %133 = vst [vmem:[#allocation2 + $0x64] sm:$0x1] %v132
  %v134 = vld [vmem:[#allocation2 + $0x6c] sm:$0x1]
  %v135 = vsel %vm94, 0, %v134
  %136 = vst [vmem:[#allocation2 + $0x6c] sm:$0x1] %v135
  %v137 = vld [vmem:[#allocation2 + $0x74] sm:$0x1]
  %v138 = vsel %vm94, 0, %v137
  %139 = vst [vmem:[#allocation2 + $0x74] sm:$0x1] %v138
  %v140 = vld [vmem:[#allocation2 + $0x7c] sm:$0x1]
  %v141 = vsel %vm94, 0, %v140
  %142 = vst [vmem:[#allocation2 + $0x7c] sm:$0x1] %v141
  %v143 = vld [vmem:[#allocation2 + $0x84] sm:$0x1]
  %v144 = vsel %vm94, 0, %v143
  %145 = vst [vmem:[#allocation2 + $0x84] sm:$0x1] %v144
  %v146 = vld [vmem:[#allocation2 + $0x8c] sm:$0x1]
  %v147 = vsel %vm94, 0, %v146
  %148 = vst [vmem:[#allocation2 + $0x8c] sm:$0x1] %v147
  %v149 = vld [vmem:[#allocation2 + $0x94] sm:$0x1]
  %v150 = vsel %vm94, 0, %v149
  %151 = vst [vmem:[#allocation2 + $0x94] sm:$0x1] %v150
  %v152 = vld [vmem:[#allocation2 + $0x9c] sm:$0x1]
  %v153 = vsel %vm94, 0, %v152
  %154 = vst [vmem:[#allocation2 + $0x9c] sm:$0x1] %v153
  %v155 = vld [vmem:[%s0] sm:$0xf]
  %v156 = vld [vmem:[%s0 + $0x4] sm:$0xf]
  %v157 = vld [vmem:[%s0 + $0x8] sm:$0xf]
  %v158 = vld [vmem:[%s0 + $0xc] sm:$0xf]
  %v159 = vld [vmem:[%s0 + $0x10] sm:$0xf]
  %v160 = vld [vmem:[%s0 + $0x14] sm:$0xf]
  %v161 = vld [vmem:[%s0 + $0x18] sm:$0xf]
  %v162 = vld [vmem:[%s0 + $0x1c] sm:$0xf]
  %v163 = vld [vmem:[%s0 + $0x20] sm:$0xf]
  %v164 = vld [vmem:[%s0 + $0x24] sm:$0xf]
  %v165 = vld [vmem:[%s0 + $0x28] sm:$0xf]
  %v166 = vld [vmem:[%s0 + $0x2c] sm:$0xf]
  %v167 = vld [vmem:[%s0 + $0x30] sm:$0xf]
  %v168 = vld [vmem:[%s0 + $0x34] sm:$0xf]
  %v169 = vld [vmem:[%s0 + $0x38] sm:$0xf]
  %v170 = vld [vmem:[%s0 + $0x3c] sm:$0xf]
  %v171 = vunpack.c.l.bf16 %v155
  %v172 = vunpack.c.l.bf16 %v156
  %v173 = vunpack.c.l.bf16 %v157
  %v174 = vunpack.c.l.bf16 %v158
  %v175 = vunpack.c.l.bf16 %v159
  %v176 = vunpack.c.l.bf16 %v160
  %v177 = vunpack.c.l.bf16 %v161
  %v178 = vunpack.c.l.bf16 %v162
  %v179 = vunpack.c.l.bf16 %v163
  %v180 = vunpack.c.l.bf16 %v164
  %v181 = vunpack.c.l.bf16 %v165
  %v182 = vunpack.c.l.bf16 %v166
  %v183 = vunpack.c.l.bf16 %v167
  %v184 = vunpack.c.l.bf16 %v168
  %v185 = vunpack.c.l.bf16 %v169
  %v186 = vunpack.c.l.bf16 %v170
  %v187 = vld [vmem:[%s1] sm:$0x1]
  %v189 = vlaneseq
  %v190 = vshrl.u32 %v189, 7
  %v191 = vsub.s32 0, %v190
  %v192 = vrot.slane %v187, %v191
  %v194 = vmul.f32 %v171, %v192
  %v195 = vmul.f32 %v172, %v192
  %v196 = vmul.f32 %v173, %v192
  %v197 = vmul.f32 %v174, %v192
  %v198 = vmul.f32 %v175, %v192
  %v199 = vmul.f32 %v176, %v192
  %v200 = vmul.f32 %v177, %v192
  %v201 = vmul.f32 %v178, %v192
  %v202 = vmul.f32 %v179, %v192
  %v203 = vmul.f32 %v180, %v192
  %v204 = vmul.f32 %v181, %v192
  %v205 = vmul.f32 %v182, %v192
  %v206 = vmul.f32 %v183, %v192
  %v207 = vmul.f32 %v184, %v192
  %v208 = vmul.f32 %v185, %v192
  %v209 = vmul.f32 %v186, %v192
  %v210 = vld [vmem:[%s2] sm:$0x1]
  %v212 = vlaneseq
  %v213 = vshrl.u32 %v212, 7
  %v214 = vsub.s32 0, %v213
  %v215 = vrot.slane %v210, %v214
  %v217 = vadd.f32 %v194, %v215
  %v218 = vadd.f32 %v195, %v215
  %v219 = vadd.f32 %v196, %v215
  %v220 = vadd.f32 %v197, %v215
  %v221 = vadd.f32 %v198, %v215
  %v222 = vadd.f32 %v199, %v215
  %v223 = vadd.f32 %v200, %v215
  %v224 = vadd.f32 %v201, %v215
  %v225 = vadd.f32 %v202, %v215
  %v226 = vadd.f32 %v203, %v215
  %v227 = vadd.f32 %v204, %v215
  %v228 = vadd.f32 %v205, %v215
  %v229 = vadd.f32 %v206, %v215
  %v230 = vadd.f32 %v207, %v215
  %v231 = vadd.f32 %v208, %v215
  %v232 = vadd.f32 %v209, %v215
  %v233 = vmax.f32 %v217, 0.0
  %v234 = vmax.f32 %v218, 0.0
  %v235 = vmax.f32 %v219, 0.0
  %v236 = vmax.f32 %v220, 0.0
  %v237 = vmax.f32 %v221, 0.0
  %v238 = vmax.f32 %v222, 0.0
  %v239 = vmax.f32 %v223, 0.0
  %v240 = vmax.f32 %v224, 0.0
  %v241 = vmax.f32 %v225, 0.0
  %v242 = vmax.f32 %v226, 0.0
  %v243 = vmax.f32 %v227, 0.0
  %v244 = vmax.f32 %v228, 0.0
  %v245 = vmax.f32 %v229, 0.0
  %v246 = vmax.f32 %v230, 0.0
  %v247 = vmax.f32 %v231, 0.0
  %v248 = vmax.f32 %v232, 0.0
  %v249 = vpack.c.bf16 %v233, %v233
  %v250 = vpack.c.bf16 %v234, %v234
  %v251 = vpack.c.bf16 %v235, %v235
  %v252 = vpack.c.bf16 %v236, %v236
  %v253 = vpack.c.bf16 %v237, %v237
  %v254 = vpack.c.bf16 %v238, %v238
  %v255 = vpack.c.bf16 %v239, %v239
  %v256 = vpack.c.bf16 %v240, %v240
  %v257 = vpack.c.bf16 %v241, %v241
  %v258 = vpack.c.bf16 %v242, %v242
  %v259 = vpack.c.bf16 %v243, %v243
  %v260 = vpack.c.bf16 %v244, %v244
  %v261 = vpack.c.bf16 %v245, %v245
  %v262 = vpack.c.bf16 %v246, %v246
  %v263 = vpack.c.bf16 %v247, %v247
  %v264 = vpack.c.bf16 %v248, %v248
  %v281 = vunpack.c.l.b16 %v249
  %v282 = vunpack.c.l.b16 %v250
  %v283 = vunpack.c.l.b16 %v251
  %v284 = vunpack.c.l.b16 %v252
  %v285 = vunpack.c.l.b16 %v253
  %v286 = vunpack.c.l.b16 %v254
  %v287 = vunpack.c.l.b16 %v255
  %v288 = vunpack.c.l.b16 %v256
  %v289 = vunpack.c.l.b16 %v257
  %v290 = vunpack.c.l.b16 %v258
  %v291 = vunpack.c.l.b16 %v259
  %v292 = vunpack.c.l.b16 %v260
  %v293 = vunpack.c.l.b16 %v261
  %v294 = vunpack.c.l.b16 %v262
  %v295 = vunpack.c.l.b16 %v263
  %v296 = vunpack.c.l.b16 %v264
  %v297 = vpack.c.b16 %v281, %v281
  %v298 = vpack.c.b16 %v282, %v282
  %v299 = vpack.c.b16 %v283, %v283
  %v300 = vpack.c.b16 %v284, %v284
  %v301 = vpack.c.b16 %v285, %v285
  %v302 = vpack.c.b16 %v286, %v286
  %v303 = vpack.c.b16 %v287, %v287
  %v304 = vpack.c.b16 %v288, %v288
  %v305 = vpack.c.b16 %v289, %v289
  %v306 = vpack.c.b16 %v290, %v290
  %v307 = vpack.c.b16 %v291, %v291
  %v308 = vpack.c.b16 %v292, %v292
  %v309 = vpack.c.b16 %v293, %v293
  %v310 = vpack.c.b16 %v294, %v294
  %v311 = vpack.c.b16 %v295, %v295
  %v312 = vpack.c.b16 %v296, %v296
  %v314 = vshrl.u32 %v297, 16
  %v316 = vrot.slane %v314, 7
  %v317 = vshll.u32 %v297, 16
  %v319 = vor.u32 %v316, %v317
  %v320 = vrot.slane %v316, 4
  %v322 = vshrl.u32 %v298, 16
  %v324 = vrot.slane %v322, 7
  %v325 = vshll.u32 %v298, 16
  %v327 = vor.u32 %v324, %v325
  %v328 = vrot.slane %v324, 4
  %v330 = vshrl.u32 %v299, 16
  %v332 = vrot.slane %v330, 7
  %v333 = vshll.u32 %v299, 16
  %v335 = vor.u32 %v332, %v333
  %v336 = vrot.slane %v332, 4
  %v338 = vshrl.u32 %v300, 16
  %v340 = vrot.slane %v338, 7
  %v341 = vshll.u32 %v300, 16
  %v343 = vor.u32 %v340, %v341
  %v344 = vrot.slane %v340, 4
  %v346 = vshrl.u32 %v301, 16
  %v348 = vrot.slane %v346, 7
  %v349 = vshll.u32 %v301, 16
  %v351 = vor.u32 %v348, %v349
  %v352 = vrot.slane %v348, 4
  %v354 = vshrl.u32 %v302, 16
  %v356 = vrot.slane %v354, 7
  %v357 = vshll.u32 %v302, 16
  %v359 = vor.u32 %v356, %v357
  %v360 = vrot.slane %v356, 4
  %v362 = vshrl.u32 %v303, 16
  %v364 = vrot.slane %v362, 7
  %v365 = vshll.u32 %v303, 16
  %v367 = vor.u32 %v364, %v365
  %v368 = vrot.slane %v364, 4
  %v370 = vshrl.u32 %v304, 16
  %v372 = vrot.slane %v370, 7
  %v373 = vshll.u32 %v304, 16
  %v375 = vor.u32 %v372, %v373
  %v376 = vrot.slane %v372, 4
  %v378 = vshrl.u32 %v305, 16
  %v380 = vrot.slane %v378, 7
  %v381 = vshll.u32 %v305, 16
  %v383 = vor.u32 %v380, %v381
  %v384 = vrot.slane %v380, 4
  %v386 = vshrl.u32 %v306, 16
  %v388 = vrot.slane %v386, 7
  %v389 = vshll.u32 %v306, 16
  %v391 = vor.u32 %v388, %v389
  %v392 = vrot.slane %v388, 4
  %v394 = vshrl.u32 %v307, 16
  %v396 = vrot.slane %v394, 7
  %v397 = vshll.u32 %v307, 16
  %v399 = vor.u32 %v396, %v397
  %v400 = vrot.slane %v396, 4
  %v402 = vshrl.u32 %v308, 16
  %v404 = vrot.slane %v402, 7
  %v405 = vshll.u32 %v308, 16
  %v407 = vor.u32 %v404, %v405
  %v408 = vrot.slane %v404, 4
  %v410 = vshrl.u32 %v309, 16
  %v412 = vrot.slane %v410, 7
  %v413 = vshll.u32 %v309, 16
  %v415 = vor.u32 %v412, %v413
  %v416 = vrot.slane %v412, 4
  %v418 = vshrl.u32 %v310, 16
  %v420 = vrot.slane %v418, 7
  %v421 = vshll.u32 %v310, 16
  %v423 = vor.u32 %v420, %v421
  %v424 = vrot.slane %v420, 4
  %v426 = vshrl.u32 %v311, 16
  %v428 = vrot.slane %v426, 7
  %v429 = vshll.u32 %v311, 16
  %v431 = vor.u32 %v428, %v429
  %v432 = vrot.slane %v428, 4
  %v434 = vshrl.u32 %v312, 16
  %v436 = vrot.slane %v434, 7
  %v437 = vshll.u32 %v312, 16
  %v439 = vor.u32 %v436, %v437
  %v440 = vrot.slane %v436, 4
  %s473 = scalar_lea.vmem [#allocation2], 8
  %vm474 = vcmask 1043456
  %vm475 = vmand %vm474, %vm93
  %v476 = vld [vmem:[%s473] sm:$0xf]
  %v477 = vsel %vm475, %v319, %v476
  %478 = vst [vmem:[%s473] sm:$0xf] %v477
  %v479 = vld [vmem:[%s473 + $0x4] sm:$0x1]
  %v480 = vsel %vm32, %v320, %v479
  %481 = vst [vmem:[%s473 + $0x4] sm:$0x1] %v480
  %v482 = vld [vmem:[%s473 + $0x8] sm:$0xf]
  %v483 = vsel %vm475, %v327, %v482
  %484 = vst [vmem:[%s473 + $0x8] sm:$0xf] %v483
  %v485 = vld [vmem:[%s473 + $0xc] sm:$0x1]
  %v486 = vsel %vm32, %v328, %v485
  %487 = vst [vmem:[%s473 + $0xc] sm:$0x1] %v486
  %v488 = vld [vmem:[%s473 + $0x10] sm:$0xf]
  %v489 = vsel %vm475, %v335, %v488
  %490 = vst [vmem:[%s473 + $0x10] sm:$0xf] %v489
  %v491 = vld [vmem:[%s473 + $0x14] sm:$0x1]
  %v492 = vsel %vm32, %v336, %v491
  %493 = vst [vmem:[%s473 + $0x14] sm:$0x1] %v492
  %v494 = vld [vmem:[%s473 + $0x18] sm:$0xf]
  %v495 = vsel %vm475, %v343, %v494
  %496 = vst [vmem:[%s473 + $0x18] sm:$0xf] %v495
  %v497 = vld [vmem:[%s473 + $0x1c] sm:$0x1]
  %v498 = vsel %vm32, %v344, %v497
  %499 = vst [vmem:[%s473 + $0x1c] sm:$0x1] %v498
  %v500 = vld [vmem:[%s473 + $0x20] sm:$0xf]
  %v501 = vsel %vm475, %v351, %v500
  %502 = vst [vmem:[%s473 + $0x20] sm:$0xf] %v501
  %v503 = vld [vmem:[%s473 + $0x24] sm:$0x1]
  %v504 = vsel %vm32, %v352, %v503
  %505 = vst [vmem:[%s473 + $0x24] sm:$0x1] %v504
  %v506 = vld [vmem:[%s473 + $0x28] sm:$0xf]
  %v507 = vsel %vm475, %v359, %v506
  %508 = vst [vmem:[%s473 + $0x28] sm:$0xf] %v507
  %v509 = vld [vmem:[%s473 + $0x2c] sm:$0x1]
  %v510 = vsel %vm32, %v360, %v509
  %511 = vst [vmem:[%s473 + $0x2c] sm:$0x1] %v510
  %v512 = vld [vmem:[%s473 + $0x30] sm:$0xf]
  %v513 = vsel %vm475, %v367, %v512
  %514 = vst [vmem:[%s473 + $0x30] sm:$0xf] %v513
  %v515 = vld [vmem:[%s473 + $0x34] sm:$0x1]
  %v516 = vsel %vm32, %v368, %v515
  %517 = vst [vmem:[%s473 + $0x34] sm:$0x1] %v516
  %v518 = vld [vmem:[%s473 + $0x38] sm:$0xf]
  %v519 = vsel %vm475, %v375, %v518
  %520 = vst [vmem:[%s473 + $0x38] sm:$0xf] %v519
  %v521 = vld [vmem:[%s473 + $0x3c] sm:$0x1]
  %v522 = vsel %vm32, %v376, %v521
  %523 = vst [vmem:[%s473 + $0x3c] sm:$0x1] %v522
  %v524 = vld [vmem:[%s473 + $0x50] sm:$0xf]
  %v525 = vsel %vm475, %v383, %v524
  %526 = vst [vmem:[%s473 + $0x50] sm:$0xf] %v525
  %v527 = vld [vmem:[%s473 + $0x54] sm:$0x1]
  %v528 = vsel %vm32, %v384, %v527
  %529 = vst [vmem:[%s473 + $0x54] sm:$0x1] %v528
  %v530 = vld [vmem:[%s473 + $0x58] sm:$0xf]
  %v531 = vsel %vm475, %v391, %v530
  %532 = vst [vmem:[%s473 + $0x58] sm:$0xf] %v531
  %v533 = vld [vmem:[%s473 + $0x5c] sm:$0x1]
  %v534 = vsel %vm32, %v392, %v533
  %535 = vst [vmem:[%s473 + $0x5c] sm:$0x1] %v534
  %v536 = vld [vmem:[%s473 + $0x60] sm:$0xf]
  %v537 = vsel %vm475, %v399, %v536
  %538 = vst [vmem:[%s473 + $0x60] sm:$0xf] %v537
  %v539 = vld [vmem:[%s473 + $0x64] sm:$0x1]
  %v540 = vsel %vm32, %v400, %v539
  %541 = vst [vmem:[%s473 + $0x64] sm:$0x1] %v540
  %v542 = vld [vmem:[%s473 + $0x68] sm:$0xf]
  %v543 = vsel %vm475, %v407, %v542
  %544 = vst [vmem:[%s473 + $0x68] sm:$0xf] %v543
  %v545 = vld [vmem:[%s473 + $0x6c] sm:$0x1]
  %v546 = vsel %vm32, %v408, %v545
  %547 = vst [vmem:[%s473 + $0x6c] sm:$0x1] %v546
  %v548 = vld [vmem:[%s473 + $0x70] sm:$0xf]
  %v549 = vsel %vm475, %v415, %v548
  %550 = vst [vmem:[%s473 + $0x70] sm:$0xf] %v549
  %v551 = vld [vmem:[%s473 + $0x74] sm:$0x1]
  %v552 = vsel %vm32, %v416, %v551
  %553 = vst [vmem:[%s473 + $0x74] sm:$0x1] %v552
  %v554 = vld [vmem:[%s473 + $0x78] sm:$0xf]
  %v555 = vsel %vm475, %v423, %v554
  %556 = vst [vmem:[%s473 + $0x78] sm:$0xf] %v555
  %v557 = vld [vmem:[%s473 + $0x7c] sm:$0x1]
  %v558 = vsel %vm32, %v424, %v557
  %559 = vst [vmem:[%s473 + $0x7c] sm:$0x1] %v558
  %v560 = vld [vmem:[%s473 + $0x80] sm:$0xf]
  %v561 = vsel %vm475, %v431, %v560
  %562 = vst [vmem:[%s473 + $0x80] sm:$0xf] %v561
  %v563 = vld [vmem:[%s473 + $0x84] sm:$0x1]
  %v564 = vsel %vm32, %v432, %v563
  %565 = vst [vmem:[%s473 + $0x84] sm:$0x1] %v564
  %v566 = vld [vmem:[%s473 + $0x88] sm:$0xf]
  %v567 = vsel %vm475, %v439, %v566
  %568 = vst [vmem:[%s473 + $0x88] sm:$0xf] %v567
  %v569 = vld [vmem:[%s473 + $0x8c] sm:$0x1]
  %v570 = vsel %vm32, %v440, %v569
  %571 = vst [vmem:[%s473 + $0x8c] sm:$0x1] %v570
  %v572 = vld [vmem:[#allocation2] sm:$0xf]
  %v573 = vld [vmem:[#allocation2 + $0x8] sm:$0xf]
  %v574 = vld [vmem:[#allocation2 + $0x10] sm:$0xf]
  %v575 = vld [vmem:[#allocation2 + $0x18] sm:$0xf]
  %v576 = vld [vmem:[#allocation2 + $0x20] sm:$0xf]
  %v577 = vld [vmem:[#allocation2 + $0x28] sm:$0xf]
  %v578 = vld [vmem:[#allocation2 + $0x30] sm:$0xf]
  %v579 = vld [vmem:[#allocation2 + $0x38] sm:$0xf]
  %v580 = vld [vmem:[#allocation2 + $0x50] sm:$0xf]
  %v581 = vld [vmem:[#allocation2 + $0x58] sm:$0xf]
  %v582 = vld [vmem:[#allocation2 + $0x60] sm:$0xf]
  %v583 = vld [vmem:[#allocation2 + $0x68] sm:$0xf]
  %v584 = vld [vmem:[#allocation2 + $0x70] sm:$0xf]
  %v585 = vld [vmem:[#allocation2 + $0x78] sm:$0xf]
  %v586 = vld [vmem:[#allocation2 + $0x80] sm:$0xf]
  %v587 = vld [vmem:[#allocation2 + $0x88] sm:$0xf]
  %v588 = vld [vmem:[%s3] sm:$0xf]
  %v589 = vld [vmem:[%s3 + $0x40] sm:$0xf]
  %v590 = vld [vmem:[%s3 + $0x80] sm:$0xf]
  %v591 = vld [vmem:[%s3 + $0xc0] sm:$0xf]
  %v592 = vld [vmem:[%s3 + $0x100] sm:$0xf]
  %v593 = vld [vmem:[%s3 + $0x140] sm:$0xf]
  %v594 = vld [vmem:[%s3 + $0x180] sm:$0xf]
  %v595 = vld [vmem:[%s3 + $0x1c0] sm:$0xf]
  %v596 = vld [vmem:[%s3 + $0x200] sm:$0xf]
  %v597 = vld [vmem:[%s3 + $0x240] sm:$0xf]
  %v598 = vld [vmem:[%s3 + $0x280] sm:$0xf]
  %v599 = vld [vmem:[%s3 + $0x2c0] sm:$0xf]
  %v600 = vld [vmem:[%s3 + $0x300] sm:$0xf]
  %v601 = vld [vmem:[%s3 + $0x340] sm:$0xf]
  %v602 = vld [vmem:[%s3 + $0x380] sm:$0xf]
  %v603 = vld [vmem:[%s3 + $0x3c0] sm:$0xf]
  %v604 = vld [vmem:[#allocation2 + $0x4] sm:$0x1]
  %v605 = vld [vmem:[#allocation2 + $0xc] sm:$0x1]
  %v606 = vld [vmem:[#allocation2 + $0x14] sm:$0x1]
  %v607 = vld [vmem:[#allocation2 + $0x1c] sm:$0x1]
  %v608 = vld [vmem:[#allocation2 + $0x24] sm:$0x1]
  %v609 = vld [vmem:[#allocation2 + $0x2c] sm:$0x1]
  %v610 = vld [vmem:[#allocation2 + $0x34] sm:$0x1]
  %v611 = vld [vmem:[#allocation2 + $0x3c] sm:$0x1]
  %v612 = vld [vmem:[#allocation2 + $0x54] sm:$0x1]
  %v613 = vld [vmem:[#allocation2 + $0x5c] sm:$0x1]
  %v614 = vld [vmem:[#allocation2 + $0x64] sm:$0x1]
  %v615 = vld [vmem:[#allocation2 + $0x6c] sm:$0x1]
  %v616 = vld [vmem:[#allocation2 + $0x74] sm:$0x1]
  %v617 = vld [vmem:[#allocation2 + $0x7c] sm:$0x1]
  %v618 = vld [vmem:[#allocation2 + $0x84] sm:$0x1]
  %v619 = vld [vmem:[#allocation2 + $0x8c] sm:$0x1]
  %vm620 = vsmask.f32 3328
  %vm621 = vsmask.f32 7440
  %vm622 = vmor %vm620, %vm621
  %v624 = vshrl.u32 %v572, 16
  %v626 = vrot.slane %v624, 4
  %v627 = vshll.u32 %v572, 16
  %v629 = vrot.slane %v627, 5
  %v630 = vor.u32 %v626, %v629
  %v631 = vrot.slane %v630, 4
  %v633 = vshll.u32 %v604, 16
  %v635 = vrot.slane %v633, 5
  %v636 = vsel %vm622, %v631, %v635
  %v638 = vshrl.u32 %v573, 16
  %v640 = vrot.slane %v638, 4
  %v641 = vshll.u32 %v573, 16
  %v643 = vrot.slane %v641, 5
  %v644 = vor.u32 %v640, %v643
  %v645 = vrot.slane %v644, 4
  %v647 = vshll.u32 %v605, 16
  %v649 = vrot.slane %v647, 5
  %v650 = vsel %vm622, %v645, %v649
  %v652 = vshrl.u32 %v574, 16
  %v654 = vrot.slane %v652, 4
  %v655 = vshll.u32 %v574, 16
  %v657 = vrot.slane %v655, 5
  %v658 = vor.u32 %v654, %v657
  %v659 = vrot.slane %v658, 4
  %v661 = vshll.u32 %v606, 16
  %v663 = vrot.slane %v661, 5
  %v664 = vsel %vm622, %v659, %v663
  %v666 = vshrl.u32 %v575, 16
  %v668 = vrot.slane %v666, 4
  %v669 = vshll.u32 %v575, 16
  %v671 = vrot.slane %v669, 5
  %v672 = vor.u32 %v668, %v671
  %v673 = vrot.slane %v672, 4
  %v675 = vshll.u32 %v607, 16
  %v677 = vrot.slane %v675, 5
  %v678 = vsel %vm622, %v673, %v677
  %v680 = vshrl.u32 %v576, 16
  %v682 = vrot.slane %v680, 4
  %v683 = vshll.u32 %v576, 16
  %v685 = vrot.slane %v683, 5
  %v686 = vor.u32 %v682, %v685
  %v687 = vrot.slane %v686, 4
  %v689 = vshll.u32 %v608, 16
  %v691 = vrot.slane %v689, 5
  %v692 = vsel %vm622, %v687, %v691
  %v694 = vshrl.u32 %v577, 16
  %v696 = vrot.slane %v694, 4
  %v697 = vshll.u32 %v577, 16
  %v699 = vrot.slane %v697, 5
  %v700 = vor.u32 %v696, %v699
  %v701 = vrot.slane %v700, 4
  %v703 = vshll.u32 %v609, 16
  %v705 = vrot.slane %v703, 5
  %v706 = vsel %vm622, %v701, %v705
  %v708 = vshrl.u32 %v578, 16
  %v710 = vrot.slane %v708, 4
  %v711 = vshll.u32 %v578, 16
  %v713 = vrot.slane %v711, 5
  %v714 = vor.u32 %v710, %v713
  %v715 = vrot.slane %v714, 4
  %v717 = vshll.u32 %v610, 16
  %v719 = vrot.slane %v717, 5
  %v720 = vsel %vm622, %v715, %v719
  %v722 = vshrl.u32 %v579, 16
  %v724 = vrot.slane %v722, 4
  %v725 = vshll.u32 %v579, 16
  %v727 = vrot.slane %v725, 5
  %v728 = vor.u32 %v724, %v727
  %v729 = vrot.slane %v728, 4
  %v731 = vshll.u32 %v611, 16
  %v733 = vrot.slane %v731, 5
  %v734 = vsel %vm622, %v729, %v733
  %v736 = vshrl.u32 %v580, 16
  %v738 = vrot.slane %v736, 4
  %v739 = vshll.u32 %v580, 16
  %v741 = vrot.slane %v739, 5
  %v742 = vor.u32 %v738, %v741
  %v743 = vrot.slane %v742, 4
  %v745 = vshll.u32 %v612, 16
  %v747 = vrot.slane %v745, 5
  %v748 = vsel %vm622, %v743, %v747
  %v750 = vshrl.u32 %v581, 16
  %v752 = vrot.slane %v750, 4
  %v753 = vshll.u32 %v581, 16
  %v755 = vrot.slane %v753, 5
  %v756 = vor.u32 %v752, %v755
  %v757 = vrot.slane %v756, 4
  %v759 = vshll.u32 %v613, 16
  %v761 = vrot.slane %v759, 5
  %v762 = vsel %vm622, %v757, %v761
  %v764 = vshrl.u32 %v582, 16
  %v766 = vrot.slane %v764, 4
  %v767 = vshll.u32 %v582, 16
  %v769 = vrot.slane %v767, 5
  %v770 = vor.u32 %v766, %v769
  %v771 = vrot.slane %v770, 4
  %v773 = vshll.u32 %v614, 16
  %v775 = vrot.slane %v773, 5
  %v776 = vsel %vm622, %v771, %v775
  %v778 = vshrl.u32 %v583, 16
  %v780 = vrot.slane %v778, 4
  %v781 = vshll.u32 %v583, 16
  %v783 = vrot.slane %v781, 5
  %v784 = vor.u32 %v780, %v783
  %v785 = vrot.slane %v784, 4
  %v787 = vshll.u32 %v615, 16
  %v789 = vrot.slane %v787, 5
  %v790 = vsel %vm622, %v785, %v789
  %v792 = vshrl.u32 %v584, 16
  %v794 = vrot.slane %v792, 4
  %v795 = vshll.u32 %v584, 16
  %v797 = vrot.slane %v795, 5
  %v798 = vor.u32 %v794, %v797
  %v799 = vrot.slane %v798, 4
  %v801 = vshll.u32 %v616, 16
  %v803 = vrot.slane %v801, 5
  %v804 = vsel %vm622, %v799, %v803
  %v806 = vshrl.u32 %v585, 16
  %v808 = vrot.slane %v806, 4
  %v809 = vshll.u32 %v585, 16
  %v811 = vrot.slane %v809, 5
  %v812 = vor.u32 %v808, %v811
  %v813 = vrot.slane %v812, 4
  %v815 = vshll.u32 %v617, 16
  %v817 = vrot.slane %v815, 5
  %v818 = vsel %vm622, %v813, %v817
  %v820 = vshrl.u32 %v586, 16
  %v822 = vrot.slane %v820, 4
  %v823 = vshll.u32 %v586, 16
  %v825 = vrot.slane %v823, 5
  %v826 = vor.u32 %v822, %v825
  %v827 = vrot.slane %v826, 4
  %v829 = vshll.u32 %v618, 16
  %v831 = vrot.slane %v829, 5
  %v832 = vsel %vm622, %v827, %v831
  %v834 = vshrl.u32 %v587, 16
  %v836 = vrot.slane %v834, 4
  %v837 = vshll.u32 %v587, 16
  %v839 = vrot.slane %v837, 5
  %v840 = vor.u32 %v836, %v839
  %v841 = vrot.slane %v840, 4
  %v843 = vshll.u32 %v619, 16
  %v845 = vrot.slane %v843, 5
  %v846 = vsel %vm622, %v841, %v845
  %v847 = vld [vmem:[%s3 + $0x4] sm:$0xff]
  %v848 = vld [vmem:[%s3 + $0x44] sm:$0xff]
  %v849 = vld [vmem:[%s3 + $0x84] sm:$0xff]
  %v850 = vld [vmem:[%s3 + $0xc4] sm:$0xff]
  %v851 = vld [vmem:[%s3 + $0x104] sm:$0xff]
  %v852 = vld [vmem:[%s3 + $0x144] sm:$0xff]
  %v853 = vld [vmem:[%s3 + $0x184] sm:$0xff]
  %v854 = vld [vmem:[%s3 + $0x1c4] sm:$0xff]
  %v855 = vld [vmem:[%s3 + $0x204] sm:$0xff]
  %v856 = vld [vmem:[%s3 + $0x244] sm:$0xff]
  %v857 = vld [vmem:[%s3 + $0x284] sm:$0xff]
  %v858 = vld [vmem:[%s3 + $0x2c4] sm:$0xff]
  %v859 = vld [vmem:[%s3 + $0x304] sm:$0xff]
  %v860 = vld [vmem:[%s3 + $0x344] sm:$0xff]
  %v861 = vld [vmem:[%s3 + $0x384] sm:$0xff]
  %v862 = vld [vmem:[%s3 + $0x3c4] sm:$0xff]
  %v863 = vunpack.c.l.b16 %v636
  %v864 = vunpack.c.l.b16 %v650
  %v865 = vunpack.c.l.b16 %v664
  %v866 = vunpack.c.l.b16 %v678
  %v867 = vunpack.c.l.b16 %v692
  %v868 = vunpack.c.l.b16 %v706
  %v869 = vunpack.c.l.b16 %v720
  %v870 = vunpack.c.l.b16 %v734
  %v871 = vunpack.c.l.b16 %v748
  %v872 = vunpack.c.l.b16 %v762
  %v873 = vunpack.c.l.b16 %v776
  %v874 = vunpack.c.l.b16 %v790
  %v875 = vunpack.c.l.b16 %v804
  %v876 = vunpack.c.l.b16 %v818
  %v877 = vunpack.c.l.b16 %v832
  %v878 = vunpack.c.l.b16 %v846
  %v879 = vpack.c.b16 %v864, %v863
  %v880 = vpack.c.b16 %v866, %v865
  %v881 = vpack.c.b16 %v868, %v867
  %v882 = vpack.c.b16 %v870, %v869
  %v883 = vpack.c.b16 %v872, %v871
  %v884 = vpack.c.b16 %v874, %v873
  %v885 = vpack.c.b16 %v876, %v875
  %v886 = vpack.c.b16 %v878, %v877
  %v911 = vunpack.c.l.b16 %v847
  %v912 = vunpack.c.h.b16 %v847
  %v913 = vunpack.c.l.b16 %v848
  %v914 = vunpack.c.h.b16 %v848
  %v915 = vunpack.c.l.b16 %v849
  %v916 = vunpack.c.h.b16 %v849
  %v917 = vunpack.c.l.b16 %v850
  %v918 = vunpack.c.h.b16 %v850
  %v919 = vunpack.c.l.b16 %v851
  %v920 = vunpack.c.h.b16 %v851
  %v921 = vunpack.c.l.b16 %v852
  %v922 = vunpack.c.h.b16 %v852
  %v923 = vunpack.c.l.b16 %v853
  %v924 = vunpack.c.h.b16 %v853
  %v925 = vunpack.c.l.b16 %v854
  %v926 = vunpack.c.h.b16 %v854
  %v927 = vunpack.c.l.b16 %v855
  %v928 = vunpack.c.h.b16 %v855
  %v929 = vunpack.c.l.b16 %v856
  %v930 = vunpack.c.h.b16 %v856
  %v931 = vunpack.c.l.b16 %v857
  %v932 = vunpack.c.h.b16 %v857
  %v933 = vunpack.c.l.b16 %v858
  %v934 = vunpack.c.h.b16 %v858
  %v935 = vunpack.c.l.b16 %v859
  %v936 = vunpack.c.h.b16 %v859
  %v937 = vunpack.c.l.b16 %v860
  %v938 = vunpack.c.h.b16 %v860
  %v939 = vunpack.c.l.b16 %v861
  %v940 = vunpack.c.h.b16 %v861
  %v941 = vunpack.c.l.b16 %v862
  %v942 = vunpack.c.h.b16 %v862
  %v943 = vpack.c.b16 %v913, %v911
  %v944 = vpack.c.b16 %v914, %v912
  %v945 = vpack.c.b16 %v917, %v915
  %v946 = vpack.c.b16 %v918, %v916
  %v947 = vpack.c.b16 %v921, %v919
  %v948 = vpack.c.b16 %v922, %v920
  %v949 = vpack.c.b16 %v925, %v923
  %v950 = vpack.c.b16 %v926, %v924
  %v951 = vpack.c.b16 %v929, %v927
  %v952 = vpack.c.b16 %v930, %v928
  %v953 = vpack.c.b16 %v933, %v931
  %v954 = vpack.c.b16 %v934, %v932
  %v955 = vpack.c.b16 %v937, %v935
  %v956 = vpack.c.b16 %v938, %v936
  %v957 = vpack.c.b16 %v941, %v939
  %v958 = vpack.c.b16 %v942, %v940
  %975 = vmatprep.subr.bf16.mxu0 %v958
  %976 = vmatpush1.bf16.msra.mxu0 %v957
  %977 = vmatprep.subr.bf16.mxu0 %v956
  %978 = vmatpush1.bf16.msra.mxu0 %v955
  %979 = vmatprep.subr.bf16.mxu0 %v954
  %980 = vmatpush1.bf16.msra.mxu0 %v953
  %981 = vmatprep.subr.bf16.mxu0 %v952
  %982 = vmatpush1.bf16.msra.mxu0 %v951
  %983 = vmatprep.subr.bf16.mxu0 %v950
  %984 = vmatpush1.bf16.msra.mxu0 %v949
  %985 = vmatprep.subr.bf16.mxu0 %v948
  %986 = vmatpush1.bf16.msra.mxu0 %v947
  %987 = vmatprep.subr.bf16.mxu0 %v946
  %988 = vmatpush1.bf16.msra.mxu0 %v945
  %989 = vmatprep.subr.bf16.mxu0 %v944
  %990 = vmatpush1.bf16.msra.mxu0 %v943
  %991 = vmatprep.subr.bf16.mxu0 0
  %992 = vmatpush2.bf16.msra.mxu0 0
  %993 = vmatprep.subr.bf16.mxu0 0
  %994 = vmatpush2.bf16.msra.mxu0 0
  %995 = vmatprep.subr.bf16.mxu0 0
  %996 = vmatpush2.bf16.msra.mxu0 0
  %997 = vmatprep.subr.bf16.mxu0 0
  %998 = vmatpush2.bf16.msra.mxu0 0
  %999 = vmatprep.subr.bf16.mxu0 0
  %1000 = vmatpush2.bf16.msra.mxu0 0
  %1001 = vmatprep.subr.bf16.mxu0 0
  %1002 = vmatpush2.bf16.msra.mxu0 0
  %1003 = vmatprep.subr.bf16.mxu0 0
  %1004 = vmatpush2.bf16.msra.mxu0 0
  %1005 = vmatprep.subr.bf16.mxu0 0
  %1006 = vmatpush2.bf16.msra.mxu0 0
  %1007 = vmatprep.mubr.bf16.mxu0 0
  %1008 = vmatmul.mubr.bf16.gmra.mxu0 %v879
  %v1009 = vpop.f32.mrf.mxu0
  %v1010 = vadd.f32 0.0, %v1009
  %v1011 = vpop.f32.mrf.mxu0
  %v1012 = vadd.f32 0.0, %v1011
  %v1013 = vpop.f32.mrf.mxu0
  %v1014 = vadd.f32 0.0, %v1013
  %v1015 = vpop.f32.mrf.mxu0
  %v1016 = vadd.f32 0.0, %v1015
  %1017 = vmatprep.mubr.bf16.mxu0 0
  %1018 = vmatmul.mubr.bf16.gmra.mxu0 %v880
  %v1019 = vpop.f32.mrf.mxu0
  %v1020 = vadd.f32 0.0, %v1019
  %v1021 = vpop.f32.mrf.mxu0
  %v1022 = vadd.f32 0.0, %v1021
  %v1023 = vpop.f32.mrf.mxu0
  %v1024 = vadd.f32 0.0, %v1023
  %v1025 = vpop.f32.mrf.mxu0
  %v1026 = vadd.f32 0.0, %v1025
  %1027 = vmatprep.mubr.bf16.mxu0 0
  %1028 = vmatmul.mubr.bf16.gmra.mxu0 %v881
  %v1029 = vpop.f32.mrf.mxu0
  %v1030 = vadd.f32 0.0, %v1029
  %v1031 = vpop.f32.mrf.mxu0
  %v1032 = vadd.f32 0.0, %v1031
  %v1033 = vpop.f32.mrf.mxu0
  %v1034 = vadd.f32 0.0, %v1033
  %v1035 = vpop.f32.mrf.mxu0
  %v1036 = vadd.f32 0.0, %v1035
  %1037 = vmatprep.mubr.bf16.mxu0 0
  %1038 = vmatmul.mubr.bf16.gmra.mxu0 %v882
  %v1039 = vpop.f32.mrf.mxu0
  %v1040 = vadd.f32 0.0, %v1039
  %v1041 = vpop.f32.mrf.mxu0
  %v1042 = vadd.f32 0.0, %v1041
  %v1043 = vpop.f32.mrf.mxu0
  %v1044 = vadd.f32 0.0, %v1043
  %v1045 = vpop.f32.mrf.mxu0
  %v1046 = vadd.f32 0.0, %v1045
  %1047 = vmatprep.mubr.bf16.mxu0 0
  %1048 = vmatmul.mubr.bf16.gmra.mxu0 %v883
  %v1049 = vpop.f32.mrf.mxu0
  %v1050 = vadd.f32 0.0, %v1049
  %v1051 = vpop.f32.mrf.mxu0
  %v1052 = vadd.f32 0.0, %v1051
  %v1053 = vpop.f32.mrf.mxu0
  %v1054 = vadd.f32 0.0, %v1053
  %v1055 = vpop.f32.mrf.mxu0
  %v1056 = vadd.f32 0.0, %v1055
  %1057 = vmatprep.mubr.bf16.mxu0 0
  %1058 = vmatmul.mubr.bf16.gmra.mxu0 %v884
  %v1059 = vpop.f32.mrf.mxu0
  %v1060 = vadd.f32 0.0, %v1059
  %v1061 = vpop.f32.mrf.mxu0
  %v1062 = vadd.f32 0.0, %v1061
  %v1063 = vpop.f32.mrf.mxu0
  %v1064 = vadd.f32 0.0, %v1063
  %v1065 = vpop.f32.mrf.mxu0
  %v1066 = vadd.f32 0.0, %v1065
  %1067 = vmatprep.mubr.bf16.mxu0 0
  %1068 = vmatmul.mubr.bf16.gmra.mxu0 %v885
  %v1069 = vpop.f32.mrf.mxu0
  %v1070 = vadd.f32 0.0, %v1069
  %v1071 = vpop.f32.mrf.mxu0
  %v1072 = vadd.f32 0.0, %v1071
  %v1073 = vpop.f32.mrf.mxu0
  %v1074 = vadd.f32 0.0, %v1073
  %v1075 = vpop.f32.mrf.mxu0
  %v1076 = vadd.f32 0.0, %v1075
  %1077 = vmatprep.mubr.bf16.mxu0 0
  %1078 = vmatmul.mubr.bf16.gmra.mxu0 %v886
  %v1079 = vpop.f32.mrf.mxu0
  %v1080 = vadd.f32 0.0, %v1079
  %v1081 = vpop.f32.mrf.mxu0
  %v1082 = vadd.f32 0.0, %v1081
  %v1083 = vpop.f32.mrf.mxu0
  %v1084 = vadd.f32 0.0, %v1083
  %v1085 = vpop.f32.mrf.mxu0
  %v1086 = vadd.f32 0.0, %v1085
  %1087 = vdwg.mxu0
  %v1104 = vunpack.c.l.b16 %v572
  %v1105 = vunpack.c.l.b16 %v573
  %v1106 = vunpack.c.l.b16 %v574
  %v1107 = vunpack.c.l.b16 %v575
  %v1108 = vunpack.c.l.b16 %v576
  %v1109 = vunpack.c.l.b16 %v577
  %v1110 = vunpack.c.l.b16 %v578
  %v1111 = vunpack.c.l.b16 %v579
  %v1112 = vunpack.c.l.b16 %v580
  %v1113 = vunpack.c.l.b16 %v581
  %v1114 = vunpack.c.l.b16 %v582
  %v1115 = vunpack.c.l.b16 %v583
  %v1116 = vunpack.c.l.b16 %v584
  %v1117 = vunpack.c.l.b16 %v585
  %v1118 = vunpack.c.l.b16 %v586
  %v1119 = vunpack.c.l.b16 %v587
  %v1120 = vpack.c.b16 %v1105, %v1104
  %v1121 = vpack.c.b16 %v1107, %v1106
  %v1122 = vpack.c.b16 %v1109, %v1108
  %v1123 = vpack.c.b16 %v1111, %v1110
  %v1124 = vpack.c.b16 %v1113, %v1112
  %v1125 = vpack.c.b16 %v1115, %v1114
  %v1126 = vpack.c.b16 %v1117, %v1116
  %v1127 = vpack.c.b16 %v1119, %v1118
  %v1152 = vunpack.c.l.b16 %v588
  %v1153 = vunpack.c.l.b16 %v589
  %v1154 = vunpack.c.l.b16 %v590
  %v1155 = vunpack.c.l.b16 %v591
  %v1156 = vunpack.c.l.b16 %v592
  %v1157 = vunpack.c.l.b16 %v593
  %v1158 = vunpack.c.l.b16 %v594
  %v1159 = vunpack.c.l.b16 %v595
  %v1160 = vunpack.c.l.b16 %v596
  %v1161 = vunpack.c.l.b16 %v597
  %v1162 = vunpack.c.l.b16 %v598
  %v1163 = vunpack.c.l.b16 %v599
  %v1164 = vunpack.c.l.b16 %v600
  %v1165 = vunpack.c.l.b16 %v601
  %v1166 = vunpack.c.l.b16 %v602
  %v1167 = vunpack.c.l.b16 %v603
  %v1168 = vpack.c.b16 %v1153, %v1152
  %v1169 = vpack.c.b16 %v1155, %v1154
  %v1170 = vpack.c.b16 %v1157, %v1156
  %v1171 = vpack.c.b16 %v1159, %v1158
  %v1172 = vpack.c.b16 %v1161, %v1160
  %v1173 = vpack.c.b16 %v1163, %v1162
  %v1174 = vpack.c.b16 %v1165, %v1164
  %v1175 = vpack.c.b16 %v1167, %v1166
  %1184 = vmatprep.subr.bf16.mxu0 0
  %1185 = vmatpush1.bf16.msra.mxu0 %v1175
  %1186 = vmatprep.subr.bf16.mxu0 0
  %1187 = vmatpush1.bf16.msra.mxu0 %v1174
  %1188 = vmatprep.subr.bf16.mxu0 0
  %1189 = vmatpush1.bf16.msra.mxu0 %v1173
  %1190 = vmatprep.subr.bf16.mxu0 0
  %1191 = vmatpush1.bf16.msra.mxu0 %v1172
  %1192 = vmatprep.subr.bf16.mxu0 0
  %1193 = vmatpush1.bf16.msra.mxu0 %v1171
  %1194 = vmatprep.subr.bf16.mxu0 0
  %1195 = vmatpush1.bf16.msra.mxu0 %v1170
  %1196 = vmatprep.subr.bf16.mxu0 0
  %1197 = vmatpush1.bf16.msra.mxu0 %v1169
  %1198 = vmatprep.subr.bf16.mxu0 0
  %1199 = vmatpush1.bf16.msra.mxu0 %v1168
  %1200 = vmatprep.subr.bf16.mxu0 0
  %1201 = vmatpush2.bf16.msra.mxu0 0
  %1202 = vmatprep.subr.bf16.mxu0 0
  %1203 = vmatpush2.bf16.msra.mxu0 0
  %1204 = vmatprep.subr.bf16.mxu0 0
  %1205 = vmatpush2.bf16.msra.mxu0 0
  %1206 = vmatprep.subr.bf16.mxu0 0
  %1207 = vmatpush2.bf16.msra.mxu0 0
  %1208 = vmatprep.subr.bf16.mxu0 0
  %1209 = vmatpush2.bf16.msra.mxu0 0
  %1210 = vmatprep.subr.bf16.mxu0 0
  %1211 = vmatpush2.bf16.msra.mxu0 0
  %1212 = vmatprep.subr.bf16.mxu0 0
  %1213 = vmatpush2.bf16.msra.mxu0 0
  %1214 = vmatprep.subr.bf16.mxu0 0
  %1215 = vmatpush2.bf16.msra.mxu0 0
  %1216 = vmatprep.mubr.bf16.mxu0 0
  %1217 = vmatmul.mubr.bf16.gmra.mxu0 %v1120
  %v1218 = vpop.f32.mrf.mxu0
  %v1219 = vadd.f32 %v1010, %v1218
  %v1220 = vpop.f32.mrf.mxu0
  %v1221 = vpop.f32.mrf.mxu0
  %v1222 = vadd.f32 %v1014, %v1221
  %v1223 = vpop.f32.mrf.mxu0
  %1224 = vmatprep.mubr.bf16.mxu0 0
  %1225 = vmatmul.mubr.bf16.gmra.mxu0 %v1121
  %v1226 = vpop.f32.mrf.mxu0
  %v1227 = vadd.f32 %v1020, %v1226
  %v1228 = vpop.f32.mrf.mxu0
  %v1229 = vpop.f32.mrf.mxu0
  %v1230 = vadd.f32 %v1024, %v1229
  %v1231 = vpop.f32.mrf.mxu0
  %1232 = vmatprep.mubr.bf16.mxu0 0
  %1233 = vmatmul.mubr.bf16.gmra.mxu0 %v1122
  %v1234 = vpop.f32.mrf.mxu0
  %v1235 = vadd.f32 %v1030, %v1234
  %v1236 = vpop.f32.mrf.mxu0
  %v1237 = vpop.f32.mrf.mxu0
  %v1238 = vadd.f32 %v1034, %v1237
  %v1239 = vpop.f32.mrf.mxu0
  %1240 = vmatprep.mubr.bf16.mxu0 0
  %1241 = vmatmul.mubr.bf16.gmra.mxu0 %v1123
  %v1242 = vpop.f32.mrf.mxu0
  %v1243 = vadd.f32 %v1040, %v1242
  %v1244 = vpop.f32.mrf.mxu0
  %v1245 = vpop.f32.mrf.mxu0
  %v1246 = vadd.f32 %v1044, %v1245
  %v1247 = vpop.f32.mrf.mxu0
  %1248 = vmatprep.mubr.bf16.mxu0 0
  %1249 = vmatmul.mubr.bf16.gmra.mxu0 %v1124
  %v1250 = vpop.f32.mrf.mxu0
  %v1251 = vadd.f32 %v1050, %v1250
  %v1252 = vpop.f32.mrf.mxu0
  %v1253 = vpop.f32.mrf.mxu0
  %v1254 = vadd.f32 %v1054, %v1253
  %v1255 = vpop.f32.mrf.mxu0
  %1256 = vmatprep.mubr.bf16.mxu0 0
  %1257 = vmatmul.mubr.bf16.gmra.mxu0 %v1125
  %v1258 = vpop.f32.mrf.mxu0
  %v1259 = vadd.f32 %v1060, %v1258
  %v1260 = vpop.f32.mrf.mxu0
  %v1261 = vpop.f32.mrf.mxu0
  %v1262 = vadd.f32 %v1064, %v1261
  %v1263 = vpop.f32.mrf.mxu0
  %1264 = vmatprep.mubr.bf16.mxu0 0
  %1265 = vmatmul.mubr.bf16.gmra.mxu0 %v1126
  %v1266 = vpop.f32.mrf.mxu0
  %v1267 = vadd.f32 %v1070, %v1266
  %v1268 = vpop.f32.mrf.mxu0
  %v1269 = vpop.f32.mrf.mxu0
  %v1270 = vadd.f32 %v1074, %v1269
  %v1271 = vpop.f32.mrf.mxu0
  %1272 = vmatprep.mubr.bf16.mxu0 0
  %1273 = vmatmul.mubr.bf16.gmra.mxu0 %v1127
  %v1274 = vpop.f32.mrf.mxu0
  %v1275 = vadd.f32 %v1080, %v1274
  %v1276 = vpop.f32.mrf.mxu0
  %v1277 = vpop.f32.mrf.mxu0
  %v1278 = vadd.f32 %v1084, %v1277
  %v1279 = vpop.f32.mrf.mxu0
  %1280 = vdwg.mxu0
  %v1281 = vld [vmem:[#allocation2] sm:$0xe]
  %v1282 = vld [vmem:[#allocation2 + $0x8] sm:$0xe]
  %v1283 = vld [vmem:[#allocation2 + $0x10] sm:$0xe]
  %v1284 = vld [vmem:[#allocation2 + $0x18] sm:$0xe]
  %v1285 = vld [vmem:[#allocation2 + $0x20] sm:$0xe]
  %v1286 = vld [vmem:[#allocation2 + $0x28] sm:$0xe]
  %v1287 = vld [vmem:[#allocation2 + $0x30] sm:$0xe]
  %v1288 = vld [vmem:[#allocation2 + $0x38] sm:$0xe]
  %v1289 = vld [vmem:[#allocation2 + $0x50] sm:$0xe]
  %v1290 = vld [vmem:[#allocation2 + $0x58] sm:$0xe]
  %v1291 = vld [vmem:[#allocation2 + $0x60] sm:$0xe]
  %v1292 = vld [vmem:[#allocation2 + $0x68] sm:$0xe]
  %v1293 = vld [vmem:[#allocation2 + $0x70] sm:$0xe]
  %v1294 = vld [vmem:[#allocation2 + $0x78] sm:$0xe]
  %v1295 = vld [vmem:[#allocation2 + $0x80] sm:$0xe]
  %v1296 = vld [vmem:[#allocation2 + $0x88] sm:$0xe]
  %vm1329 = vcmask 1042432
  %vm1330 = vcmask 1046532
  %vm1331 = vmor %vm1329, %vm1330
  %v1332 = vrot.slane %v1281, 5
  %v1333 = vrot.slane %v1332, 4
  %v1334 = vrot.slane %v604, 5
  %v1335 = vsel %vm1331, %v1333, %v1334
  %v1336 = vrot.slane %v1282, 5
  %v1337 = vrot.slane %v1336, 4
  %v1338 = vrot.slane %v605, 5
  %v1339 = vsel %vm1331, %v1337, %v1338
  %v1340 = vrot.slane %v1283, 5
  %v1341 = vrot.slane %v1340, 4
  %v1342 = vrot.slane %v606, 5
  %v1343 = vsel %vm1331, %v1341, %v1342
  %v1344 = vrot.slane %v1284, 5
  %v1345 = vrot.slane %v1344, 4
  %v1346 = vrot.slane %v607, 5
  %v1347 = vsel %vm1331, %v1345, %v1346
  %v1348 = vrot.slane %v1285, 5
  %v1349 = vrot.slane %v1348, 4
  %v1350 = vrot.slane %v608, 5
  %v1351 = vsel %vm1331, %v1349, %v1350
  %v1352 = vrot.slane %v1286, 5
  %v1353 = vrot.slane %v1352, 4
  %v1354 = vrot.slane %v609, 5
  %v1355 = vsel %vm1331, %v1353, %v1354
  %v1356 = vrot.slane %v1287, 5
  %v1357 = vrot.slane %v1356, 4
  %v1358 = vrot.slane %v610, 5
  %v1359 = vsel %vm1331, %v1357, %v1358
  %v1360 = vrot.slane %v1288, 5
  %v1361 = vrot.slane %v1360, 4
  %v1362 = vrot.slane %v611, 5
  %v1363 = vsel %vm1331, %v1361, %v1362
  %v1364 = vrot.slane %v1289, 5
  %v1365 = vrot.slane %v1364, 4
  %v1366 = vrot.slane %v612, 5
  %v1367 = vsel %vm1331, %v1365, %v1366
  %v1368 = vrot.slane %v1290, 5
  %v1369 = vrot.slane %v1368, 4
  %v1370 = vrot.slane %v613, 5
  %v1371 = vsel %vm1331, %v1369, %v1370
  %v1372 = vrot.slane %v1291, 5
  %v1373 = vrot.slane %v1372, 4
  %v1374 = vrot.slane %v614, 5
  %v1375 = vsel %vm1331, %v1373, %v1374
  %v1376 = vrot.slane %v1292, 5
  %v1377 = vrot.slane %v1376, 4
  %v1378 = vrot.slane %v615, 5
  %v1379 = vsel %vm1331, %v1377, %v1378
  %v1380 = vrot.slane %v1293, 5
  %v1381 = vrot.slane %v1380, 4
  %v1382 = vrot.slane %v616, 5
  %v1383 = vsel %vm1331, %v1381, %v1382
  %v1384 = vrot.slane %v1294, 5
  %v1385 = vrot.slane %v1384, 4
  %v1386 = vrot.slane %v617, 5
  %v1387 = vsel %vm1331, %v1385, %v1386
  %v1388 = vrot.slane %v1295, 5
  %v1389 = vrot.slane %v1388, 4
  %v1390 = vrot.slane %v618, 5
  %v1391 = vsel %vm1331, %v1389, %v1390
  %v1392 = vrot.slane %v1296, 5
  %v1393 = vrot.slane %v1392, 4
  %v1394 = vrot.slane %v619, 5
  %v1395 = vsel %vm1331, %v1393, %v1394
  %v1396 = vld [vmem:[%s3 + $0xc] sm:$0xf]
  %v1397 = vld [vmem:[%s3 + $0x4c] sm:$0xf]
  %v1398 = vld [vmem:[%s3 + $0x8c] sm:$0xf]
  %v1399 = vld [vmem:[%s3 + $0xcc] sm:$0xf]
  %v1400 = vld [vmem:[%s3 + $0x10c] sm:$0xf]
  %v1401 = vld [vmem:[%s3 + $0x14c] sm:$0xf]
  %v1402 = vld [vmem:[%s3 + $0x18c] sm:$0xf]
  %v1403 = vld [vmem:[%s3 + $0x1cc] sm:$0xf]
  %v1404 = vld [vmem:[%s3 + $0x20c] sm:$0xf]
  %v1405 = vld [vmem:[%s3 + $0x24c] sm:$0xf]
  %v1406 = vld [vmem:[%s3 + $0x28c] sm:$0xf]
  %v1407 = vld [vmem:[%s3 + $0x2cc] sm:$0xf]
  %v1408 = vld [vmem:[%s3 + $0x30c] sm:$0xf]
  %v1409 = vld [vmem:[%s3 + $0x34c] sm:$0xf]
  %v1410 = vld [vmem:[%s3 + $0x38c] sm:$0xf]
  %v1411 = vld [vmem:[%s3 + $0x3cc] sm:$0xf]
  %v1412 = vunpack.c.l.b16 %v1335
  %v1413 = vunpack.c.l.b16 %v1339
  %v1414 = vunpack.c.l.b16 %v1343
  %v1415 = vunpack.c.l.b16 %v1347
  %v1416 = vunpack.c.l.b16 %v1351
  %v1417 = vunpack.c.l.b16 %v1355
  %v1418 = vunpack.c.l.b16 %v1359
  %v1419 = vunpack.c.l.b16 %v1363
  %v1420 = vunpack.c.l.b16 %v1367
  %v1421 = vunpack.c.l.b16 %v1371
  %v1422 = vunpack.c.l.b16 %v1375
  %v1423 = vunpack.c.l.b16 %v1379
  %v1424 = vunpack.c.l.b16 %v1383
  %v1425 = vunpack.c.l.b16 %v1387
  %v1426 = vunpack.c.l.b16 %v1391
  %v1427 = vunpack.c.l.b16 %v1395
  %v1428 = vpack.c.b16 %v1413, %v1412
  %v1429 = vpack.c.b16 %v1415, %v1414
  %v1430 = vpack.c.b16 %v1417, %v1416
  %v1431 = vpack.c.b16 %v1419, %v1418
  %v1432 = vpack.c.b16 %v1421, %v1420
  %v1433 = vpack.c.b16 %v1423, %v1422
  %v1434 = vpack.c.b16 %v1425, %v1424
  %v1435 = vpack.c.b16 %v1427, %v1426
  %v1460 = vunpack.c.l.b16 %v1396
  %v1461 = vunpack.c.l.b16 %v1397
  %v1462 = vunpack.c.l.b16 %v1398
  %v1463 = vunpack.c.l.b16 %v1399
  %v1464 = vunpack.c.l.b16 %v1400
  %v1465 = vunpack.c.l.b16 %v1401
  %v1466 = vunpack.c.l.b16 %v1402
  %v1467 = vunpack.c.l.b16 %v1403
  %v1468 = vunpack.c.l.b16 %v1404
  %v1469 = vunpack.c.l.b16 %v1405
  %v1470 = vunpack.c.l.b16 %v1406
  %v1471 = vunpack.c.l.b16 %v1407
  %v1472 = vunpack.c.l.b16 %v1408
  %v1473 = vunpack.c.l.b16 %v1409
  %v1474 = vunpack.c.l.b16 %v1410
  %v1475 = vunpack.c.l.b16 %v1411
  %v1476 = vpack.c.b16 %v1461, %v1460
  %v1477 = vpack.c.b16 %v1463, %v1462
  %v1478 = vpack.c.b16 %v1465, %v1464
  %v1479 = vpack.c.b16 %v1467, %v1466
  %v1480 = vpack.c.b16 %v1469, %v1468
  %v1481 = vpack.c.b16 %v1471, %v1470
  %v1482 = vpack.c.b16 %v1473, %v1472
  %v1483 = vpack.c.b16 %v1475, %v1474
  %1492 = vmatprep.subr.bf16.mxu0 0
  %1493 = vmatpush1.bf16.msra.mxu0 %v1483
  %1494 = vmatprep.subr.bf16.mxu0 0
  %1495 = vmatpush1.bf16.msra.mxu0 %v1482
  %1496 = vmatprep.subr.bf16.mxu0 0
  %1497 = vmatpush1.bf16.msra.mxu0 %v1481
  %1498 = vmatprep.subr.bf16.mxu0 0
  %1499 = vmatpush1.bf16.msra.mxu0 %v1480
  %1500 = vmatprep.subr.bf16.mxu0 0
  %1501 = vmatpush1.bf16.msra.mxu0 %v1479
  %1502 = vmatprep.subr.bf16.mxu0 0
  %1503 = vmatpush1.bf16.msra.mxu0 %v1478
  %1504 = vmatprep.subr.bf16.mxu0 0
  %1505 = vmatpush1.bf16.msra.mxu0 %v1477
  %1506 = vmatprep.subr.bf16.mxu0 0
  %1507 = vmatpush1.bf16.msra.mxu0 %v1476
  %1508 = vmatprep.subr.bf16.mxu0 0
  %1509 = vmatpush2.bf16.msra.mxu0 0
  %1510 = vmatprep.subr.bf16.mxu0 0
  %1511 = vmatpush2.bf16.msra.mxu0 0
  %1512 = vmatprep.subr.bf16.mxu0 0
  %1513 = vmatpush2.bf16.msra.mxu0 0
  %1514 = vmatprep.subr.bf16.mxu0 0
  %1515 = vmatpush2.bf16.msra.mxu0 0
  %1516 = vmatprep.subr.bf16.mxu0 0
  %1517 = vmatpush2.bf16.msra.mxu0 0
  %1518 = vmatprep.subr.bf16.mxu0 0
  %1519 = vmatpush2.bf16.msra.mxu0 0
  %1520 = vmatprep.subr.bf16.mxu0 0
  %1521 = vmatpush2.bf16.msra.mxu0 0
  %1522 = vmatprep.subr.bf16.mxu0 0
  %1523 = vmatpush2.bf16.msra.mxu0 0
  %1524 = vmatprep.mubr.bf16.mxu0 0
  %1525 = vmatmul.mubr.bf16.gmra.mxu0 %v1428
  %v1526 = vpop.f32.mrf.mxu0
  %v1527 = vadd.f32 0.0, %v1526
  %v1528 = vpop.f32.mrf.mxu0
  %v1529 = vpop.f32.mrf.mxu0
  %v1530 = vadd.f32 0.0, %v1529
  %v1531 = vpop.f32.mrf.mxu0
  %1532 = vmatprep.mubr.bf16.mxu0 0
  %1533 = vmatmul.mubr.bf16.gmra.mxu0 %v1429
  %v1534 = vpop.f32.mrf.mxu0
  %v1535 = vadd.f32 0.0, %v1534
  %v1536 = vpop.f32.mrf.mxu0
  %v1537 = vpop.f32.mrf.mxu0
  %v1538 = vadd.f32 0.0, %v1537
  %v1539 = vpop.f32.mrf.mxu0
  %1540 = vmatprep.mubr.bf16.mxu0 0
  %1541 = vmatmul.mubr.bf16.gmra.mxu0 %v1430
  %v1542 = vpop.f32.mrf.mxu0
  %v1543 = vadd.f32 0.0, %v1542
  %v1544 = vpop.f32.mrf.mxu0
  %v1545 = vpop.f32.mrf.mxu0
  %v1546 = vadd.f32 0.0, %v1545
  %v1547 = vpop.f32.mrf.mxu0
  %1548 = vmatprep.mubr.bf16.mxu0 0
  %1549 = vmatmul.mubr.bf16.gmra.mxu0 %v1431
  %v1550 = vpop.f32.mrf.mxu0
  %v1551 = vadd.f32 0.0, %v1550
  %v1552 = vpop.f32.mrf.mxu0
  %v1553 = vpop.f32.mrf.mxu0
  %v1554 = vadd.f32 0.0, %v1553
  %v1555 = vpop.f32.mrf.mxu0
  %1556 = vmatprep.mubr.bf16.mxu0 0
  %1557 = vmatmul.mubr.bf16.gmra.mxu0 %v1432
  %v1558 = vpop.f32.mrf.mxu0
  %v1559 = vadd.f32 0.0, %v1558
  %v1560 = vpop.f32.mrf.mxu0
  %v1561 = vpop.f32.mrf.mxu0
  %v1562 = vadd.f32 0.0, %v1561
  %v1563 = vpop.f32.mrf.mxu0
  %1564 = vmatprep.mubr.bf16.mxu0 0
  %1565 = vmatmul.mubr.bf16.gmra.mxu0 %v1433
  %v1566 = vpop.f32.mrf.mxu0
  %v1567 = vadd.f32 0.0, %v1566
  %v1568 = vpop.f32.mrf.mxu0
  %v1569 = vpop.f32.mrf.mxu0
  %v1570 = vadd.f32 0.0, %v1569
  %v1571 = vpop.f32.mrf.mxu0
  %1572 = vmatprep.mubr.bf16.mxu0 0
  %1573 = vmatmul.mubr.bf16.gmra.mxu0 %v1434
  %v1574 = vpop.f32.mrf.mxu0
  %v1575 = vadd.f32 0.0, %v1574
  %v1576 = vpop.f32.mrf.mxu0
  %v1577 = vpop.f32.mrf.mxu0
  %v1578 = vadd.f32 0.0, %v1577
  %v1579 = vpop.f32.mrf.mxu0
  %1580 = vmatprep.mubr.bf16.mxu0 0
  %1581 = vmatmul.mubr.bf16.gmra.mxu0 %v1435
  %v1582 = vpop.f32.mrf.mxu0
  %v1583 = vadd.f32 0.0, %v1582
  %v1584 = vpop.f32.mrf.mxu0
  %v1585 = vpop.f32.mrf.mxu0
  %v1586 = vadd.f32 0.0, %v1585
  %v1587 = vpop.f32.mrf.mxu0
  %1588 = vdwg.mxu0
  %v1589 = vadd.f32 %v1012, %v1527
  %v1590 = vadd.f32 %v1016, %v1530
  %v1591 = vadd.f32 %v1022, %v1535
  %v1592 = vadd.f32 %v1026, %v1538
  %v1593 = vadd.f32 %v1032, %v1543
  %v1594 = vadd.f32 %v1036, %v1546
  %v1595 = vadd.f32 %v1042, %v1551
  %v1596 = vadd.f32 %v1046, %v1554
  %v1597 = vadd.f32 %v1052, %v1559
  %v1598 = vadd.f32 %v1056, %v1562
  %v1599 = vadd.f32 %v1062, %v1567
  %v1600 = vadd.f32 %v1066, %v1570
  %v1601 = vadd.f32 %v1072, %v1575
  %v1602 = vadd.f32 %v1076, %v1578
  %v1603 = vadd.f32 %v1082, %v1583
  %v1604 = vadd.f32 %v1086, %v1586
  %v1605 = vld [vmem:[%s473] sm:$0xf]
  %v1606 = vld [vmem:[%s473 + $0x8] sm:$0xf]
  %v1607 = vld [vmem:[%s473 + $0x10] sm:$0xf]
  %v1608 = vld [vmem:[%s473 + $0x18] sm:$0xf]
  %v1609 = vld [vmem:[%s473 + $0x20] sm:$0xf]
  %v1610 = vld [vmem:[%s473 + $0x28] sm:$0xf]
  %v1611 = vld [vmem:[%s473 + $0x30] sm:$0xf]
  %v1612 = vld [vmem:[%s473 + $0x38] sm:$0xf]
  %v1613 = vld [vmem:[%s473 + $0x50] sm:$0xf]
  %v1614 = vld [vmem:[%s473 + $0x58] sm:$0xf]
  %v1615 = vld [vmem:[%s473 + $0x60] sm:$0xf]
  %v1616 = vld [vmem:[%s473 + $0x68] sm:$0xf]
  %v1617 = vld [vmem:[%s473 + $0x70] sm:$0xf]
  %v1618 = vld [vmem:[%s473 + $0x78] sm:$0xf]
  %v1619 = vld [vmem:[%s473 + $0x80] sm:$0xf]
  %v1620 = vld [vmem:[%s473 + $0x88] sm:$0xf]
  %v1621 = vld [vmem:[%s3 + $0x10] sm:$0xff]
  %v1622 = vld [vmem:[%s3 + $0x50] sm:$0xff]
  %v1623 = vld [vmem:[%s3 + $0x90] sm:$0xff]
  %v1624 = vld [vmem:[%s3 + $0xd0] sm:$0xff]
  %v1625 = vld [vmem:[%s3 + $0x110] sm:$0xff]
  %v1626 = vld [vmem:[%s3 + $0x150] sm:$0xff]
  %v1627 = vld [vmem:[%s3 + $0x190] sm:$0xff]
  %v1628 = vld [vmem:[%s3 + $0x1d0] sm:$0xff]
  %v1629 = vld [vmem:[%s3 + $0x210] sm:$0xff]
  %v1630 = vld [vmem:[%s3 + $0x250] sm:$0xff]
  %v1631 = vld [vmem:[%s3 + $0x290] sm:$0xff]
  %v1632 = vld [vmem:[%s3 + $0x2d0] sm:$0xff]
  %v1633 = vld [vmem:[%s3 + $0x310] sm:$0xff]
  %v1634 = vld [vmem:[%s3 + $0x350] sm:$0xff]
  %v1635 = vld [vmem:[%s3 + $0x390] sm:$0xff]
  %v1636 = vld [vmem:[%s3 + $0x3d0] sm:$0xff]
  %v1653 = vunpack.c.l.b16 %v1605
  %v1654 = vunpack.c.l.b16 %v1606
  %v1655 = vunpack.c.l.b16 %v1607
  %v1656 = vunpack.c.l.b16 %v1608
  %v1657 = vunpack.c.l.b16 %v1609
  %v1658 = vunpack.c.l.b16 %v1610
  %v1659 = vunpack.c.l.b16 %v1611
  %v1660 = vunpack.c.l.b16 %v1612
  %v1661 = vunpack.c.l.b16 %v1613
  %v1662 = vunpack.c.l.b16 %v1614
  %v1663 = vunpack.c.l.b16 %v1615
  %v1664 = vunpack.c.l.b16 %v1616
  %v1665 = vunpack.c.l.b16 %v1617
  %v1666 = vunpack.c.l.b16 %v1618
  %v1667 = vunpack.c.l.b16 %v1619
  %v1668 = vunpack.c.l.b16 %v1620
  %v1669 = vpack.c.b16 %v1654, %v1653
  %v1670 = vpack.c.b16 %v1656, %v1655
  %v1671 = vpack.c.b16 %v1658, %v1657
  %v1672 = vpack.c.b16 %v1660, %v1659
  %v1673 = vpack.c.b16 %v1662, %v1661
  %v1674 = vpack.c.b16 %v1664, %v1663
  %v1675 = vpack.c.b16 %v1666, %v1665
  %v1676 = vpack.c.b16 %v1668, %v1667
  %v1701 = vunpack.c.l.b16 %v1621
  %v1702 = vunpack.c.h.b16 %v1621
  %v1703 = vunpack.c.l.b16 %v1622
  %v1704 = vunpack.c.h.b16 %v1622
  %v1705 = vunpack.c.l.b16 %v1623
  %v1706 = vunpack.c.h.b16 %v1623
  %v1707 = vunpack.c.l.b16 %v1624
  %v1708 = vunpack.c.h.b16 %v1624
  %v1709 = vunpack.c.l.b16 %v1625
  %v1710 = vunpack.c.h.b16 %v1625
  %v1711 = vunpack.c.l.b16 %v1626
  %v1712 = vunpack.c.h.b16 %v1626
  %v1713 = vunpack.c.l.b16 %v1627
  %v1714 = vunpack.c.h.b16 %v1627
  %v1715 = vunpack.c.l.b16 %v1628
  %v1716 = vunpack.c.h.b16 %v1628
  %v1717 = vunpack.c.l.b16 %v1629
  %v1718 = vunpack.c.h.b16 %v1629
  %v1719 = vunpack.c.l.b16 %v1630
  %v1720 = vunpack.c.h.b16 %v1630
  %v1721 = vunpack.c.l.b16 %v1631
  %v1722 = vunpack.c.h.b16 %v1631
  %v1723 = vunpack.c.l.b16 %v1632
  %v1724 = vunpack.c.h.b16 %v1632
  %v1725 = vunpack.c.l.b16 %v1633
  %v1726 = vunpack.c.h.b16 %v1633
  %v1727 = vunpack.c.l.b16 %v1634
  %v1728 = vunpack.c.h.b16 %v1634
  %v1729 = vunpack.c.l.b16 %v1635
  %v1730 = vunpack.c.h.b16 %v1635
  %v1731 = vunpack.c.l.b16 %v1636
  %v1732 = vunpack.c.h.b16 %v1636
  %v1733 = vpack.c.b16 %v1703, %v1701
  %v1734 = vpack.c.b16 %v1704, %v1702
  %v1735 = vpack.c.b16 %v1707, %v1705
  %v1736 = vpack.c.b16 %v1708, %v1706
  %v1737 = vpack.c.b16 %v1711, %v1709
  %v1738 = vpack.c.b16 %v1712, %v1710
  %v1739 = vpack.c.b16 %v1715, %v1713
  %v1740 = vpack.c.b16 %v1716, %v1714
  %v1741 = vpack.c.b16 %v1719, %v1717
  %v1742 = vpack.c.b16 %v1720, %v1718
  %v1743 = vpack.c.b16 %v1723, %v1721
  %v1744 = vpack.c.b16 %v1724, %v1722
  %v1745 = vpack.c.b16 %v1727, %v1725
  %v1746 = vpack.c.b16 %v1728, %v1726
  %v1747 = vpack.c.b16 %v1731, %v1729
  %v1748 = vpack.c.b16 %v1732, %v1730
  %1765 = vmatprep.subr.bf16.mxu0 %v1748
  %1766 = vmatpush1.bf16.msra.mxu0 %v1747
  %1767 = vmatprep.subr.bf16.mxu0 %v1746
  %1768 = vmatpush1.bf16.msra.mxu0 %v1745
  %1769 = vmatprep.subr.bf16.mxu0 %v1744
  %1770 = vmatpush1.bf16.msra.mxu0 %v1743
  %1771 = vmatprep.subr.bf16.mxu0 %v1742
  %1772 = vmatpush1.bf16.msra.mxu0 %v1741
  %1773 = vmatprep.subr.bf16.mxu0 %v1740
  %1774 = vmatpush1.bf16.msra.mxu0 %v1739
  %1775 = vmatprep.subr.bf16.mxu0 %v1738
  %1776 = vmatpush1.bf16.msra.mxu0 %v1737
  %1777 = vmatprep.subr.bf16.mxu0 %v1736
  %1778 = vmatpush1.bf16.msra.mxu0 %v1735
  %1779 = vmatprep.subr.bf16.mxu0 %v1734
  %1780 = vmatpush1.bf16.msra.mxu0 %v1733
  %1781 = vmatprep.subr.bf16.mxu0 0
  %1782 = vmatpush2.bf16.msra.mxu0 0
  %1783 = vmatprep.subr.bf16.mxu0 0
  %1784 = vmatpush2.bf16.msra.mxu0 0
  %1785 = vmatprep.subr.bf16.mxu0 0
  %1786 = vmatpush2.bf16.msra.mxu0 0
  %1787 = vmatprep.subr.bf16.mxu0 0
  %1788 = vmatpush2.bf16.msra.mxu0 0
  %1789 = vmatprep.subr.bf16.mxu0 0
  %1790 = vmatpush2.bf16.msra.mxu0 0
  %1791 = vmatprep.subr.bf16.mxu0 0
  %1792 = vmatpush2.bf16.msra.mxu0 0
  %1793 = vmatprep.subr.bf16.mxu0 0
  %1794 = vmatpush2.bf16.msra.mxu0 0
  %1795 = vmatprep.subr.bf16.mxu0 0
  %1796 = vmatpush2.bf16.msra.mxu0 0
  %1797 = vmatprep.mubr.bf16.mxu0 0
  %1798 = vmatmul.mubr.bf16.gmra.mxu0 %v1669
  %v1799 = vpop.f32.mrf.mxu0
  %v1800 = vadd.f32 0.0, %v1799
  %v1801 = vpop.f32.mrf.mxu0
  %v1802 = vadd.f32 0.0, %v1801
  %v1803 = vpop.f32.mrf.mxu0
  %v1804 = vadd.f32 0.0, %v1803
  %v1805 = vpop.f32.mrf.mxu0
  %v1806 = vadd.f32 0.0, %v1805
  %1807 = vmatprep.mubr.bf16.mxu0 0
  %1808 = vmatmul.mubr.bf16.gmra.mxu0 %v1670
  %v1809 = vpop.f32.mrf.mxu0
  %v1810 = vadd.f32 0.0, %v1809
  %v1811 = vpop.f32.mrf.mxu0
  %v1812 = vadd.f32 0.0, %v1811
  %v1813 = vpop.f32.mrf.mxu0
  %v1814 = vadd.f32 0.0, %v1813
  %v1815 = vpop.f32.mrf.mxu0
  %v1816 = vadd.f32 0.0, %v1815
  %1817 = vmatprep.mubr.bf16.mxu0 0
  %1818 = vmatmul.mubr.bf16.gmra.mxu0 %v1671
  %v1819 = vpop.f32.mrf.mxu0
  %v1820 = vadd.f32 0.0, %v1819
  %v1821 = vpop.f32.mrf.mxu0
  %v1822 = vadd.f32 0.0, %v1821
  %v1823 = vpop.f32.mrf.mxu0
  %v1824 = vadd.f32 0.0, %v1823
  %v1825 = vpop.f32.mrf.mxu0
  %v1826 = vadd.f32 0.0, %v1825
  %1827 = vmatprep.mubr.bf16.mxu0 0
  %1828 = vmatmul.mubr.bf16.gmra.mxu0 %v1672
  %v1829 = vpop.f32.mrf.mxu0
  %v1830 = vadd.f32 0.0, %v1829
  %v1831 = vpop.f32.mrf.mxu0
  %v1832 = vadd.f32 0.0, %v1831
  %v1833 = vpop.f32.mrf.mxu0
  %v1834 = vadd.f32 0.0, %v1833
  %v1835 = vpop.f32.mrf.mxu0
  %v1836 = vadd.f32 0.0, %v1835
  %1837 = vmatprep.mubr.bf16.mxu0 0
  %1838 = vmatmul.mubr.bf16.gmra.mxu0 %v1673
  %v1839 = vpop.f32.mrf.mxu0
  %v1840 = vadd.f32 0.0, %v1839
  %v1841 = vpop.f32.mrf.mxu0
  %v1842 = vadd.f32 0.0, %v1841
  %v1843 = vpop.f32.mrf.mxu0
  %v1844 = vadd.f32 0.0, %v1843
  %v1845 = vpop.f32.mrf.mxu0
  %v1846 = vadd.f32 0.0, %v1845
  %1847 = vmatprep.mubr.bf16.mxu0 0
  %1848 = vmatmul.mubr.bf16.gmra.mxu0 %v1674
  %v1849 = vpop.f32.mrf.mxu0
  %v1850 = vadd.f32 0.0, %v1849
  %v1851 = vpop.f32.mrf.mxu0
  %v1852 = vadd.f32 0.0, %v1851
  %v1853 = vpop.f32.mrf.mxu0
  %v1854 = vadd.f32 0.0, %v1853
  %v1855 = vpop.f32.mrf.mxu0
  %v1856 = vadd.f32 0.0, %v1855
  %1857 = vmatprep.mubr.bf16.mxu0 0
  %1858 = vmatmul.mubr.bf16.gmra.mxu0 %v1675
  %v1859 = vpop.f32.mrf.mxu0
  %v1860 = vadd.f32 0.0, %v1859
  %v1861 = vpop.f32.mrf.mxu0
  %v1862 = vadd.f32 0.0, %v1861
  %v1863 = vpop.f32.mrf.mxu0
  %v1864 = vadd.f32 0.0, %v1863
  %v1865 = vpop.f32.mrf.mxu0
  %v1866 = vadd.f32 0.0, %v1865
  %1867 = vmatprep.mubr.bf16.mxu0 0
  %1868 = vmatmul.mubr.bf16.gmra.mxu0 %v1676
  %v1869 = vpop.f32.mrf.mxu0
  %v1870 = vadd.f32 0.0, %v1869
  %v1871 = vpop.f32.mrf.mxu0
  %v1872 = vadd.f32 0.0, %v1871
  %v1873 = vpop.f32.mrf.mxu0
  %v1874 = vadd.f32 0.0, %v1873
  %v1875 = vpop.f32.mrf.mxu0
  %v1876 = vadd.f32 0.0, %v1875
  %1877 = vdwg.mxu0
  %v1878 = vadd.f32 %v1219, %v1800
  %v1879 = vadd.f32 %v1222, %v1804
  %v1880 = vadd.f32 %v1227, %v1810
  %v1881 = vadd.f32 %v1230, %v1814
  %v1882 = vadd.f32 %v1235, %v1820
  %v1883 = vadd.f32 %v1238, %v1824
  %v1884 = vadd.f32 %v1243, %v1830
  %v1885 = vadd.f32 %v1246, %v1834
  %v1886 = vadd.f32 %v1251, %v1840
  %v1887 = vadd.f32 %v1254, %v1844
  %v1888 = vadd.f32 %v1259, %v1850
  %v1889 = vadd.f32 %v1262, %v1854
  %v1890 = vadd.f32 %v1267, %v1860
  %v1891 = vadd.f32 %v1270, %v1864
  %v1892 = vadd.f32 %v1275, %v1870
  %v1893 = vadd.f32 %v1278, %v1874
  %v1894 = vld [vmem:[%s473] sm:$0xf]
  %v1895 = vld [vmem:[%s473 + $0x4] sm:$0x1]
  %v1896 = vld [vmem:[%s473 + $0x8] sm:$0xf]
  %v1897 = vld [vmem:[%s473 + $0xc] sm:$0x1]
  %v1898 = vld [vmem:[%s473 + $0x10] sm:$0xf]
  %v1899 = vld [vmem:[%s473 + $0x14] sm:$0x1]
  %v1900 = vld [vmem:[%s473 + $0x18] sm:$0xf]
  %v1901 = vld [vmem:[%s473 + $0x1c] sm:$0x1]
  %v1902 = vld [vmem:[%s473 + $0x20] sm:$0xf]
  %v1903 = vld [vmem:[%s473 + $0x24] sm:$0x1]
  %v1904 = vld [vmem:[%s473 + $0x28] sm:$0xf]
  %v1905 = vld [vmem:[%s473 + $0x2c] sm:$0x1]
  %v1906 = vld [vmem:[%s473 + $0x30] sm:$0xf]
  %v1907 = vld [vmem:[%s473 + $0x34] sm:$0x1]
  %v1908 = vld [vmem:[%s473 + $0x38] sm:$0xf]
  %v1909 = vld [vmem:[%s473 + $0x3c] sm:$0x1]
  %v1910 = vld [vmem:[%s473 + $0x50] sm:$0xf]
  %v1911 = vld [vmem:[%s473 + $0x54] sm:$0x1]
  %v1912 = vld [vmem:[%s473 + $0x58] sm:$0xf]
  %v1913 = vld [vmem:[%s473 + $0x5c] sm:$0x1]
  %v1914 = vld [vmem:[%s473 + $0x60] sm:$0xf]
  %v1915 = vld [vmem:[%s473 + $0x64] sm:$0x1]
  %v1916 = vld [vmem:[%s473 + $0x68] sm:$0xf]
  %v1917 = vld [vmem:[%s473 + $0x6c] sm:$0x1]
  %v1918 = vld [vmem:[%s473 + $0x70] sm:$0xf]
  %v1919 = vld [vmem:[%s473 + $0x74] sm:$0x1]
  %v1920 = vld [vmem:[%s473 + $0x78] sm:$0xf]
  %v1921 = vld [vmem:[%s473 + $0x7c] sm:$0x1]
  %v1922 = vld [vmem:[%s473 + $0x80] sm:$0xf]
  %v1923 = vld [vmem:[%s473 + $0x84] sm:$0x1]
  %v1924 = vld [vmem:[%s473 + $0x88] sm:$0xf]
  %v1925 = vld [vmem:[%s473 + $0x8c] sm:$0x1]
  %v1927 = vshrl.u32 %v1894, 16
  %v1929 = vrot.slane %v1927, 4
  %v1930 = vshll.u32 %v1894, 16
  %v1932 = vrot.slane %v1930, 5
  %v1933 = vor.u32 %v1929, %v1932
  %v1934 = vrot.slane %v1933, 4
  %v1936 = vshll.u32 %v1895, 16
  %v1938 = vrot.slane %v1936, 5
  %v1939 = vsel %vm622, %v1934, %v1938
  %v1941 = vshrl.u32 %v1896, 16
  %v1943 = vrot.slane %v1941, 4
  %v1944 = vshll.u32 %v1896, 16
  %v1946 = vrot.slane %v1944, 5
  %v1947 = vor.u32 %v1943, %v1946
  %v1948 = vrot.slane %v1947, 4
  %v1950 = vshll.u32 %v1897, 16
  %v1952 = vrot.slane %v1950, 5
  %v1953 = vsel %vm622, %v1948, %v1952
  %v1955 = vshrl.u32 %v1898, 16
  %v1957 = vrot.slane %v1955, 4
  %v1958 = vshll.u32 %v1898, 16
  %v1960 = vrot.slane %v1958, 5
  %v1961 = vor.u32 %v1957, %v1960
  %v1962 = vrot.slane %v1961, 4
  %v1964 = vshll.u32 %v1899, 16
  %v1966 = vrot.slane %v1964, 5
  %v1967 = vsel %vm622, %v1962, %v1966
  %v1969 = vshrl.u32 %v1900, 16
  %v1971 = vrot.slane %v1969, 4
  %v1972 = vshll.u32 %v1900, 16
  %v1974 = vrot.slane %v1972, 5
  %v1975 = vor.u32 %v1971, %v1974
  %v1976 = vrot.slane %v1975, 4
  %v1978 = vshll.u32 %v1901, 16
  %v1980 = vrot.slane %v1978, 5
  %v1981 = vsel %vm622, %v1976, %v1980
  %v1983 = vshrl.u32 %v1902, 16
  %v1985 = vrot.slane %v1983, 4
  %v1986 = vshll.u32 %v1902, 16
  %v1988 = vrot.slane %v1986, 5
  %v1989 = vor.u32 %v1985, %v1988
  %v1990 = vrot.slane %v1989, 4
  %v1992 = vshll.u32 %v1903, 16
  %v1994 = vrot.slane %v1992, 5
  %v1995 = vsel %vm622, %v1990, %v1994
  %v1997 = vshrl.u32 %v1904, 16
  %v1999 = vrot.slane %v1997, 4
  %v2000 = vshll.u32 %v1904, 16
  %v2002 = vrot.slane %v2000, 5
  %v2003 = vor.u32 %v1999, %v2002
  %v2004 = vrot.slane %v2003, 4
  %v2006 = vshll.u32 %v1905, 16
  %v2008 = vrot.slane %v2006, 5
  %v2009 = vsel %vm622, %v2004, %v2008
  %v2011 = vshrl.u32 %v1906, 16
  %v2013 = vrot.slane %v2011, 4
  %v2014 = vshll.u32 %v1906, 16
  %v2016 = vrot.slane %v2014, 5
  %v2017 = vor.u32 %v2013, %v2016
  %v2018 = vrot.slane %v2017, 4
  %v2020 = vshll.u32 %v1907, 16
  %v2022 = vrot.slane %v2020, 5
  %v2023 = vsel %vm622, %v2018, %v2022
  %v2025 = vshrl.u32 %v1908, 16
  %v2027 = vrot.slane %v2025, 4
  %v2028 = vshll.u32 %v1908, 16
  %v2030 = vrot.slane %v2028, 5
  %v2031 = vor.u32 %v2027, %v2030
  %v2032 = vrot.slane %v2031, 4
  %v2034 = vshll.u32 %v1909, 16
  %v2036 = vrot.slane %v2034, 5
  %v2037 = vsel %vm622, %v2032, %v2036
  %v2039 = vshrl.u32 %v1910, 16
  %v2041 = vrot.slane %v2039, 4
  %v2042 = vshll.u32 %v1910, 16
  %v2044 = vrot.slane %v2042, 5
  %v2045 = vor.u32 %v2041, %v2044
  %v2046 = vrot.slane %v2045, 4
  %v2048 = vshll.u32 %v1911, 16
  %v2050 = vrot.slane %v2048, 5
  %v2051 = vsel %vm622, %v2046, %v2050
  %v2053 = vshrl.u32 %v1912, 16
  %v2055 = vrot.slane %v2053, 4
  %v2056 = vshll.u32 %v1912, 16
  %v2058 = vrot.slane %v2056, 5
  %v2059 = vor.u32 %v2055, %v2058
  %v2060 = vrot.slane %v2059, 4
  %v2062 = vshll.u32 %v1913, 16
  %v2064 = vrot.slane %v2062, 5
  %v2065 = vsel %vm622, %v2060, %v2064
  %v2067 = vshrl.u32 %v1914, 16
  %v2069 = vrot.slane %v2067, 4
  %v2070 = vshll.u32 %v1914, 16
  %v2072 = vrot.slane %v2070, 5
  %v2073 = vor.u32 %v2069, %v2072
  %v2074 = vrot.slane %v2073, 4
  %v2076 = vshll.u32 %v1915, 16
  %v2078 = vrot.slane %v2076, 5
  %v2079 = vsel %vm622, %v2074, %v2078
  %v2081 = vshrl.u32 %v1916, 16
  %v2083 = vrot.slane %v2081, 4
  %v2084 = vshll.u32 %v1916, 16
  %v2086 = vrot.slane %v2084, 5
  %v2087 = vor.u32 %v2083, %v2086
  %v2088 = vrot.slane %v2087, 4
  %v2090 = vshll.u32 %v1917, 16
  %v2092 = vrot.slane %v2090, 5
  %v2093 = vsel %vm622, %v2088, %v2092
  %v2095 = vshrl.u32 %v1918, 16
  %v2097 = vrot.slane %v2095, 4
  %v2098 = vshll.u32 %v1918, 16
  %v2100 = vrot.slane %v2098, 5
  %v2101 = vor.u32 %v2097, %v2100
  %v2102 = vrot.slane %v2101, 4
  %v2104 = vshll.u32 %v1919, 16
  %v2106 = vrot.slane %v2104, 5
  %v2107 = vsel %vm622, %v2102, %v2106
  %v2109 = vshrl.u32 %v1920, 16
  %v2111 = vrot.slane %v2109, 4
  %v2112 = vshll.u32 %v1920, 16
  %v2114 = vrot.slane %v2112, 5
  %v2115 = vor.u32 %v2111, %v2114
  %v2116 = vrot.slane %v2115, 4
  %v2118 = vshll.u32 %v1921, 16
  %v2120 = vrot.slane %v2118, 5
  %v2121 = vsel %vm622, %v2116, %v2120
  %v2123 = vshrl.u32 %v1922, 16
  %v2125 = vrot.slane %v2123, 4
  %v2126 = vshll.u32 %v1922, 16
  %v2128 = vrot.slane %v2126, 5
  %v2129 = vor.u32 %v2125, %v2128
  %v2130 = vrot.slane %v2129, 4
  %v2132 = vshll.u32 %v1923, 16
  %v2134 = vrot.slane %v2132, 5
  %v2135 = vsel %vm622, %v2130, %v2134
  %v2137 = vshrl.u32 %v1924, 16
  %v2139 = vrot.slane %v2137, 4
  %v2140 = vshll.u32 %v1924, 16
  %v2142 = vrot.slane %v2140, 5
  %v2143 = vor.u32 %v2139, %v2142
  %v2144 = vrot.slane %v2143, 4
  %v2146 = vshll.u32 %v1925, 16
  %v2148 = vrot.slane %v2146, 5
  %v2149 = vsel %vm622, %v2144, %v2148
  %v2150 = vld [vmem:[%s3 + $0x18] sm:$0xff]
  %v2151 = vld [vmem:[%s3 + $0x20] sm:$0xff]
  %v2152 = vld [vmem:[%s3 + $0x58] sm:$0xff]
  %v2153 = vld [vmem:[%s3 + $0x60] sm:$0xff]
  %v2154 = vld [vmem:[%s3 + $0x98] sm:$0xff]
  %v2155 = vld [vmem:[%s3 + $0xa0] sm:$0xff]
  %v2156 = vld [vmem:[%s3 + $0xd8] sm:$0xff]
  %v2157 = vld [vmem:[%s3 + $0xe0] sm:$0xff]
  %v2158 = vld [vmem:[%s3 + $0x118] sm:$0xff]
  %v2159 = vld [vmem:[%s3 + $0x120] sm:$0xff]
  %v2160 = vld [vmem:[%s3 + $0x158] sm:$0xff]
  %v2161 = vld [vmem:[%s3 + $0x160] sm:$0xff]
  %v2162 = vld [vmem:[%s3 + $0x198] sm:$0xff]
  %v2163 = vld [vmem:[%s3 + $0x1a0] sm:$0xff]
  %v2164 = vld [vmem:[%s3 + $0x1d8] sm:$0xff]
  %v2165 = vld [vmem:[%s3 + $0x1e0] sm:$0xff]
  %v2166 = vld [vmem:[%s3 + $0x218] sm:$0xff]
  %v2167 = vld [vmem:[%s3 + $0x220] sm:$0xff]
  %v2168 = vld [vmem:[%s3 + $0x258] sm:$0xff]
  %v2169 = vld [vmem:[%s3 + $0x260] sm:$0xff]
  %v2170 = vld [vmem:[%s3 + $0x298] sm:$0xff]
  %v2171 = vld [vmem:[%s3 + $0x2a0] sm:$0xff]
  %v2172 = vld [vmem:[%s3 + $0x2d8] sm:$0xff]
  %v2173 = vld [vmem:[%s3 + $0x2e0] sm:$0xff]
  %v2174 = vld [vmem:[%s3 + $0x318] sm:$0xff]
  %v2175 = vld [vmem:[%s3 + $0x320] sm:$0xff]
  %v2176 = vld [vmem:[%s3 + $0x358] sm:$0xff]
  %v2177 = vld [vmem:[%s3 + $0x360] sm:$0xff]
  %v2178 = vld [vmem:[%s3 + $0x398] sm:$0xff]
  %v2179 = vld [vmem:[%s3 + $0x3a0] sm:$0xff]
  %v2180 = vld [vmem:[%s3 + $0x3d8] sm:$0xff]
  %v2181 = vld [vmem:[%s3 + $0x3e0] sm:$0xff]
  %v2182 = vunpack.c.l.b16 %v1939
  %v2183 = vunpack.c.l.b16 %v1953
  %v2184 = vunpack.c.l.b16 %v1967
  %v2185 = vunpack.c.l.b16 %v1981
  %v2186 = vunpack.c.l.b16 %v1995
  %v2187 = vunpack.c.l.b16 %v2009
  %v2188 = vunpack.c.l.b16 %v2023
  %v2189 = vunpack.c.l.b16 %v2037
  %v2190 = vunpack.c.l.b16 %v2051
  %v2191 = vunpack.c.l.b16 %v2065
  %v2192 = vunpack.c.l.b16 %v2079
  %v2193 = vunpack.c.l.b16 %v2093
  %v2194 = vunpack.c.l.b16 %v2107
  %v2195 = vunpack.c.l.b16 %v2121
  %v2196 = vunpack.c.l.b16 %v2135
  %v2197 = vunpack.c.l.b16 %v2149
  %v2198 = vpack.c.b16 %v2183, %v2182
  %v2199 = vpack.c.b16 %v2185, %v2184
  %v2200 = vpack.c.b16 %v2187, %v2186
  %v2201 = vpack.c.b16 %v2189, %v2188
  %v2202 = vpack.c.b16 %v2191, %v2190
  %v2203 = vpack.c.b16 %v2193, %v2192
  %v2204 = vpack.c.b16 %v2195, %v2194
  %v2205 = vpack.c.b16 %v2197, %v2196
  %v2246 = vunpack.c.l.b16 %v2150
  %v2247 = vunpack.c.h.b16 %v2150
  %v2248 = vunpack.c.l.b16 %v2151
  %v2249 = vunpack.c.h.b16 %v2151
  %v2250 = vunpack.c.l.b16 %v2152
  %v2251 = vunpack.c.h.b16 %v2152
  %v2252 = vunpack.c.l.b16 %v2153
  %v2253 = vunpack.c.h.b16 %v2153
  %v2254 = vunpack.c.l.b16 %v2154
  %v2255 = vunpack.c.h.b16 %v2154
  %v2256 = vunpack.c.l.b16 %v2155
  %v2257 = vunpack.c.h.b16 %v2155
  %v2258 = vunpack.c.l.b16 %v2156
  %v2259 = vunpack.c.h.b16 %v2156
  %v2260 = vunpack.c.l.b16 %v2157
  %v2261 = vunpack.c.h.b16 %v2157
  %v2262 = vunpack.c.l.b16 %v2158
  %v2263 = vunpack.c.h.b16 %v2158
  %v2264 = vunpack.c.l.b16 %v2159
  %v2265 = vunpack.c.h.b16 %v2159
  %v2266 = vunpack.c.l.b16 %v2160
  %v2267 = vunpack.c.h.b16 %v2160
  %v2268 = vunpack.c.l.b16 %v2161
  %v2269 = vunpack.c.h.b16 %v2161
  %v2270 = vunpack.c.l.b16 %v2162
  %v2271 = vunpack.c.h.b16 %v2162
  %v2272 = vunpack.c.l.b16 %v2163
  %v2273 = vunpack.c.h.b16 %v2163
  %v2274 = vunpack.c.l.b16 %v2164
  %v2275 = vunpack.c.h.b16 %v2164
  %v2276 = vunpack.c.l.b16 %v2165
  %v2277 = vunpack.c.h.b16 %v2165
  %v2278 = vunpack.c.l.b16 %v2166
  %v2279 = vunpack.c.h.b16 %v2166
  %v2280 = vunpack.c.l.b16 %v2167
  %v2281 = vunpack.c.h.b16 %v2167
  %v2282 = vunpack.c.l.b16 %v2168
  %v2283 = vunpack.c.h.b16 %v2168
  %v2284 = vunpack.c.l.b16 %v2169
  %v2285 = vunpack.c.h.b16 %v2169
  %v2286 = vunpack.c.l.b16 %v2170
  %v2287 = vunpack.c.h.b16 %v2170
  %v2288 = vunpack.c.l.b16 %v2171
  %v2289 = vunpack.c.h.b16 %v2171
  %v2290 = vunpack.c.l.b16 %v2172
  %v2291 = vunpack.c.h.b16 %v2172
  %v2292 = vunpack.c.l.b16 %v2173
  %v2293 = vunpack.c.h.b16 %v2173
  %v2294 = vunpack.c.l.b16 %v2174
  %v2295 = vunpack.c.h.b16 %v2174
  %v2296 = vunpack.c.l.b16 %v2175
  %v2297 = vunpack.c.h.b16 %v2175
  %v2298 = vunpack.c.l.b16 %v2176
  %v2299 = vunpack.c.h.b16 %v2176
  %v2300 = vunpack.c.l.b16 %v2177
  %v2301 = vunpack.c.h.b16 %v2177
  %v2302 = vunpack.c.l.b16 %v2178
  %v2303 = vunpack.c.h.b16 %v2178
  %v2304 = vunpack.c.l.b16 %v2179
  %v2305 = vunpack.c.h.b16 %v2179
  %v2306 = vunpack.c.l.b16 %v2180
  %v2307 = vunpack.c.h.b16 %v2180
  %v2308 = vunpack.c.l.b16 %v2181
  %v2309 = vunpack.c.h.b16 %v2181
  %v2310 = vpack.c.b16 %v2250, %v2246
  %v2311 = vpack.c.b16 %v2251, %v2247
  %v2312 = vpack.c.b16 %v2252, %v2248
  %v2313 = vpack.c.b16 %v2253, %v2249
  %v2314 = vpack.c.b16 %v2258, %v2254
  %v2315 = vpack.c.b16 %v2259, %v2255
  %v2316 = vpack.c.b16 %v2260, %v2256
  %v2317 = vpack.c.b16 %v2261, %v2257
  %v2318 = vpack.c.b16 %v2266, %v2262
  %v2319 = vpack.c.b16 %v2267, %v2263
  %v2320 = vpack.c.b16 %v2268, %v2264
  %v2321 = vpack.c.b16 %v2269, %v2265
  %v2322 = vpack.c.b16 %v2274, %v2270
  %v2323 = vpack.c.b16 %v2275, %v2271
  %v2324 = vpack.c.b16 %v2276, %v2272
  %v2325 = vpack.c.b16 %v2277, %v2273
  %v2326 = vpack.c.b16 %v2282, %v2278
  %v2327 = vpack.c.b16 %v2283, %v2279
  %v2328 = vpack.c.b16 %v2284, %v2280
  %v2329 = vpack.c.b16 %v2285, %v2281
  %v2330 = vpack.c.b16 %v2290, %v2286
  %v2331 = vpack.c.b16 %v2291, %v2287
  %v2332 = vpack.c.b16 %v2292, %v2288
  %v2333 = vpack.c.b16 %v2293, %v2289
  %v2334 = vpack.c.b16 %v2298, %v2294
  %v2335 = vpack.c.b16 %v2299, %v2295
  %v2336 = vpack.c.b16 %v2300, %v2296
  %v2337 = vpack.c.b16 %v2301, %v2297
  %v2338 = vpack.c.b16 %v2306, %v2302
  %v2339 = vpack.c.b16 %v2307, %v2303
  %v2340 = vpack.c.b16 %v2308, %v2304
  %v2341 = vpack.c.b16 %v2309, %v2305
  %2374 = vmatprep.subr.bf16.mxu0 %v2339
  %2375 = vmatpush1.bf16.msra.mxu0 %v2338
  %2376 = vmatprep.subr.bf16.mxu0 %v2335
  %2377 = vmatpush1.bf16.msra.mxu0 %v2334
  %2378 = vmatprep.subr.bf16.mxu0 %v2331
  %2379 = vmatpush1.bf16.msra.mxu0 %v2330
  %2380 = vmatprep.subr.bf16.mxu0 %v2327
  %2381 = vmatpush1.bf16.msra.mxu0 %v2326
  %2382 = vmatprep.subr.bf16.mxu0 %v2323
  %2383 = vmatpush1.bf16.msra.mxu0 %v2322
  %2384 = vmatprep.subr.bf16.mxu0 %v2319
  %2385 = vmatpush1.bf16.msra.mxu0 %v2318
  %2386 = vmatprep.subr.bf16.mxu0 %v2315
  %2387 = vmatpush1.bf16.msra.mxu0 %v2314
  %2388 = vmatprep.subr.bf16.mxu0 %v2311
  %2389 = vmatpush1.bf16.msra.mxu0 %v2310
  %2390 = vmatprep.subr.bf16.mxu0 0
  %2391 = vmatpush2.bf16.msra.mxu0 0
  %2392 = vmatprep.subr.bf16.mxu0 0
  %2393 = vmatpush2.bf16.msra.mxu0 0
  %2394 = vmatprep.subr.bf16.mxu0 0
  %2395 = vmatpush2.bf16.msra.mxu0 0
  %2396 = vmatprep.subr.bf16.mxu0 0
  %2397 = vmatpush2.bf16.msra.mxu0 0
  %2398 = vmatprep.subr.bf16.mxu0 0
  %2399 = vmatpush2.bf16.msra.mxu0 0
  %2400 = vmatprep.subr.bf16.mxu0 0
  %2401 = vmatpush2.bf16.msra.mxu0 0
  %2402 = vmatprep.subr.bf16.mxu0 0
  %2403 = vmatpush2.bf16.msra.mxu0 0
  %2404 = vmatprep.subr.bf16.mxu0 0
  %2405 = vmatpush2.bf16.msra.mxu0 0
  %2406 = vmatprep.mubr.bf16.mxu0 0
  %2407 = vmatmul.mubr.bf16.gmra.mxu0 %v2198
  %v2408 = vpop.f32.mrf.mxu0
  %v2409 = vadd.f32 0.0, %v2408
  %v2410 = vpop.f32.mrf.mxu0
  %v2411 = vadd.f32 0.0, %v2410
  %v2412 = vpop.f32.mrf.mxu0
  %v2413 = vadd.f32 0.0, %v2412
  %v2414 = vpop.f32.mrf.mxu0
  %v2415 = vadd.f32 0.0, %v2414
  %2416 = vmatprep.mubr.bf16.mxu0 0
  %2417 = vmatmul.mubr.bf16.gmra.mxu0 %v2199
  %v2418 = vpop.f32.mrf.mxu0
  %v2419 = vadd.f32 0.0, %v2418
  %v2420 = vpop.f32.mrf.mxu0
  %v2421 = vadd.f32 0.0, %v2420
  %v2422 = vpop.f32.mrf.mxu0
  %v2423 = vadd.f32 0.0, %v2422
  %v2424 = vpop.f32.mrf.mxu0
  %v2425 = vadd.f32 0.0, %v2424
  %2426 = vmatprep.mubr.bf16.mxu0 0
  %2427 = vmatmul.mubr.bf16.gmra.mxu0 %v2200
  %v2428 = vpop.f32.mrf.mxu0
  %v2429 = vadd.f32 0.0, %v2428
  %v2430 = vpop.f32.mrf.mxu0
  %v2431 = vadd.f32 0.0, %v2430
  %v2432 = vpop.f32.mrf.mxu0
  %v2433 = vadd.f32 0.0, %v2432
  %v2434 = vpop.f32.mrf.mxu0
  %v2435 = vadd.f32 0.0, %v2434
  %2436 = vmatprep.mubr.bf16.mxu0 0
  %2437 = vmatmul.mubr.bf16.gmra.mxu0 %v2201
  %v2438 = vpop.f32.mrf.mxu0
  %v2439 = vadd.f32 0.0, %v2438
  %v2440 = vpop.f32.mrf.mxu0
  %v2441 = vadd.f32 0.0, %v2440
  %v2442 = vpop.f32.mrf.mxu0
  %v2443 = vadd.f32 0.0, %v2442
  %v2444 = vpop.f32.mrf.mxu0
  %v2445 = vadd.f32 0.0, %v2444
  %2446 = vmatprep.mubr.bf16.mxu0 0
  %2447 = vmatmul.mubr.bf16.gmra.mxu0 %v2202
  %v2448 = vpop.f32.mrf.mxu0
  %v2449 = vadd.f32 0.0, %v2448
  %v2450 = vpop.f32.mrf.mxu0
  %v2451 = vadd.f32 0.0, %v2450
  %v2452 = vpop.f32.mrf.mxu0
  %v2453 = vadd.f32 0.0, %v2452
  %v2454 = vpop.f32.mrf.mxu0
  %v2455 = vadd.f32 0.0, %v2454
  %2456 = vmatprep.mubr.bf16.mxu0 0
  %2457 = vmatmul.mubr.bf16.gmra.mxu0 %v2203
  %v2458 = vpop.f32.mrf.mxu0
  %v2459 = vadd.f32 0.0, %v2458
  %v2460 = vpop.f32.mrf.mxu0
  %v2461 = vadd.f32 0.0, %v2460
  %v2462 = vpop.f32.mrf.mxu0
  %v2463 = vadd.f32 0.0, %v2462
  %v2464 = vpop.f32.mrf.mxu0
  %v2465 = vadd.f32 0.0, %v2464
  %2466 = vmatprep.mubr.bf16.mxu0 0
  %2467 = vmatmul.mubr.bf16.gmra.mxu0 %v2204
  %v2468 = vpop.f32.mrf.mxu0
  %v2469 = vadd.f32 0.0, %v2468
  %v2470 = vpop.f32.mrf.mxu0
  %v2471 = vadd.f32 0.0, %v2470
  %v2472 = vpop.f32.mrf.mxu0
  %v2473 = vadd.f32 0.0, %v2472
  %v2474 = vpop.f32.mrf.mxu0
  %v2475 = vadd.f32 0.0, %v2474
  %2476 = vmatprep.mubr.bf16.mxu0 0
  %2477 = vmatmul.mubr.bf16.gmra.mxu0 %v2205
  %v2478 = vpop.f32.mrf.mxu0
  %v2479 = vadd.f32 0.0, %v2478
  %v2480 = vpop.f32.mrf.mxu0
  %v2481 = vadd.f32 0.0, %v2480
  %v2482 = vpop.f32.mrf.mxu0
  %v2483 = vadd.f32 0.0, %v2482
  %v2484 = vpop.f32.mrf.mxu0
  %v2485 = vadd.f32 0.0, %v2484
  %2486 = vdwg.mxu0
  %2487 = vmatprep.subr.bf16.mxu0 %v2341
  %2488 = vmatpush1.bf16.msra.mxu0 %v2340
  %2489 = vmatprep.subr.bf16.mxu0 %v2337
  %2490 = vmatpush1.bf16.msra.mxu0 %v2336
  %2491 = vmatprep.subr.bf16.mxu0 %v2333
  %2492 = vmatpush1.bf16.msra.mxu0 %v2332
  %2493 = vmatprep.subr.bf16.mxu0 %v2329
  %2494 = vmatpush1.bf16.msra.mxu0 %v2328
  %2495 = vmatprep.subr.bf16.mxu0 %v2325
  %2496 = vmatpush1.bf16.msra.mxu0 %v2324
  %2497 = vmatprep.subr.bf16.mxu0 %v2321
  %2498 = vmatpush1.bf16.msra.mxu0 %v2320
  %2499 = vmatprep.subr.bf16.mxu0 %v2317
  %2500 = vmatpush1.bf16.msra.mxu0 %v2316
  %2501 = vmatprep.subr.bf16.mxu0 %v2313
  %2502 = vmatpush1.bf16.msra.mxu0 %v2312
  %2503 = vmatprep.subr.bf16.mxu0 0
  %2504 = vmatpush2.bf16.msra.mxu0 0
  %2505 = vmatprep.subr.bf16.mxu0 0
  %2506 = vmatpush2.bf16.msra.mxu0 0
  %2507 = vmatprep.subr.bf16.mxu0 0
  %2508 = vmatpush2.bf16.msra.mxu0 0
  %2509 = vmatprep.subr.bf16.mxu0 0
  %2510 = vmatpush2.bf16.msra.mxu0 0
  %2511 = vmatprep.subr.bf16.mxu0 0
  %2512 = vmatpush2.bf16.msra.mxu0 0
  %2513 = vmatprep.subr.bf16.mxu0 0
  %2514 = vmatpush2.bf16.msra.mxu0 0
  %2515 = vmatprep.subr.bf16.mxu0 0
  %2516 = vmatpush2.bf16.msra.mxu0 0
  %2517 = vmatprep.subr.bf16.mxu0 0
  %2518 = vmatpush2.bf16.msra.mxu0 0
  %2519 = vmatprep.mubr.bf16.mxu0 0
  %2520 = vmatmul.mubr.bf16.gmra.mxu0 %v2198
  %v2521 = vpop.f32.mrf.mxu0
  %v2522 = vadd.f32 0.0, %v2521
  %v2523 = vpop.f32.mrf.mxu0
  %v2524 = vadd.f32 0.0, %v2523
  %v2525 = vpop.f32.mrf.mxu0
  %v2526 = vadd.f32 0.0, %v2525
  %v2527 = vpop.f32.mrf.mxu0
  %v2528 = vadd.f32 0.0, %v2527
  %2529 = vmatprep.mubr.bf16.mxu0 0
  %2530 = vmatmul.mubr.bf16.gmra.mxu0 %v2199
  %v2531 = vpop.f32.mrf.mxu0
  %v2532 = vadd.f32 0.0, %v2531
  %v2533 = vpop.f32.mrf.mxu0
  %v2534 = vadd.f32 0.0, %v2533
  %v2535 = vpop.f32.mrf.mxu0
  %v2536 = vadd.f32 0.0, %v2535
  %v2537 = vpop.f32.mrf.mxu0
  %v2538 = vadd.f32 0.0, %v2537
  %2539 = vmatprep.mubr.bf16.mxu0 0
  %2540 = vmatmul.mubr.bf16.gmra.mxu0 %v2200
  %v2541 = vpop.f32.mrf.mxu0
  %v2542 = vadd.f32 0.0, %v2541
  %v2543 = vpop.f32.mrf.mxu0
  %v2544 = vadd.f32 0.0, %v2543
  %v2545 = vpop.f32.mrf.mxu0
  %v2546 = vadd.f32 0.0, %v2545
  %v2547 = vpop.f32.mrf.mxu0
  %v2548 = vadd.f32 0.0, %v2547
  %2549 = vmatprep.mubr.bf16.mxu0 0
  %2550 = vmatmul.mubr.bf16.gmra.mxu0 %v2201
  %v2551 = vpop.f32.mrf.mxu0
  %v2552 = vadd.f32 0.0, %v2551
  %v2553 = vpop.f32.mrf.mxu0
  %v2554 = vadd.f32 0.0, %v2553
  %v2555 = vpop.f32.mrf.mxu0
  %v2556 = vadd.f32 0.0, %v2555
  %v2557 = vpop.f32.mrf.mxu0
  %v2558 = vadd.f32 0.0, %v2557
  %2559 = vmatprep.mubr.bf16.mxu0 0
  %2560 = vmatmul.mubr.bf16.gmra.mxu0 %v2202
  %v2561 = vpop.f32.mrf.mxu0
  %v2562 = vadd.f32 0.0, %v2561
  %v2563 = vpop.f32.mrf.mxu0
  %v2564 = vadd.f32 0.0, %v2563
  %v2565 = vpop.f32.mrf.mxu0
  %v2566 = vadd.f32 0.0, %v2565
  %v2567 = vpop.f32.mrf.mxu0
  %v2568 = vadd.f32 0.0, %v2567
  %2569 = vmatprep.mubr.bf16.mxu0 0
  %2570 = vmatmul.mubr.bf16.gmra.mxu0 %v2203
  %v2571 = vpop.f32.mrf.mxu0
  %v2572 = vadd.f32 0.0, %v2571
  %v2573 = vpop.f32.mrf.mxu0
  %v2574 = vadd.f32 0.0, %v2573
  %v2575 = vpop.f32.mrf.mxu0
  %v2576 = vadd.f32 0.0, %v2575
  %v2577 = vpop.f32.mrf.mxu0
  %v2578 = vadd.f32 0.0, %v2577
  %2579 = vmatprep.mubr.bf16.mxu0 0
  %2580 = vmatmul.mubr.bf16.gmra.mxu0 %v2204
  %v2581 = vpop.f32.mrf.mxu0
  %v2582 = vadd.f32 0.0, %v2581
  %v2583 = vpop.f32.mrf.mxu0
  %v2584 = vadd.f32 0.0, %v2583
  %v2585 = vpop.f32.mrf.mxu0
  %v2586 = vadd.f32 0.0, %v2585
  %v2587 = vpop.f32.mrf.mxu0
  %v2588 = vadd.f32 0.0, %v2587
  %2589 = vmatprep.mubr.bf16.mxu0 0
  %2590 = vmatmul.mubr.bf16.gmra.mxu0 %v2205
  %v2591 = vpop.f32.mrf.mxu0
  %v2592 = vadd.f32 0.0, %v2591
  %v2593 = vpop.f32.mrf.mxu0
  %v2594 = vadd.f32 0.0, %v2593
  %v2595 = vpop.f32.mrf.mxu0
  %v2596 = vadd.f32 0.0, %v2595
  %v2597 = vpop.f32.mrf.mxu0
  %v2598 = vadd.f32 0.0, %v2597
  %2599 = vdwg.mxu0
  %v2600 = vadd.f32 %v1878, %v2409
  %v2601 = vadd.f32 %v1879, %v2413
  %v2602 = vadd.f32 %v1880, %v2419
  %v2603 = vadd.f32 %v1881, %v2423
  %v2604 = vadd.f32 %v1882, %v2429
  %v2605 = vadd.f32 %v1883, %v2433
  %v2606 = vadd.f32 %v1884, %v2439
  %v2607 = vadd.f32 %v1885, %v2443
  %v2608 = vadd.f32 %v1886, %v2449
  %v2609 = vadd.f32 %v1887, %v2453
  %v2610 = vadd.f32 %v1888, %v2459
  %v2611 = vadd.f32 %v1889, %v2463
  %v2612 = vadd.f32 %v1890, %v2469
  %v2613 = vadd.f32 %v1891, %v2473
  %v2614 = vadd.f32 %v1892, %v2479
  %v2615 = vadd.f32 %v1893, %v2483
  %v2616 = vadd.f32 %v1589, %v2411
  %v2617 = vadd.f32 %v1590, %v2415
  %v2618 = vadd.f32 %v1591, %v2421
  %v2619 = vadd.f32 %v1592, %v2425
  %v2620 = vadd.f32 %v1593, %v2431
  %v2621 = vadd.f32 %v1594, %v2435
  %v2622 = vadd.f32 %v1595, %v2441
  %v2623 = vadd.f32 %v1596, %v2445
  %v2624 = vadd.f32 %v1597, %v2451
  %v2625 = vadd.f32 %v1598, %v2455
  %v2626 = vadd.f32 %v1599, %v2461
  %v2627 = vadd.f32 %v1600, %v2465
  %v2628 = vadd.f32 %v1601, %v2471
  %v2629 = vadd.f32 %v1602, %v2475
  %v2630 = vadd.f32 %v1603, %v2481
  %v2631 = vadd.f32 %v1604, %v2485
  %v2632 = vadd.f32 %v1802, %v2522
  %v2633 = vadd.f32 %v1806, %v2526
  %v2634 = vadd.f32 %v1812, %v2532
  %v2635 = vadd.f32 %v1816, %v2536
  %v2636 = vadd.f32 %v1822, %v2542
  %v2637 = vadd.f32 %v1826, %v2546
  %v2638 = vadd.f32 %v1832, %v2552
  %v2639 = vadd.f32 %v1836, %v2556
  %v2640 = vadd.f32 %v1842, %v2562
  %v2641 = vadd.f32 %v1846, %v2566
  %v2642 = vadd.f32 %v1852, %v2572
  %v2643 = vadd.f32 %v1856, %v2576
  %v2644 = vadd.f32 %v1862, %v2582
  %v2645 = vadd.f32 %v1866, %v2586
  %v2646 = vadd.f32 %v1872, %v2592
  %v2647 = vadd.f32 %v1876, %v2596
  %v2648 = vld [vmem:[%s473] sm:$0xe]
  %v2649 = vld [vmem:[%s473 + $0x8] sm:$0xe]
  %v2650 = vld [vmem:[%s473 + $0x10] sm:$0xe]
  %v2651 = vld [vmem:[%s473 + $0x18] sm:$0xe]
  %v2652 = vld [vmem:[%s473 + $0x20] sm:$0xe]
  %v2653 = vld [vmem:[%s473 + $0x28] sm:$0xe]
  %v2654 = vld [vmem:[%s473 + $0x30] sm:$0xe]
  %v2655 = vld [vmem:[%s473 + $0x38] sm:$0xe]
  %v2656 = vld [vmem:[%s473 + $0x50] sm:$0xe]
  %v2657 = vld [vmem:[%s473 + $0x58] sm:$0xe]
  %v2658 = vld [vmem:[%s473 + $0x60] sm:$0xe]
  %v2659 = vld [vmem:[%s473 + $0x68] sm:$0xe]
  %v2660 = vld [vmem:[%s473 + $0x70] sm:$0xe]
  %v2661 = vld [vmem:[%s473 + $0x78] sm:$0xe]
  %v2662 = vld [vmem:[%s473 + $0x80] sm:$0xe]
  %v2663 = vld [vmem:[%s473 + $0x88] sm:$0xe]
  %v2696 = vrot.slane %v2648, 5
  %v2697 = vrot.slane %v2696, 4
  %v2698 = vrot.slane %v1895, 5
  %v2699 = vsel %vm1331, %v2697, %v2698
  %v2700 = vrot.slane %v2649, 5
  %v2701 = vrot.slane %v2700, 4
  %v2702 = vrot.slane %v1897, 5
  %v2703 = vsel %vm1331, %v2701, %v2702
  %v2704 = vrot.slane %v2650, 5
  %v2705 = vrot.slane %v2704, 4
  %v2706 = vrot.slane %v1899, 5
  %v2707 = vsel %vm1331, %v2705, %v2706
  %v2708 = vrot.slane %v2651, 5
  %v2709 = vrot.slane %v2708, 4
  %v2710 = vrot.slane %v1901, 5
  %v2711 = vsel %vm1331, %v2709, %v2710
  %v2712 = vrot.slane %v2652, 5
  %v2713 = vrot.slane %v2712, 4
  %v2714 = vrot.slane %v1903, 5
  %v2715 = vsel %vm1331, %v2713, %v2714
  %v2716 = vrot.slane %v2653, 5
  %v2717 = vrot.slane %v2716, 4
  %v2718 = vrot.slane %v1905, 5
  %v2719 = vsel %vm1331, %v2717, %v2718
  %v2720 = vrot.slane %v2654, 5
  %v2721 = vrot.slane %v2720, 4
  %v2722 = vrot.slane %v1907, 5
  %v2723 = vsel %vm1331, %v2721, %v2722
  %v2724 = vrot.slane %v2655, 5
  %v2725 = vrot.slane %v2724, 4
  %v2726 = vrot.slane %v1909, 5
  %v2727 = vsel %vm1331, %v2725, %v2726
  %v2728 = vrot.slane %v2656, 5
  %v2729 = vrot.slane %v2728, 4
  %v2730 = vrot.slane %v1911, 5
  %v2731 = vsel %vm1331, %v2729, %v2730
  %v2732 = vrot.slane %v2657, 5
  %v2733 = vrot.slane %v2732, 4
  %v2734 = vrot.slane %v1913, 5
  %v2735 = vsel %vm1331, %v2733, %v2734
  %v2736 = vrot.slane %v2658, 5
  %v2737 = vrot.slane %v2736, 4
  %v2738 = vrot.slane %v1915, 5
  %v2739 = vsel %vm1331, %v2737, %v2738
  %v2740 = vrot.slane %v2659, 5
  %v2741 = vrot.slane %v2740, 4
  %v2742 = vrot.slane %v1917, 5
  %v2743 = vsel %vm1331, %v2741, %v2742
  %v2744 = vrot.slane %v2660, 5
  %v2745 = vrot.slane %v2744, 4
  %v2746 = vrot.slane %v1919, 5
  %v2747 = vsel %vm1331, %v2745, %v2746
  %v2748 = vrot.slane %v2661, 5
  %v2749 = vrot.slane %v2748, 4
  %v2750 = vrot.slane %v1921, 5
  %v2751 = vsel %vm1331, %v2749, %v2750
  %v2752 = vrot.slane %v2662, 5
  %v2753 = vrot.slane %v2752, 4
  %v2754 = vrot.slane %v1923, 5
  %v2755 = vsel %vm1331, %v2753, %v2754
  %v2756 = vrot.slane %v2663, 5
  %v2757 = vrot.slane %v2756, 4
  %v2758 = vrot.slane %v1925, 5
  %v2759 = vsel %vm1331, %v2757, %v2758
  %v2760 = vld [vmem:[%s3 + $0x28] sm:$0xff]
  %v2761 = vld [vmem:[%s3 + $0x68] sm:$0xff]
  %v2762 = vld [vmem:[%s3 + $0xa8] sm:$0xff]
  %v2763 = vld [vmem:[%s3 + $0xe8] sm:$0xff]
  %v2764 = vld [vmem:[%s3 + $0x128] sm:$0xff]
  %v2765 = vld [vmem:[%s3 + $0x168] sm:$0xff]
  %v2766 = vld [vmem:[%s3 + $0x1a8] sm:$0xff]
  %v2767 = vld [vmem:[%s3 + $0x1e8] sm:$0xff]
  %v2768 = vld [vmem:[%s3 + $0x228] sm:$0xff]
  %v2769 = vld [vmem:[%s3 + $0x268] sm:$0xff]
  %v2770 = vld [vmem:[%s3 + $0x2a8] sm:$0xff]
  %v2771 = vld [vmem:[%s3 + $0x2e8] sm:$0xff]
  %v2772 = vld [vmem:[%s3 + $0x328] sm:$0xff]
  %v2773 = vld [vmem:[%s3 + $0x368] sm:$0xff]
  %v2774 = vld [vmem:[%s3 + $0x3a8] sm:$0xff]
  %v2775 = vld [vmem:[%s3 + $0x3e8] sm:$0xff]
  %v2776 = vunpack.c.l.b16 %v2699
  %v2777 = vunpack.c.l.b16 %v2703
  %v2778 = vunpack.c.l.b16 %v2707
  %v2779 = vunpack.c.l.b16 %v2711
  %v2780 = vunpack.c.l.b16 %v2715
  %v2781 = vunpack.c.l.b16 %v2719
  %v2782 = vunpack.c.l.b16 %v2723
  %v2783 = vunpack.c.l.b16 %v2727
  %v2784 = vunpack.c.l.b16 %v2731
  %v2785 = vunpack.c.l.b16 %v2735
  %v2786 = vunpack.c.l.b16 %v2739
  %v2787 = vunpack.c.l.b16 %v2743
  %v2788 = vunpack.c.l.b16 %v2747
  %v2789 = vunpack.c.l.b16 %v2751
  %v2790 = vunpack.c.l.b16 %v2755
  %v2791 = vunpack.c.l.b16 %v2759
  %v2792 = vpack.c.b16 %v2777, %v2776
  %v2793 = vpack.c.b16 %v2779, %v2778
  %v2794 = vpack.c.b16 %v2781, %v2780
  %v2795 = vpack.c.b16 %v2783, %v2782
  %v2796 = vpack.c.b16 %v2785, %v2784
  %v2797 = vpack.c.b16 %v2787, %v2786
  %v2798 = vpack.c.b16 %v2789, %v2788
  %v2799 = vpack.c.b16 %v2791, %v2790
  %v2824 = vunpack.c.l.b16 %v2760
  %v2825 = vunpack.c.h.b16 %v2760
  %v2826 = vunpack.c.l.b16 %v2761
  %v2827 = vunpack.c.h.b16 %v2761
  %v2828 = vunpack.c.l.b16 %v2762
  %v2829 = vunpack.c.h.b16 %v2762
  %v2830 = vunpack.c.l.b16 %v2763
  %v2831 = vunpack.c.h.b16 %v2763
  %v2832 = vunpack.c.l.b16 %v2764
  %v2833 = vunpack.c.h.b16 %v2764
  %v2834 = vunpack.c.l.b16 %v2765
  %v2835 = vunpack.c.h.b16 %v2765
  %v2836 = vunpack.c.l.b16 %v2766
  %v2837 = vunpack.c.h.b16 %v2766
  %v2838 = vunpack.c.l.b16 %v2767
  %v2839 = vunpack.c.h.b16 %v2767
  %v2840 = vunpack.c.l.b16 %v2768
  %v2841 = vunpack.c.h.b16 %v2768
  %v2842 = vunpack.c.l.b16 %v2769
  %v2843 = vunpack.c.h.b16 %v2769
  %v2844 = vunpack.c.l.b16 %v2770
  %v2845 = vunpack.c.h.b16 %v2770
  %v2846 = vunpack.c.l.b16 %v2771
  %v2847 = vunpack.c.h.b16 %v2771
  %v2848 = vunpack.c.l.b16 %v2772
  %v2849 = vunpack.c.h.b16 %v2772
  %v2850 = vunpack.c.l.b16 %v2773
  %v2851 = vunpack.c.h.b16 %v2773
  %v2852 = vunpack.c.l.b16 %v2774
  %v2853 = vunpack.c.h.b16 %v2774
  %v2854 = vunpack.c.l.b16 %v2775
  %v2855 = vunpack.c.h.b16 %v2775
  %v2856 = vpack.c.b16 %v2826, %v2824
  %v2857 = vpack.c.b16 %v2827, %v2825
  %v2858 = vpack.c.b16 %v2830, %v2828
  %v2859 = vpack.c.b16 %v2831, %v2829
  %v2860 = vpack.c.b16 %v2834, %v2832
  %v2861 = vpack.c.b16 %v2835, %v2833
  %v2862 = vpack.c.b16 %v2838, %v2836
  %v2863 = vpack.c.b16 %v2839, %v2837
  %v2864 = vpack.c.b16 %v2842, %v2840
  %v2865 = vpack.c.b16 %v2843, %v2841
  %v2866 = vpack.c.b16 %v2846, %v2844
  %v2867 = vpack.c.b16 %v2847, %v2845
  %v2868 = vpack.c.b16 %v2850, %v2848
  %v2869 = vpack.c.b16 %v2851, %v2849
  %v2870 = vpack.c.b16 %v2854, %v2852
  %v2871 = vpack.c.b16 %v2855, %v2853
  %2888 = vmatprep.subr.bf16.mxu0 %v2871
  %2889 = vmatpush1.bf16.msra.mxu0 %v2870
  %2890 = vmatprep.subr.bf16.mxu0 %v2869
  %2891 = vmatpush1.bf16.msra.mxu0 %v2868
  %2892 = vmatprep.subr.bf16.mxu0 %v2867
  %2893 = vmatpush1.bf16.msra.mxu0 %v2866
  %2894 = vmatprep.subr.bf16.mxu0 %v2865
  %2895 = vmatpush1.bf16.msra.mxu0 %v2864
  %2896 = vmatprep.subr.bf16.mxu0 %v2863
  %2897 = vmatpush1.bf16.msra.mxu0 %v2862
  %2898 = vmatprep.subr.bf16.mxu0 %v2861
  %2899 = vmatpush1.bf16.msra.mxu0 %v2860
  %2900 = vmatprep.subr.bf16.mxu0 %v2859
  %2901 = vmatpush1.bf16.msra.mxu0 %v2858
  %2902 = vmatprep.subr.bf16.mxu0 %v2857
  %2903 = vmatpush1.bf16.msra.mxu0 %v2856
  %2904 = vmatprep.subr.bf16.mxu0 0
  %2905 = vmatpush2.bf16.msra.mxu0 0
  %2906 = vmatprep.subr.bf16.mxu0 0
  %2907 = vmatpush2.bf16.msra.mxu0 0
  %2908 = vmatprep.subr.bf16.mxu0 0
  %2909 = vmatpush2.bf16.msra.mxu0 0
  %2910 = vmatprep.subr.bf16.mxu0 0
  %2911 = vmatpush2.bf16.msra.mxu0 0
  %2912 = vmatprep.subr.bf16.mxu0 0
  %2913 = vmatpush2.bf16.msra.mxu0 0
  %2914 = vmatprep.subr.bf16.mxu0 0
  %2915 = vmatpush2.bf16.msra.mxu0 0
  %2916 = vmatprep.subr.bf16.mxu0 0
  %2917 = vmatpush2.bf16.msra.mxu0 0
  %2918 = vmatprep.subr.bf16.mxu0 0
  %2919 = vmatpush2.bf16.msra.mxu0 0
  %2920 = vmatprep.mubr.bf16.mxu0 0
  %2921 = vmatmul.mubr.bf16.gmra.mxu0 %v2792
  %v2922 = vpop.f32.mrf.mxu0
  %v2923 = vadd.f32 0.0, %v2922
  %v2924 = vpop.f32.mrf.mxu0
  %v2925 = vadd.f32 0.0, %v2924
  %v2926 = vpop.f32.mrf.mxu0
  %v2927 = vadd.f32 0.0, %v2926
  %v2928 = vpop.f32.mrf.mxu0
  %v2929 = vadd.f32 0.0, %v2928
  %2930 = vmatprep.mubr.bf16.mxu0 0
  %2931 = vmatmul.mubr.bf16.gmra.mxu0 %v2793
  %v2932 = vpop.f32.mrf.mxu0
  %v2933 = vadd.f32 0.0, %v2932
  %v2934 = vpop.f32.mrf.mxu0
  %v2935 = vadd.f32 0.0, %v2934
  %v2936 = vpop.f32.mrf.mxu0
  %v2937 = vadd.f32 0.0, %v2936
  %v2938 = vpop.f32.mrf.mxu0
  %v2939 = vadd.f32 0.0, %v2938
  %2940 = vmatprep.mubr.bf16.mxu0 0
  %2941 = vmatmul.mubr.bf16.gmra.mxu0 %v2794
  %v2942 = vpop.f32.mrf.mxu0
  %v2943 = vadd.f32 0.0, %v2942
  %v2944 = vpop.f32.mrf.mxu0
  %v2945 = vadd.f32 0.0, %v2944
  %v2946 = vpop.f32.mrf.mxu0
  %v2947 = vadd.f32 0.0, %v2946
  %v2948 = vpop.f32.mrf.mxu0
  %v2949 = vadd.f32 0.0, %v2948
  %2950 = vmatprep.mubr.bf16.mxu0 0
  %2951 = vmatmul.mubr.bf16.gmra.mxu0 %v2795
  %v2952 = vpop.f32.mrf.mxu0
  %v2953 = vadd.f32 0.0, %v2952
  %v2954 = vpop.f32.mrf.mxu0
  %v2955 = vadd.f32 0.0, %v2954
  %v2956 = vpop.f32.mrf.mxu0
  %v2957 = vadd.f32 0.0, %v2956
  %v2958 = vpop.f32.mrf.mxu0
  %v2959 = vadd.f32 0.0, %v2958
  %2960 = vmatprep.mubr.bf16.mxu0 0
  %2961 = vmatmul.mubr.bf16.gmra.mxu0 %v2796
  %v2962 = vpop.f32.mrf.mxu0
  %v2963 = vadd.f32 0.0, %v2962
  %v2964 = vpop.f32.mrf.mxu0
  %v2965 = vadd.f32 0.0, %v2964
  %v2966 = vpop.f32.mrf.mxu0
  %v2967 = vadd.f32 0.0, %v2966
  %v2968 = vpop.f32.mrf.mxu0
  %v2969 = vadd.f32 0.0, %v2968
  %2970 = vmatprep.mubr.bf16.mxu0 0
  %2971 = vmatmul.mubr.bf16.gmra.mxu0 %v2797
  %v2972 = vpop.f32.mrf.mxu0
  %v2973 = vadd.f32 0.0, %v2972
  %v2974 = vpop.f32.mrf.mxu0
  %v2975 = vadd.f32 0.0, %v2974
  %v2976 = vpop.f32.mrf.mxu0
  %v2977 = vadd.f32 0.0, %v2976
  %v2978 = vpop.f32.mrf.mxu0
  %v2979 = vadd.f32 0.0, %v2978
  %2980 = vmatprep.mubr.bf16.mxu0 0
  %2981 = vmatmul.mubr.bf16.gmra.mxu0 %v2798
  %v2982 = vpop.f32.mrf.mxu0
  %v2983 = vadd.f32 0.0, %v2982
  %v2984 = vpop.f32.mrf.mxu0
  %v2985 = vadd.f32 0.0, %v2984
  %v2986 = vpop.f32.mrf.mxu0
  %v2987 = vadd.f32 0.0, %v2986
  %v2988 = vpop.f32.mrf.mxu0
  %v2989 = vadd.f32 0.0, %v2988
  %2990 = vmatprep.mubr.bf16.mxu0 0
  %2991 = vmatmul.mubr.bf16.gmra.mxu0 %v2799
  %v2992 = vpop.f32.mrf.mxu0
  %v2993 = vadd.f32 0.0, %v2992
  %v2994 = vpop.f32.mrf.mxu0
  %v2995 = vadd.f32 0.0, %v2994
  %v2996 = vpop.f32.mrf.mxu0
  %v2997 = vadd.f32 0.0, %v2996
  %v2998 = vpop.f32.mrf.mxu0
  %v2999 = vadd.f32 0.0, %v2998
  %3000 = vdwg.mxu0
  %v3001 = vadd.f32 %v2616, %v2923
  %v3002 = vadd.f32 %v2617, %v2927
  %v3003 = vadd.f32 %v2618, %v2933
  %v3004 = vadd.f32 %v2619, %v2937
  %v3005 = vadd.f32 %v2620, %v2943
  %v3006 = vadd.f32 %v2621, %v2947
  %v3007 = vadd.f32 %v2622, %v2953
  %v3008 = vadd.f32 %v2623, %v2957
  %v3009 = vadd.f32 %v2624, %v2963
  %v3010 = vadd.f32 %v2625, %v2967
  %v3011 = vadd.f32 %v2626, %v2973
  %v3012 = vadd.f32 %v2627, %v2977
  %v3013 = vadd.f32 %v2628, %v2983
  %v3014 = vadd.f32 %v2629, %v2987
  %v3015 = vadd.f32 %v2630, %v2993
  %v3016 = vadd.f32 %v2631, %v2997
  %v3017 = vadd.f32 %v2524, %v2925
  %v3018 = vadd.f32 %v2528, %v2929
  %v3019 = vadd.f32 %v2534, %v2935
  %v3020 = vadd.f32 %v2538, %v2939
  %v3021 = vadd.f32 %v2544, %v2945
  %v3022 = vadd.f32 %v2548, %v2949
  %v3023 = vadd.f32 %v2554, %v2955
  %v3024 = vadd.f32 %v2558, %v2959
  %v3025 = vadd.f32 %v2564, %v2965
  %v3026 = vadd.f32 %v2568, %v2969
  %v3027 = vadd.f32 %v2574, %v2975
  %v3028 = vadd.f32 %v2578, %v2979
  %v3029 = vadd.f32 %v2584, %v2985
  %v3030 = vadd.f32 %v2588, %v2989
  %v3031 = vadd.f32 %v2594, %v2995
  %v3032 = vadd.f32 %v2598, %v2999
  %s3033 = scalar_lea.vmem [#allocation2], 16
  %v3034 = vld [vmem:[%s3033] sm:$0xf]
  %v3035 = vld [vmem:[%s3033 + $0x8] sm:$0xf]
  %v3036 = vld [vmem:[%s3033 + $0x10] sm:$0xf]
  %v3037 = vld [vmem:[%s3033 + $0x18] sm:$0xf]
  %v3038 = vld [vmem:[%s3033 + $0x20] sm:$0xf]
  %v3039 = vld [vmem:[%s3033 + $0x28] sm:$0xf]
  %v3040 = vld [vmem:[%s3033 + $0x30] sm:$0xf]
  %v3041 = vld [vmem:[%s3033 + $0x38] sm:$0xf]
  %v3042 = vld [vmem:[%s3033 + $0x50] sm:$0xf]
  %v3043 = vld [vmem:[%s3033 + $0x58] sm:$0xf]
  %v3044 = vld [vmem:[%s3033 + $0x60] sm:$0xf]
  %v3045 = vld [vmem:[%s3033 + $0x68] sm:$0xf]
  %v3046 = vld [vmem:[%s3033 + $0x70] sm:$0xf]
  %v3047 = vld [vmem:[%s3033 + $0x78] sm:$0xf]
  %v3048 = vld [vmem:[%s3033 + $0x80] sm:$0xf]
  %v3049 = vld [vmem:[%s3033 + $0x88] sm:$0xf]
  %v3050 = vld [vmem:[%s3 + $0x30] sm:$0xf]
  %v3051 = vld [vmem:[%s3 + $0x70] sm:$0xf]
  %v3052 = vld [vmem:[%s3 + $0xb0] sm:$0xf]
  %v3053 = vld [vmem:[%s3 + $0xf0] sm:$0xf]
  %v3054 = vld [vmem:[%s3 + $0x130] sm:$0xf]
  %v3055 = vld [vmem:[%s3 + $0x170] sm:$0xf]
  %v3056 = vld [vmem:[%s3 + $0x1b0] sm:$0xf]
  %v3057 = vld [vmem:[%s3 + $0x1f0] sm:$0xf]
  %v3058 = vld [vmem:[%s3 + $0x230] sm:$0xf]
  %v3059 = vld [vmem:[%s3 + $0x270] sm:$0xf]
  %v3060 = vld [vmem:[%s3 + $0x2b0] sm:$0xf]
  %v3061 = vld [vmem:[%s3 + $0x2f0] sm:$0xf]
  %v3062 = vld [vmem:[%s3 + $0x330] sm:$0xf]
  %v3063 = vld [vmem:[%s3 + $0x370] sm:$0xf]
  %v3064 = vld [vmem:[%s3 + $0x3b0] sm:$0xf]
  %v3065 = vld [vmem:[%s3 + $0x3f0] sm:$0xf]
  %v3082 = vunpack.c.l.b16 %v3034
  %v3083 = vunpack.c.l.b16 %v3035
  %v3084 = vunpack.c.l.b16 %v3036
  %v3085 = vunpack.c.l.b16 %v3037
  %v3086 = vunpack.c.l.b16 %v3038
  %v3087 = vunpack.c.l.b16 %v3039
  %v3088 = vunpack.c.l.b16 %v3040
  %v3089 = vunpack.c.l.b16 %v3041
  %v3090 = vunpack.c.l.b16 %v3042
  %v3091 = vunpack.c.l.b16 %v3043
  %v3092 = vunpack.c.l.b16 %v3044
  %v3093 = vunpack.c.l.b16 %v3045
  %v3094 = vunpack.c.l.b16 %v3046
  %v3095 = vunpack.c.l.b16 %v3047
  %v3096 = vunpack.c.l.b16 %v3048
  %v3097 = vunpack.c.l.b16 %v3049
  %v3098 = vpack.c.b16 %v3083, %v3082
  %v3099 = vpack.c.b16 %v3085, %v3084
  %v3100 = vpack.c.b16 %v3087, %v3086
  %v3101 = vpack.c.b16 %v3089, %v3088
  %v3102 = vpack.c.b16 %v3091, %v3090
  %v3103 = vpack.c.b16 %v3093, %v3092
  %v3104 = vpack.c.b16 %v3095, %v3094
  %v3105 = vpack.c.b16 %v3097, %v3096
  %v3130 = vunpack.c.l.b16 %v3050
  %v3131 = vunpack.c.l.b16 %v3051
  %v3132 = vunpack.c.l.b16 %v3052
  %v3133 = vunpack.c.l.b16 %v3053
  %v3134 = vunpack.c.l.b16 %v3054
  %v3135 = vunpack.c.l.b16 %v3055
  %v3136 = vunpack.c.l.b16 %v3056
  %v3137 = vunpack.c.l.b16 %v3057
  %v3138 = vunpack.c.l.b16 %v3058
  %v3139 = vunpack.c.l.b16 %v3059
  %v3140 = vunpack.c.l.b16 %v3060
  %v3141 = vunpack.c.l.b16 %v3061
  %v3142 = vunpack.c.l.b16 %v3062
  %v3143 = vunpack.c.l.b16 %v3063
  %v3144 = vunpack.c.l.b16 %v3064
  %v3145 = vunpack.c.l.b16 %v3065
  %v3146 = vpack.c.b16 %v3131, %v3130
  %v3147 = vpack.c.b16 %v3133, %v3132
  %v3148 = vpack.c.b16 %v3135, %v3134
  %v3149 = vpack.c.b16 %v3137, %v3136
  %v3150 = vpack.c.b16 %v3139, %v3138
  %v3151 = vpack.c.b16 %v3141, %v3140
  %v3152 = vpack.c.b16 %v3143, %v3142
  %v3153 = vpack.c.b16 %v3145, %v3144
  %3162 = vmatprep.subr.bf16.mxu0 0
  %3163 = vmatpush1.bf16.msra.mxu0 %v3153
  %3164 = vmatprep.subr.bf16.mxu0 0
  %3165 = vmatpush1.bf16.msra.mxu0 %v3152
  %3166 = vmatprep.subr.bf16.mxu0 0
  %3167 = vmatpush1.bf16.msra.mxu0 %v3151
  %3168 = vmatprep.subr.bf16.mxu0 0
  %3169 = vmatpush1.bf16.msra.mxu0 %v3150
  %3170 = vmatprep.subr.bf16.mxu0 0
  %3171 = vmatpush1.bf16.msra.mxu0 %v3149
  %3172 = vmatprep.subr.bf16.mxu0 0
  %3173 = vmatpush1.bf16.msra.mxu0 %v3148
  %3174 = vmatprep.subr.bf16.mxu0 0
  %3175 = vmatpush1.bf16.msra.mxu0 %v3147
  %3176 = vmatprep.subr.bf16.mxu0 0
  %3177 = vmatpush1.bf16.msra.mxu0 %v3146
  %3178 = vmatprep.subr.bf16.mxu0 0
  %3179 = vmatpush2.bf16.msra.mxu0 0
  %3180 = vmatprep.subr.bf16.mxu0 0
  %3181 = vmatpush2.bf16.msra.mxu0 0
  %3182 = vmatprep.subr.bf16.mxu0 0
  %3183 = vmatpush2.bf16.msra.mxu0 0
  %3184 = vmatprep.subr.bf16.mxu0 0
  %3185 = vmatpush2.bf16.msra.mxu0 0
  %3186 = vmatprep.subr.bf16.mxu0 0
  %3187 = vmatpush2.bf16.msra.mxu0 0
  %3188 = vmatprep.subr.bf16.mxu0 0
  %3189 = vmatpush2.bf16.msra.mxu0 0
  %3190 = vmatprep.subr.bf16.mxu0 0
  %3191 = vmatpush2.bf16.msra.mxu0 0
  %3192 = vmatprep.subr.bf16.mxu0 0
  %3193 = vmatpush2.bf16.msra.mxu0 0
  %3194 = vmatprep.mubr.bf16.mxu0 0
  %3195 = vmatmul.mubr.bf16.gmra.mxu0 %v3098
  %v3196 = vpop.f32.mrf.mxu0
  %v3197 = vadd.f32 0.0, %v3196
  %v3198 = vpop.f32.mrf.mxu0
  %v3199 = vpop.f32.mrf.mxu0
  %v3200 = vadd.f32 0.0, %v3199
  %v3201 = vpop.f32.mrf.mxu0
  %3202 = vmatprep.mubr.bf16.mxu0 0
  %3203 = vmatmul.mubr.bf16.gmra.mxu0 %v3099
  %v3204 = vpop.f32.mrf.mxu0
  %v3205 = vadd.f32 0.0, %v3204
  %v3206 = vpop.f32.mrf.mxu0
  %v3207 = vpop.f32.mrf.mxu0
  %v3208 = vadd.f32 0.0, %v3207
  %v3209 = vpop.f32.mrf.mxu0
  %3210 = vmatprep.mubr.bf16.mxu0 0
  %3211 = vmatmul.mubr.bf16.gmra.mxu0 %v3100
  %v3212 = vpop.f32.mrf.mxu0
  %v3213 = vadd.f32 0.0, %v3212
  %v3214 = vpop.f32.mrf.mxu0
  %v3215 = vpop.f32.mrf.mxu0
  %v3216 = vadd.f32 0.0, %v3215
  %v3217 = vpop.f32.mrf.mxu0
  %3218 = vmatprep.mubr.bf16.mxu0 0
  %3219 = vmatmul.mubr.bf16.gmra.mxu0 %v3101
  %v3220 = vpop.f32.mrf.mxu0
  %v3221 = vadd.f32 0.0, %v3220
  %v3222 = vpop.f32.mrf.mxu0
  %v3223 = vpop.f32.mrf.mxu0
  %v3224 = vadd.f32 0.0, %v3223
  %v3225 = vpop.f32.mrf.mxu0
  %3226 = vmatprep.mubr.bf16.mxu0 0
  %3227 = vmatmul.mubr.bf16.gmra.mxu0 %v3102
  %v3228 = vpop.f32.mrf.mxu0
  %v3229 = vadd.f32 0.0, %v3228
  %v3230 = vpop.f32.mrf.mxu0
  %v3231 = vpop.f32.mrf.mxu0
  %v3232 = vadd.f32 0.0, %v3231
  %v3233 = vpop.f32.mrf.mxu0
  %3234 = vmatprep.mubr.bf16.mxu0 0
  %3235 = vmatmul.mubr.bf16.gmra.mxu0 %v3103
  %v3236 = vpop.f32.mrf.mxu0
  %v3237 = vadd.f32 0.0, %v3236
  %v3238 = vpop.f32.mrf.mxu0
  %v3239 = vpop.f32.mrf.mxu0
  %v3240 = vadd.f32 0.0, %v3239
  %v3241 = vpop.f32.mrf.mxu0
  %3242 = vmatprep.mubr.bf16.mxu0 0
  %3243 = vmatmul.mubr.bf16.gmra.mxu0 %v3104
  %v3244 = vpop.f32.mrf.mxu0
  %v3245 = vadd.f32 0.0, %v3244
  %v3246 = vpop.f32.mrf.mxu0
  %v3247 = vpop.f32.mrf.mxu0
  %v3248 = vadd.f32 0.0, %v3247
  %v3249 = vpop.f32.mrf.mxu0
  %3250 = vmatprep.mubr.bf16.mxu0 0
  %3251 = vmatmul.mubr.bf16.gmra.mxu0 %v3105
  %v3252 = vpop.f32.mrf.mxu0
  %v3253 = vadd.f32 0.0, %v3252
  %v3254 = vpop.f32.mrf.mxu0
  %v3255 = vpop.f32.mrf.mxu0
  %v3256 = vadd.f32 0.0, %v3255
  %v3257 = vpop.f32.mrf.mxu0
  %3258 = vdwg.mxu0
  %v3259 = vadd.f32 %v2632, %v3197
  %v3260 = vadd.f32 %v2633, %v3200
  %v3261 = vadd.f32 %v2634, %v3205
  %v3262 = vadd.f32 %v2635, %v3208
  %v3263 = vadd.f32 %v2636, %v3213
  %v3264 = vadd.f32 %v2637, %v3216
  %v3265 = vadd.f32 %v2638, %v3221
  %v3266 = vadd.f32 %v2639, %v3224
  %v3267 = vadd.f32 %v2640, %v3229
  %v3268 = vadd.f32 %v2641, %v3232
  %v3269 = vadd.f32 %v2642, %v3237
  %v3270 = vadd.f32 %v2643, %v3240
  %v3271 = vadd.f32 %v2644, %v3245
  %v3272 = vadd.f32 %v2645, %v3248
  %v3273 = vadd.f32 %v2646, %v3253
  %v3274 = vadd.f32 %v2647, %v3256
  %v3275 = vld [vmem:[%s3033] sm:$0xf]
  %v3276 = vld [vmem:[%s3033 + $0x4] sm:$0x1]
  %v3277 = vld [vmem:[%s3033 + $0x8] sm:$0xf]
  %v3278 = vld [vmem:[%s3033 + $0xc] sm:$0x1]
  %v3279 = vld [vmem:[%s3033 + $0x10] sm:$0xf]
  %v3280 = vld [vmem:[%s3033 + $0x14] sm:$0x1]
  %v3281 = vld [vmem:[%s3033 + $0x18] sm:$0xf]
  %v3282 = vld [vmem:[%s3033 + $0x1c] sm:$0x1]
  %v3283 = vld [vmem:[%s3033 + $0x20] sm:$0xf]
  %v3284 = vld [vmem:[%s3033 + $0x24] sm:$0x1]
  %v3285 = vld [vmem:[%s3033 + $0x28] sm:$0xf]
  %v3286 = vld [vmem:[%s3033 + $0x2c] sm:$0x1]
  %v3287 = vld [vmem:[%s3033 + $0x30] sm:$0xf]
  %v3288 = vld [vmem:[%s3033 + $0x34] sm:$0x1]
  %v3289 = vld [vmem:[%s3033 + $0x38] sm:$0xf]
  %v3290 = vld [vmem:[%s3033 + $0x3c] sm:$0x1]
  %v3291 = vld [vmem:[%s3033 + $0x50] sm:$0xf]
  %v3292 = vld [vmem:[%s3033 + $0x54] sm:$0x1]
  %v3293 = vld [vmem:[%s3033 + $0x58] sm:$0xf]
  %v3294 = vld [vmem:[%s3033 + $0x5c] sm:$0x1]
  %v3295 = vld [vmem:[%s3033 + $0x60] sm:$0xf]
  %v3296 = vld [vmem:[%s3033 + $0x64] sm:$0x1]
  %v3297 = vld [vmem:[%s3033 + $0x68] sm:$0xf]
  %v3298 = vld [vmem:[%s3033 + $0x6c] sm:$0x1]
  %v3299 = vld [vmem:[%s3033 + $0x70] sm:$0xf]
  %v3300 = vld [vmem:[%s3033 + $0x74] sm:$0x1]
  %v3301 = vld [vmem:[%s3033 + $0x78] sm:$0xf]
  %v3302 = vld [vmem:[%s3033 + $0x7c] sm:$0x1]
  %v3303 = vld [vmem:[%s3033 + $0x80] sm:$0xf]
  %v3304 = vld [vmem:[%s3033 + $0x84] sm:$0x1]
  %v3305 = vld [vmem:[%s3033 + $0x88] sm:$0xf]
  %v3306 = vld [vmem:[%s3033 + $0x8c] sm:$0x1]
  %v3308 = vshrl.u32 %v3275, 16
  %v3310 = vrot.slane %v3308, 4
  %v3311 = vshll.u32 %v3275, 16
  %v3313 = vrot.slane %v3311, 5
  %v3314 = vor.u32 %v3310, %v3313
  %v3315 = vrot.slane %v3314, 4
  %v3317 = vshll.u32 %v3276, 16
  %v3319 = vrot.slane %v3317, 5
  %v3320 = vsel %vm622, %v3315, %v3319
  %v3322 = vshrl.u32 %v3277, 16
  %v3324 = vrot.slane %v3322, 4
  %v3325 = vshll.u32 %v3277, 16
  %v3327 = vrot.slane %v3325, 5
  %v3328 = vor.u32 %v3324, %v3327
  %v3329 = vrot.slane %v3328, 4
  %v3331 = vshll.u32 %v3278, 16
  %v3333 = vrot.slane %v3331, 5
  %v3334 = vsel %vm622, %v3329, %v3333
  %v3336 = vshrl.u32 %v3279, 16
  %v3338 = vrot.slane %v3336, 4
  %v3339 = vshll.u32 %v3279, 16
  %v3341 = vrot.slane %v3339, 5
  %v3342 = vor.u32 %v3338, %v3341
  %v3343 = vrot.slane %v3342, 4
  %v3345 = vshll.u32 %v3280, 16
  %v3347 = vrot.slane %v3345, 5
  %v3348 = vsel %vm622, %v3343, %v3347
  %v3350 = vshrl.u32 %v3281, 16
  %v3352 = vrot.slane %v3350, 4
  %v3353 = vshll.u32 %v3281, 16
  %v3355 = vrot.slane %v3353, 5
  %v3356 = vor.u32 %v3352, %v3355
  %v3357 = vrot.slane %v3356, 4
  %v3359 = vshll.u32 %v3282, 16
  %v3361 = vrot.slane %v3359, 5
  %v3362 = vsel %vm622, %v3357, %v3361
  %v3364 = vshrl.u32 %v3283, 16
  %v3366 = vrot.slane %v3364, 4
  %v3367 = vshll.u32 %v3283, 16
  %v3369 = vrot.slane %v3367, 5
  %v3370 = vor.u32 %v3366, %v3369
  %v3371 = vrot.slane %v3370, 4
  %v3373 = vshll.u32 %v3284, 16
  %v3375 = vrot.slane %v3373, 5
  %v3376 = vsel %vm622, %v3371, %v3375
  %v3378 = vshrl.u32 %v3285, 16
  %v3380 = vrot.slane %v3378, 4
  %v3381 = vshll.u32 %v3285, 16
  %v3383 = vrot.slane %v3381, 5
  %v3384 = vor.u32 %v3380, %v3383
  %v3385 = vrot.slane %v3384, 4
  %v3387 = vshll.u32 %v3286, 16
  %v3389 = vrot.slane %v3387, 5
  %v3390 = vsel %vm622, %v3385, %v3389
  %v3392 = vshrl.u32 %v3287, 16
  %v3394 = vrot.slane %v3392, 4
  %v3395 = vshll.u32 %v3287, 16
  %v3397 = vrot.slane %v3395, 5
  %v3398 = vor.u32 %v3394, %v3397
  %v3399 = vrot.slane %v3398, 4
  %v3401 = vshll.u32 %v3288, 16
  %v3403 = vrot.slane %v3401, 5
  %v3404 = vsel %vm622, %v3399, %v3403
  %v3406 = vshrl.u32 %v3289, 16
  %v3408 = vrot.slane %v3406, 4
  %v3409 = vshll.u32 %v3289, 16
  %v3411 = vrot.slane %v3409, 5
  %v3412 = vor.u32 %v3408, %v3411
  %v3413 = vrot.slane %v3412, 4
  %v3415 = vshll.u32 %v3290, 16
  %v3417 = vrot.slane %v3415, 5
  %v3418 = vsel %vm622, %v3413, %v3417
  %v3420 = vshrl.u32 %v3291, 16
  %v3422 = vrot.slane %v3420, 4
  %v3423 = vshll.u32 %v3291, 16
  %v3425 = vrot.slane %v3423, 5
  %v3426 = vor.u32 %v3422, %v3425
  %v3427 = vrot.slane %v3426, 4
  %v3429 = vshll.u32 %v3292, 16
  %v3431 = vrot.slane %v3429, 5
  %v3432 = vsel %vm622, %v3427, %v3431
  %v3434 = vshrl.u32 %v3293, 16
  %v3436 = vrot.slane %v3434, 4
  %v3437 = vshll.u32 %v3293, 16
  %v3439 = vrot.slane %v3437, 5
  %v3440 = vor.u32 %v3436, %v3439
  %v3441 = vrot.slane %v3440, 4
  %v3443 = vshll.u32 %v3294, 16
  %v3445 = vrot.slane %v3443, 5
  %v3446 = vsel %vm622, %v3441, %v3445
  %v3448 = vshrl.u32 %v3295, 16
  %v3450 = vrot.slane %v3448, 4
  %v3451 = vshll.u32 %v3295, 16
  %v3453 = vrot.slane %v3451, 5
  %v3454 = vor.u32 %v3450, %v3453
  %v3455 = vrot.slane %v3454, 4
  %v3457 = vshll.u32 %v3296, 16
  %v3459 = vrot.slane %v3457, 5
  %v3460 = vsel %vm622, %v3455, %v3459
  %v3462 = vshrl.u32 %v3297, 16
  %v3464 = vrot.slane %v3462, 4
  %v3465 = vshll.u32 %v3297, 16
  %v3467 = vrot.slane %v3465, 5
  %v3468 = vor.u32 %v3464, %v3467
  %v3469 = vrot.slane %v3468, 4
  %v3471 = vshll.u32 %v3298, 16
  %v3473 = vrot.slane %v3471, 5
  %v3474 = vsel %vm622, %v3469, %v3473
  %v3476 = vshrl.u32 %v3299, 16
  %v3478 = vrot.slane %v3476, 4
  %v3479 = vshll.u32 %v3299, 16
  %v3481 = vrot.slane %v3479, 5
  %v3482 = vor.u32 %v3478, %v3481
  %v3483 = vrot.slane %v3482, 4
  %v3485 = vshll.u32 %v3300, 16
  %v3487 = vrot.slane %v3485, 5
  %v3488 = vsel %vm622, %v3483, %v3487
  %v3490 = vshrl.u32 %v3301, 16
  %v3492 = vrot.slane %v3490, 4
  %v3493 = vshll.u32 %v3301, 16
  %v3495 = vrot.slane %v3493, 5
  %v3496 = vor.u32 %v3492, %v3495
  %v3497 = vrot.slane %v3496, 4
  %v3499 = vshll.u32 %v3302, 16
  %v3501 = vrot.slane %v3499, 5
  %v3502 = vsel %vm622, %v3497, %v3501
  %v3504 = vshrl.u32 %v3303, 16
  %v3506 = vrot.slane %v3504, 4
  %v3507 = vshll.u32 %v3303, 16
  %v3509 = vrot.slane %v3507, 5
  %v3510 = vor.u32 %v3506, %v3509
  %v3511 = vrot.slane %v3510, 4
  %v3513 = vshll.u32 %v3304, 16
  %v3515 = vrot.slane %v3513, 5
  %v3516 = vsel %vm622, %v3511, %v3515
  %v3518 = vshrl.u32 %v3305, 16
  %v3520 = vrot.slane %v3518, 4
  %v3521 = vshll.u32 %v3305, 16
  %v3523 = vrot.slane %v3521, 5
  %v3524 = vor.u32 %v3520, %v3523
  %v3525 = vrot.slane %v3524, 4
  %v3527 = vshll.u32 %v3306, 16
  %v3529 = vrot.slane %v3527, 5
  %v3530 = vsel %vm622, %v3525, %v3529
  %v3531 = vld [vmem:[%s3 + $0x34] sm:$0xff]
  %v3532 = vld [vmem:[%s3 + $0x74] sm:$0xff]
  %v3533 = vld [vmem:[%s3 + $0xb4] sm:$0xff]
  %v3534 = vld [vmem:[%s3 + $0xf4] sm:$0xff]
  %v3535 = vld [vmem:[%s3 + $0x134] sm:$0xff]
  %v3536 = vld [vmem:[%s3 + $0x174] sm:$0xff]
  %v3537 = vld [vmem:[%s3 + $0x1b4] sm:$0xff]
  %v3538 = vld [vmem:[%s3 + $0x1f4] sm:$0xff]
  %v3539 = vld [vmem:[%s3 + $0x234] sm:$0xff]
  %v3540 = vld [vmem:[%s3 + $0x274] sm:$0xff]
  %v3541 = vld [vmem:[%s3 + $0x2b4] sm:$0xff]
  %v3542 = vld [vmem:[%s3 + $0x2f4] sm:$0xff]
  %v3543 = vld [vmem:[%s3 + $0x334] sm:$0xff]
  %v3544 = vld [vmem:[%s3 + $0x374] sm:$0xff]
  %v3545 = vld [vmem:[%s3 + $0x3b4] sm:$0xff]
  %v3546 = vld [vmem:[%s3 + $0x3f4] sm:$0xff]
  %v3547 = vunpack.c.l.b16 %v3320
  %v3548 = vunpack.c.l.b16 %v3334
  %v3549 = vunpack.c.l.b16 %v3348
  %v3550 = vunpack.c.l.b16 %v3362
  %v3551 = vunpack.c.l.b16 %v3376
  %v3552 = vunpack.c.l.b16 %v3390
  %v3553 = vunpack.c.l.b16 %v3404
  %v3554 = vunpack.c.l.b16 %v3418
  %v3555 = vunpack.c.l.b16 %v3432
  %v3556 = vunpack.c.l.b16 %v3446
  %v3557 = vunpack.c.l.b16 %v3460
  %v3558 = vunpack.c.l.b16 %v3474
  %v3559 = vunpack.c.l.b16 %v3488
  %v3560 = vunpack.c.l.b16 %v3502
  %v3561 = vunpack.c.l.b16 %v3516
  %v3562 = vunpack.c.l.b16 %v3530
  %v3563 = vpack.c.b16 %v3548, %v3547
  %v3564 = vpack.c.b16 %v3550, %v3549
  %v3565 = vpack.c.b16 %v3552, %v3551
  %v3566 = vpack.c.b16 %v3554, %v3553
  %v3567 = vpack.c.b16 %v3556, %v3555
  %v3568 = vpack.c.b16 %v3558, %v3557
  %v3569 = vpack.c.b16 %v3560, %v3559
  %v3570 = vpack.c.b16 %v3562, %v3561
  %v3595 = vunpack.c.l.b16 %v3531
  %v3596 = vunpack.c.h.b16 %v3531
  %v3597 = vunpack.c.l.b16 %v3532
  %v3598 = vunpack.c.h.b16 %v3532
  %v3599 = vunpack.c.l.b16 %v3533
  %v3600 = vunpack.c.h.b16 %v3533
  %v3601 = vunpack.c.l.b16 %v3534
  %v3602 = vunpack.c.h.b16 %v3534
  %v3603 = vunpack.c.l.b16 %v3535
  %v3604 = vunpack.c.h.b16 %v3535
  %v3605 = vunpack.c.l.b16 %v3536
  %v3606 = vunpack.c.h.b16 %v3536
  %v3607 = vunpack.c.l.b16 %v3537
  %v3608 = vunpack.c.h.b16 %v3537
  %v3609 = vunpack.c.l.b16 %v3538
  %v3610 = vunpack.c.h.b16 %v3538
  %v3611 = vunpack.c.l.b16 %v3539
  %v3612 = vunpack.c.h.b16 %v3539
  %v3613 = vunpack.c.l.b16 %v3540
  %v3614 = vunpack.c.h.b16 %v3540
  %v3615 = vunpack.c.l.b16 %v3541
  %v3616 = vunpack.c.h.b16 %v3541
  %v3617 = vunpack.c.l.b16 %v3542
  %v3618 = vunpack.c.h.b16 %v3542
  %v3619 = vunpack.c.l.b16 %v3543
  %v3620 = vunpack.c.h.b16 %v3543
  %v3621 = vunpack.c.l.b16 %v3544
  %v3622 = vunpack.c.h.b16 %v3544
  %v3623 = vunpack.c.l.b16 %v3545
  %v3624 = vunpack.c.h.b16 %v3545
  %v3625 = vunpack.c.l.b16 %v3546
  %v3626 = vunpack.c.h.b16 %v3546
  %v3627 = vpack.c.b16 %v3597, %v3595
  %v3628 = vpack.c.b16 %v3598, %v3596
  %v3629 = vpack.c.b16 %v3601, %v3599
  %v3630 = vpack.c.b16 %v3602, %v3600
  %v3631 = vpack.c.b16 %v3605, %v3603
  %v3632 = vpack.c.b16 %v3606, %v3604
  %v3633 = vpack.c.b16 %v3609, %v3607
  %v3634 = vpack.c.b16 %v3610, %v3608
  %v3635 = vpack.c.b16 %v3613, %v3611
  %v3636 = vpack.c.b16 %v3614, %v3612
  %v3637 = vpack.c.b16 %v3617, %v3615
  %v3638 = vpack.c.b16 %v3618, %v3616
  %v3639 = vpack.c.b16 %v3621, %v3619
  %v3640 = vpack.c.b16 %v3622, %v3620
  %v3641 = vpack.c.b16 %v3625, %v3623
  %v3642 = vpack.c.b16 %v3626, %v3624
  %3659 = vmatprep.subr.bf16.mxu0 %v3642
  %3660 = vmatpush1.bf16.msra.mxu0 %v3641
  %3661 = vmatprep.subr.bf16.mxu0 %v3640
  %3662 = vmatpush1.bf16.msra.mxu0 %v3639
  %3663 = vmatprep.subr.bf16.mxu0 %v3638
  %3664 = vmatpush1.bf16.msra.mxu0 %v3637
  %3665 = vmatprep.subr.bf16.mxu0 %v3636
  %3666 = vmatpush1.bf16.msra.mxu0 %v3635
  %3667 = vmatprep.subr.bf16.mxu0 %v3634
  %3668 = vmatpush1.bf16.msra.mxu0 %v3633
  %3669 = vmatprep.subr.bf16.mxu0 %v3632
  %3670 = vmatpush1.bf16.msra.mxu0 %v3631
  %3671 = vmatprep.subr.bf16.mxu0 %v3630
  %3672 = vmatpush1.bf16.msra.mxu0 %v3629
  %3673 = vmatprep.subr.bf16.mxu0 %v3628
  %3674 = vmatpush1.bf16.msra.mxu0 %v3627
  %3675 = vmatprep.subr.bf16.mxu0 0
  %3676 = vmatpush2.bf16.msra.mxu0 0
  %3677 = vmatprep.subr.bf16.mxu0 0
  %3678 = vmatpush2.bf16.msra.mxu0 0
  %3679 = vmatprep.subr.bf16.mxu0 0
  %3680 = vmatpush2.bf16.msra.mxu0 0
  %3681 = vmatprep.subr.bf16.mxu0 0
  %3682 = vmatpush2.bf16.msra.mxu0 0
  %3683 = vmatprep.subr.bf16.mxu0 0
  %3684 = vmatpush2.bf16.msra.mxu0 0
  %3685 = vmatprep.subr.bf16.mxu0 0
  %3686 = vmatpush2.bf16.msra.mxu0 0
  %3687 = vmatprep.subr.bf16.mxu0 0
  %3688 = vmatpush2.bf16.msra.mxu0 0
  %3689 = vmatprep.subr.bf16.mxu0 0
  %3690 = vmatpush2.bf16.msra.mxu0 0
  %3691 = vmatprep.mubr.bf16.mxu0 0
  %3692 = vmatmul.mubr.bf16.gmra.mxu0 %v3563
  %v3693 = vpop.f32.mrf.mxu0
  %v3694 = vadd.f32 0.0, %v3693
  %v3695 = vpop.f32.mrf.mxu0
  %v3696 = vadd.f32 0.0, %v3695
  %v3697 = vpop.f32.mrf.mxu0
  %v3698 = vadd.f32 0.0, %v3697
  %v3699 = vpop.f32.mrf.mxu0
  %v3700 = vadd.f32 0.0, %v3699
  %3701 = vmatprep.mubr.bf16.mxu0 0
  %3702 = vmatmul.mubr.bf16.gmra.mxu0 %v3564
  %v3703 = vpop.f32.mrf.mxu0
  %v3704 = vadd.f32 0.0, %v3703
  %v3705 = vpop.f32.mrf.mxu0
  %v3706 = vadd.f32 0.0, %v3705
  %v3707 = vpop.f32.mrf.mxu0
  %v3708 = vadd.f32 0.0, %v3707
  %v3709 = vpop.f32.mrf.mxu0
  %v3710 = vadd.f32 0.0, %v3709
  %3711 = vmatprep.mubr.bf16.mxu0 0
  %3712 = vmatmul.mubr.bf16.gmra.mxu0 %v3565
  %v3713 = vpop.f32.mrf.mxu0
  %v3714 = vadd.f32 0.0, %v3713
  %v3715 = vpop.f32.mrf.mxu0
  %v3716 = vadd.f32 0.0, %v3715
  %v3717 = vpop.f32.mrf.mxu0
  %v3718 = vadd.f32 0.0, %v3717
  %v3719 = vpop.f32.mrf.mxu0
  %v3720 = vadd.f32 0.0, %v3719
  %3721 = vmatprep.mubr.bf16.mxu0 0
  %3722 = vmatmul.mubr.bf16.gmra.mxu0 %v3566
  %v3723 = vpop.f32.mrf.mxu0
  %v3724 = vadd.f32 0.0, %v3723
  %v3725 = vpop.f32.mrf.mxu0
  %v3726 = vadd.f32 0.0, %v3725
  %v3727 = vpop.f32.mrf.mxu0
  %v3728 = vadd.f32 0.0, %v3727
  %v3729 = vpop.f32.mrf.mxu0
  %v3730 = vadd.f32 0.0, %v3729
  %3731 = vmatprep.mubr.bf16.mxu0 0
  %3732 = vmatmul.mubr.bf16.gmra.mxu0 %v3567
  %v3733 = vpop.f32.mrf.mxu0
  %v3734 = vadd.f32 0.0, %v3733
  %v3735 = vpop.f32.mrf.mxu0
  %v3736 = vadd.f32 0.0, %v3735
  %v3737 = vpop.f32.mrf.mxu0
  %v3738 = vadd.f32 0.0, %v3737
  %v3739 = vpop.f32.mrf.mxu0
  %v3740 = vadd.f32 0.0, %v3739
  %3741 = vmatprep.mubr.bf16.mxu0 0
  %3742 = vmatmul.mubr.bf16.gmra.mxu0 %v3568
  %v3743 = vpop.f32.mrf.mxu0
  %v3744 = vadd.f32 0.0, %v3743
  %v3745 = vpop.f32.mrf.mxu0
  %v3746 = vadd.f32 0.0, %v3745
  %v3747 = vpop.f32.mrf.mxu0
  %v3748 = vadd.f32 0.0, %v3747
  %v3749 = vpop.f32.mrf.mxu0
  %v3750 = vadd.f32 0.0, %v3749
  %3751 = vmatprep.mubr.bf16.mxu0 0
  %3752 = vmatmul.mubr.bf16.gmra.mxu0 %v3569
  %v3753 = vpop.f32.mrf.mxu0
  %v3754 = vadd.f32 0.0, %v3753
  %v3755 = vpop.f32.mrf.mxu0
  %v3756 = vadd.f32 0.0, %v3755
  %v3757 = vpop.f32.mrf.mxu0
  %v3758 = vadd.f32 0.0, %v3757
  %v3759 = vpop.f32.mrf.mxu0
  %v3760 = vadd.f32 0.0, %v3759
  %3761 = vmatprep.mubr.bf16.mxu0 0
  %3762 = vmatmul.mubr.bf16.gmra.mxu0 %v3570
  %v3763 = vpop.f32.mrf.mxu0
  %v3764 = vadd.f32 0.0, %v3763
  %v3765 = vpop.f32.mrf.mxu0
  %v3766 = vadd.f32 0.0, %v3765
  %v3767 = vpop.f32.mrf.mxu0
  %v3768 = vadd.f32 0.0, %v3767
  %v3769 = vpop.f32.mrf.mxu0
  %v3770 = vadd.f32 0.0, %v3769
  %3771 = vdwg.mxu0
  %v3772 = vadd.f32 %v3259, %v3694
  %v3773 = vadd.f32 %v3260, %v3698
  %v3774 = vadd.f32 %v3261, %v3704
  %v3775 = vadd.f32 %v3262, %v3708
  %v3776 = vadd.f32 %v3263, %v3714
  %v3777 = vadd.f32 %v3264, %v3718
  %v3778 = vadd.f32 %v3265, %v3724
  %v3779 = vadd.f32 %v3266, %v3728
  %v3780 = vadd.f32 %v3267, %v3734
  %v3781 = vadd.f32 %v3268, %v3738
  %v3782 = vadd.f32 %v3269, %v3744
  %v3783 = vadd.f32 %v3270, %v3748
  %v3784 = vadd.f32 %v3271, %v3754
  %v3785 = vadd.f32 %v3272, %v3758
  %v3786 = vadd.f32 %v3273, %v3764
  %v3787 = vadd.f32 %v3274, %v3768
  %v3788 = vadd.f32 %v3017, %v3696
  %v3789 = vadd.f32 %v3018, %v3700
  %v3790 = vadd.f32 %v3019, %v3706
  %v3791 = vadd.f32 %v3020, %v3710
  %v3792 = vadd.f32 %v3021, %v3716
  %v3793 = vadd.f32 %v3022, %v3720
  %v3794 = vadd.f32 %v3023, %v3726
  %v3795 = vadd.f32 %v3024, %v3730
  %v3796 = vadd.f32 %v3025, %v3736
  %v3797 = vadd.f32 %v3026, %v3740
  %v3798 = vadd.f32 %v3027, %v3746
  %v3799 = vadd.f32 %v3028, %v3750
  %v3800 = vadd.f32 %v3029, %v3756
  %v3801 = vadd.f32 %v3030, %v3760
  %v3802 = vadd.f32 %v3031, %v3766
  %v3803 = vadd.f32 %v3032, %v3770
  %v3804 = vld [vmem:[%s3033] sm:$0xe]
  %v3805 = vld [vmem:[%s3033 + $0x8] sm:$0xe]
  %v3806 = vld [vmem:[%s3033 + $0x10] sm:$0xe]
  %v3807 = vld [vmem:[%s3033 + $0x18] sm:$0xe]
  %v3808 = vld [vmem:[%s3033 + $0x20] sm:$0xe]
  %v3809 = vld [vmem:[%s3033 + $0x28] sm:$0xe]
  %v3810 = vld [vmem:[%s3033 + $0x30] sm:$0xe]
  %v3811 = vld [vmem:[%s3033 + $0x38] sm:$0xe]
  %v3812 = vld [vmem:[%s3033 + $0x50] sm:$0xe]
  %v3813 = vld [vmem:[%s3033 + $0x58] sm:$0xe]
  %v3814 = vld [vmem:[%s3033 + $0x60] sm:$0xe]
  %v3815 = vld [vmem:[%s3033 + $0x68] sm:$0xe]
  %v3816 = vld [vmem:[%s3033 + $0x70] sm:$0xe]
  %v3817 = vld [vmem:[%s3033 + $0x78] sm:$0xe]
  %v3818 = vld [vmem:[%s3033 + $0x80] sm:$0xe]
  %v3819 = vld [vmem:[%s3033 + $0x88] sm:$0xe]
  %v3852 = vrot.slane %v3804, 5
  %v3853 = vrot.slane %v3852, 4
  %v3854 = vrot.slane %v3276, 5
  %v3855 = vsel %vm1331, %v3853, %v3854
  %v3856 = vrot.slane %v3805, 5
  %v3857 = vrot.slane %v3856, 4
  %v3858 = vrot.slane %v3278, 5
  %v3859 = vsel %vm1331, %v3857, %v3858
  %v3860 = vrot.slane %v3806, 5
  %v3861 = vrot.slane %v3860, 4
  %v3862 = vrot.slane %v3280, 5
  %v3863 = vsel %vm1331, %v3861, %v3862
  %v3864 = vrot.slane %v3807, 5
  %v3865 = vrot.slane %v3864, 4
  %v3866 = vrot.slane %v3282, 5
  %v3867 = vsel %vm1331, %v3865, %v3866
  %v3868 = vrot.slane %v3808, 5
  %v3869 = vrot.slane %v3868, 4
  %v3870 = vrot.slane %v3284, 5
  %v3871 = vsel %vm1331, %v3869, %v3870
  %v3872 = vrot.slane %v3809, 5
  %v3873 = vrot.slane %v3872, 4
  %v3874 = vrot.slane %v3286, 5
  %v3875 = vsel %vm1331, %v3873, %v3874
  %v3876 = vrot.slane %v3810, 5
  %v3877 = vrot.slane %v3876, 4
  %v3878 = vrot.slane %v3288, 5
  %v3879 = vsel %vm1331, %v3877, %v3878
  %v3880 = vrot.slane %v3811, 5
  %v3881 = vrot.slane %v3880, 4
  %v3882 = vrot.slane %v3290, 5
  %v3883 = vsel %vm1331, %v3881, %v3882
  %v3884 = vrot.slane %v3812, 5
  %v3885 = vrot.slane %v3884, 4
  %v3886 = vrot.slane %v3292, 5
  %v3887 = vsel %vm1331, %v3885, %v3886
  %v3888 = vrot.slane %v3813, 5
  %v3889 = vrot.slane %v3888, 4
  %v3890 = vrot.slane %v3294, 5
  %v3891 = vsel %vm1331, %v3889, %v3890
  %v3892 = vrot.slane %v3814, 5
  %v3893 = vrot.slane %v3892, 4
  %v3894 = vrot.slane %v3296, 5
  %v3895 = vsel %vm1331, %v3893, %v3894
  %v3896 = vrot.slane %v3815, 5
  %v3897 = vrot.slane %v3896, 4
  %v3898 = vrot.slane %v3298, 5
  %v3899 = vsel %vm1331, %v3897, %v3898
  %v3900 = vrot.slane %v3816, 5
  %v3901 = vrot.slane %v3900, 4
  %v3902 = vrot.slane %v3300, 5
  %v3903 = vsel %vm1331, %v3901, %v3902
  %v3904 = vrot.slane %v3817, 5
  %v3905 = vrot.slane %v3904, 4
  %v3906 = vrot.slane %v3302, 5
  %v3907 = vsel %vm1331, %v3905, %v3906
  %v3908 = vrot.slane %v3818, 5
  %v3909 = vrot.slane %v3908, 4
  %v3910 = vrot.slane %v3304, 5
  %v3911 = vsel %vm1331, %v3909, %v3910
  %v3912 = vrot.slane %v3819, 5
  %v3913 = vrot.slane %v3912, 4
  %v3914 = vrot.slane %v3306, 5
  %v3915 = vsel %vm1331, %v3913, %v3914
  %v3916 = vld [vmem:[%s3 + $0x3c] sm:$0xf]
  %v3917 = vld [vmem:[%s3 + $0x7c] sm:$0xf]
  %v3918 = vld [vmem:[%s3 + $0xbc] sm:$0xf]
  %v3919 = vld [vmem:[%s3 + $0xfc] sm:$0xf]
  %v3920 = vld [vmem:[%s3 + $0x13c] sm:$0xf]
  %v3921 = vld [vmem:[%s3 + $0x17c] sm:$0xf]
  %v3922 = vld [vmem:[%s3 + $0x1bc] sm:$0xf]
  %v3923 = vld [vmem:[%s3 + $0x1fc] sm:$0xf]
  %v3924 = vld [vmem:[%s3 + $0x23c] sm:$0xf]
  %v3925 = vld [vmem:[%s3 + $0x27c] sm:$0xf]
  %v3926 = vld [vmem:[%s3 + $0x2bc] sm:$0xf]
  %v3927 = vld [vmem:[%s3 + $0x2fc] sm:$0xf]
  %v3928 = vld [vmem:[%s3 + $0x33c] sm:$0xf]
  %v3929 = vld [vmem:[%s3 + $0x37c] sm:$0xf]
  %v3930 = vld [vmem:[%s3 + $0x3bc] sm:$0xf]
  %v3931 = vld [vmem:[%s3 + $0x3fc] sm:$0xf]
  %v3932 = vunpack.c.l.b16 %v3855
  %v3933 = vunpack.c.l.b16 %v3859
  %v3934 = vunpack.c.l.b16 %v3863
  %v3935 = vunpack.c.l.b16 %v3867
  %v3936 = vunpack.c.l.b16 %v3871
  %v3937 = vunpack.c.l.b16 %v3875
  %v3938 = vunpack.c.l.b16 %v3879
  %v3939 = vunpack.c.l.b16 %v3883
  %v3940 = vunpack.c.l.b16 %v3887
  %v3941 = vunpack.c.l.b16 %v3891
  %v3942 = vunpack.c.l.b16 %v3895
  %v3943 = vunpack.c.l.b16 %v3899
  %v3944 = vunpack.c.l.b16 %v3903
  %v3945 = vunpack.c.l.b16 %v3907
  %v3946 = vunpack.c.l.b16 %v3911
  %v3947 = vunpack.c.l.b16 %v3915
  %v3948 = vpack.c.b16 %v3933, %v3932
  %v3949 = vpack.c.b16 %v3935, %v3934
  %v3950 = vpack.c.b16 %v3937, %v3936
  %v3951 = vpack.c.b16 %v3939, %v3938
  %v3952 = vpack.c.b16 %v3941, %v3940
  %v3953 = vpack.c.b16 %v3943, %v3942
  %v3954 = vpack.c.b16 %v3945, %v3944
  %v3955 = vpack.c.b16 %v3947, %v3946
  %v3980 = vunpack.c.l.b16 %v3916
  %v3981 = vunpack.c.l.b16 %v3917
  %v3982 = vunpack.c.l.b16 %v3918
  %v3983 = vunpack.c.l.b16 %v3919
  %v3984 = vunpack.c.l.b16 %v3920
  %v3985 = vunpack.c.l.b16 %v3921
  %v3986 = vunpack.c.l.b16 %v3922
  %v3987 = vunpack.c.l.b16 %v3923
  %v3988 = vunpack.c.l.b16 %v3924
  %v3989 = vunpack.c.l.b16 %v3925
  %v3990 = vunpack.c.l.b16 %v3926
  %v3991 = vunpack.c.l.b16 %v3927
  %v3992 = vunpack.c.l.b16 %v3928
  %v3993 = vunpack.c.l.b16 %v3929
  %v3994 = vunpack.c.l.b16 %v3930
  %v3995 = vunpack.c.l.b16 %v3931
  %v3996 = vpack.c.b16 %v3981, %v3980
  %v3997 = vpack.c.b16 %v3983, %v3982
  %v3998 = vpack.c.b16 %v3985, %v3984
  %v3999 = vpack.c.b16 %v3987, %v3986
  %v4000 = vpack.c.b16 %v3989, %v3988
  %v4001 = vpack.c.b16 %v3991, %v3990
  %v4002 = vpack.c.b16 %v3993, %v3992
  %v4003 = vpack.c.b16 %v3995, %v3994
  %4012 = vmatprep.subr.bf16.mxu0 0
  %4013 = vmatpush1.bf16.msra.mxu0 %v4003
  %4014 = vmatprep.subr.bf16.mxu0 0
  %4015 = vmatpush1.bf16.msra.mxu0 %v4002
  %4016 = vmatprep.subr.bf16.mxu0 0
  %4017 = vmatpush1.bf16.msra.mxu0 %v4001
  %4018 = vmatprep.subr.bf16.mxu0 0
  %4019 = vmatpush1.bf16.msra.mxu0 %v4000
  %4020 = vmatprep.subr.bf16.mxu0 0
  %4021 = vmatpush1.bf16.msra.mxu0 %v3999
  %4022 = vmatprep.subr.bf16.mxu0 0
  %4023 = vmatpush1.bf16.msra.mxu0 %v3998
  %4024 = vmatprep.subr.bf16.mxu0 0
  %4025 = vmatpush1.bf16.msra.mxu0 %v3997
  %4026 = vmatprep.subr.bf16.mxu0 0
  %4027 = vmatpush1.bf16.msra.mxu0 %v3996
  %4028 = vmatprep.subr.bf16.mxu0 0
  %4029 = vmatpush2.bf16.msra.mxu0 0
  %4030 = vmatprep.subr.bf16.mxu0 0
  %4031 = vmatpush2.bf16.msra.mxu0 0
  %4032 = vmatprep.subr.bf16.mxu0 0
  %4033 = vmatpush2.bf16.msra.mxu0 0
  %4034 = vmatprep.subr.bf16.mxu0 0
  %4035 = vmatpush2.bf16.msra.mxu0 0
  %4036 = vmatprep.subr.bf16.mxu0 0
  %4037 = vmatpush2.bf16.msra.mxu0 0
  %4038 = vmatprep.subr.bf16.mxu0 0
  %4039 = vmatpush2.bf16.msra.mxu0 0
  %4040 = vmatprep.subr.bf16.mxu0 0
  %4041 = vmatpush2.bf16.msra.mxu0 0
  %4042 = vmatprep.subr.bf16.mxu0 0
  %4043 = vmatpush2.bf16.msra.mxu0 0
  %4044 = vmatprep.mubr.bf16.mxu0 0
  %4045 = vmatmul.mubr.bf16.gmra.mxu0 %v3948
  %v4046 = vpop.f32.mrf.mxu0
  %v4047 = vadd.f32 0.0, %v4046
  %v4048 = vpop.f32.mrf.mxu0
  %v4049 = vpop.f32.mrf.mxu0
  %v4050 = vadd.f32 0.0, %v4049
  %v4051 = vpop.f32.mrf.mxu0
  %4052 = vmatprep.mubr.bf16.mxu0 0
  %4053 = vmatmul.mubr.bf16.gmra.mxu0 %v3949
  %v4054 = vpop.f32.mrf.mxu0
  %v4055 = vadd.f32 0.0, %v4054
  %v4056 = vpop.f32.mrf.mxu0
  %v4057 = vpop.f32.mrf.mxu0
  %v4058 = vadd.f32 0.0, %v4057
  %v4059 = vpop.f32.mrf.mxu0
  %4060 = vmatprep.mubr.bf16.mxu0 0
  %4061 = vmatmul.mubr.bf16.gmra.mxu0 %v3950
  %v4062 = vpop.f32.mrf.mxu0
  %v4063 = vadd.f32 0.0, %v4062
  %v4064 = vpop.f32.mrf.mxu0
  %v4065 = vpop.f32.mrf.mxu0
  %v4066 = vadd.f32 0.0, %v4065
  %v4067 = vpop.f32.mrf.mxu0
  %4068 = vmatprep.mubr.bf16.mxu0 0
  %4069 = vmatmul.mubr.bf16.gmra.mxu0 %v3951
  %v4070 = vpop.f32.mrf.mxu0
  %v4071 = vadd.f32 0.0, %v4070
  %v4072 = vpop.f32.mrf.mxu0
  %v4073 = vpop.f32.mrf.mxu0
  %v4074 = vadd.f32 0.0, %v4073
  %v4075 = vpop.f32.mrf.mxu0
  %4076 = vmatprep.mubr.bf16.mxu0 0
  %4077 = vmatmul.mubr.bf16.gmra.mxu0 %v3952
  %v4078 = vpop.f32.mrf.mxu0
  %v4079 = vadd.f32 0.0, %v4078
  %v4080 = vpop.f32.mrf.mxu0
  %v4081 = vpop.f32.mrf.mxu0
  %v4082 = vadd.f32 0.0, %v4081
  %v4083 = vpop.f32.mrf.mxu0
  %4084 = vmatprep.mubr.bf16.mxu0 0
  %4085 = vmatmul.mubr.bf16.gmra.mxu0 %v3953
  %v4086 = vpop.f32.mrf.mxu0
  %v4087 = vadd.f32 0.0, %v4086
  %v4088 = vpop.f32.mrf.mxu0
  %v4089 = vpop.f32.mrf.mxu0
  %v4090 = vadd.f32 0.0, %v4089
  %v4091 = vpop.f32.mrf.mxu0
  %4092 = vmatprep.mubr.bf16.mxu0 0
  %4093 = vmatmul.mubr.bf16.gmra.mxu0 %v3954
  %v4094 = vpop.f32.mrf.mxu0
  %v4095 = vadd.f32 0.0, %v4094
  %v4096 = vpop.f32.mrf.mxu0
  %v4097 = vpop.f32.mrf.mxu0
  %v4098 = vadd.f32 0.0, %v4097
  %v4099 = vpop.f32.mrf.mxu0
  %4100 = vmatprep.mubr.bf16.mxu0 0
  %4101 = vmatmul.mubr.bf16.gmra.mxu0 %v3955
  %v4102 = vpop.f32.mrf.mxu0
  %v4103 = vadd.f32 0.0, %v4102
  %v4104 = vpop.f32.mrf.mxu0
  %v4105 = vpop.f32.mrf.mxu0
  %v4106 = vadd.f32 0.0, %v4105
  %v4107 = vpop.f32.mrf.mxu0
  %4108 = vdwg.mxu0
  %v4109 = vadd.f32 %v3788, %v4047
  %v4110 = vadd.f32 %v3789, %v4050
  %v4111 = vadd.f32 %v3790, %v4055
  %v4112 = vadd.f32 %v3791, %v4058
  %v4113 = vadd.f32 %v3792, %v4063
  %v4114 = vadd.f32 %v3793, %v4066
  %v4115 = vadd.f32 %v3794, %v4071
  %v4116 = vadd.f32 %v3795, %v4074
  %v4117 = vadd.f32 %v3796, %v4079
  %v4118 = vadd.f32 %v3797, %v4082
  %v4119 = vadd.f32 %v3798, %v4087
  %v4120 = vadd.f32 %v3799, %v4090
  %v4121 = vadd.f32 %v3800, %v4095
  %v4122 = vadd.f32 %v3801, %v4098
  %v4123 = vadd.f32 %v3802, %v4103
  %v4124 = vadd.f32 %v3803, %v4106
  %v4125 = vld [vmem:[%s4] sm:$0x1]
  %v4127 = vlaneseq
  %v4128 = vshrl.u32 %v4127, 7
  %v4129 = vsub.s32 0, %v4128
  %v4130 = vrot.slane %v4125, %v4129
  %v4132 = vadd.f32 %v2600, %v4130
  %v4133 = vadd.f32 %v2601, %v4130
  %v4134 = vadd.f32 %v2602, %v4130
  %v4135 = vadd.f32 %v2603, %v4130
  %v4136 = vadd.f32 %v2604, %v4130
  %v4137 = vadd.f32 %v2605, %v4130
  %v4138 = vadd.f32 %v2606, %v4130
  %v4139 = vadd.f32 %v2607, %v4130
  %v4140 = vadd.f32 %v2608, %v4130
  %v4141 = vadd.f32 %v2609, %v4130
  %v4142 = vadd.f32 %v2610, %v4130
  %v4143 = vadd.f32 %v2611, %v4130
  %v4144 = vadd.f32 %v2612, %v4130
  %v4145 = vadd.f32 %v2613, %v4130
  %v4146 = vadd.f32 %v2614, %v4130
  %v4147 = vadd.f32 %v2615, %v4130
  %vm4148 = vcmask 23552
  %4149 = vst.msk [vmem:[%s5] sm:$0xff] %vm4148, %v4132
  %4150 = vst.msk [vmem:[%s5 + $0x10] sm:$0xff] %vm4148, %v4133
  %4151 = vst.msk [vmem:[%s5 + $0x20] sm:$0xff] %vm4148, %v4134
  %4152 = vst.msk [vmem:[%s5 + $0x30] sm:$0xff] %vm4148, %v4135
  %4153 = vst.msk [vmem:[%s5 + $0x40] sm:$0xff] %vm4148, %v4136
  %4154 = vst.msk [vmem:[%s5 + $0x50] sm:$0xff] %vm4148, %v4137
  %4155 = vst.msk [vmem:[%s5 + $0x60] sm:$0xff] %vm4148, %v4138
  %4156 = vst.msk [vmem:[%s5 + $0x70] sm:$0xff] %vm4148, %v4139
  %4157 = vst.msk [vmem:[%s5 + $0x80] sm:$0xff] %vm4148, %v4140
  %4158 = vst.msk [vmem:[%s5 + $0x90] sm:$0xff] %vm4148, %v4141
  %4159 = vst.msk [vmem:[%s5 + $0xa0] sm:$0xff] %vm4148, %v4142
  %4160 = vst.msk [vmem:[%s5 + $0xb0] sm:$0xff] %vm4148, %v4143
  %4161 = vst.msk [vmem:[%s5 + $0xc0] sm:$0xff] %vm4148, %v4144
  %4162 = vst.msk [vmem:[%s5 + $0xd0] sm:$0xff] %vm4148, %v4145
  %4163 = vst.msk [vmem:[%s5 + $0xe0] sm:$0xff] %vm4148, %v4146
  %4164 = vst.msk [vmem:[%s5 + $0xf0] sm:$0xff] %vm4148, %v4147
  %v4165 = vld [vmem:[%s4] sm:$0x1]
  %v4167 = vlaneseq
  %v4168 = vshrl.u32 %v4167, 7
  %v4169 = vsub.s32 0, %v4168
  %v4170 = vrot.slane %v4165, %v4169
  %v4172 = vadd.f32 %v3001, %v4170
  %v4173 = vadd.f32 %v3002, %v4170
  %v4174 = vadd.f32 %v3003, %v4170
  %v4175 = vadd.f32 %v3004, %v4170
  %v4176 = vadd.f32 %v3005, %v4170
  %v4177 = vadd.f32 %v3006, %v4170
  %v4178 = vadd.f32 %v3007, %v4170
  %v4179 = vadd.f32 %v3008, %v4170
  %v4180 = vadd.f32 %v3009, %v4170
  %v4181 = vadd.f32 %v3010, %v4170
  %v4182 = vadd.f32 %v3011, %v4170
  %v4183 = vadd.f32 %v3012, %v4170
  %v4184 = vadd.f32 %v3013, %v4170
  %v4185 = vadd.f32 %v3014, %v4170
  %v4186 = vadd.f32 %v3015, %v4170
  %v4187 = vadd.f32 %v3016, %v4170
  %4204 = vrot.lane.b32.xlu0 %v4172, 3
  %v4205 = vpop.permute.xlu0 %4204
  %4206 = vrot.lane.b32.xlu0 %v4173, 3
  %v4207 = vpop.permute.xlu0 %4206
  %4208 = vrot.lane.b32.xlu0 %v4174, 3
  %v4209 = vpop.permute.xlu0 %4208
  %4210 = vrot.lane.b32.xlu0 %v4175, 3
  %v4211 = vpop.permute.xlu0 %4210
  %4212 = vrot.lane.b32.xlu0 %v4176, 3
  %v4213 = vpop.permute.xlu0 %4212
  %4214 = vrot.lane.b32.xlu0 %v4177, 3
  %v4215 = vpop.permute.xlu0 %4214
  %4216 = vrot.lane.b32.xlu0 %v4178, 3
  %v4217 = vpop.permute.xlu0 %4216
  %4218 = vrot.lane.b32.xlu0 %v4179, 3
  %v4219 = vpop.permute.xlu0 %4218
  %4220 = vrot.lane.b32.xlu0 %v4180, 3
  %v4221 = vpop.permute.xlu0 %4220
  %4222 = vrot.lane.b32.xlu0 %v4181, 3
  %v4223 = vpop.permute.xlu0 %4222
  %4224 = vrot.lane.b32.xlu0 %v4182, 3
  %v4225 = vpop.permute.xlu0 %4224
  %4226 = vrot.lane.b32.xlu0 %v4183, 3
  %v4227 = vpop.permute.xlu0 %4226
  %4228 = vrot.lane.b32.xlu0 %v4184, 3
  %v4229 = vpop.permute.xlu0 %4228
  %4230 = vrot.lane.b32.xlu0 %v4185, 3
  %v4231 = vpop.permute.xlu0 %4230
  %4232 = vrot.lane.b32.xlu0 %v4186, 3
  %v4233 = vpop.permute.xlu0 %4232
  %4234 = vrot.lane.b32.xlu0 %v4187, 3
  %v4235 = vpop.permute.xlu0 %4234
  %vm4252 = vcmask 48152
  %4253 = vst.msk [vmem:[%s5] sm:$0xff] %vm4252, %v4205
  %4254 = vst.msk [vmem:[%s5 + $0x10] sm:$0xff] %vm4252, %v4207
  %4255 = vst.msk [vmem:[%s5 + $0x20] sm:$0xff] %vm4252, %v4209
  %4256 = vst.msk [vmem:[%s5 + $0x30] sm:$0xff] %vm4252, %v4211
  %4257 = vst.msk [vmem:[%s5 + $0x40] sm:$0xff] %vm4252, %v4213
  %4258 = vst.msk [vmem:[%s5 + $0x50] sm:$0xff] %vm4252, %v4215
  %4259 = vst.msk [vmem:[%s5 + $0x60] sm:$0xff] %vm4252, %v4217
  %4260 = vst.msk [vmem:[%s5 + $0x70] sm:$0xff] %vm4252, %v4219
  %4261 = vst.msk [vmem:[%s5 + $0x80] sm:$0xff] %vm4252, %v4221
  %4262 = vst.msk [vmem:[%s5 + $0x90] sm:$0xff] %vm4252, %v4223
  %4263 = vst.msk [vmem:[%s5 + $0xa0] sm:$0xff] %vm4252, %v4225
  %4264 = vst.msk [vmem:[%s5 + $0xb0] sm:$0xff] %vm4252, %v4227
  %4265 = vst.msk [vmem:[%s5 + $0xc0] sm:$0xff] %vm4252, %v4229
  %4266 = vst.msk [vmem:[%s5 + $0xd0] sm:$0xff] %vm4252, %v4231
  %4267 = vst.msk [vmem:[%s5 + $0xe0] sm:$0xff] %vm4252, %v4233
  %4268 = vst.msk [vmem:[%s5 + $0xf0] sm:$0xff] %vm4252, %v4235
  %v4269 = vld [vmem:[%s4] sm:$0x1]
  %v4271 = vlaneseq
  %v4272 = vshrl.u32 %v4271, 7
  %v4273 = vsub.s32 0, %v4272
  %v4274 = vrot.slane %v4269, %v4273
  %v4276 = vadd.f32 %v3772, %v4274
  %v4277 = vadd.f32 %v3773, %v4274
  %v4278 = vadd.f32 %v3774, %v4274
  %v4279 = vadd.f32 %v3775, %v4274
  %v4280 = vadd.f32 %v3776, %v4274
  %v4281 = vadd.f32 %v3777, %v4274
  %v4282 = vadd.f32 %v3778, %v4274
  %v4283 = vadd.f32 %v3779, %v4274
  %v4284 = vadd.f32 %v3780, %v4274
  %v4285 = vadd.f32 %v3781, %v4274
  %v4286 = vadd.f32 %v3782, %v4274
  %v4287 = vadd.f32 %v3783, %v4274
  %v4288 = vadd.f32 %v3784, %v4274
  %v4289 = vadd.f32 %v3785, %v4274
  %v4290 = vadd.f32 %v3786, %v4274
  %v4291 = vadd.f32 %v3787, %v4274
  %s4292 = scalar_lea.vmem %s5, 8
  %4293 = vst.msk [vmem:[%s4292] sm:$0xff] %vm4148, %v4276
  %4294 = vst.msk [vmem:[%s4292 + $0x10] sm:$0xff] %vm4148, %v4277
  %4295 = vst.msk [vmem:[%s4292 + $0x20] sm:$0xff] %vm4148, %v4278
  %4296 = vst.msk [vmem:[%s4292 + $0x30] sm:$0xff] %vm4148, %v4279
  %4297 = vst.msk [vmem:[%s4292 + $0x40] sm:$0xff] %vm4148, %v4280
  %4298 = vst.msk [vmem:[%s4292 + $0x50] sm:$0xff] %vm4148, %v4281
  %4299 = vst.msk [vmem:[%s4292 + $0x60] sm:$0xff] %vm4148, %v4282
  %4300 = vst.msk [vmem:[%s4292 + $0x70] sm:$0xff] %vm4148, %v4283
  %4301 = vst.msk [vmem:[%s4292 + $0x80] sm:$0xff] %vm4148, %v4284
  %4302 = vst.msk [vmem:[%s4292 + $0x90] sm:$0xff] %vm4148, %v4285
  %4303 = vst.msk [vmem:[%s4292 + $0xa0] sm:$0xff] %vm4148, %v4286
  %4304 = vst.msk [vmem:[%s4292 + $0xb0] sm:$0xff] %vm4148, %v4287
  %4305 = vst.msk [vmem:[%s4292 + $0xc0] sm:$0xff] %vm4148, %v4288
  %4306 = vst.msk [vmem:[%s4292 + $0xd0] sm:$0xff] %vm4148, %v4289
  %4307 = vst.msk [vmem:[%s4292 + $0xe0] sm:$0xff] %vm4148, %v4290
  %4308 = vst.msk [vmem:[%s4292 + $0xf0] sm:$0xff] %vm4148, %v4291
  %v4309 = vld [vmem:[%s4] sm:$0x1]
  %v4311 = vlaneseq
  %v4312 = vshrl.u32 %v4311, 7
  %v4313 = vsub.s32 0, %v4312
  %v4314 = vrot.slane %v4309, %v4313
  %v4316 = vadd.f32 %v4109, %v4314
  %v4317 = vadd.f32 %v4110, %v4314
  %v4318 = vadd.f32 %v4111, %v4314
  %v4319 = vadd.f32 %v4112, %v4314
  %v4320 = vadd.f32 %v4113, %v4314
  %v4321 = vadd.f32 %v4114, %v4314
  %v4322 = vadd.f32 %v4115, %v4314
  %v4323 = vadd.f32 %v4116, %v4314
  %v4324 = vadd.f32 %v4117, %v4314
  %v4325 = vadd.f32 %v4118, %v4314
  %v4326 = vadd.f32 %v4119, %v4314
  %v4327 = vadd.f32 %v4120, %v4314
  %v4328 = vadd.f32 %v4121, %v4314
  %v4329 = vadd.f32 %v4122, %v4314
  %v4330 = vadd.f32 %v4123, %v4314
  %v4331 = vadd.f32 %v4124, %v4314
  %4348 = vrot.lane.b32.xlu0 %v4316, 3
  %v4349 = vpop.permute.xlu0 %4348
  %4350 = vrot.lane.b32.xlu0 %v4317, 3
  %v4351 = vpop.permute.xlu0 %4350
  %4352 = vrot.lane.b32.xlu0 %v4318, 3
  %v4353 = vpop.permute.xlu0 %4352
  %4354 = vrot.lane.b32.xlu0 %v4319, 3
  %v4355 = vpop.permute.xlu0 %4354
  %4356 = vrot.lane.b32.xlu0 %v4320, 3
  %v4357 = vpop.permute.xlu0 %4356
  %4358 = vrot.lane.b32.xlu0 %v4321, 3
  %v4359 = vpop.permute.xlu0 %4358
  %4360 = vrot.lane.b32.xlu0 %v4322, 3
  %v4361 = vpop.permute.xlu0 %4360
  %4362 = vrot.lane.b32.xlu0 %v4323, 3
  %v4363 = vpop.permute.xlu0 %4362
  %4364 = vrot.lane.b32.xlu0 %v4324, 3
  %v4365 = vpop.permute.xlu0 %4364
  %4366 = vrot.lane.b32.xlu0 %v4325, 3
  %v4367 = vpop.permute.xlu0 %4366
  %4368 = vrot.lane.b32.xlu0 %v4326, 3
  %v4369 = vpop.permute.xlu0 %4368
  %4370 = vrot.lane.b32.xlu0 %v4327, 3
  %v4371 = vpop.permute.xlu0 %4370
  %4372 = vrot.lane.b32.xlu0 %v4328, 3
  %v4373 = vpop.permute.xlu0 %4372
  %4374 = vrot.lane.b32.xlu0 %v4329, 3
  %v4375 = vpop.permute.xlu0 %4374
  %4376 = vrot.lane.b32.xlu0 %v4330, 3
  %v4377 = vpop.permute.xlu0 %4376
  %4378 = vrot.lane.b32.xlu0 %v4331, 3
  %v4379 = vpop.permute.xlu0 %4378
  %4396 = vst.msk [vmem:[%s4292] sm:$0xff] %vm4252, %v4349
  %4397 = vst.msk [vmem:[%s4292 + $0x10] sm:$0xff] %vm4252, %v4351
  %4398 = vst.msk [vmem:[%s4292 + $0x20] sm:$0xff] %vm4252, %v4353
  %4399 = vst.msk [vmem:[%s4292 + $0x30] sm:$0xff] %vm4252, %v4355
  %4400 = vst.msk [vmem:[%s4292 + $0x40] sm:$0xff] %vm4252, %v4357
  %4401 = vst.msk [vmem:[%s4292 + $0x50] sm:$0xff] %vm4252, %v4359
  %4402 = vst.msk [vmem:[%s4292 + $0x60] sm:$0xff] %vm4252, %v4361
  %4403 = vst.msk [vmem:[%s4292 + $0x70] sm:$0xff] %vm4252, %v4363
  %4404 = vst.msk [vmem:[%s4292 + $0x80] sm:$0xff] %vm4252, %v4365
  %4405 = vst.msk [vmem:[%s4292 + $0x90] sm:$0xff] %vm4252, %v4367
  %4406 = vst.msk [vmem:[%s4292 + $0xa0] sm:$0xff] %vm4252, %v4369
  %4407 = vst.msk [vmem:[%s4292 + $0xb0] sm:$0xff] %vm4252, %v4371
  %4408 = vst.msk [vmem:[%s4292 + $0xc0] sm:$0xff] %vm4252, %v4373
  %4409 = vst.msk [vmem:[%s4292 + $0xd0] sm:$0xff] %vm4252, %v4375
  %4410 = vst.msk [vmem:[%s4292 + $0xe0] sm:$0xff] %vm4252, %v4377
  %4411 = vst.msk [vmem:[%s4292 + $0xf0] sm:$0xff] %vm4252, %v4379
  // Predicated region
  $region22: #{generator_forward.5} parent=0 // pred_check
    _
  $region23: #{generator_forward.5} parent=0 // pred_check_branch
    %4413 = sbr.rel (0) target = $region25
  $region24: #{generator_forward.5} parent=0 // pred_region
    _
  $region25: #{generator_forward.5} parent=0 // pred_fallthru
    _
  // Predicated region
  $region26: #{generator_forward.5} parent=0 // pred_check
    _
  $region27: #{generator_forward.5} parent=0 // pred_check_branch
    %4415 = sbr.rel (0) target = $region29
  $region28: #{generator_forward.5} parent=0 // pred_region
    _
  $region29: #{generator_forward.5} parent=0 // pred_fallthru
    _

</llo_original>
